<compile_context>
chip_gen: v7x
topology: tpu7x:2x2x1
jax: 0.10.0
libtpu: 0.0.40
codegen_flags: <defaults>
</compile_context>

<pallas_src>
import jax
import jax.numpy as jnp
from jax import lax
from jax.experimental import pallas as pl
from jax.experimental.pallas import tpu as pltpu


# ---------------------------------------------------------------------------
# Kernel
# ---------------------------------------------------------------------------
def make_kernel(spatial_shapes, num_heads, num_points):
    L = len(spatial_shapes)
    P = num_points
    two_lp = 2 * L * P
    lvl_start = []
    _s = 0
    for (Hl, Wl) in spatial_shapes:
        lvl_start.append(_s)
        _s += Hl * Wl

    def bilinear_mask(rx, ry, ox, oy, ih, iw, Hl, Wl, scale=None):
        """Bilinear gather weights [rows, Hl*Wl], built separably.

        Matches F.grid_sample(mode='bilinear', padding_mode='zeros',
        align_corners=False) on a row-major (y*W + x) flattened map.  The
        pixel-coordinate op sequence mirrors the PyTorch reference exactly so
        floor() rounds the same way at pixel boundaries.  `scale` ([rows, 1],
        optional) is folded into the y-corner weights, so attention weighting
        costs nothing extra.
        """
        loc_x = rx + ox / float(Wl)
        loc_y = ry + oy / float(Hl)
        gx = 2.0 * loc_x - 1.0
        gy = 2.0 * loc_y - 1.0
        px = ((gx + 1.0) * float(Wl) - 1.0) / 2.0
        py = ((gy + 1.0) * float(Hl) - 1.0) / 2.0
        x0 = jnp.floor(px); x1 = x0 + 1.0
        y0 = jnp.floor(py); y1 = y0 + 1.0
        wx1 = px - x0; wx0 = 1.0 - wx1
        wy1 = py - y0; wy0 = 1.0 - wy1
        if scale is not None:
            wy0 = wy0 * scale
            wy1 = wy1 * scale
        # Iotas only cover 0..W-1 / 0..H-1, so out-of-range corners get zero
        # weight automatically == grid_sample zero padding.
        mx = jnp.where(iw == x0, wx0, 0.0) + jnp.where(iw == x1, wx1, 0.0)  # [r,Wl]
        my = jnp.where(ih == y0, wy0, 0.0) + jnp.where(ih == y1, wy1, 0.0)  # [r,Hl]
        # Separable outer product my (x) mx -> [r, Hl*Wl]; assembled via lane
        # concat (proven lowering) instead of a 3-D reshape.
        return jnp.concatenate([my[:, y:y + 1] * mx for y in range(Hl)], axis=1)

    def kernel(q_ref, k_ref, v_ref, rp_ref,
               wq_ref, bq_ref, wk_ref, bk_ref, wv_ref, bv_ref,
               woff_ref, boff_ref, wout_ref, bout_ref, out_ref):
        query = q_ref[0]                     # [Q, E] raw (also the residual)
        key = k_ref[0]                       # [N, E] raw
        value = v_ref[0]                     # [N, E] raw
        refp = rp_ref[0]                     # [Q, 2L]  (x, y per level)
        Qn, E = query.shape
        D = E // num_heads

        w_k = wk_ref[...]                    # [D, D] shared per-head K weight
        b_k = bk_ref[...]                    # [1, D]

        # Head-fused projections (weights packed block-diagonally in the
        # wrapper): ONE MXU matmul each for Q and the sampling offsets.
        # K/V projections are deferred to after sampling (exact: sampling and
        # the softmax-weighted sum are linear), so no full-[N,E]x[E,E] matmul
        # and no projected feature-map copy ever lives in VMEM.
        q_proj = jnp.dot(query, wq_ref[...],
                         preferred_element_type=jnp.float32) + bq_ref[...]
        off_all = jnp.dot(query, woff_ref[...],
                          preferred_element_type=jnp.float32) + boff_ref[...]

        # Per-level coordinate iotas built in-kernel (no [2, N] coords DMA).
        iotas = []
        for (Hl, Wl) in spatial_shapes:
            ih = lax.broadcasted_iota(jnp.int32, (1, Hl), 1).astype(jnp.float32)
            iw = lax.broadcasted_iota(jnp.int32, (1, Wl), 1).astype(jnp.float32)
            iotas.append((ih, iw))

        # ---- Phase A: per head, sampled keys (query-0 grid only, as in the
        #      torch reference) -> logits -> EXACT softmax --------------------
        attn_heads = []
        for h in range(num_heads):
            c0 = h * D
            q_h = q_proj[:, c0:c0 + D]                       # [Q, D]
            off_h = off_all[:, h * two_lp:(h + 1) * two_lp]  # [Q, 2LP]
            k_lvl = []
            for l, (Hl, Wl) in enumerate(spatial_shapes):
                HW = Hl * Wl
                st = lvl_start[l]
                ih, iw = iotas[l]
                rx0 = refp[0:1, 2 * l:2 * l + 1]
                ry0 = refp[0:1, 2 * l + 1:2 * l + 2]
                pt_masks = []
                for p in range(P):
                    c = 2 * (l * P + p)
                    pt_masks.append(bilinear_mask(
                        rx0, ry0,
                        off_h[0:1, c:c + 1], off_h[0:1, c + 1:c + 2],
                        ih, iw, Hl, Wl))
                k_onehot = jnp.concatenate(pt_masks, axis=0)     # [P, HW]
                # gather-as-matmul against the RAW key head slice
                k_lvl.append(jnp.dot(k_onehot, key[st:st + HW, c0:c0 + D],
                                     preferred_element_type=jnp.float32))
            k_raw = jnp.concatenate(k_lvl, axis=0)               # [LP, D]
            k_proj = jnp.dot(k_raw, w_k,
                             preferred_element_type=jnp.float32) + b_k
            logits = lax.dot_general(q_h, k_proj, (((1,), (1,)), ((), ())),
                                     preferred_element_type=jnp.float32)  # [Q,LP]
            m_max = jnp.max(logits, axis=-1, keepdims=True)
            e = jnp.exp(logits - m_max)
            # Exact divide (denominator is only [Q,1]); keeps the softmax-sum
            # identity used for the deferred V bias tight.
            attn_heads.append(e / jnp.sum(e, axis=-1, keepdims=True))

        # ---- Phase B: fold attention into the bilinear corner weights, stack
        #      ALL heads along M, and do ONE [H*Q, HW] x [HW, E] matmul per
        #      level against the RAW value slab.  Each head's output is the
        #      diagonal D-column block of its row block.  No per-point mask
        #      list is ever materialized.
        head_acc = [None] * num_heads
        for l, (Hl, Wl) in enumerate(spatial_shapes):
            HW = Hl * Wl
            st = lvl_start[l]
            ih, iw = iotas[l]
            rx = refp[:, 2 * l:2 * l + 1]                       # [Q, 1]
            ry = refp[:, 2 * l + 1:2 * l + 2]
            w_heads = []
            for h in range(num_heads):
                off_h = off_all[:, h * two_lp:(h + 1) * two_lp]
                attn = attn_heads[h]                            # [Q, LP]
                w_lvl = None
                for p in range(P):
                    s = l * P + p
                    c = 2 * s
                    m = bilinear_mask(
                        rx, ry, off_h[:, c:c + 1], off_h[:, c + 1:c + 2],
                        ih, iw, Hl, Wl, scale=attn[:, s:s + 1])
                    w_lvl = m if w_lvl is None else w_lvl + m
                w_heads.append(w_lvl)                           # [Q, HW]
            big = jnp.concatenate(w_heads, axis=0)              # [H*Q, HW]
            res = jnp.dot(big, value[st:st + HW, :],
                          preferred_element_type=jnp.float32)   # [H*Q, E]
            for h in range(num_heads):
                blk = res[h * Qn:(h + 1) * Qn, h * D:(h + 1) * D]
                head_acc[h] = blk if head_acc[h] is None else head_acc[h] + blk

        # Deferred V projection: project-then-weighted-sum equals weighted-
        # sum-then-project (linear), and the softmax weights sum to 1, so the
        # per-sample bias b_v becomes a single head-tiled bias add here.
        feat_raw = jnp.concatenate(head_acc, axis=1)            # [Q, E]
        feat = jnp.dot(feat_raw, wv_ref[...],
                       preferred_element_type=jnp.float32) + bv_ref[...]
        # TODO(synk): NN_dropout has no in-kernel RNG; it is identity in the
        # deterministic / eval-mode forward implemented here.
        out = (jnp.dot(feat, wout_ref[...],
                       preferred_element_type=jnp.float32) + bout_ref[...]
               + query)
        out_ref[0] = out

    return kernel


# ---------------------------------------------------------------------------
# One-time parameter packing (block-diag weights, tiled biases)
# ---------------------------------------------------------------------------
def prepare_params(params, num_heads):
    H = num_heads

    def blk_diag(w):
        return jnp.kron(jnp.eye(H, dtype=w.dtype), w)

    return dict(
        wq=blk_diag(params["w_q"]), bq=jnp.tile(params["b_q"], (1, H)),
        wk=params["w_k"], bk=params["b_k"],                 # applied post-sampling
        wv=blk_diag(params["w_v"]), bv=jnp.tile(params["b_v"], (1, H)),
        woff=blk_diag(params["w_off"]), boff=jnp.tile(params["b_off"], (1, H)),
        wout=params["w_out"], bout=params["b_out"],
    )


# ---------------------------------------------------------------------------
# Wrapper calling the Pallas kernel
# ---------------------------------------------------------------------------
def custom_attention_forward(prepared, query, key, value, reference_points,
                             spatial_shapes, num_heads, num_points):
    bs, Q, E = query.shape
    N = key.shape[1]
    L = len(spatial_shapes)
    P = num_points
    H = num_heads
    D = E // H

    rp2 = reference_points.reshape(bs, Q, L * 2).astype(jnp.float32)
    kernel = make_kernel(tuple(spatial_shapes), H, P)

    def batched(shape):
        rest = (0,) * (len(shape) - 1)
        return pl.BlockSpec((1,) + tuple(shape[1:]),
                            lambda b, rest=rest: (b,) + rest)

    def full(shape):
        zeros = (0,) * len(shape)
        return pl.BlockSpec(tuple(shape), lambda b, zeros=zeros: zeros)

    return pl.pallas_call(
        kernel,
        out_shape=jax.ShapeDtypeStruct((bs, Q, E), jnp.float32),
        grid=(bs,),
        in_specs=[
            batched((bs, Q, E)),                        # query
            batched((bs, N, E)),                        # key (raw)
            batched((bs, N, E)),                        # value (raw)
            batched((bs, Q, 2 * L)),                    # reference points
            full((E, E)), full((1, E)),                 # Q proj (head-fused)
            full((D, D)), full((1, D)),                 # K proj (post-sampling)
            full((E, E)), full((1, E)),                 # V proj (deferred, fused)
            full((E, H * 2 * L * P)), full((1, H * 2 * L * P)),  # offsets
            full((E, E)), full((1, E)),                 # output proj
        ],
        out_specs=batched((bs, Q, E)),
        compiler_params=pltpu.CompilerParams(dimension_semantics=("parallel",)),
    )(query, key, value, rp2,
      prepared["wq"], prepared["bq"], prepared["wk"], prepared["bk"],
      prepared["wv"], prepared["bv"], prepared["woff"], prepared["boff"],
      prepared["wout"], prepared["bout"])


# ---------------------------------------------------------------------------
# Pure-JAX reference (mirrors the PyTorch forward literally) for validation
# ---------------------------------------------------------------------------
def _grid_sample_ref(img, grid):
    # img: [N, C, H, W]; grid: [N, Hg, Wg, 2] with x = grid[...,0], y = grid[...,1]
    N, C, H, W = img.shape
    gx = grid[..., 0]
    gy = grid[..., 1]
    px = ((gx + 1.0) * W - 1.0) / 2.0
    py = ((gy + 1.0) * H - 1.0) / 2.0
    x0f = jnp.floor(px); y0f = jnp.floor(py)
    x0 = x0f.astype(jnp.int32); y0 = y0f.astype(jnp.int32)
    x1 = x0 + 1; y1 = y0 + 1
    wx1 = px - x0f; wx0 = 1.0 - wx1
    wy1 = py - y0f; wy0 = 1.0 - wy1
    flat = img.reshape(N, C, H * W)

    def gather(xi, yi):
        valid = (xi >= 0) & (xi < W) & (yi >= 0) & (yi < H)
        idx = jnp.clip(yi, 0, H - 1) * W + jnp.clip(xi, 0, W - 1)
        g = jnp.take_along_axis(flat, idx.reshape(N, 1, -1), axis=2)
        g = g.reshape(N, C, *xi.shape[1:])
        return jnp.where(valid[:, None], g, 0.0)

    return (gather(x0, y0) * (wy0 * wx0)[:, None]
            + gather(x1, y0) * (wy0 * wx1)[:, None]
            + gather(x0, y1) * (wy1 * wx0)[:, None]
            + gather(x1, y1) * (wy1 * wx1)[:, None])


def reference_forward(params, query, key, value, reference_points,
                      spatial_shapes, num_heads, num_points):
    bs, Q, E = query.shape
    Hh = num_heads
    D = E // Hh
    L = len(spatial_shapes)
    P = num_points
    residual = query
    q4 = query.reshape(bs, Q, Hh, D)
    k4 = key.reshape(bs, -1, Hh, D)
    v4 = value.reshape(bs, -1, Hh, D)

    off = q4 @ params["w_off"] + params["b_off"]
    off = off.reshape(bs, Q, Hh, L, P, 2)
    norm = jnp.array([[w, h] for (h, w) in spatial_shapes], jnp.float32)
    loc = (reference_points[:, :, None, :, None, :]
           + off / norm[None, None, None, :, None, :])
    grids = 2.0 * loc - 1.0

    key_samp, val_samp = [], []
    start = 0
    for l, (Hl, Wl) in enumerate(spatial_shapes):
        HW = Hl * Wl
        k_img = k4[:, start:start + HW].transpose(0, 2, 3, 1).reshape(bs * Hh, D, Hl, Wl)
        v_img = v4[:, start:start + HW].transpose(0, 2, 3, 1).reshape(bs * Hh, D, Hl, Wl)
        g_k = grids[:, :1, :, l].transpose(0, 2, 1, 3, 4).reshape(bs * Hh, 1, P, 2)
        g_v = grids[:, :, :, l].transpose(0, 2, 1, 3, 4).reshape(bs * Hh, Q, P, 2)
        key_samp.append(_grid_sample_ref(k_img, g_k))
        val_samp.append(_grid_sample_ref(v_img, g_v))
        start += HW

    key_sampled = jnp.stack(key_samp, axis=-2).reshape(bs * Hh, D, L * P)
    key_sampled = key_sampled.reshape(bs, Hh, D, L * P).transpose(0, 3, 1, 2)
    value_sampled = jnp.stack(val_samp, axis=-2).reshape(bs * Hh, D, Q, L * P)

    q = q4 @ params["w_q"] + params["b_q"]
    k = key_sampled @ params["w_k"] + params["b_k"]
    v = (value_sampled.transpose(0, 2, 3, 1) @ params["w_v"]
         + params["b_v"]).transpose(0, 3, 1, 2)

    attn = jnp.einsum("bqhd,bkhd->bqhk", q, k)
    attn = jax.nn.softmax(attn, axis=-1)
    attn = attn.transpose(0, 2, 1, 3).reshape(bs * Hh, 1, Q, L * P)
    attention = (v * attn).sum(-1).reshape(bs, Hh * D, Q).transpose(0, 2, 1)
    return attention @ params["w_out"] + params["b_out"] + residual


# ---------------------------------------------------------------------------
if __name__ == "__main__":
    BS, NUM_QUERY = 2, 8
    EMBED_DIMS, NUM_HEADS = 32, 4
    NUM_LEVELS, NUM_POINTS = 1, 4
    SPATIAL_SHAPES = ((4, 4),)                 # (H, W) per level; sum(H*W)=num_value
    HEAD_DIMS = EMBED_DIMS // NUM_HEADS
    NUM_VALUE = sum(h * w for h, w in SPATIAL_SHAPES)

    root = jax.random.PRNGKey(0)
    keys = jax.random.split(root, 10)

    def lin(k, fin, fout):
        kw, kb = jax.random.split(k)
        w = jax.random.normal(kw, (fin, fout), jnp.float32) / jnp.sqrt(float(fin))
        b = jax.random.normal(kb, (1, fout), jnp.float32) * 0.02
        return w, b

    w_q, b_q = lin(keys[0], HEAD_DIMS, HEAD_DIMS)
    w_k, b_k = lin(keys[1], HEAD_DIMS, HEAD_DIMS)
    w_v, b_v = lin(keys[2], HEAD_DIMS, HEAD_DIMS)
    w_off, b_off = lin(keys[3], HEAD_DIMS, NUM_LEVELS * NUM_POINTS * 2)
    w_out, b_out = lin(keys[4], EMBED_DIMS, EMBED_DIMS)
    params = dict(w_q=w_q, b_q=b_q, w_k=w_k, b_k=b_k, w_v=w_v, b_v=b_v,
                  w_off=w_off, b_off=b_off, w_out=w_out, b_out=b_out)

    query = jax.random.normal(keys[5], (BS, NUM_QUERY, EMBED_DIMS), jnp.float32)
    key_in = jax.random.normal(keys[6], (BS, NUM_VALUE, EMBED_DIMS), jnp.float32)
    value_in = jax.random.normal(keys[7], (BS, NUM_VALUE, EMBED_DIMS), jnp.float32)
    reference_points = jax.random.uniform(
        keys[8], (BS, NUM_QUERY, NUM_LEVELS, 2), jnp.float32)

    prepared = prepare_params(params, NUM_HEADS)   # one-time weight packing
    out = custom_attention_forward(prepared, query, key_in, value_in,
                                   reference_points, SPATIAL_SHAPES,
                                   NUM_HEADS, NUM_POINTS)
    out = jax.block_until_ready(out)

    ref = reference_forward(params, query, key_in, value_in, reference_points,
                            SPATIAL_SHAPES, NUM_HEADS, NUM_POINTS)
    ref = jax.block_until_ready(ref)

    assert out.shape == (BS, NUM_QUERY, EMBED_DIMS)
    # Exact softmax divide + reference-matching pixel arithmetic -> tight match.
    max_err = float(jnp.max(jnp.abs(out - ref)))
    assert max_err < 2e-3, f"kernel/reference mismatch: {max_err}"
    print("KERNEL_OK")
</pallas_src>

<mosaic_0001>
module attributes {stable_mosaic.version = 11 : i64} {
  func.func @kernel(%arg0: i32, %arg1: memref<1x8x32xf32, #tpu.memory_space<vmem>>, %arg2: memref<1x16x32xf32, #tpu.memory_space<vmem>>, %arg3: memref<1x16x32xf32, #tpu.memory_space<vmem>>, %arg4: memref<1x8x2xf32, #tpu.memory_space<vmem>>, %arg5: memref<32x32xf32, #tpu.memory_space<vmem>>, %arg6: memref<1x32xf32, #tpu.memory_space<vmem>>, %arg7: memref<8x8xf32, #tpu.memory_space<vmem>>, %arg8: memref<1x8xf32, #tpu.memory_space<vmem>>, %arg9: memref<32x32xf32, #tpu.memory_space<vmem>>, %arg10: memref<1x32xf32, #tpu.memory_space<vmem>>, %arg11: memref<32x32xf32, #tpu.memory_space<vmem>>, %arg12: memref<1x32xf32, #tpu.memory_space<vmem>>, %arg13: memref<32x32xf32, #tpu.memory_space<vmem>>, %arg14: memref<1x32xf32, #tpu.memory_space<vmem>>, %arg15: memref<1x8x32xf32, #tpu.memory_space<vmem>>) attributes {dimension_semantics = [#tpu.dimension_semantics<parallel>], iteration_bounds = array<i64: 2>, scalar_prefetch = 0 : i64, scratch_operands = 0 : i64, tpu.core_type = #tpu.core_type<tc>, window_params = [{transform_indices = @transform_0, window_bounds = array<i64: 1, 8, 32>}, {transform_indices = @transform_1, window_bounds = array<i64: 1, 16, 32>}, {transform_indices = @transform_2, window_bounds = array<i64: 1, 16, 32>}, {transform_indices = @transform_3, window_bounds = array<i64: 1, 8, 2>}, {pipeline_mode = #tpu.pipeline_mode<synchronous>, transform_indices = @transform_4, window_bounds = array<i64: 32, 32>}, {pipeline_mode = #tpu.pipeline_mode<synchronous>, transform_indices = @transform_5, window_bounds = array<i64: 1, 32>}, {pipeline_mode = #tpu.pipeline_mode<synchronous>, transform_indices = @transform_6, window_bounds = array<i64: 8, 8>}, {pipeline_mode = #tpu.pipeline_mode<synchronous>, transform_indices = @transform_7, window_bounds = array<i64: 1, 8>}, {pipeline_mode = #tpu.pipeline_mode<synchronous>, transform_indices = @transform_8, window_bounds = array<i64: 32, 32>}, {pipeline_mode = #tpu.pipeline_mode<synchronous>, transform_indices = @transform_9, window_bounds = array<i64: 1, 32>}, {pipeline_mode = #tpu.pipeline_mode<synchronous>, transform_indices = @transform_10, window_bounds = array<i64: 32, 32>}, {pipeline_mode = #tpu.pipeline_mode<synchronous>, transform_indices = @transform_11, window_bounds = array<i64: 1, 32>}, {pipeline_mode = #tpu.pipeline_mode<synchronous>, transform_indices = @transform_12, window_bounds = array<i64: 32, 32>}, {pipeline_mode = #tpu.pipeline_mode<synchronous>, transform_indices = @transform_13, window_bounds = array<i64: 1, 32>}, {transform_indices = @transform_14, window_bounds = array<i64: 1, 8, 32>}]} {
    %c0 = arith.constant 0 : index
    %c0_0 = arith.constant 0 : index
    %c0_1 = arith.constant 0 : index
    %0 = vector.load %arg1[%c0, %c0_0, %c0_1] : memref<1x8x32xf32, #tpu.memory_space<vmem>>, vector<1x8x32xf32>
    %1 = vector.shape_cast %0 : vector<1x8x32xf32> to vector<8x32xf32>
    %c0_2 = arith.constant 0 : index
    %c0_3 = arith.constant 0 : index
    %c0_4 = arith.constant 0 : index
    %2 = vector.load %arg2[%c0_2, %c0_3, %c0_4] : memref<1x16x32xf32, #tpu.memory_space<vmem>>, vector<1x16x32xf32>
    %3 = vector.shape_cast %2 : vector<1x16x32xf32> to vector<16x32xf32>
    %c0_5 = arith.constant 0 : index
    %c0_6 = arith.constant 0 : index
    %c0_7 = arith.constant 0 : index
    %4 = vector.load %arg3[%c0_5, %c0_6, %c0_7] : memref<1x16x32xf32, #tpu.memory_space<vmem>>, vector<1x16x32xf32>
    %5 = vector.shape_cast %4 : vector<1x16x32xf32> to vector<16x32xf32>
    %c0_8 = arith.constant 0 : index
    %c0_9 = arith.constant 0 : index
    %c0_10 = arith.constant 0 : index
    %6 = vector.load %arg4[%c0_8, %c0_9, %c0_10] : memref<1x8x2xf32, #tpu.memory_space<vmem>>, vector<1x8x2xf32>
    %7 = vector.shape_cast %6 : vector<1x8x2xf32> to vector<8x2xf32>
    %c0_11 = arith.constant 0 : index
    %c0_12 = arith.constant 0 : index
    %8 = vector.load %arg7[%c0_11, %c0_12] : memref<8x8xf32, #tpu.memory_space<vmem>>, vector<8x8xf32>
    %c0_13 = arith.constant 0 : index
    %c0_14 = arith.constant 0 : index
    %9 = vector.load %arg8[%c0_13, %c0_14] : memref<1x8xf32, #tpu.memory_space<vmem>>, vector<1x8xf32>
    %c0_15 = arith.constant 0 : index
    %c0_16 = arith.constant 0 : index
    %10 = vector.load %arg5[%c0_15, %c0_16] : memref<32x32xf32, #tpu.memory_space<vmem>>, vector<32x32xf32>
    %cst = arith.constant dense<0.000000e+00> : vector<8x32xf32>
    %11 = tpu.matmul %1, %10, %cst {dimension_numbers = #tpu.dot_dimension_numbers<[1], [0], [0], [1], [0, 0, 1, 1], [], []>} : vector<8x32xf32>, vector<32x32xf32>, vector<8x32xf32> -> vector<8x32xf32>
    %c0_17 = arith.constant 0 : index
    %c0_18 = arith.constant 0 : index
    %12 = vector.load %arg6[%c0_17, %c0_18] : memref<1x32xf32, #tpu.memory_space<vmem>>, vector<1x32xf32>
    %13 = vector.broadcast %12 : vector<1x32xf32> to vector<8x32xf32>
    %14 = arith.addf %11, %13 : vector<8x32xf32>
    %c0_19 = arith.constant 0 : index
    %c0_20 = arith.constant 0 : index
    %15 = vector.load %arg11[%c0_19, %c0_20] : memref<32x32xf32, #tpu.memory_space<vmem>>, vector<32x32xf32>
    %cst_21 = arith.constant dense<0.000000e+00> : vector<8x32xf32>
    %16 = tpu.matmul %1, %15, %cst_21 {dimension_numbers = #tpu.dot_dimension_numbers<[1], [0], [0], [1], [0, 0, 1, 1], [], []>} : vector<8x32xf32>, vector<32x32xf32>, vector<8x32xf32> -> vector<8x32xf32>
    %c0_22 = arith.constant 0 : index
    %c0_23 = arith.constant 0 : index
    %17 = vector.load %arg12[%c0_22, %c0_23] : memref<1x32xf32, #tpu.memory_space<vmem>>, vector<1x32xf32>
    %18 = vector.broadcast %17 : vector<1x32xf32> to vector<8x32xf32>
    %19 = arith.addf %16, %18 : vector<8x32xf32>
    %20 = tpu.iota {dimensions = array<i32: 1>} : vector<1x4xi32>
    %21 = arith.sitofp %20 : vector<1x4xi32> to vector<1x4xf32>
    %22 = tpu.iota {dimensions = array<i32: 1>} : vector<1x4xi32>
    %23 = arith.sitofp %22 : vector<1x4xi32> to vector<1x4xf32>
    %24 = vector.extract_strided_slice %14 {offsets = [0, 0], sizes = [8, 8], strides = [1, 1]} : vector<8x32xf32> to vector<8x8xf32>
    %25 = vector.extract_strided_slice %19 {offsets = [0, 0], sizes = [8, 8], strides = [1, 1]} : vector<8x32xf32> to vector<8x8xf32>
    %26 = vector.extract_strided_slice %7 {offsets = [0, 0], sizes = [1, 1], strides = [1, 1]} : vector<8x2xf32> to vector<1x1xf32>
    %27 = vector.extract_strided_slice %7 {offsets = [0, 1], sizes = [1, 1], strides = [1, 1]} : vector<8x2xf32> to vector<1x1xf32>
    %28 = vector.extract_strided_slice %25 {offsets = [0, 0], sizes = [1, 1], strides = [1, 1]} : vector<8x8xf32> to vector<1x1xf32>
    %29 = vector.extract_strided_slice %25 {offsets = [0, 1], sizes = [1, 1], strides = [1, 1]} : vector<8x8xf32> to vector<1x1xf32>
    %cst_24 = arith.constant 4.000000e+00 : f32
    %30 = vector.broadcast %cst_24 : f32 to vector<1x1xf32>
    %31 = arith.divf %28, %30 : vector<1x1xf32>
    %32 = arith.addf %26, %31 : vector<1x1xf32>
    %cst_25 = arith.constant 4.000000e+00 : f32
    %33 = vector.broadcast %cst_25 : f32 to vector<1x1xf32>
    %34 = arith.divf %29, %33 : vector<1x1xf32>
    %35 = arith.addf %27, %34 : vector<1x1xf32>
    %cst_26 = arith.constant 2.000000e+00 : f32
    %36 = vector.broadcast %cst_26 : f32 to vector<1x1xf32>
    %37 = arith.mulf %36, %32 : vector<1x1xf32>
    %cst_27 = arith.constant 1.000000e+00 : f32
    %38 = vector.broadcast %cst_27 : f32 to vector<1x1xf32>
    %39 = arith.subf %37, %38 : vector<1x1xf32>
    %cst_28 = arith.constant 2.000000e+00 : f32
    %40 = vector.broadcast %cst_28 : f32 to vector<1x1xf32>
    %41 = arith.mulf %40, %35 : vector<1x1xf32>
    %cst_29 = arith.constant 1.000000e+00 : f32
    %42 = vector.broadcast %cst_29 : f32 to vector<1x1xf32>
    %43 = arith.subf %41, %42 : vector<1x1xf32>
    %cst_30 = arith.constant 1.000000e+00 : f32
    %44 = vector.broadcast %cst_30 : f32 to vector<1x1xf32>
    %45 = arith.addf %39, %44 : vector<1x1xf32>
    %cst_31 = arith.constant 4.000000e+00 : f32
    %46 = vector.broadcast %cst_31 : f32 to vector<1x1xf32>
    %47 = arith.mulf %45, %46 : vector<1x1xf32>
    %cst_32 = arith.constant 1.000000e+00 : f32
    %48 = vector.broadcast %cst_32 : f32 to vector<1x1xf32>
    %49 = arith.subf %47, %48 : vector<1x1xf32>
    %cst_33 = arith.constant 2.000000e+00 : f32
    %50 = vector.broadcast %cst_33 : f32 to vector<1x1xf32>
    %51 = arith.divf %49, %50 : vector<1x1xf32>
    %cst_34 = arith.constant 1.000000e+00 : f32
    %52 = vector.broadcast %cst_34 : f32 to vector<1x1xf32>
    %53 = arith.addf %43, %52 : vector<1x1xf32>
    %cst_35 = arith.constant 4.000000e+00 : f32
    %54 = vector.broadcast %cst_35 : f32 to vector<1x1xf32>
    %55 = arith.mulf %53, %54 : vector<1x1xf32>
    %cst_36 = arith.constant 1.000000e+00 : f32
    %56 = vector.broadcast %cst_36 : f32 to vector<1x1xf32>
    %57 = arith.subf %55, %56 : vector<1x1xf32>
    %cst_37 = arith.constant 2.000000e+00 : f32
    %58 = vector.broadcast %cst_37 : f32 to vector<1x1xf32>
    %59 = arith.divf %57, %58 : vector<1x1xf32>
    %60 = math.floor %51 : vector<1x1xf32>
    %cst_38 = arith.constant 1.000000e+00 : f32
    %61 = vector.broadcast %cst_38 : f32 to vector<1x1xf32>
    %62 = arith.addf %60, %61 : vector<1x1xf32>
    %63 = math.floor %59 : vector<1x1xf32>
    %cst_39 = arith.constant 1.000000e+00 : f32
    %64 = vector.broadcast %cst_39 : f32 to vector<1x1xf32>
    %65 = arith.addf %63, %64 : vector<1x1xf32>
    %66 = arith.subf %51, %60 : vector<1x1xf32>
    %cst_40 = arith.constant 1.000000e+00 : f32
    %67 = vector.broadcast %cst_40 : f32 to vector<1x1xf32>
    %68 = arith.subf %67, %66 : vector<1x1xf32>
    %69 = arith.subf %59, %63 : vector<1x1xf32>
    %cst_41 = arith.constant 1.000000e+00 : f32
    %70 = vector.broadcast %cst_41 : f32 to vector<1x1xf32>
    %71 = arith.subf %70, %69 : vector<1x1xf32>
    %72 = vector.broadcast %60 : vector<1x1xf32> to vector<1x4xf32>
    %73 = arith.cmpf oeq, %23, %72 : vector<1x4xf32>
    %cst_42 = arith.constant 0.000000e+00 : f32
    %74 = vector.shape_cast %68 : vector<1x1xf32> to vector<1x1xf32>
    %75 = vector.broadcast %74 : vector<1x1xf32> to vector<1x4xf32>
    %76 = vector.broadcast %cst_42 : f32 to vector<1x4xf32>
    %77 = arith.select %73, %75, %76 : vector<1x4xi1>, vector<1x4xf32>
    %78 = vector.broadcast %62 : vector<1x1xf32> to vector<1x4xf32>
    %79 = arith.cmpf oeq, %23, %78 : vector<1x4xf32>
    %cst_43 = arith.constant 0.000000e+00 : f32
    %80 = vector.shape_cast %66 : vector<1x1xf32> to vector<1x1xf32>
    %81 = vector.broadcast %80 : vector<1x1xf32> to vector<1x4xf32>
    %82 = vector.broadcast %cst_43 : f32 to vector<1x4xf32>
    %83 = arith.select %79, %81, %82 : vector<1x4xi1>, vector<1x4xf32>
    %84 = arith.addf %77, %83 : vector<1x4xf32>
    %85 = vector.broadcast %63 : vector<1x1xf32> to vector<1x4xf32>
    %86 = arith.cmpf oeq, %21, %85 : vector<1x4xf32>
    %cst_44 = arith.constant 0.000000e+00 : f32
    %87 = vector.shape_cast %71 : vector<1x1xf32> to vector<1x1xf32>
    %88 = vector.broadcast %87 : vector<1x1xf32> to vector<1x4xf32>
    %89 = vector.broadcast %cst_44 : f32 to vector<1x4xf32>
    %90 = arith.select %86, %88, %89 : vector<1x4xi1>, vector<1x4xf32>
    %91 = vector.broadcast %65 : vector<1x1xf32> to vector<1x4xf32>
    %92 = arith.cmpf oeq, %21, %91 : vector<1x4xf32>
    %cst_45 = arith.constant 0.000000e+00 : f32
    %93 = vector.shape_cast %69 : vector<1x1xf32> to vector<1x1xf32>
    %94 = vector.broadcast %93 : vector<1x1xf32> to vector<1x4xf32>
    %95 = vector.broadcast %cst_45 : f32 to vector<1x4xf32>
    %96 = arith.select %92, %94, %95 : vector<1x4xi1>, vector<1x4xf32>
    %97 = arith.addf %90, %96 : vector<1x4xf32>
    %98 = vector.extract_strided_slice %97 {offsets = [0, 0], sizes = [1, 1], strides = [1, 1]} : vector<1x4xf32> to vector<1x1xf32>
    %99 = vector.broadcast %98 : vector<1x1xf32> to vector<1x4xf32>
    %100 = arith.mulf %99, %84 : vector<1x4xf32>
    %101 = vector.extract_strided_slice %97 {offsets = [0, 1], sizes = [1, 1], strides = [1, 1]} : vector<1x4xf32> to vector<1x1xf32>
    %102 = vector.broadcast %101 : vector<1x1xf32> to vector<1x4xf32>
    %103 = arith.mulf %102, %84 : vector<1x4xf32>
    %104 = vector.extract_strided_slice %97 {offsets = [0, 2], sizes = [1, 1], strides = [1, 1]} : vector<1x4xf32> to vector<1x1xf32>
    %105 = vector.broadcast %104 : vector<1x1xf32> to vector<1x4xf32>
    %106 = arith.mulf %105, %84 : vector<1x4xf32>
    %107 = vector.extract_strided_slice %97 {offsets = [0, 3], sizes = [1, 1], strides = [1, 1]} : vector<1x4xf32> to vector<1x1xf32>
    %108 = vector.broadcast %107 : vector<1x1xf32> to vector<1x4xf32>
    %109 = arith.mulf %108, %84 : vector<1x4xf32>
    %110 = tpu.concatenate %100, %103, %106, %109 in 1 : vector<1x4xf32>, vector<1x4xf32>, vector<1x4xf32>, vector<1x4xf32> -> vector<1x16xf32>
    %111 = vector.extract_strided_slice %25 {offsets = [0, 2], sizes = [1, 1], strides = [1, 1]} : vector<8x8xf32> to vector<1x1xf32>
    %112 = vector.extract_strided_slice %25 {offsets = [0, 3], sizes = [1, 1], strides = [1, 1]} : vector<8x8xf32> to vector<1x1xf32>
    %cst_46 = arith.constant 4.000000e+00 : f32
    %113 = vector.broadcast %cst_46 : f32 to vector<1x1xf32>
    %114 = arith.divf %111, %113 : vector<1x1xf32>
    %115 = arith.addf %26, %114 : vector<1x1xf32>
    %cst_47 = arith.constant 4.000000e+00 : f32
    %116 = vector.broadcast %cst_47 : f32 to vector<1x1xf32>
    %117 = arith.divf %112, %116 : vector<1x1xf32>
    %118 = arith.addf %27, %117 : vector<1x1xf32>
    %cst_48 = arith.constant 2.000000e+00 : f32
    %119 = vector.broadcast %cst_48 : f32 to vector<1x1xf32>
    %120 = arith.mulf %119, %115 : vector<1x1xf32>
    %cst_49 = arith.constant 1.000000e+00 : f32
    %121 = vector.broadcast %cst_49 : f32 to vector<1x1xf32>
    %122 = arith.subf %120, %121 : vector<1x1xf32>
    %cst_50 = arith.constant 2.000000e+00 : f32
    %123 = vector.broadcast %cst_50 : f32 to vector<1x1xf32>
    %124 = arith.mulf %123, %118 : vector<1x1xf32>
    %cst_51 = arith.constant 1.000000e+00 : f32
    %125 = vector.broadcast %cst_51 : f32 to vector<1x1xf32>
    %126 = arith.subf %124, %125 : vector<1x1xf32>
    %cst_52 = arith.constant 1.000000e+00 : f32
    %127 = vector.broadcast %cst_52 : f32 to vector<1x1xf32>
    %128 = arith.addf %122, %127 : vector<1x1xf32>
    %cst_53 = arith.constant 4.000000e+00 : f32
    %129 = vector.broadcast %cst_53 : f32 to vector<1x1xf32>
    %130 = arith.mulf %128, %129 : vector<1x1xf32>
    %cst_54 = arith.constant 1.000000e+00 : f32
    %131 = vector.broadcast %cst_54 : f32 to vector<1x1xf32>
    %132 = arith.subf %130, %131 : vector<1x1xf32>
    %cst_55 = arith.constant 2.000000e+00 : f32
    %133 = vector.broadcast %cst_55 : f32 to vector<1x1xf32>
    %134 = arith.divf %132, %133 : vector<1x1xf32>
    %cst_56 = arith.constant 1.000000e+00 : f32
    %135 = vector.broadcast %cst_56 : f32 to vector<1x1xf32>
    %136 = arith.addf %126, %135 : vector<1x1xf32>
    %cst_57 = arith.constant 4.000000e+00 : f32
    %137 = vector.broadcast %cst_57 : f32 to vector<1x1xf32>
    %138 = arith.mulf %136, %137 : vector<1x1xf32>
    %cst_58 = arith.constant 1.000000e+00 : f32
    %139 = vector.broadcast %cst_58 : f32 to vector<1x1xf32>
    %140 = arith.subf %138, %139 : vector<1x1xf32>
    %cst_59 = arith.constant 2.000000e+00 : f32
    %141 = vector.broadcast %cst_59 : f32 to vector<1x1xf32>
    %142 = arith.divf %140, %141 : vector<1x1xf32>
    %143 = math.floor %134 : vector<1x1xf32>
    %cst_60 = arith.constant 1.000000e+00 : f32
    %144 = vector.broadcast %cst_60 : f32 to vector<1x1xf32>
    %145 = arith.addf %143, %144 : vector<1x1xf32>
    %146 = math.floor %142 : vector<1x1xf32>
    %cst_61 = arith.constant 1.000000e+00 : f32
    %147 = vector.broadcast %cst_61 : f32 to vector<1x1xf32>
    %148 = arith.addf %146, %147 : vector<1x1xf32>
    %149 = arith.subf %134, %143 : vector<1x1xf32>
    %cst_62 = arith.constant 1.000000e+00 : f32
    %150 = vector.broadcast %cst_62 : f32 to vector<1x1xf32>
    %151 = arith.subf %150, %149 : vector<1x1xf32>
    %152 = arith.subf %142, %146 : vector<1x1xf32>
    %cst_63 = arith.constant 1.000000e+00 : f32
    %153 = vector.broadcast %cst_63 : f32 to vector<1x1xf32>
    %154 = arith.subf %153, %152 : vector<1x1xf32>
    %155 = vector.broadcast %143 : vector<1x1xf32> to vector<1x4xf32>
    %156 = arith.cmpf oeq, %23, %155 : vector<1x4xf32>
    %cst_64 = arith.constant 0.000000e+00 : f32
    %157 = vector.shape_cast %151 : vector<1x1xf32> to vector<1x1xf32>
    %158 = vector.broadcast %157 : vector<1x1xf32> to vector<1x4xf32>
    %159 = vector.broadcast %cst_64 : f32 to vector<1x4xf32>
    %160 = arith.select %156, %158, %159 : vector<1x4xi1>, vector<1x4xf32>
    %161 = vector.broadcast %145 : vector<1x1xf32> to vector<1x4xf32>
    %162 = arith.cmpf oeq, %23, %161 : vector<1x4xf32>
    %cst_65 = arith.constant 0.000000e+00 : f32
    %163 = vector.shape_cast %149 : vector<1x1xf32> to vector<1x1xf32>
    %164 = vector.broadcast %163 : vector<1x1xf32> to vector<1x4xf32>
    %165 = vector.broadcast %cst_65 : f32 to vector<1x4xf32>
    %166 = arith.select %162, %164, %165 : vector<1x4xi1>, vector<1x4xf32>
    %167 = arith.addf %160, %166 : vector<1x4xf32>
    %168 = vector.broadcast %146 : vector<1x1xf32> to vector<1x4xf32>
    %169 = arith.cmpf oeq, %21, %168 : vector<1x4xf32>
    %cst_66 = arith.constant 0.000000e+00 : f32
    %170 = vector.shape_cast %154 : vector<1x1xf32> to vector<1x1xf32>
    %171 = vector.broadcast %170 : vector<1x1xf32> to vector<1x4xf32>
    %172 = vector.broadcast %cst_66 : f32 to vector<1x4xf32>
    %173 = arith.select %169, %171, %172 : vector<1x4xi1>, vector<1x4xf32>
    %174 = vector.broadcast %148 : vector<1x1xf32> to vector<1x4xf32>
    %175 = arith.cmpf oeq, %21, %174 : vector<1x4xf32>
    %cst_67 = arith.constant 0.000000e+00 : f32
    %176 = vector.shape_cast %152 : vector<1x1xf32> to vector<1x1xf32>
    %177 = vector.broadcast %176 : vector<1x1xf32> to vector<1x4xf32>
    %178 = vector.broadcast %cst_67 : f32 to vector<1x4xf32>
    %179 = arith.select %175, %177, %178 : vector<1x4xi1>, vector<1x4xf32>
    %180 = arith.addf %173, %179 : vector<1x4xf32>
    %181 = vector.extract_strided_slice %180 {offsets = [0, 0], sizes = [1, 1], strides = [1, 1]} : vector<1x4xf32> to vector<1x1xf32>
    %182 = vector.broadcast %181 : vector<1x1xf32> to vector<1x4xf32>
    %183 = arith.mulf %182, %167 : vector<1x4xf32>
    %184 = vector.extract_strided_slice %180 {offsets = [0, 1], sizes = [1, 1], strides = [1, 1]} : vector<1x4xf32> to vector<1x1xf32>
    %185 = vector.broadcast %184 : vector<1x1xf32> to vector<1x4xf32>
    %186 = arith.mulf %185, %167 : vector<1x4xf32>
    %187 = vector.extract_strided_slice %180 {offsets = [0, 2], sizes = [1, 1], strides = [1, 1]} : vector<1x4xf32> to vector<1x1xf32>
    %188 = vector.broadcast %187 : vector<1x1xf32> to vector<1x4xf32>
    %189 = arith.mulf %188, %167 : vector<1x4xf32>
    %190 = vector.extract_strided_slice %180 {offsets = [0, 3], sizes = [1, 1], strides = [1, 1]} : vector<1x4xf32> to vector<1x1xf32>
    %191 = vector.broadcast %190 : vector<1x1xf32> to vector<1x4xf32>
    %192 = arith.mulf %191, %167 : vector<1x4xf32>
    %193 = tpu.concatenate %183, %186, %189, %192 in 1 : vector<1x4xf32>, vector<1x4xf32>, vector<1x4xf32>, vector<1x4xf32> -> vector<1x16xf32>
    %194 = vector.extract_strided_slice %25 {offsets = [0, 4], sizes = [1, 1], strides = [1, 1]} : vector<8x8xf32> to vector<1x1xf32>
    %195 = vector.extract_strided_slice %25 {offsets = [0, 5], sizes = [1, 1], strides = [1, 1]} : vector<8x8xf32> to vector<1x1xf32>
    %cst_68 = arith.constant 4.000000e+00 : f32
    %196 = vector.broadcast %cst_68 : f32 to vector<1x1xf32>
    %197 = arith.divf %194, %196 : vector<1x1xf32>
    %198 = arith.addf %26, %197 : vector<1x1xf32>
    %cst_69 = arith.constant 4.000000e+00 : f32
    %199 = vector.broadcast %cst_69 : f32 to vector<1x1xf32>
    %200 = arith.divf %195, %199 : vector<1x1xf32>
    %201 = arith.addf %27, %200 : vector<1x1xf32>
    %cst_70 = arith.constant 2.000000e+00 : f32
    %202 = vector.broadcast %cst_70 : f32 to vector<1x1xf32>
    %203 = arith.mulf %202, %198 : vector<1x1xf32>
    %cst_71 = arith.constant 1.000000e+00 : f32
    %204 = vector.broadcast %cst_71 : f32 to vector<1x1xf32>
    %205 = arith.subf %203, %204 : vector<1x1xf32>
    %cst_72 = arith.constant 2.000000e+00 : f32
    %206 = vector.broadcast %cst_72 : f32 to vector<1x1xf32>
    %207 = arith.mulf %206, %201 : vector<1x1xf32>
    %cst_73 = arith.constant 1.000000e+00 : f32
    %208 = vector.broadcast %cst_73 : f32 to vector<1x1xf32>
    %209 = arith.subf %207, %208 : vector<1x1xf32>
    %cst_74 = arith.constant 1.000000e+00 : f32
    %210 = vector.broadcast %cst_74 : f32 to vector<1x1xf32>
    %211 = arith.addf %205, %210 : vector<1x1xf32>
    %cst_75 = arith.constant 4.000000e+00 : f32
    %212 = vector.broadcast %cst_75 : f32 to vector<1x1xf32>
    %213 = arith.mulf %211, %212 : vector<1x1xf32>
    %cst_76 = arith.constant 1.000000e+00 : f32
    %214 = vector.broadcast %cst_76 : f32 to vector<1x1xf32>
    %215 = arith.subf %213, %214 : vector<1x1xf32>
    %cst_77 = arith.constant 2.000000e+00 : f32
    %216 = vector.broadcast %cst_77 : f32 to vector<1x1xf32>
    %217 = arith.divf %215, %216 : vector<1x1xf32>
    %cst_78 = arith.constant 1.000000e+00 : f32
    %218 = vector.broadcast %cst_78 : f32 to vector<1x1xf32>
    %219 = arith.addf %209, %218 : vector<1x1xf32>
    %cst_79 = arith.constant 4.000000e+00 : f32
    %220 = vector.broadcast %cst_79 : f32 to vector<1x1xf32>
    %221 = arith.mulf %219, %220 : vector<1x1xf32>
    %cst_80 = arith.constant 1.000000e+00 : f32
    %222 = vector.broadcast %cst_80 : f32 to vector<1x1xf32>
    %223 = arith.subf %221, %222 : vector<1x1xf32>
    %cst_81 = arith.constant 2.000000e+00 : f32
    %224 = vector.broadcast %cst_81 : f32 to vector<1x1xf32>
    %225 = arith.divf %223, %224 : vector<1x1xf32>
    %226 = math.floor %217 : vector<1x1xf32>
    %cst_82 = arith.constant 1.000000e+00 : f32
    %227 = vector.broadcast %cst_82 : f32 to vector<1x1xf32>
    %228 = arith.addf %226, %227 : vector<1x1xf32>
    %229 = math.floor %225 : vector<1x1xf32>
    %cst_83 = arith.constant 1.000000e+00 : f32
    %230 = vector.broadcast %cst_83 : f32 to vector<1x1xf32>
    %231 = arith.addf %229, %230 : vector<1x1xf32>
    %232 = arith.subf %217, %226 : vector<1x1xf32>
    %cst_84 = arith.constant 1.000000e+00 : f32
    %233 = vector.broadcast %cst_84 : f32 to vector<1x1xf32>
    %234 = arith.subf %233, %232 : vector<1x1xf32>
    %235 = arith.subf %225, %229 : vector<1x1xf32>
    %cst_85 = arith.constant 1.000000e+00 : f32
    %236 = vector.broadcast %cst_85 : f32 to vector<1x1xf32>
    %237 = arith.subf %236, %235 : vector<1x1xf32>
    %238 = vector.broadcast %226 : vector<1x1xf32> to vector<1x4xf32>
    %239 = arith.cmpf oeq, %23, %238 : vector<1x4xf32>
    %cst_86 = arith.constant 0.000000e+00 : f32
    %240 = vector.shape_cast %234 : vector<1x1xf32> to vector<1x1xf32>
    %241 = vector.broadcast %240 : vector<1x1xf32> to vector<1x4xf32>
    %242 = vector.broadcast %cst_86 : f32 to vector<1x4xf32>
    %243 = arith.select %239, %241, %242 : vector<1x4xi1>, vector<1x4xf32>
    %244 = vector.broadcast %228 : vector<1x1xf32> to vector<1x4xf32>
    %245 = arith.cmpf oeq, %23, %244 : vector<1x4xf32>
    %cst_87 = arith.constant 0.000000e+00 : f32
    %246 = vector.shape_cast %232 : vector<1x1xf32> to vector<1x1xf32>
    %247 = vector.broadcast %246 : vector<1x1xf32> to vector<1x4xf32>
    %248 = vector.broadcast %cst_87 : f32 to vector<1x4xf32>
    %249 = arith.select %245, %247, %248 : vector<1x4xi1>, vector<1x4xf32>
    %250 = arith.addf %243, %249 : vector<1x4xf32>
    %251 = vector.broadcast %229 : vector<1x1xf32> to vector<1x4xf32>
    %252 = arith.cmpf oeq, %21, %251 : vector<1x4xf32>
    %cst_88 = arith.constant 0.000000e+00 : f32
    %253 = vector.shape_cast %237 : vector<1x1xf32> to vector<1x1xf32>
    %254 = vector.broadcast %253 : vector<1x1xf32> to vector<1x4xf32>
    %255 = vector.broadcast %cst_88 : f32 to vector<1x4xf32>
    %256 = arith.select %252, %254, %255 : vector<1x4xi1>, vector<1x4xf32>
    %257 = vector.broadcast %231 : vector<1x1xf32> to vector<1x4xf32>
    %258 = arith.cmpf oeq, %21, %257 : vector<1x4xf32>
    %cst_89 = arith.constant 0.000000e+00 : f32
    %259 = vector.shape_cast %235 : vector<1x1xf32> to vector<1x1xf32>
    %260 = vector.broadcast %259 : vector<1x1xf32> to vector<1x4xf32>
    %261 = vector.broadcast %cst_89 : f32 to vector<1x4xf32>
    %262 = arith.select %258, %260, %261 : vector<1x4xi1>, vector<1x4xf32>
    %263 = arith.addf %256, %262 : vector<1x4xf32>
    %264 = vector.extract_strided_slice %263 {offsets = [0, 0], sizes = [1, 1], strides = [1, 1]} : vector<1x4xf32> to vector<1x1xf32>
    %265 = vector.broadcast %264 : vector<1x1xf32> to vector<1x4xf32>
    %266 = arith.mulf %265, %250 : vector<1x4xf32>
    %267 = vector.extract_strided_slice %263 {offsets = [0, 1], sizes = [1, 1], strides = [1, 1]} : vector<1x4xf32> to vector<1x1xf32>
    %268 = vector.broadcast %267 : vector<1x1xf32> to vector<1x4xf32>
    %269 = arith.mulf %268, %250 : vector<1x4xf32>
    %270 = vector.extract_strided_slice %263 {offsets = [0, 2], sizes = [1, 1], strides = [1, 1]} : vector<1x4xf32> to vector<1x1xf32>
    %271 = vector.broadcast %270 : vector<1x1xf32> to vector<1x4xf32>
    %272 = arith.mulf %271, %250 : vector<1x4xf32>
    %273 = vector.extract_strided_slice %263 {offsets = [0, 3], sizes = [1, 1], strides = [1, 1]} : vector<1x4xf32> to vector<1x1xf32>
    %274 = vector.broadcast %273 : vector<1x1xf32> to vector<1x4xf32>
    %275 = arith.mulf %274, %250 : vector<1x4xf32>
    %276 = tpu.concatenate %266, %269, %272, %275 in 1 : vector<1x4xf32>, vector<1x4xf32>, vector<1x4xf32>, vector<1x4xf32> -> vector<1x16xf32>
    %277 = vector.extract_strided_slice %25 {offsets = [0, 6], sizes = [1, 1], strides = [1, 1]} : vector<8x8xf32> to vector<1x1xf32>
    %278 = vector.extract_strided_slice %25 {offsets = [0, 7], sizes = [1, 1], strides = [1, 1]} : vector<8x8xf32> to vector<1x1xf32>
    %cst_90 = arith.constant 4.000000e+00 : f32
    %279 = vector.broadcast %cst_90 : f32 to vector<1x1xf32>
    %280 = arith.divf %277, %279 : vector<1x1xf32>
    %281 = arith.addf %26, %280 : vector<1x1xf32>
    %cst_91 = arith.constant 4.000000e+00 : f32
    %282 = vector.broadcast %cst_91 : f32 to vector<1x1xf32>
    %283 = arith.divf %278, %282 : vector<1x1xf32>
    %284 = arith.addf %27, %283 : vector<1x1xf32>
    %cst_92 = arith.constant 2.000000e+00 : f32
    %285 = vector.broadcast %cst_92 : f32 to vector<1x1xf32>
    %286 = arith.mulf %285, %281 : vector<1x1xf32>
    %cst_93 = arith.constant 1.000000e+00 : f32
    %287 = vector.broadcast %cst_93 : f32 to vector<1x1xf32>
    %288 = arith.subf %286, %287 : vector<1x1xf32>
    %cst_94 = arith.constant 2.000000e+00 : f32
    %289 = vector.broadcast %cst_94 : f32 to vector<1x1xf32>
    %290 = arith.mulf %289, %284 : vector<1x1xf32>
    %cst_95 = arith.constant 1.000000e+00 : f32
    %291 = vector.broadcast %cst_95 : f32 to vector<1x1xf32>
    %292 = arith.subf %290, %291 : vector<1x1xf32>
    %cst_96 = arith.constant 1.000000e+00 : f32
    %293 = vector.broadcast %cst_96 : f32 to vector<1x1xf32>
    %294 = arith.addf %288, %293 : vector<1x1xf32>
    %cst_97 = arith.constant 4.000000e+00 : f32
    %295 = vector.broadcast %cst_97 : f32 to vector<1x1xf32>
    %296 = arith.mulf %294, %295 : vector<1x1xf32>
    %cst_98 = arith.constant 1.000000e+00 : f32
    %297 = vector.broadcast %cst_98 : f32 to vector<1x1xf32>
    %298 = arith.subf %296, %297 : vector<1x1xf32>
    %cst_99 = arith.constant 2.000000e+00 : f32
    %299 = vector.broadcast %cst_99 : f32 to vector<1x1xf32>
    %300 = arith.divf %298, %299 : vector<1x1xf32>
    %cst_100 = arith.constant 1.000000e+00 : f32
    %301 = vector.broadcast %cst_100 : f32 to vector<1x1xf32>
    %302 = arith.addf %292, %301 : vector<1x1xf32>
    %cst_101 = arith.constant 4.000000e+00 : f32
    %303 = vector.broadcast %cst_101 : f32 to vector<1x1xf32>
    %304 = arith.mulf %302, %303 : vector<1x1xf32>
    %cst_102 = arith.constant 1.000000e+00 : f32
    %305 = vector.broadcast %cst_102 : f32 to vector<1x1xf32>
    %306 = arith.subf %304, %305 : vector<1x1xf32>
    %cst_103 = arith.constant 2.000000e+00 : f32
    %307 = vector.broadcast %cst_103 : f32 to vector<1x1xf32>
    %308 = arith.divf %306, %307 : vector<1x1xf32>
    %309 = math.floor %300 : vector<1x1xf32>
    %cst_104 = arith.constant 1.000000e+00 : f32
    %310 = vector.broadcast %cst_104 : f32 to vector<1x1xf32>
    %311 = arith.addf %309, %310 : vector<1x1xf32>
    %312 = math.floor %308 : vector<1x1xf32>
    %cst_105 = arith.constant 1.000000e+00 : f32
    %313 = vector.broadcast %cst_105 : f32 to vector<1x1xf32>
    %314 = arith.addf %312, %313 : vector<1x1xf32>
    %315 = arith.subf %300, %309 : vector<1x1xf32>
    %cst_106 = arith.constant 1.000000e+00 : f32
    %316 = vector.broadcast %cst_106 : f32 to vector<1x1xf32>
    %317 = arith.subf %316, %315 : vector<1x1xf32>
    %318 = arith.subf %308, %312 : vector<1x1xf32>
    %cst_107 = arith.constant 1.000000e+00 : f32
    %319 = vector.broadcast %cst_107 : f32 to vector<1x1xf32>
    %320 = arith.subf %319, %318 : vector<1x1xf32>
    %321 = vector.broadcast %309 : vector<1x1xf32> to vector<1x4xf32>
    %322 = arith.cmpf oeq, %23, %321 : vector<1x4xf32>
    %cst_108 = arith.constant 0.000000e+00 : f32
    %323 = vector.shape_cast %317 : vector<1x1xf32> to vector<1x1xf32>
    %324 = vector.broadcast %323 : vector<1x1xf32> to vector<1x4xf32>
    %325 = vector.broadcast %cst_108 : f32 to vector<1x4xf32>
    %326 = arith.select %322, %324, %325 : vector<1x4xi1>, vector<1x4xf32>
    %327 = vector.broadcast %311 : vector<1x1xf32> to vector<1x4xf32>
    %328 = arith.cmpf oeq, %23, %327 : vector<1x4xf32>
    %cst_109 = arith.constant 0.000000e+00 : f32
    %329 = vector.shape_cast %315 : vector<1x1xf32> to vector<1x1xf32>
    %330 = vector.broadcast %329 : vector<1x1xf32> to vector<1x4xf32>
    %331 = vector.broadcast %cst_109 : f32 to vector<1x4xf32>
    %332 = arith.select %328, %330, %331 : vector<1x4xi1>, vector<1x4xf32>
    %333 = arith.addf %326, %332 : vector<1x4xf32>
    %334 = vector.broadcast %312 : vector<1x1xf32> to vector<1x4xf32>
    %335 = arith.cmpf oeq, %21, %334 : vector<1x4xf32>
    %cst_110 = arith.constant 0.000000e+00 : f32
    %336 = vector.shape_cast %320 : vector<1x1xf32> to vector<1x1xf32>
    %337 = vector.broadcast %336 : vector<1x1xf32> to vector<1x4xf32>
    %338 = vector.broadcast %cst_110 : f32 to vector<1x4xf32>
    %339 = arith.select %335, %337, %338 : vector<1x4xi1>, vector<1x4xf32>
    %340 = vector.broadcast %314 : vector<1x1xf32> to vector<1x4xf32>
    %341 = arith.cmpf oeq, %21, %340 : vector<1x4xf32>
    %cst_111 = arith.constant 0.000000e+00 : f32
    %342 = vector.shape_cast %318 : vector<1x1xf32> to vector<1x1xf32>
    %343 = vector.broadcast %342 : vector<1x1xf32> to vector<1x4xf32>
    %344 = vector.broadcast %cst_111 : f32 to vector<1x4xf32>
    %345 = arith.select %341, %343, %344 : vector<1x4xi1>, vector<1x4xf32>
    %346 = arith.addf %339, %345 : vector<1x4xf32>
    %347 = vector.extract_strided_slice %346 {offsets = [0, 0], sizes = [1, 1], strides = [1, 1]} : vector<1x4xf32> to vector<1x1xf32>
    %348 = vector.broadcast %347 : vector<1x1xf32> to vector<1x4xf32>
    %349 = arith.mulf %348, %333 : vector<1x4xf32>
    %350 = vector.extract_strided_slice %346 {offsets = [0, 1], sizes = [1, 1], strides = [1, 1]} : vector<1x4xf32> to vector<1x1xf32>
    %351 = vector.broadcast %350 : vector<1x1xf32> to vector<1x4xf32>
    %352 = arith.mulf %351, %333 : vector<1x4xf32>
    %353 = vector.extract_strided_slice %346 {offsets = [0, 2], sizes = [1, 1], strides = [1, 1]} : vector<1x4xf32> to vector<1x1xf32>
    %354 = vector.broadcast %353 : vector<1x1xf32> to vector<1x4xf32>
    %355 = arith.mulf %354, %333 : vector<1x4xf32>
    %356 = vector.extract_strided_slice %346 {offsets = [0, 3], sizes = [1, 1], strides = [1, 1]} : vector<1x4xf32> to vector<1x1xf32>
    %357 = vector.broadcast %356 : vector<1x1xf32> to vector<1x4xf32>
    %358 = arith.mulf %357, %333 : vector<1x4xf32>
    %359 = tpu.concatenate %349, %352, %355, %358 in 1 : vector<1x4xf32>, vector<1x4xf32>, vector<1x4xf32>, vector<1x4xf32> -> vector<1x16xf32>
    %360 = tpu.concatenate %110, %193, %276, %359 in 0 : vector<1x16xf32>, vector<1x16xf32>, vector<1x16xf32>, vector<1x16xf32> -> vector<4x16xf32>
    %361 = vector.extract_strided_slice %3 {offsets = [0, 0], sizes = [16, 8], strides = [1, 1]} : vector<16x32xf32> to vector<16x8xf32>
    %cst_112 = arith.constant dense<0.000000e+00> : vector<4x8xf32>
    %362 = tpu.matmul %360, %361, %cst_112 {dimension_numbers = #tpu.dot_dimension_numbers<[1], [0], [0], [1], [0, 0, 1, 1], [], []>} : vector<4x16xf32>, vector<16x8xf32>, vector<4x8xf32> -> vector<4x8xf32>
    %cst_113 = arith.constant dense<0.000000e+00> : vector<4x8xf32>
    %363 = tpu.matmul %362, %8, %cst_113 {dimension_numbers = #tpu.dot_dimension_numbers<[1], [0], [0], [1], [0, 0, 1, 1], [], []>} : vector<4x8xf32>, vector<8x8xf32>, vector<4x8xf32> -> vector<4x8xf32>
    %364 = vector.broadcast %9 : vector<1x8xf32> to vector<4x8xf32>
    %365 = arith.addf %363, %364 : vector<4x8xf32>
    %cst_114 = arith.constant dense<0.000000e+00> : vector<8x4xf32>
    %366 = tpu.matmul %24, %365, %cst_114 {dimension_numbers = #tpu.dot_dimension_numbers<[1], [1], [0], [0], [0, 0, 1, 0], [], []>} : vector<8x8xf32>, vector<4x8xf32>, vector<8x4xf32> -> vector<8x4xf32>
    %cst_115 = arith.constant dense<0xFF800000> : vector<8xf32>
    %367 = vector.multi_reduction <maximumf>, %366, %cst_115 [1] : vector<8x4xf32> to vector<8xf32>
    %368 = vector.shape_cast %367 : vector<8xf32> to vector<8x1xf32>
    %369 = vector.broadcast %368 : vector<8x1xf32> to vector<8x4xf32>
    %370 = arith.subf %366, %369 : vector<8x4xf32>
    %371 = math.exp %370 : vector<8x4xf32>
    %cst_116 = arith.constant dense<0.000000e+00> : vector<8xf32>
    %372 = vector.multi_reduction <add>, %371, %cst_116 [1] : vector<8x4xf32> to vector<8xf32>
    %373 = vector.shape_cast %372 : vector<8xf32> to vector<8x1xf32>
    %374 = vector.broadcast %373 : vector<8x1xf32> to vector<8x4xf32>
    %375 = arith.divf %371, %374 : vector<8x4xf32>
    %376 = vector.extract_strided_slice %14 {offsets = [0, 8], sizes = [8, 8], strides = [1, 1]} : vector<8x32xf32> to vector<8x8xf32>
    %377 = vector.extract_strided_slice %19 {offsets = [0, 8], sizes = [8, 8], strides = [1, 1]} : vector<8x32xf32> to vector<8x8xf32>
    %378 = vector.extract_strided_slice %7 {offsets = [0, 0], sizes = [1, 1], strides = [1, 1]} : vector<8x2xf32> to vector<1x1xf32>
    %379 = vector.extract_strided_slice %7 {offsets = [0, 1], sizes = [1, 1], strides = [1, 1]} : vector<8x2xf32> to vector<1x1xf32>
    %380 = vector.extract_strided_slice %377 {offsets = [0, 0], sizes = [1, 1], strides = [1, 1]} : vector<8x8xf32> to vector<1x1xf32>
    %381 = vector.extract_strided_slice %377 {offsets = [0, 1], sizes = [1, 1], strides = [1, 1]} : vector<8x8xf32> to vector<1x1xf32>
    %cst_117 = arith.constant 4.000000e+00 : f32
    %382 = vector.broadcast %cst_117 : f32 to vector<1x1xf32>
    %383 = arith.divf %380, %382 : vector<1x1xf32>
    %384 = arith.addf %378, %383 : vector<1x1xf32>
    %cst_118 = arith.constant 4.000000e+00 : f32
    %385 = vector.broadcast %cst_118 : f32 to vector<1x1xf32>
    %386 = arith.divf %381, %385 : vector<1x1xf32>
    %387 = arith.addf %379, %386 : vector<1x1xf32>
    %cst_119 = arith.constant 2.000000e+00 : f32
    %388 = vector.broadcast %cst_119 : f32 to vector<1x1xf32>
    %389 = arith.mulf %388, %384 : vector<1x1xf32>
    %cst_120 = arith.constant 1.000000e+00 : f32
    %390 = vector.broadcast %cst_120 : f32 to vector<1x1xf32>
    %391 = arith.subf %389, %390 : vector<1x1xf32>
    %cst_121 = arith.constant 2.000000e+00 : f32
    %392 = vector.broadcast %cst_121 : f32 to vector<1x1xf32>
    %393 = arith.mulf %392, %387 : vector<1x1xf32>
    %cst_122 = arith.constant 1.000000e+00 : f32
    %394 = vector.broadcast %cst_122 : f32 to vector<1x1xf32>
    %395 = arith.subf %393, %394 : vector<1x1xf32>
    %cst_123 = arith.constant 1.000000e+00 : f32
    %396 = vector.broadcast %cst_123 : f32 to vector<1x1xf32>
    %397 = arith.addf %391, %396 : vector<1x1xf32>
    %cst_124 = arith.constant 4.000000e+00 : f32
    %398 = vector.broadcast %cst_124 : f32 to vector<1x1xf32>
    %399 = arith.mulf %397, %398 : vector<1x1xf32>
    %cst_125 = arith.constant 1.000000e+00 : f32
    %400 = vector.broadcast %cst_125 : f32 to vector<1x1xf32>
    %401 = arith.subf %399, %400 : vector<1x1xf32>
    %cst_126 = arith.constant 2.000000e+00 : f32
    %402 = vector.broadcast %cst_126 : f32 to vector<1x1xf32>
    %403 = arith.divf %401, %402 : vector<1x1xf32>
    %cst_127 = arith.constant 1.000000e+00 : f32
    %404 = vector.broadcast %cst_127 : f32 to vector<1x1xf32>
    %405 = arith.addf %395, %404 : vector<1x1xf32>
    %cst_128 = arith.constant 4.000000e+00 : f32
    %406 = vector.broadcast %cst_128 : f32 to vector<1x1xf32>
    %407 = arith.mulf %405, %406 : vector<1x1xf32>
    %cst_129 = arith.constant 1.000000e+00 : f32
    %408 = vector.broadcast %cst_129 : f32 to vector<1x1xf32>
    %409 = arith.subf %407, %408 : vector<1x1xf32>
    %cst_130 = arith.constant 2.000000e+00 : f32
    %410 = vector.broadcast %cst_130 : f32 to vector<1x1xf32>
    %411 = arith.divf %409, %410 : vector<1x1xf32>
    %412 = math.floor %403 : vector<1x1xf32>
    %cst_131 = arith.constant 1.000000e+00 : f32
    %413 = vector.broadcast %cst_131 : f32 to vector<1x1xf32>
    %414 = arith.addf %412, %413 : vector<1x1xf32>
    %415 = math.floor %411 : vector<1x1xf32>
    %cst_132 = arith.constant 1.000000e+00 : f32
    %416 = vector.broadcast %cst_132 : f32 to vector<1x1xf32>
    %417 = arith.addf %415, %416 : vector<1x1xf32>
    %418 = arith.subf %403, %412 : vector<1x1xf32>
    %cst_133 = arith.constant 1.000000e+00 : f32
    %419 = vector.broadcast %cst_133 : f32 to vector<1x1xf32>
    %420 = arith.subf %419, %418 : vector<1x1xf32>
    %421 = arith.subf %411, %415 : vector<1x1xf32>
    %cst_134 = arith.constant 1.000000e+00 : f32
    %422 = vector.broadcast %cst_134 : f32 to vector<1x1xf32>
    %423 = arith.subf %422, %421 : vector<1x1xf32>
    %424 = vector.broadcast %412 : vector<1x1xf32> to vector<1x4xf32>
    %425 = arith.cmpf oeq, %23, %424 : vector<1x4xf32>
    %cst_135 = arith.constant 0.000000e+00 : f32
    %426 = vector.shape_cast %420 : vector<1x1xf32> to vector<1x1xf32>
    %427 = vector.broadcast %426 : vector<1x1xf32> to vector<1x4xf32>
    %428 = vector.broadcast %cst_135 : f32 to vector<1x4xf32>
    %429 = arith.select %425, %427, %428 : vector<1x4xi1>, vector<1x4xf32>
    %430 = vector.broadcast %414 : vector<1x1xf32> to vector<1x4xf32>
    %431 = arith.cmpf oeq, %23, %430 : vector<1x4xf32>
    %cst_136 = arith.constant 0.000000e+00 : f32
    %432 = vector.shape_cast %418 : vector<1x1xf32> to vector<1x1xf32>
    %433 = vector.broadcast %432 : vector<1x1xf32> to vector<1x4xf32>
    %434 = vector.broadcast %cst_136 : f32 to vector<1x4xf32>
    %435 = arith.select %431, %433, %434 : vector<1x4xi1>, vector<1x4xf32>
    %436 = arith.addf %429, %435 : vector<1x4xf32>
    %437 = vector.broadcast %415 : vector<1x1xf32> to vector<1x4xf32>
    %438 = arith.cmpf oeq, %21, %437 : vector<1x4xf32>
    %cst_137 = arith.constant 0.000000e+00 : f32
    %439 = vector.shape_cast %423 : vector<1x1xf32> to vector<1x1xf32>
    %440 = vector.broadcast %439 : vector<1x1xf32> to vector<1x4xf32>
    %441 = vector.broadcast %cst_137 : f32 to vector<1x4xf32>
    %442 = arith.select %438, %440, %441 : vector<1x4xi1>, vector<1x4xf32>
    %443 = vector.broadcast %417 : vector<1x1xf32> to vector<1x4xf32>
    %444 = arith.cmpf oeq, %21, %443 : vector<1x4xf32>
    %cst_138 = arith.constant 0.000000e+00 : f32
    %445 = vector.shape_cast %421 : vector<1x1xf32> to vector<1x1xf32>
    %446 = vector.broadcast %445 : vector<1x1xf32> to vector<1x4xf32>
    %447 = vector.broadcast %cst_138 : f32 to vector<1x4xf32>
    %448 = arith.select %444, %446, %447 : vector<1x4xi1>, vector<1x4xf32>
    %449 = arith.addf %442, %448 : vector<1x4xf32>
    %450 = vector.extract_strided_slice %449 {offsets = [0, 0], sizes = [1, 1], strides = [1, 1]} : vector<1x4xf32> to vector<1x1xf32>
    %451 = vector.broadcast %450 : vector<1x1xf32> to vector<1x4xf32>
    %452 = arith.mulf %451, %436 : vector<1x4xf32>
    %453 = vector.extract_strided_slice %449 {offsets = [0, 1], sizes = [1, 1], strides = [1, 1]} : vector<1x4xf32> to vector<1x1xf32>
    %454 = vector.broadcast %453 : vector<1x1xf32> to vector<1x4xf32>
    %455 = arith.mulf %454, %436 : vector<1x4xf32>
    %456 = vector.extract_strided_slice %449 {offsets = [0, 2], sizes = [1, 1], strides = [1, 1]} : vector<1x4xf32> to vector<1x1xf32>
    %457 = vector.broadcast %456 : vector<1x1xf32> to vector<1x4xf32>
    %458 = arith.mulf %457, %436 : vector<1x4xf32>
    %459 = vector.extract_strided_slice %449 {offsets = [0, 3], sizes = [1, 1], strides = [1, 1]} : vector<1x4xf32> to vector<1x1xf32>
    %460 = vector.broadcast %459 : vector<1x1xf32> to vector<1x4xf32>
    %461 = arith.mulf %460, %436 : vector<1x4xf32>
    %462 = tpu.concatenate %452, %455, %458, %461 in 1 : vector<1x4xf32>, vector<1x4xf32>, vector<1x4xf32>, vector<1x4xf32> -> vector<1x16xf32>
    %463 = vector.extract_strided_slice %377 {offsets = [0, 2], sizes = [1, 1], strides = [1, 1]} : vector<8x8xf32> to vector<1x1xf32>
    %464 = vector.extract_strided_slice %377 {offsets = [0, 3], sizes = [1, 1], strides = [1, 1]} : vector<8x8xf32> to vector<1x1xf32>
    %cst_139 = arith.constant 4.000000e+00 : f32
    %465 = vector.broadcast %cst_139 : f32 to vector<1x1xf32>
    %466 = arith.divf %463, %465 : vector<1x1xf32>
    %467 = arith.addf %378, %466 : vector<1x1xf32>
    %cst_140 = arith.constant 4.000000e+00 : f32
    %468 = vector.broadcast %cst_140 : f32 to vector<1x1xf32>
    %469 = arith.divf %464, %468 : vector<1x1xf32>
    %470 = arith.addf %379, %469 : vector<1x1xf32>
    %cst_141 = arith.constant 2.000000e+00 : f32
    %471 = vector.broadcast %cst_141 : f32 to vector<1x1xf32>
    %472 = arith.mulf %471, %467 : vector<1x1xf32>
    %cst_142 = arith.constant 1.000000e+00 : f32
    %473 = vector.broadcast %cst_142 : f32 to vector<1x1xf32>
    %474 = arith.subf %472, %473 : vector<1x1xf32>
    %cst_143 = arith.constant 2.000000e+00 : f32
    %475 = vector.broadcast %cst_143 : f32 to vector<1x1xf32>
    %476 = arith.mulf %475, %470 : vector<1x1xf32>
    %cst_144 = arith.constant 1.000000e+00 : f32
    %477 = vector.broadcast %cst_144 : f32 to vector<1x1xf32>
    %478 = arith.subf %476, %477 : vector<1x1xf32>
    %cst_145 = arith.constant 1.000000e+00 : f32
    %479 = vector.broadcast %cst_145 : f32 to vector<1x1xf32>
    %480 = arith.addf %474, %479 : vector<1x1xf32>
    %cst_146 = arith.constant 4.000000e+00 : f32
    %481 = vector.broadcast %cst_146 : f32 to vector<1x1xf32>
    %482 = arith.mulf %480, %481 : vector<1x1xf32>
    %cst_147 = arith.constant 1.000000e+00 : f32
    %483 = vector.broadcast %cst_147 : f32 to vector<1x1xf32>
    %484 = arith.subf %482, %483 : vector<1x1xf32>
    %cst_148 = arith.constant 2.000000e+00 : f32
    %485 = vector.broadcast %cst_148 : f32 to vector<1x1xf32>
    %486 = arith.divf %484, %485 : vector<1x1xf32>
    %cst_149 = arith.constant 1.000000e+00 : f32
    %487 = vector.broadcast %cst_149 : f32 to vector<1x1xf32>
    %488 = arith.addf %478, %487 : vector<1x1xf32>
    %cst_150 = arith.constant 4.000000e+00 : f32
    %489 = vector.broadcast %cst_150 : f32 to vector<1x1xf32>
    %490 = arith.mulf %488, %489 : vector<1x1xf32>
    %cst_151 = arith.constant 1.000000e+00 : f32
    %491 = vector.broadcast %cst_151 : f32 to vector<1x1xf32>
    %492 = arith.subf %490, %491 : vector<1x1xf32>
    %cst_152 = arith.constant 2.000000e+00 : f32
    %493 = vector.broadcast %cst_152 : f32 to vector<1x1xf32>
    %494 = arith.divf %492, %493 : vector<1x1xf32>
    %495 = math.floor %486 : vector<1x1xf32>
    %cst_153 = arith.constant 1.000000e+00 : f32
    %496 = vector.broadcast %cst_153 : f32 to vector<1x1xf32>
    %497 = arith.addf %495, %496 : vector<1x1xf32>
    %498 = math.floor %494 : vector<1x1xf32>
    %cst_154 = arith.constant 1.000000e+00 : f32
    %499 = vector.broadcast %cst_154 : f32 to vector<1x1xf32>
    %500 = arith.addf %498, %499 : vector<1x1xf32>
    %501 = arith.subf %486, %495 : vector<1x1xf32>
    %cst_155 = arith.constant 1.000000e+00 : f32
    %502 = vector.broadcast %cst_155 : f32 to vector<1x1xf32>
    %503 = arith.subf %502, %501 : vector<1x1xf32>
    %504 = arith.subf %494, %498 : vector<1x1xf32>
    %cst_156 = arith.constant 1.000000e+00 : f32
    %505 = vector.broadcast %cst_156 : f32 to vector<1x1xf32>
    %506 = arith.subf %505, %504 : vector<1x1xf32>
    %507 = vector.broadcast %495 : vector<1x1xf32> to vector<1x4xf32>
    %508 = arith.cmpf oeq, %23, %507 : vector<1x4xf32>
    %cst_157 = arith.constant 0.000000e+00 : f32
    %509 = vector.shape_cast %503 : vector<1x1xf32> to vector<1x1xf32>
    %510 = vector.broadcast %509 : vector<1x1xf32> to vector<1x4xf32>
    %511 = vector.broadcast %cst_157 : f32 to vector<1x4xf32>
    %512 = arith.select %508, %510, %511 : vector<1x4xi1>, vector<1x4xf32>
    %513 = vector.broadcast %497 : vector<1x1xf32> to vector<1x4xf32>
    %514 = arith.cmpf oeq, %23, %513 : vector<1x4xf32>
    %cst_158 = arith.constant 0.000000e+00 : f32
    %515 = vector.shape_cast %501 : vector<1x1xf32> to vector<1x1xf32>
    %516 = vector.broadcast %515 : vector<1x1xf32> to vector<1x4xf32>
    %517 = vector.broadcast %cst_158 : f32 to vector<1x4xf32>
    %518 = arith.select %514, %516, %517 : vector<1x4xi1>, vector<1x4xf32>
    %519 = arith.addf %512, %518 : vector<1x4xf32>
    %520 = vector.broadcast %498 : vector<1x1xf32> to vector<1x4xf32>
    %521 = arith.cmpf oeq, %21, %520 : vector<1x4xf32>
    %cst_159 = arith.constant 0.000000e+00 : f32
    %522 = vector.shape_cast %506 : vector<1x1xf32> to vector<1x1xf32>
    %523 = vector.broadcast %522 : vector<1x1xf32> to vector<1x4xf32>
    %524 = vector.broadcast %cst_159 : f32 to vector<1x4xf32>
    %525 = arith.select %521, %523, %524 : vector<1x4xi1>, vector<1x4xf32>
    %526 = vector.broadcast %500 : vector<1x1xf32> to vector<1x4xf32>
    %527 = arith.cmpf oeq, %21, %526 : vector<1x4xf32>
    %cst_160 = arith.constant 0.000000e+00 : f32
    %528 = vector.shape_cast %504 : vector<1x1xf32> to vector<1x1xf32>
    %529 = vector.broadcast %528 : vector<1x1xf32> to vector<1x4xf32>
    %530 = vector.broadcast %cst_160 : f32 to vector<1x4xf32>
    %531 = arith.select %527, %529, %530 : vector<1x4xi1>, vector<1x4xf32>
    %532 = arith.addf %525, %531 : vector<1x4xf32>
    %533 = vector.extract_strided_slice %532 {offsets = [0, 0], sizes = [1, 1], strides = [1, 1]} : vector<1x4xf32> to vector<1x1xf32>
    %534 = vector.broadcast %533 : vector<1x1xf32> to vector<1x4xf32>
    %535 = arith.mulf %534, %519 : vector<1x4xf32>
    %536 = vector.extract_strided_slice %532 {offsets = [0, 1], sizes = [1, 1], strides = [1, 1]} : vector<1x4xf32> to vector<1x1xf32>
    %537 = vector.broadcast %536 : vector<1x1xf32> to vector<1x4xf32>
    %538 = arith.mulf %537, %519 : vector<1x4xf32>
    %539 = vector.extract_strided_slice %532 {offsets = [0, 2], sizes = [1, 1], strides = [1, 1]} : vector<1x4xf32> to vector<1x1xf32>
    %540 = vector.broadcast %539 : vector<1x1xf32> to vector<1x4xf32>
    %541 = arith.mulf %540, %519 : vector<1x4xf32>
    %542 = vector.extract_strided_slice %532 {offsets = [0, 3], sizes = [1, 1], strides = [1, 1]} : vector<1x4xf32> to vector<1x1xf32>
    %543 = vector.broadcast %542 : vector<1x1xf32> to vector<1x4xf32>
    %544 = arith.mulf %543, %519 : vector<1x4xf32>
    %545 = tpu.concatenate %535, %538, %541, %544 in 1 : vector<1x4xf32>, vector<1x4xf32>, vector<1x4xf32>, vector<1x4xf32> -> vector<1x16xf32>
    %546 = vector.extract_strided_slice %377 {offsets = [0, 4], sizes = [1, 1], strides = [1, 1]} : vector<8x8xf32> to vector<1x1xf32>
    %547 = vector.extract_strided_slice %377 {offsets = [0, 5], sizes = [1, 1], strides = [1, 1]} : vector<8x8xf32> to vector<1x1xf32>
    %cst_161 = arith.constant 4.000000e+00 : f32
    %548 = vector.broadcast %cst_161 : f32 to vector<1x1xf32>
    %549 = arith.divf %546, %548 : vector<1x1xf32>
    %550 = arith.addf %378, %549 : vector<1x1xf32>
    %cst_162 = arith.constant 4.000000e+00 : f32
    %551 = vector.broadcast %cst_162 : f32 to vector<1x1xf32>
    %552 = arith.divf %547, %551 : vector<1x1xf32>
    %553 = arith.addf %379, %552 : vector<1x1xf32>
    %cst_163 = arith.constant 2.000000e+00 : f32
    %554 = vector.broadcast %cst_163 : f32 to vector<1x1xf32>
    %555 = arith.mulf %554, %550 : vector<1x1xf32>
    %cst_164 = arith.constant 1.000000e+00 : f32
    %556 = vector.broadcast %cst_164 : f32 to vector<1x1xf32>
    %557 = arith.subf %555, %556 : vector<1x1xf32>
    %cst_165 = arith.constant 2.000000e+00 : f32
    %558 = vector.broadcast %cst_165 : f32 to vector<1x1xf32>
    %559 = arith.mulf %558, %553 : vector<1x1xf32>
    %cst_166 = arith.constant 1.000000e+00 : f32
    %560 = vector.broadcast %cst_166 : f32 to vector<1x1xf32>
    %561 = arith.subf %559, %560 : vector<1x1xf32>
    %cst_167 = arith.constant 1.000000e+00 : f32
    %562 = vector.broadcast %cst_167 : f32 to vector<1x1xf32>
    %563 = arith.addf %557, %562 : vector<1x1xf32>
    %cst_168 = arith.constant 4.000000e+00 : f32
    %564 = vector.broadcast %cst_168 : f32 to vector<1x1xf32>
    %565 = arith.mulf %563, %564 : vector<1x1xf32>
    %cst_169 = arith.constant 1.000000e+00 : f32
    %566 = vector.broadcast %cst_169 : f32 to vector<1x1xf32>
    %567 = arith.subf %565, %566 : vector<1x1xf32>
    %cst_170 = arith.constant 2.000000e+00 : f32
    %568 = vector.broadcast %cst_170 : f32 to vector<1x1xf32>
    %569 = arith.divf %567, %568 : vector<1x1xf32>
    %cst_171 = arith.constant 1.000000e+00 : f32
    %570 = vector.broadcast %cst_171 : f32 to vector<1x1xf32>
    %571 = arith.addf %561, %570 : vector<1x1xf32>
    %cst_172 = arith.constant 4.000000e+00 : f32
    %572 = vector.broadcast %cst_172 : f32 to vector<1x1xf32>
    %573 = arith.mulf %571, %572 : vector<1x1xf32>
    %cst_173 = arith.constant 1.000000e+00 : f32
    %574 = vector.broadcast %cst_173 : f32 to vector<1x1xf32>
    %575 = arith.subf %573, %574 : vector<1x1xf32>
    %cst_174 = arith.constant 2.000000e+00 : f32
    %576 = vector.broadcast %cst_174 : f32 to vector<1x1xf32>
    %577 = arith.divf %575, %576 : vector<1x1xf32>
    %578 = math.floor %569 : vector<1x1xf32>
    %cst_175 = arith.constant 1.000000e+00 : f32
    %579 = vector.broadcast %cst_175 : f32 to vector<1x1xf32>
    %580 = arith.addf %578, %579 : vector<1x1xf32>
    %581 = math.floor %577 : vector<1x1xf32>
    %cst_176 = arith.constant 1.000000e+00 : f32
    %582 = vector.broadcast %cst_176 : f32 to vector<1x1xf32>
    %583 = arith.addf %581, %582 : vector<1x1xf32>
    %584 = arith.subf %569, %578 : vector<1x1xf32>
    %cst_177 = arith.constant 1.000000e+00 : f32
    %585 = vector.broadcast %cst_177 : f32 to vector<1x1xf32>
    %586 = arith.subf %585, %584 : vector<1x1xf32>
    %587 = arith.subf %577, %581 : vector<1x1xf32>
    %cst_178 = arith.constant 1.000000e+00 : f32
    %588 = vector.broadcast %cst_178 : f32 to vector<1x1xf32>
    %589 = arith.subf %588, %587 : vector<1x1xf32>
    %590 = vector.broadcast %578 : vector<1x1xf32> to vector<1x4xf32>
    %591 = arith.cmpf oeq, %23, %590 : vector<1x4xf32>
    %cst_179 = arith.constant 0.000000e+00 : f32
    %592 = vector.shape_cast %586 : vector<1x1xf32> to vector<1x1xf32>
    %593 = vector.broadcast %592 : vector<1x1xf32> to vector<1x4xf32>
    %594 = vector.broadcast %cst_179 : f32 to vector<1x4xf32>
    %595 = arith.select %591, %593, %594 : vector<1x4xi1>, vector<1x4xf32>
    %596 = vector.broadcast %580 : vector<1x1xf32> to vector<1x4xf32>
    %597 = arith.cmpf oeq, %23, %596 : vector<1x4xf32>
    %cst_180 = arith.constant 0.000000e+00 : f32
    %598 = vector.shape_cast %584 : vector<1x1xf32> to vector<1x1xf32>
    %599 = vector.broadcast %598 : vector<1x1xf32> to vector<1x4xf32>
    %600 = vector.broadcast %cst_180 : f32 to vector<1x4xf32>
    %601 = arith.select %597, %599, %600 : vector<1x4xi1>, vector<1x4xf32>
    %602 = arith.addf %595, %601 : vector<1x4xf32>
    %603 = vector.broadcast %581 : vector<1x1xf32> to vector<1x4xf32>
    %604 = arith.cmpf oeq, %21, %603 : vector<1x4xf32>
    %cst_181 = arith.constant 0.000000e+00 : f32
    %605 = vector.shape_cast %589 : vector<1x1xf32> to vector<1x1xf32>
    %606 = vector.broadcast %605 : vector<1x1xf32> to vector<1x4xf32>
    %607 = vector.broadcast %cst_181 : f32 to vector<1x4xf32>
    %608 = arith.select %604, %606, %607 : vector<1x4xi1>, vector<1x4xf32>
    %609 = vector.broadcast %583 : vector<1x1xf32> to vector<1x4xf32>
    %610 = arith.cmpf oeq, %21, %609 : vector<1x4xf32>
    %cst_182 = arith.constant 0.000000e+00 : f32
    %611 = vector.shape_cast %587 : vector<1x1xf32> to vector<1x1xf32>
    %612 = vector.broadcast %611 : vector<1x1xf32> to vector<1x4xf32>
    %613 = vector.broadcast %cst_182 : f32 to vector<1x4xf32>
    %614 = arith.select %610, %612, %613 : vector<1x4xi1>, vector<1x4xf32>
    %615 = arith.addf %608, %614 : vector<1x4xf32>
    %616 = vector.extract_strided_slice %615 {offsets = [0, 0], sizes = [1, 1], strides = [1, 1]} : vector<1x4xf32> to vector<1x1xf32>
    %617 = vector.broadcast %616 : vector<1x1xf32> to vector<1x4xf32>
    %618 = arith.mulf %617, %602 : vector<1x4xf32>
    %619 = vector.extract_strided_slice %615 {offsets = [0, 1], sizes = [1, 1], strides = [1, 1]} : vector<1x4xf32> to vector<1x1xf32>
    %620 = vector.broadcast %619 : vector<1x1xf32> to vector<1x4xf32>
    %621 = arith.mulf %620, %602 : vector<1x4xf32>
    %622 = vector.extract_strided_slice %615 {offsets = [0, 2], sizes = [1, 1], strides = [1, 1]} : vector<1x4xf32> to vector<1x1xf32>
    %623 = vector.broadcast %622 : vector<1x1xf32> to vector<1x4xf32>
    %624 = arith.mulf %623, %602 : vector<1x4xf32>
    %625 = vector.extract_strided_slice %615 {offsets = [0, 3], sizes = [1, 1], strides = [1, 1]} : vector<1x4xf32> to vector<1x1xf32>
    %626 = vector.broadcast %625 : vector<1x1xf32> to vector<1x4xf32>
    %627 = arith.mulf %626, %602 : vector<1x4xf32>
    %628 = tpu.concatenate %618, %621, %624, %627 in 1 : vector<1x4xf32>, vector<1x4xf32>, vector<1x4xf32>, vector<1x4xf32> -> vector<1x16xf32>
    %629 = vector.extract_strided_slice %377 {offsets = [0, 6], sizes = [1, 1], strides = [1, 1]} : vector<8x8xf32> to vector<1x1xf32>
    %630 = vector.extract_strided_slice %377 {offsets = [0, 7], sizes = [1, 1], strides = [1, 1]} : vector<8x8xf32> to vector<1x1xf32>
    %cst_183 = arith.constant 4.000000e+00 : f32
    %631 = vector.broadcast %cst_183 : f32 to vector<1x1xf32>
    %632 = arith.divf %629, %631 : vector<1x1xf32>
    %633 = arith.addf %378, %632 : vector<1x1xf32>
    %cst_184 = arith.constant 4.000000e+00 : f32
    %634 = vector.broadcast %cst_184 : f32 to vector<1x1xf32>
    %635 = arith.divf %630, %634 : vector<1x1xf32>
    %636 = arith.addf %379, %635 : vector<1x1xf32>
    %cst_185 = arith.constant 2.000000e+00 : f32
    %637 = vector.broadcast %cst_185 : f32 to vector<1x1xf32>
    %638 = arith.mulf %637, %633 : vector<1x1xf32>
    %cst_186 = arith.constant 1.000000e+00 : f32
    %639 = vector.broadcast %cst_186 : f32 to vector<1x1xf32>
    %640 = arith.subf %638, %639 : vector<1x1xf32>
    %cst_187 = arith.constant 2.000000e+00 : f32
    %641 = vector.broadcast %cst_187 : f32 to vector<1x1xf32>
    %642 = arith.mulf %641, %636 : vector<1x1xf32>
    %cst_188 = arith.constant 1.000000e+00 : f32
    %643 = vector.broadcast %cst_188 : f32 to vector<1x1xf32>
    %644 = arith.subf %642, %643 : vector<1x1xf32>
    %cst_189 = arith.constant 1.000000e+00 : f32
    %645 = vector.broadcast %cst_189 : f32 to vector<1x1xf32>
    %646 = arith.addf %640, %645 : vector<1x1xf32>
    %cst_190 = arith.constant 4.000000e+00 : f32
    %647 = vector.broadcast %cst_190 : f32 to vector<1x1xf32>
    %648 = arith.mulf %646, %647 : vector<1x1xf32>
    %cst_191 = arith.constant 1.000000e+00 : f32
    %649 = vector.broadcast %cst_191 : f32 to vector<1x1xf32>
    %650 = arith.subf %648, %649 : vector<1x1xf32>
    %cst_192 = arith.constant 2.000000e+00 : f32
    %651 = vector.broadcast %cst_192 : f32 to vector<1x1xf32>
    %652 = arith.divf %650, %651 : vector<1x1xf32>
    %cst_193 = arith.constant 1.000000e+00 : f32
    %653 = vector.broadcast %cst_193 : f32 to vector<1x1xf32>
    %654 = arith.addf %644, %653 : vector<1x1xf32>
    %cst_194 = arith.constant 4.000000e+00 : f32
    %655 = vector.broadcast %cst_194 : f32 to vector<1x1xf32>
    %656 = arith.mulf %654, %655 : vector<1x1xf32>
    %cst_195 = arith.constant 1.000000e+00 : f32
    %657 = vector.broadcast %cst_195 : f32 to vector<1x1xf32>
    %658 = arith.subf %656, %657 : vector<1x1xf32>
    %cst_196 = arith.constant 2.000000e+00 : f32
    %659 = vector.broadcast %cst_196 : f32 to vector<1x1xf32>
    %660 = arith.divf %658, %659 : vector<1x1xf32>
    %661 = math.floor %652 : vector<1x1xf32>
    %cst_197 = arith.constant 1.000000e+00 : f32
    %662 = vector.broadcast %cst_197 : f32 to vector<1x1xf32>
    %663 = arith.addf %661, %662 : vector<1x1xf32>
    %664 = math.floor %660 : vector<1x1xf32>
    %cst_198 = arith.constant 1.000000e+00 : f32
    %665 = vector.broadcast %cst_198 : f32 to vector<1x1xf32>
    %666 = arith.addf %664, %665 : vector<1x1xf32>
    %667 = arith.subf %652, %661 : vector<1x1xf32>
    %cst_199 = arith.constant 1.000000e+00 : f32
    %668 = vector.broadcast %cst_199 : f32 to vector<1x1xf32>
    %669 = arith.subf %668, %667 : vector<1x1xf32>
    %670 = arith.subf %660, %664 : vector<1x1xf32>
    %cst_200 = arith.constant 1.000000e+00 : f32
    %671 = vector.broadcast %cst_200 : f32 to vector<1x1xf32>
    %672 = arith.subf %671, %670 : vector<1x1xf32>
    %673 = vector.broadcast %661 : vector<1x1xf32> to vector<1x4xf32>
    %674 = arith.cmpf oeq, %23, %673 : vector<1x4xf32>
    %cst_201 = arith.constant 0.000000e+00 : f32
    %675 = vector.shape_cast %669 : vector<1x1xf32> to vector<1x1xf32>
    %676 = vector.broadcast %675 : vector<1x1xf32> to vector<1x4xf32>
    %677 = vector.broadcast %cst_201 : f32 to vector<1x4xf32>
    %678 = arith.select %674, %676, %677 : vector<1x4xi1>, vector<1x4xf32>
    %679 = vector.broadcast %663 : vector<1x1xf32> to vector<1x4xf32>
    %680 = arith.cmpf oeq, %23, %679 : vector<1x4xf32>
    %cst_202 = arith.constant 0.000000e+00 : f32
    %681 = vector.shape_cast %667 : vector<1x1xf32> to vector<1x1xf32>
    %682 = vector.broadcast %681 : vector<1x1xf32> to vector<1x4xf32>
    %683 = vector.broadcast %cst_202 : f32 to vector<1x4xf32>
    %684 = arith.select %680, %682, %683 : vector<1x4xi1>, vector<1x4xf32>
    %685 = arith.addf %678, %684 : vector<1x4xf32>
    %686 = vector.broadcast %664 : vector<1x1xf32> to vector<1x4xf32>
    %687 = arith.cmpf oeq, %21, %686 : vector<1x4xf32>
    %cst_203 = arith.constant 0.000000e+00 : f32
    %688 = vector.shape_cast %672 : vector<1x1xf32> to vector<1x1xf32>
    %689 = vector.broadcast %688 : vector<1x1xf32> to vector<1x4xf32>
    %690 = vector.broadcast %cst_203 : f32 to vector<1x4xf32>
    %691 = arith.select %687, %689, %690 : vector<1x4xi1>, vector<1x4xf32>
    %692 = vector.broadcast %666 : vector<1x1xf32> to vector<1x4xf32>
    %693 = arith.cmpf oeq, %21, %692 : vector<1x4xf32>
    %cst_204 = arith.constant 0.000000e+00 : f32
    %694 = vector.shape_cast %670 : vector<1x1xf32> to vector<1x1xf32>
    %695 = vector.broadcast %694 : vector<1x1xf32> to vector<1x4xf32>
    %696 = vector.broadcast %cst_204 : f32 to vector<1x4xf32>
    %697 = arith.select %693, %695, %696 : vector<1x4xi1>, vector<1x4xf32>
    %698 = arith.addf %691, %697 : vector<1x4xf32>
    %699 = vector.extract_strided_slice %698 {offsets = [0, 0], sizes = [1, 1], strides = [1, 1]} : vector<1x4xf32> to vector<1x1xf32>
    %700 = vector.broadcast %699 : vector<1x1xf32> to vector<1x4xf32>
    %701 = arith.mulf %700, %685 : vector<1x4xf32>
    %702 = vector.extract_strided_slice %698 {offsets = [0, 1], sizes = [1, 1], strides = [1, 1]} : vector<1x4xf32> to vector<1x1xf32>
    %703 = vector.broadcast %702 : vector<1x1xf32> to vector<1x4xf32>
    %704 = arith.mulf %703, %685 : vector<1x4xf32>
    %705 = vector.extract_strided_slice %698 {offsets = [0, 2], sizes = [1, 1], strides = [1, 1]} : vector<1x4xf32> to vector<1x1xf32>
    %706 = vector.broadcast %705 : vector<1x1xf32> to vector<1x4xf32>
    %707 = arith.mulf %706, %685 : vector<1x4xf32>
    %708 = vector.extract_strided_slice %698 {offsets = [0, 3], sizes = [1, 1], strides = [1, 1]} : vector<1x4xf32> to vector<1x1xf32>
    %709 = vector.broadcast %708 : vector<1x1xf32> to vector<1x4xf32>
    %710 = arith.mulf %709, %685 : vector<1x4xf32>
    %711 = tpu.concatenate %701, %704, %707, %710 in 1 : vector<1x4xf32>, vector<1x4xf32>, vector<1x4xf32>, vector<1x4xf32> -> vector<1x16xf32>
    %712 = tpu.concatenate %462, %545, %628, %711 in 0 : vector<1x16xf32>, vector<1x16xf32>, vector<1x16xf32>, vector<1x16xf32> -> vector<4x16xf32>
    %713 = vector.extract_strided_slice %3 {offsets = [0, 8], sizes = [16, 8], strides = [1, 1]} : vector<16x32xf32> to vector<16x8xf32>
    %cst_205 = arith.constant dense<0.000000e+00> : vector<4x8xf32>
    %714 = tpu.matmul %712, %713, %cst_205 {dimension_numbers = #tpu.dot_dimension_numbers<[1], [0], [0], [1], [0, 0, 1, 1], [], []>} : vector<4x16xf32>, vector<16x8xf32>, vector<4x8xf32> -> vector<4x8xf32>
    %cst_206 = arith.constant dense<0.000000e+00> : vector<4x8xf32>
    %715 = tpu.matmul %714, %8, %cst_206 {dimension_numbers = #tpu.dot_dimension_numbers<[1], [0], [0], [1], [0, 0, 1, 1], [], []>} : vector<4x8xf32>, vector<8x8xf32>, vector<4x8xf32> -> vector<4x8xf32>
    %716 = vector.broadcast %9 : vector<1x8xf32> to vector<4x8xf32>
    %717 = arith.addf %715, %716 : vector<4x8xf32>
    %cst_207 = arith.constant dense<0.000000e+00> : vector<8x4xf32>
    %718 = tpu.matmul %376, %717, %cst_207 {dimension_numbers = #tpu.dot_dimension_numbers<[1], [1], [0], [0], [0, 0, 1, 0], [], []>} : vector<8x8xf32>, vector<4x8xf32>, vector<8x4xf32> -> vector<8x4xf32>
    %cst_208 = arith.constant dense<0xFF800000> : vector<8xf32>
    %719 = vector.multi_reduction <maximumf>, %718, %cst_208 [1] : vector<8x4xf32> to vector<8xf32>
    %720 = vector.shape_cast %719 : vector<8xf32> to vector<8x1xf32>
    %721 = vector.broadcast %720 : vector<8x1xf32> to vector<8x4xf32>
    %722 = arith.subf %718, %721 : vector<8x4xf32>
    %723 = math.exp %722 : vector<8x4xf32>
    %cst_209 = arith.constant dense<0.000000e+00> : vector<8xf32>
    %724 = vector.multi_reduction <add>, %723, %cst_209 [1] : vector<8x4xf32> to vector<8xf32>
    %725 = vector.shape_cast %724 : vector<8xf32> to vector<8x1xf32>
    %726 = vector.broadcast %725 : vector<8x1xf32> to vector<8x4xf32>
    %727 = arith.divf %723, %726 : vector<8x4xf32>
    %728 = vector.extract_strided_slice %14 {offsets = [0, 16], sizes = [8, 8], strides = [1, 1]} : vector<8x32xf32> to vector<8x8xf32>
    %729 = vector.extract_strided_slice %19 {offsets = [0, 16], sizes = [8, 8], strides = [1, 1]} : vector<8x32xf32> to vector<8x8xf32>
    %730 = vector.extract_strided_slice %7 {offsets = [0, 0], sizes = [1, 1], strides = [1, 1]} : vector<8x2xf32> to vector<1x1xf32>
    %731 = vector.extract_strided_slice %7 {offsets = [0, 1], sizes = [1, 1], strides = [1, 1]} : vector<8x2xf32> to vector<1x1xf32>
    %732 = vector.extract_strided_slice %729 {offsets = [0, 0], sizes = [1, 1], strides = [1, 1]} : vector<8x8xf32> to vector<1x1xf32>
    %733 = vector.extract_strided_slice %729 {offsets = [0, 1], sizes = [1, 1], strides = [1, 1]} : vector<8x8xf32> to vector<1x1xf32>
    %cst_210 = arith.constant 4.000000e+00 : f32
    %734 = vector.broadcast %cst_210 : f32 to vector<1x1xf32>
    %735 = arith.divf %732, %734 : vector<1x1xf32>
    %736 = arith.addf %730, %735 : vector<1x1xf32>
    %cst_211 = arith.constant 4.000000e+00 : f32
    %737 = vector.broadcast %cst_211 : f32 to vector<1x1xf32>
    %738 = arith.divf %733, %737 : vector<1x1xf32>
    %739 = arith.addf %731, %738 : vector<1x1xf32>
    %cst_212 = arith.constant 2.000000e+00 : f32
    %740 = vector.broadcast %cst_212 : f32 to vector<1x1xf32>
    %741 = arith.mulf %740, %736 : vector<1x1xf32>
    %cst_213 = arith.constant 1.000000e+00 : f32
    %742 = vector.broadcast %cst_213 : f32 to vector<1x1xf32>
    %743 = arith.subf %741, %742 : vector<1x1xf32>
    %cst_214 = arith.constant 2.000000e+00 : f32
    %744 = vector.broadcast %cst_214 : f32 to vector<1x1xf32>
    %745 = arith.mulf %744, %739 : vector<1x1xf32>
    %cst_215 = arith.constant 1.000000e+00 : f32
    %746 = vector.broadcast %cst_215 : f32 to vector<1x1xf32>
    %747 = arith.subf %745, %746 : vector<1x1xf32>
    %cst_216 = arith.constant 1.000000e+00 : f32
    %748 = vector.broadcast %cst_216 : f32 to vector<1x1xf32>
    %749 = arith.addf %743, %748 : vector<1x1xf32>
    %cst_217 = arith.constant 4.000000e+00 : f32
    %750 = vector.broadcast %cst_217 : f32 to vector<1x1xf32>
    %751 = arith.mulf %749, %750 : vector<1x1xf32>
    %cst_218 = arith.constant 1.000000e+00 : f32
    %752 = vector.broadcast %cst_218 : f32 to vector<1x1xf32>
    %753 = arith.subf %751, %752 : vector<1x1xf32>
    %cst_219 = arith.constant 2.000000e+00 : f32
    %754 = vector.broadcast %cst_219 : f32 to vector<1x1xf32>
    %755 = arith.divf %753, %754 : vector<1x1xf32>
    %cst_220 = arith.constant 1.000000e+00 : f32
    %756 = vector.broadcast %cst_220 : f32 to vector<1x1xf32>
    %757 = arith.addf %747, %756 : vector<1x1xf32>
    %cst_221 = arith.constant 4.000000e+00 : f32
    %758 = vector.broadcast %cst_221 : f32 to vector<1x1xf32>
    %759 = arith.mulf %757, %758 : vector<1x1xf32>
    %cst_222 = arith.constant 1.000000e+00 : f32
    %760 = vector.broadcast %cst_222 : f32 to vector<1x1xf32>
    %761 = arith.subf %759, %760 : vector<1x1xf32>
    %cst_223 = arith.constant 2.000000e+00 : f32
    %762 = vector.broadcast %cst_223 : f32 to vector<1x1xf32>
    %763 = arith.divf %761, %762 : vector<1x1xf32>
    %764 = math.floor %755 : vector<1x1xf32>
    %cst_224 = arith.constant 1.000000e+00 : f32
    %765 = vector.broadcast %cst_224 : f32 to vector<1x1xf32>
    %766 = arith.addf %764, %765 : vector<1x1xf32>
    %767 = math.floor %763 : vector<1x1xf32>
    %cst_225 = arith.constant 1.000000e+00 : f32
    %768 = vector.broadcast %cst_225 : f32 to vector<1x1xf32>
    %769 = arith.addf %767, %768 : vector<1x1xf32>
    %770 = arith.subf %755, %764 : vector<1x1xf32>
    %cst_226 = arith.constant 1.000000e+00 : f32
    %771 = vector.broadcast %cst_226 : f32 to vector<1x1xf32>
    %772 = arith.subf %771, %770 : vector<1x1xf32>
    %773 = arith.subf %763, %767 : vector<1x1xf32>
    %cst_227 = arith.constant 1.000000e+00 : f32
    %774 = vector.broadcast %cst_227 : f32 to vector<1x1xf32>
    %775 = arith.subf %774, %773 : vector<1x1xf32>
    %776 = vector.broadcast %764 : vector<1x1xf32> to vector<1x4xf32>
    %777 = arith.cmpf oeq, %23, %776 : vector<1x4xf32>
    %cst_228 = arith.constant 0.000000e+00 : f32
    %778 = vector.shape_cast %772 : vector<1x1xf32> to vector<1x1xf32>
    %779 = vector.broadcast %778 : vector<1x1xf32> to vector<1x4xf32>
    %780 = vector.broadcast %cst_228 : f32 to vector<1x4xf32>
    %781 = arith.select %777, %779, %780 : vector<1x4xi1>, vector<1x4xf32>
    %782 = vector.broadcast %766 : vector<1x1xf32> to vector<1x4xf32>
    %783 = arith.cmpf oeq, %23, %782 : vector<1x4xf32>
    %cst_229 = arith.constant 0.000000e+00 : f32
    %784 = vector.shape_cast %770 : vector<1x1xf32> to vector<1x1xf32>
    %785 = vector.broadcast %784 : vector<1x1xf32> to vector<1x4xf32>
    %786 = vector.broadcast %cst_229 : f32 to vector<1x4xf32>
    %787 = arith.select %783, %785, %786 : vector<1x4xi1>, vector<1x4xf32>
    %788 = arith.addf %781, %787 : vector<1x4xf32>
    %789 = vector.broadcast %767 : vector<1x1xf32> to vector<1x4xf32>
    %790 = arith.cmpf oeq, %21, %789 : vector<1x4xf32>
    %cst_230 = arith.constant 0.000000e+00 : f32
    %791 = vector.shape_cast %775 : vector<1x1xf32> to vector<1x1xf32>
    %792 = vector.broadcast %791 : vector<1x1xf32> to vector<1x4xf32>
    %793 = vector.broadcast %cst_230 : f32 to vector<1x4xf32>
    %794 = arith.select %790, %792, %793 : vector<1x4xi1>, vector<1x4xf32>
    %795 = vector.broadcast %769 : vector<1x1xf32> to vector<1x4xf32>
    %796 = arith.cmpf oeq, %21, %795 : vector<1x4xf32>
    %cst_231 = arith.constant 0.000000e+00 : f32
    %797 = vector.shape_cast %773 : vector<1x1xf32> to vector<1x1xf32>
    %798 = vector.broadcast %797 : vector<1x1xf32> to vector<1x4xf32>
    %799 = vector.broadcast %cst_231 : f32 to vector<1x4xf32>
    %800 = arith.select %796, %798, %799 : vector<1x4xi1>, vector<1x4xf32>
    %801 = arith.addf %794, %800 : vector<1x4xf32>
    %802 = vector.extract_strided_slice %801 {offsets = [0, 0], sizes = [1, 1], strides = [1, 1]} : vector<1x4xf32> to vector<1x1xf32>
    %803 = vector.broadcast %802 : vector<1x1xf32> to vector<1x4xf32>
    %804 = arith.mulf %803, %788 : vector<1x4xf32>
    %805 = vector.extract_strided_slice %801 {offsets = [0, 1], sizes = [1, 1], strides = [1, 1]} : vector<1x4xf32> to vector<1x1xf32>
    %806 = vector.broadcast %805 : vector<1x1xf32> to vector<1x4xf32>
    %807 = arith.mulf %806, %788 : vector<1x4xf32>
    %808 = vector.extract_strided_slice %801 {offsets = [0, 2], sizes = [1, 1], strides = [1, 1]} : vector<1x4xf32> to vector<1x1xf32>
    %809 = vector.broadcast %808 : vector<1x1xf32> to vector<1x4xf32>
    %810 = arith.mulf %809, %788 : vector<1x4xf32>
    %811 = vector.extract_strided_slice %801 {offsets = [0, 3], sizes = [1, 1], strides = [1, 1]} : vector<1x4xf32> to vector<1x1xf32>
    %812 = vector.broadcast %811 : vector<1x1xf32> to vector<1x4xf32>
    %813 = arith.mulf %812, %788 : vector<1x4xf32>
    %814 = tpu.concatenate %804, %807, %810, %813 in 1 : vector<1x4xf32>, vector<1x4xf32>, vector<1x4xf32>, vector<1x4xf32> -> vector<1x16xf32>
    %815 = vector.extract_strided_slice %729 {offsets = [0, 2], sizes = [1, 1], strides = [1, 1]} : vector<8x8xf32> to vector<1x1xf32>
    %816 = vector.extract_strided_slice %729 {offsets = [0, 3], sizes = [1, 1], strides = [1, 1]} : vector<8x8xf32> to vector<1x1xf32>
    %cst_232 = arith.constant 4.000000e+00 : f32
    %817 = vector.broadcast %cst_232 : f32 to vector<1x1xf32>
    %818 = arith.divf %815, %817 : vector<1x1xf32>
    %819 = arith.addf %730, %818 : vector<1x1xf32>
    %cst_233 = arith.constant 4.000000e+00 : f32
    %820 = vector.broadcast %cst_233 : f32 to vector<1x1xf32>
    %821 = arith.divf %816, %820 : vector<1x1xf32>
    %822 = arith.addf %731, %821 : vector<1x1xf32>
    %cst_234 = arith.constant 2.000000e+00 : f32
    %823 = vector.broadcast %cst_234 : f32 to vector<1x1xf32>
    %824 = arith.mulf %823, %819 : vector<1x1xf32>
    %cst_235 = arith.constant 1.000000e+00 : f32
    %825 = vector.broadcast %cst_235 : f32 to vector<1x1xf32>
    %826 = arith.subf %824, %825 : vector<1x1xf32>
    %cst_236 = arith.constant 2.000000e+00 : f32
    %827 = vector.broadcast %cst_236 : f32 to vector<1x1xf32>
    %828 = arith.mulf %827, %822 : vector<1x1xf32>
    %cst_237 = arith.constant 1.000000e+00 : f32
    %829 = vector.broadcast %cst_237 : f32 to vector<1x1xf32>
    %830 = arith.subf %828, %829 : vector<1x1xf32>
    %cst_238 = arith.constant 1.000000e+00 : f32
    %831 = vector.broadcast %cst_238 : f32 to vector<1x1xf32>
    %832 = arith.addf %826, %831 : vector<1x1xf32>
    %cst_239 = arith.constant 4.000000e+00 : f32
    %833 = vector.broadcast %cst_239 : f32 to vector<1x1xf32>
    %834 = arith.mulf %832, %833 : vector<1x1xf32>
    %cst_240 = arith.constant 1.000000e+00 : f32
    %835 = vector.broadcast %cst_240 : f32 to vector<1x1xf32>
    %836 = arith.subf %834, %835 : vector<1x1xf32>
    %cst_241 = arith.constant 2.000000e+00 : f32
    %837 = vector.broadcast %cst_241 : f32 to vector<1x1xf32>
    %838 = arith.divf %836, %837 : vector<1x1xf32>
    %cst_242 = arith.constant 1.000000e+00 : f32
    %839 = vector.broadcast %cst_242 : f32 to vector<1x1xf32>
    %840 = arith.addf %830, %839 : vector<1x1xf32>
    %cst_243 = arith.constant 4.000000e+00 : f32
    %841 = vector.broadcast %cst_243 : f32 to vector<1x1xf32>
    %842 = arith.mulf %840, %841 : vector<1x1xf32>
    %cst_244 = arith.constant 1.000000e+00 : f32
    %843 = vector.broadcast %cst_244 : f32 to vector<1x1xf32>
    %844 = arith.subf %842, %843 : vector<1x1xf32>
    %cst_245 = arith.constant 2.000000e+00 : f32
    %845 = vector.broadcast %cst_245 : f32 to vector<1x1xf32>
    %846 = arith.divf %844, %845 : vector<1x1xf32>
    %847 = math.floor %838 : vector<1x1xf32>
    %cst_246 = arith.constant 1.000000e+00 : f32
    %848 = vector.broadcast %cst_246 : f32 to vector<1x1xf32>
    %849 = arith.addf %847, %848 : vector<1x1xf32>
    %850 = math.floor %846 : vector<1x1xf32>
    %cst_247 = arith.constant 1.000000e+00 : f32
    %851 = vector.broadcast %cst_247 : f32 to vector<1x1xf32>
    %852 = arith.addf %850, %851 : vector<1x1xf32>
    %853 = arith.subf %838, %847 : vector<1x1xf32>
    %cst_248 = arith.constant 1.000000e+00 : f32
    %854 = vector.broadcast %cst_248 : f32 to vector<1x1xf32>
    %855 = arith.subf %854, %853 : vector<1x1xf32>
    %856 = arith.subf %846, %850 : vector<1x1xf32>
    %cst_249 = arith.constant 1.000000e+00 : f32
    %857 = vector.broadcast %cst_249 : f32 to vector<1x1xf32>
    %858 = arith.subf %857, %856 : vector<1x1xf32>
    %859 = vector.broadcast %847 : vector<1x1xf32> to vector<1x4xf32>
    %860 = arith.cmpf oeq, %23, %859 : vector<1x4xf32>
    %cst_250 = arith.constant 0.000000e+00 : f32
    %861 = vector.shape_cast %855 : vector<1x1xf32> to vector<1x1xf32>
    %862 = vector.broadcast %861 : vector<1x1xf32> to vector<1x4xf32>
    %863 = vector.broadcast %cst_250 : f32 to vector<1x4xf32>
    %864 = arith.select %860, %862, %863 : vector<1x4xi1>, vector<1x4xf32>
    %865 = vector.broadcast %849 : vector<1x1xf32> to vector<1x4xf32>
    %866 = arith.cmpf oeq, %23, %865 : vector<1x4xf32>
    %cst_251 = arith.constant 0.000000e+00 : f32
    %867 = vector.shape_cast %853 : vector<1x1xf32> to vector<1x1xf32>
    %868 = vector.broadcast %867 : vector<1x1xf32> to vector<1x4xf32>
    %869 = vector.broadcast %cst_251 : f32 to vector<1x4xf32>
    %870 = arith.select %866, %868, %869 : vector<1x4xi1>, vector<1x4xf32>
    %871 = arith.addf %864, %870 : vector<1x4xf32>
    %872 = vector.broadcast %850 : vector<1x1xf32> to vector<1x4xf32>
    %873 = arith.cmpf oeq, %21, %872 : vector<1x4xf32>
    %cst_252 = arith.constant 0.000000e+00 : f32
    %874 = vector.shape_cast %858 : vector<1x1xf32> to vector<1x1xf32>
    %875 = vector.broadcast %874 : vector<1x1xf32> to vector<1x4xf32>
    %876 = vector.broadcast %cst_252 : f32 to vector<1x4xf32>
    %877 = arith.select %873, %875, %876 : vector<1x4xi1>, vector<1x4xf32>
    %878 = vector.broadcast %852 : vector<1x1xf32> to vector<1x4xf32>
    %879 = arith.cmpf oeq, %21, %878 : vector<1x4xf32>
    %cst_253 = arith.constant 0.000000e+00 : f32
    %880 = vector.shape_cast %856 : vector<1x1xf32> to vector<1x1xf32>
    %881 = vector.broadcast %880 : vector<1x1xf32> to vector<1x4xf32>
    %882 = vector.broadcast %cst_253 : f32 to vector<1x4xf32>
    %883 = arith.select %879, %881, %882 : vector<1x4xi1>, vector<1x4xf32>
    %884 = arith.addf %877, %883 : vector<1x4xf32>
    %885 = vector.extract_strided_slice %884 {offsets = [0, 0], sizes = [1, 1], strides = [1, 1]} : vector<1x4xf32> to vector<1x1xf32>
    %886 = vector.broadcast %885 : vector<1x1xf32> to vector<1x4xf32>
    %887 = arith.mulf %886, %871 : vector<1x4xf32>
    %888 = vector.extract_strided_slice %884 {offsets = [0, 1], sizes = [1, 1], strides = [1, 1]} : vector<1x4xf32> to vector<1x1xf32>
    %889 = vector.broadcast %888 : vector<1x1xf32> to vector<1x4xf32>
    %890 = arith.mulf %889, %871 : vector<1x4xf32>
    %891 = vector.extract_strided_slice %884 {offsets = [0, 2], sizes = [1, 1], strides = [1, 1]} : vector<1x4xf32> to vector<1x1xf32>
    %892 = vector.broadcast %891 : vector<1x1xf32> to vector<1x4xf32>
    %893 = arith.mulf %892, %871 : vector<1x4xf32>
    %894 = vector.extract_strided_slice %884 {offsets = [0, 3], sizes = [1, 1], strides = [1, 1]} : vector<1x4xf32> to vector<1x1xf32>
    %895 = vector.broadcast %894 : vector<1x1xf32> to vector<1x4xf32>
    %896 = arith.mulf %895, %871 : vector<1x4xf32>
    %897 = tpu.concatenate %887, %890, %893, %896 in 1 : vector<1x4xf32>, vector<1x4xf32>, vector<1x4xf32>, vector<1x4xf32> -> vector<1x16xf32>
    %898 = vector.extract_strided_slice %729 {offsets = [0, 4], sizes = [1, 1], strides = [1, 1]} : vector<8x8xf32> to vector<1x1xf32>
    %899 = vector.extract_strided_slice %729 {offsets = [0, 5], sizes = [1, 1], strides = [1, 1]} : vector<8x8xf32> to vector<1x1xf32>
    %cst_254 = arith.constant 4.000000e+00 : f32
    %900 = vector.broadcast %cst_254 : f32 to vector<1x1xf32>
    %901 = arith.divf %898, %900 : vector<1x1xf32>
    %902 = arith.addf %730, %901 : vector<1x1xf32>
    %cst_255 = arith.constant 4.000000e+00 : f32
    %903 = vector.broadcast %cst_255 : f32 to vector<1x1xf32>
    %904 = arith.divf %899, %903 : vector<1x1xf32>
    %905 = arith.addf %731, %904 : vector<1x1xf32>
    %cst_256 = arith.constant 2.000000e+00 : f32
    %906 = vector.broadcast %cst_256 : f32 to vector<1x1xf32>
    %907 = arith.mulf %906, %902 : vector<1x1xf32>
    %cst_257 = arith.constant 1.000000e+00 : f32
    %908 = vector.broadcast %cst_257 : f32 to vector<1x1xf32>
    %909 = arith.subf %907, %908 : vector<1x1xf32>
    %cst_258 = arith.constant 2.000000e+00 : f32
    %910 = vector.broadcast %cst_258 : f32 to vector<1x1xf32>
    %911 = arith.mulf %910, %905 : vector<1x1xf32>
    %cst_259 = arith.constant 1.000000e+00 : f32
    %912 = vector.broadcast %cst_259 : f32 to vector<1x1xf32>
    %913 = arith.subf %911, %912 : vector<1x1xf32>
    %cst_260 = arith.constant 1.000000e+00 : f32
    %914 = vector.broadcast %cst_260 : f32 to vector<1x1xf32>
    %915 = arith.addf %909, %914 : vector<1x1xf32>
    %cst_261 = arith.constant 4.000000e+00 : f32
    %916 = vector.broadcast %cst_261 : f32 to vector<1x1xf32>
    %917 = arith.mulf %915, %916 : vector<1x1xf32>
    %cst_262 = arith.constant 1.000000e+00 : f32
    %918 = vector.broadcast %cst_262 : f32 to vector<1x1xf32>
    %919 = arith.subf %917, %918 : vector<1x1xf32>
    %cst_263 = arith.constant 2.000000e+00 : f32
    %920 = vector.broadcast %cst_263 : f32 to vector<1x1xf32>
    %921 = arith.divf %919, %920 : vector<1x1xf32>
    %cst_264 = arith.constant 1.000000e+00 : f32
    %922 = vector.broadcast %cst_264 : f32 to vector<1x1xf32>
    %923 = arith.addf %913, %922 : vector<1x1xf32>
    %cst_265 = arith.constant 4.000000e+00 : f32
    %924 = vector.broadcast %cst_265 : f32 to vector<1x1xf32>
    %925 = arith.mulf %923, %924 : vector<1x1xf32>
    %cst_266 = arith.constant 1.000000e+00 : f32
    %926 = vector.broadcast %cst_266 : f32 to vector<1x1xf32>
    %927 = arith.subf %925, %926 : vector<1x1xf32>
    %cst_267 = arith.constant 2.000000e+00 : f32
    %928 = vector.broadcast %cst_267 : f32 to vector<1x1xf32>
    %929 = arith.divf %927, %928 : vector<1x1xf32>
    %930 = math.floor %921 : vector<1x1xf32>
    %cst_268 = arith.constant 1.000000e+00 : f32
    %931 = vector.broadcast %cst_268 : f32 to vector<1x1xf32>
    %932 = arith.addf %930, %931 : vector<1x1xf32>
    %933 = math.floor %929 : vector<1x1xf32>
    %cst_269 = arith.constant 1.000000e+00 : f32
    %934 = vector.broadcast %cst_269 : f32 to vector<1x1xf32>
    %935 = arith.addf %933, %934 : vector<1x1xf32>
    %936 = arith.subf %921, %930 : vector<1x1xf32>
    %cst_270 = arith.constant 1.000000e+00 : f32
    %937 = vector.broadcast %cst_270 : f32 to vector<1x1xf32>
    %938 = arith.subf %937, %936 : vector<1x1xf32>
    %939 = arith.subf %929, %933 : vector<1x1xf32>
    %cst_271 = arith.constant 1.000000e+00 : f32
    %940 = vector.broadcast %cst_271 : f32 to vector<1x1xf32>
    %941 = arith.subf %940, %939 : vector<1x1xf32>
    %942 = vector.broadcast %930 : vector<1x1xf32> to vector<1x4xf32>
    %943 = arith.cmpf oeq, %23, %942 : vector<1x4xf32>
    %cst_272 = arith.constant 0.000000e+00 : f32
    %944 = vector.shape_cast %938 : vector<1x1xf32> to vector<1x1xf32>
    %945 = vector.broadcast %944 : vector<1x1xf32> to vector<1x4xf32>
    %946 = vector.broadcast %cst_272 : f32 to vector<1x4xf32>
    %947 = arith.select %943, %945, %946 : vector<1x4xi1>, vector<1x4xf32>
    %948 = vector.broadcast %932 : vector<1x1xf32> to vector<1x4xf32>
    %949 = arith.cmpf oeq, %23, %948 : vector<1x4xf32>
    %cst_273 = arith.constant 0.000000e+00 : f32
    %950 = vector.shape_cast %936 : vector<1x1xf32> to vector<1x1xf32>
    %951 = vector.broadcast %950 : vector<1x1xf32> to vector<1x4xf32>
    %952 = vector.broadcast %cst_273 : f32 to vector<1x4xf32>
    %953 = arith.select %949, %951, %952 : vector<1x4xi1>, vector<1x4xf32>
    %954 = arith.addf %947, %953 : vector<1x4xf32>
    %955 = vector.broadcast %933 : vector<1x1xf32> to vector<1x4xf32>
    %956 = arith.cmpf oeq, %21, %955 : vector<1x4xf32>
    %cst_274 = arith.constant 0.000000e+00 : f32
    %957 = vector.shape_cast %941 : vector<1x1xf32> to vector<1x1xf32>
    %958 = vector.broadcast %957 : vector<1x1xf32> to vector<1x4xf32>
    %959 = vector.broadcast %cst_274 : f32 to vector<1x4xf32>
    %960 = arith.select %956, %958, %959 : vector<1x4xi1>, vector<1x4xf32>
    %961 = vector.broadcast %935 : vector<1x1xf32> to vector<1x4xf32>
    %962 = arith.cmpf oeq, %21, %961 : vector<1x4xf32>
    %cst_275 = arith.constant 0.000000e+00 : f32
    %963 = vector.shape_cast %939 : vector<1x1xf32> to vector<1x1xf32>
    %964 = vector.broadcast %963 : vector<1x1xf32> to vector<1x4xf32>
    %965 = vector.broadcast %cst_275 : f32 to vector<1x4xf32>
    %966 = arith.select %962, %964, %965 : vector<1x4xi1>, vector<1x4xf32>
    %967 = arith.addf %960, %966 : vector<1x4xf32>
    %968 = vector.extract_strided_slice %967 {offsets = [0, 0], sizes = [1, 1], strides = [1, 1]} : vector<1x4xf32> to vector<1x1xf32>
    %969 = vector.broadcast %968 : vector<1x1xf32> to vector<1x4xf32>
    %970 = arith.mulf %969, %954 : vector<1x4xf32>
    %971 = vector.extract_strided_slice %967 {offsets = [0, 1], sizes = [1, 1], strides = [1, 1]} : vector<1x4xf32> to vector<1x1xf32>
    %972 = vector.broadcast %971 : vector<1x1xf32> to vector<1x4xf32>
    %973 = arith.mulf %972, %954 : vector<1x4xf32>
    %974 = vector.extract_strided_slice %967 {offsets = [0, 2], sizes = [1, 1], strides = [1, 1]} : vector<1x4xf32> to vector<1x1xf32>
    %975 = vector.broadcast %974 : vector<1x1xf32> to vector<1x4xf32>
    %976 = arith.mulf %975, %954 : vector<1x4xf32>
    %977 = vector.extract_strided_slice %967 {offsets = [0, 3], sizes = [1, 1], strides = [1, 1]} : vector<1x4xf32> to vector<1x1xf32>
    %978 = vector.broadcast %977 : vector<1x1xf32> to vector<1x4xf32>
    %979 = arith.mulf %978, %954 : vector<1x4xf32>
    %980 = tpu.concatenate %970, %973, %976, %979 in 1 : vector<1x4xf32>, vector<1x4xf32>, vector<1x4xf32>, vector<1x4xf32> -> vector<1x16xf32>
    %981 = vector.extract_strided_slice %729 {offsets = [0, 6], sizes = [1, 1], strides = [1, 1]} : vector<8x8xf32> to vector<1x1xf32>
    %982 = vector.extract_strided_slice %729 {offsets = [0, 7], sizes = [1, 1], strides = [1, 1]} : vector<8x8xf32> to vector<1x1xf32>
    %cst_276 = arith.constant 4.000000e+00 : f32
    %983 = vector.broadcast %cst_276 : f32 to vector<1x1xf32>
    %984 = arith.divf %981, %983 : vector<1x1xf32>
    %985 = arith.addf %730, %984 : vector<1x1xf32>
    %cst_277 = arith.constant 4.000000e+00 : f32
    %986 = vector.broadcast %cst_277 : f32 to vector<1x1xf32>
    %987 = arith.divf %982, %986 : vector<1x1xf32>
    %988 = arith.addf %731, %987 : vector<1x1xf32>
    %cst_278 = arith.constant 2.000000e+00 : f32
    %989 = vector.broadcast %cst_278 : f32 to vector<1x1xf32>
    %990 = arith.mulf %989, %985 : vector<1x1xf32>
    %cst_279 = arith.constant 1.000000e+00 : f32
    %991 = vector.broadcast %cst_279 : f32 to vector<1x1xf32>
    %992 = arith.subf %990, %991 : vector<1x1xf32>
    %cst_280 = arith.constant 2.000000e+00 : f32
    %993 = vector.broadcast %cst_280 : f32 to vector<1x1xf32>
    %994 = arith.mulf %993, %988 : vector<1x1xf32>
    %cst_281 = arith.constant 1.000000e+00 : f32
    %995 = vector.broadcast %cst_281 : f32 to vector<1x1xf32>
    %996 = arith.subf %994, %995 : vector<1x1xf32>
    %cst_282 = arith.constant 1.000000e+00 : f32
    %997 = vector.broadcast %cst_282 : f32 to vector<1x1xf32>
    %998 = arith.addf %992, %997 : vector<1x1xf32>
    %cst_283 = arith.constant 4.000000e+00 : f32
    %999 = vector.broadcast %cst_283 : f32 to vector<1x1xf32>
    %1000 = arith.mulf %998, %999 : vector<1x1xf32>
    %cst_284 = arith.constant 1.000000e+00 : f32
    %1001 = vector.broadcast %cst_284 : f32 to vector<1x1xf32>
    %1002 = arith.subf %1000, %1001 : vector<1x1xf32>
    %cst_285 = arith.constant 2.000000e+00 : f32
    %1003 = vector.broadcast %cst_285 : f32 to vector<1x1xf32>
    %1004 = arith.divf %1002, %1003 : vector<1x1xf32>
    %cst_286 = arith.constant 1.000000e+00 : f32
    %1005 = vector.broadcast %cst_286 : f32 to vector<1x1xf32>
    %1006 = arith.addf %996, %1005 : vector<1x1xf32>
    %cst_287 = arith.constant 4.000000e+00 : f32
    %1007 = vector.broadcast %cst_287 : f32 to vector<1x1xf32>
    %1008 = arith.mulf %1006, %1007 : vector<1x1xf32>
    %cst_288 = arith.constant 1.000000e+00 : f32
    %1009 = vector.broadcast %cst_288 : f32 to vector<1x1xf32>
    %1010 = arith.subf %1008, %1009 : vector<1x1xf32>
    %cst_289 = arith.constant 2.000000e+00 : f32
    %1011 = vector.broadcast %cst_289 : f32 to vector<1x1xf32>
    %1012 = arith.divf %1010, %1011 : vector<1x1xf32>
    %1013 = math.floor %1004 : vector<1x1xf32>
    %cst_290 = arith.constant 1.000000e+00 : f32
    %1014 = vector.broadcast %cst_290 : f32 to vector<1x1xf32>
    %1015 = arith.addf %1013, %1014 : vector<1x1xf32>
    %1016 = math.floor %1012 : vector<1x1xf32>
    %cst_291 = arith.constant 1.000000e+00 : f32
    %1017 = vector.broadcast %cst_291 : f32 to vector<1x1xf32>
    %1018 = arith.addf %1016, %1017 : vector<1x1xf32>
    %1019 = arith.subf %1004, %1013 : vector<1x1xf32>
    %cst_292 = arith.constant 1.000000e+00 : f32
    %1020 = vector.broadcast %cst_292 : f32 to vector<1x1xf32>
    %1021 = arith.subf %1020, %1019 : vector<1x1xf32>
    %1022 = arith.subf %1012, %1016 : vector<1x1xf32>
    %cst_293 = arith.constant 1.000000e+00 : f32
    %1023 = vector.broadcast %cst_293 : f32 to vector<1x1xf32>
    %1024 = arith.subf %1023, %1022 : vector<1x1xf32>
    %1025 = vector.broadcast %1013 : vector<1x1xf32> to vector<1x4xf32>
    %1026 = arith.cmpf oeq, %23, %1025 : vector<1x4xf32>
    %cst_294 = arith.constant 0.000000e+00 : f32
    %1027 = vector.shape_cast %1021 : vector<1x1xf32> to vector<1x1xf32>
    %1028 = vector.broadcast %1027 : vector<1x1xf32> to vector<1x4xf32>
    %1029 = vector.broadcast %cst_294 : f32 to vector<1x4xf32>
    %1030 = arith.select %1026, %1028, %1029 : vector<1x4xi1>, vector<1x4xf32>
    %1031 = vector.broadcast %1015 : vector<1x1xf32> to vector<1x4xf32>
    %1032 = arith.cmpf oeq, %23, %1031 : vector<1x4xf32>
    %cst_295 = arith.constant 0.000000e+00 : f32
    %1033 = vector.shape_cast %1019 : vector<1x1xf32> to vector<1x1xf32>
    %1034 = vector.broadcast %1033 : vector<1x1xf32> to vector<1x4xf32>
    %1035 = vector.broadcast %cst_295 : f32 to vector<1x4xf32>
    %1036 = arith.select %1032, %1034, %1035 : vector<1x4xi1>, vector<1x4xf32>
    %1037 = arith.addf %1030, %1036 : vector<1x4xf32>
    %1038 = vector.broadcast %1016 : vector<1x1xf32> to vector<1x4xf32>
    %1039 = arith.cmpf oeq, %21, %1038 : vector<1x4xf32>
    %cst_296 = arith.constant 0.000000e+00 : f32
    %1040 = vector.shape_cast %1024 : vector<1x1xf32> to vector<1x1xf32>
    %1041 = vector.broadcast %1040 : vector<1x1xf32> to vector<1x4xf32>
    %1042 = vector.broadcast %cst_296 : f32 to vector<1x4xf32>
    %1043 = arith.select %1039, %1041, %1042 : vector<1x4xi1>, vector<1x4xf32>
    %1044 = vector.broadcast %1018 : vector<1x1xf32> to vector<1x4xf32>
    %1045 = arith.cmpf oeq, %21, %1044 : vector<1x4xf32>
    %cst_297 = arith.constant 0.000000e+00 : f32
    %1046 = vector.shape_cast %1022 : vector<1x1xf32> to vector<1x1xf32>
    %1047 = vector.broadcast %1046 : vector<1x1xf32> to vector<1x4xf32>
    %1048 = vector.broadcast %cst_297 : f32 to vector<1x4xf32>
    %1049 = arith.select %1045, %1047, %1048 : vector<1x4xi1>, vector<1x4xf32>
    %1050 = arith.addf %1043, %1049 : vector<1x4xf32>
    %1051 = vector.extract_strided_slice %1050 {offsets = [0, 0], sizes = [1, 1], strides = [1, 1]} : vector<1x4xf32> to vector<1x1xf32>
    %1052 = vector.broadcast %1051 : vector<1x1xf32> to vector<1x4xf32>
    %1053 = arith.mulf %1052, %1037 : vector<1x4xf32>
    %1054 = vector.extract_strided_slice %1050 {offsets = [0, 1], sizes = [1, 1], strides = [1, 1]} : vector<1x4xf32> to vector<1x1xf32>
    %1055 = vector.broadcast %1054 : vector<1x1xf32> to vector<1x4xf32>
    %1056 = arith.mulf %1055, %1037 : vector<1x4xf32>
    %1057 = vector.extract_strided_slice %1050 {offsets = [0, 2], sizes = [1, 1], strides = [1, 1]} : vector<1x4xf32> to vector<1x1xf32>
    %1058 = vector.broadcast %1057 : vector<1x1xf32> to vector<1x4xf32>
    %1059 = arith.mulf %1058, %1037 : vector<1x4xf32>
    %1060 = vector.extract_strided_slice %1050 {offsets = [0, 3], sizes = [1, 1], strides = [1, 1]} : vector<1x4xf32> to vector<1x1xf32>
    %1061 = vector.broadcast %1060 : vector<1x1xf32> to vector<1x4xf32>
    %1062 = arith.mulf %1061, %1037 : vector<1x4xf32>
    %1063 = tpu.concatenate %1053, %1056, %1059, %1062 in 1 : vector<1x4xf32>, vector<1x4xf32>, vector<1x4xf32>, vector<1x4xf32> -> vector<1x16xf32>
    %1064 = tpu.concatenate %814, %897, %980, %1063 in 0 : vector<1x16xf32>, vector<1x16xf32>, vector<1x16xf32>, vector<1x16xf32> -> vector<4x16xf32>
    %1065 = vector.extract_strided_slice %3 {offsets = [0, 16], sizes = [16, 8], strides = [1, 1]} : vector<16x32xf32> to vector<16x8xf32>
    %cst_298 = arith.constant dense<0.000000e+00> : vector<4x8xf32>
    %1066 = tpu.matmul %1064, %1065, %cst_298 {dimension_numbers = #tpu.dot_dimension_numbers<[1], [0], [0], [1], [0, 0, 1, 1], [], []>} : vector<4x16xf32>, vector<16x8xf32>, vector<4x8xf32> -> vector<4x8xf32>
    %cst_299 = arith.constant dense<0.000000e+00> : vector<4x8xf32>
    %1067 = tpu.matmul %1066, %8, %cst_299 {dimension_numbers = #tpu.dot_dimension_numbers<[1], [0], [0], [1], [0, 0, 1, 1], [], []>} : vector<4x8xf32>, vector<8x8xf32>, vector<4x8xf32> -> vector<4x8xf32>
    %1068 = vector.broadcast %9 : vector<1x8xf32> to vector<4x8xf32>
    %1069 = arith.addf %1067, %1068 : vector<4x8xf32>
    %cst_300 = arith.constant dense<0.000000e+00> : vector<8x4xf32>
    %1070 = tpu.matmul %728, %1069, %cst_300 {dimension_numbers = #tpu.dot_dimension_numbers<[1], [1], [0], [0], [0, 0, 1, 0], [], []>} : vector<8x8xf32>, vector<4x8xf32>, vector<8x4xf32> -> vector<8x4xf32>
    %cst_301 = arith.constant dense<0xFF800000> : vector<8xf32>
    %1071 = vector.multi_reduction <maximumf>, %1070, %cst_301 [1] : vector<8x4xf32> to vector<8xf32>
    %1072 = vector.shape_cast %1071 : vector<8xf32> to vector<8x1xf32>
    %1073 = vector.broadcast %1072 : vector<8x1xf32> to vector<8x4xf32>
    %1074 = arith.subf %1070, %1073 : vector<8x4xf32>
    %1075 = math.exp %1074 : vector<8x4xf32>
    %cst_302 = arith.constant dense<0.000000e+00> : vector<8xf32>
    %1076 = vector.multi_reduction <add>, %1075, %cst_302 [1] : vector<8x4xf32> to vector<8xf32>
    %1077 = vector.shape_cast %1076 : vector<8xf32> to vector<8x1xf32>
    %1078 = vector.broadcast %1077 : vector<8x1xf32> to vector<8x4xf32>
    %1079 = arith.divf %1075, %1078 : vector<8x4xf32>
    %1080 = vector.extract_strided_slice %14 {offsets = [0, 24], sizes = [8, 8], strides = [1, 1]} : vector<8x32xf32> to vector<8x8xf32>
    %1081 = vector.extract_strided_slice %19 {offsets = [0, 24], sizes = [8, 8], strides = [1, 1]} : vector<8x32xf32> to vector<8x8xf32>
    %1082 = vector.extract_strided_slice %7 {offsets = [0, 0], sizes = [1, 1], strides = [1, 1]} : vector<8x2xf32> to vector<1x1xf32>
    %1083 = vector.extract_strided_slice %7 {offsets = [0, 1], sizes = [1, 1], strides = [1, 1]} : vector<8x2xf32> to vector<1x1xf32>
    %1084 = vector.extract_strided_slice %1081 {offsets = [0, 0], sizes = [1, 1], strides = [1, 1]} : vector<8x8xf32> to vector<1x1xf32>
    %1085 = vector.extract_strided_slice %1081 {offsets = [0, 1], sizes = [1, 1], strides = [1, 1]} : vector<8x8xf32> to vector<1x1xf32>
    %cst_303 = arith.constant 4.000000e+00 : f32
    %1086 = vector.broadcast %cst_303 : f32 to vector<1x1xf32>
    %1087 = arith.divf %1084, %1086 : vector<1x1xf32>
    %1088 = arith.addf %1082, %1087 : vector<1x1xf32>
    %cst_304 = arith.constant 4.000000e+00 : f32
    %1089 = vector.broadcast %cst_304 : f32 to vector<1x1xf32>
    %1090 = arith.divf %1085, %1089 : vector<1x1xf32>
    %1091 = arith.addf %1083, %1090 : vector<1x1xf32>
    %cst_305 = arith.constant 2.000000e+00 : f32
    %1092 = vector.broadcast %cst_305 : f32 to vector<1x1xf32>
    %1093 = arith.mulf %1092, %1088 : vector<1x1xf32>
    %cst_306 = arith.constant 1.000000e+00 : f32
    %1094 = vector.broadcast %cst_306 : f32 to vector<1x1xf32>
    %1095 = arith.subf %1093, %1094 : vector<1x1xf32>
    %cst_307 = arith.constant 2.000000e+00 : f32
    %1096 = vector.broadcast %cst_307 : f32 to vector<1x1xf32>
    %1097 = arith.mulf %1096, %1091 : vector<1x1xf32>
    %cst_308 = arith.constant 1.000000e+00 : f32
    %1098 = vector.broadcast %cst_308 : f32 to vector<1x1xf32>
    %1099 = arith.subf %1097, %1098 : vector<1x1xf32>
    %cst_309 = arith.constant 1.000000e+00 : f32
    %1100 = vector.broadcast %cst_309 : f32 to vector<1x1xf32>
    %1101 = arith.addf %1095, %1100 : vector<1x1xf32>
    %cst_310 = arith.constant 4.000000e+00 : f32
    %1102 = vector.broadcast %cst_310 : f32 to vector<1x1xf32>
    %1103 = arith.mulf %1101, %1102 : vector<1x1xf32>
    %cst_311 = arith.constant 1.000000e+00 : f32
    %1104 = vector.broadcast %cst_311 : f32 to vector<1x1xf32>
    %1105 = arith.subf %1103, %1104 : vector<1x1xf32>
    %cst_312 = arith.constant 2.000000e+00 : f32
    %1106 = vector.broadcast %cst_312 : f32 to vector<1x1xf32>
    %1107 = arith.divf %1105, %1106 : vector<1x1xf32>
    %cst_313 = arith.constant 1.000000e+00 : f32
    %1108 = vector.broadcast %cst_313 : f32 to vector<1x1xf32>
    %1109 = arith.addf %1099, %1108 : vector<1x1xf32>
    %cst_314 = arith.constant 4.000000e+00 : f32
    %1110 = vector.broadcast %cst_314 : f32 to vector<1x1xf32>
    %1111 = arith.mulf %1109, %1110 : vector<1x1xf32>
    %cst_315 = arith.constant 1.000000e+00 : f32
    %1112 = vector.broadcast %cst_315 : f32 to vector<1x1xf32>
    %1113 = arith.subf %1111, %1112 : vector<1x1xf32>
    %cst_316 = arith.constant 2.000000e+00 : f32
    %1114 = vector.broadcast %cst_316 : f32 to vector<1x1xf32>
    %1115 = arith.divf %1113, %1114 : vector<1x1xf32>
    %1116 = math.floor %1107 : vector<1x1xf32>
    %cst_317 = arith.constant 1.000000e+00 : f32
    %1117 = vector.broadcast %cst_317 : f32 to vector<1x1xf32>
    %1118 = arith.addf %1116, %1117 : vector<1x1xf32>
    %1119 = math.floor %1115 : vector<1x1xf32>
    %cst_318 = arith.constant 1.000000e+00 : f32
    %1120 = vector.broadcast %cst_318 : f32 to vector<1x1xf32>
    %1121 = arith.addf %1119, %1120 : vector<1x1xf32>
    %1122 = arith.subf %1107, %1116 : vector<1x1xf32>
    %cst_319 = arith.constant 1.000000e+00 : f32
    %1123 = vector.broadcast %cst_319 : f32 to vector<1x1xf32>
    %1124 = arith.subf %1123, %1122 : vector<1x1xf32>
    %1125 = arith.subf %1115, %1119 : vector<1x1xf32>
    %cst_320 = arith.constant 1.000000e+00 : f32
    %1126 = vector.broadcast %cst_320 : f32 to vector<1x1xf32>
    %1127 = arith.subf %1126, %1125 : vector<1x1xf32>
    %1128 = vector.broadcast %1116 : vector<1x1xf32> to vector<1x4xf32>
    %1129 = arith.cmpf oeq, %23, %1128 : vector<1x4xf32>
    %cst_321 = arith.constant 0.000000e+00 : f32
    %1130 = vector.shape_cast %1124 : vector<1x1xf32> to vector<1x1xf32>
    %1131 = vector.broadcast %1130 : vector<1x1xf32> to vector<1x4xf32>
    %1132 = vector.broadcast %cst_321 : f32 to vector<1x4xf32>
    %1133 = arith.select %1129, %1131, %1132 : vector<1x4xi1>, vector<1x4xf32>
    %1134 = vector.broadcast %1118 : vector<1x1xf32> to vector<1x4xf32>
    %1135 = arith.cmpf oeq, %23, %1134 : vector<1x4xf32>
    %cst_322 = arith.constant 0.000000e+00 : f32
    %1136 = vector.shape_cast %1122 : vector<1x1xf32> to vector<1x1xf32>
    %1137 = vector.broadcast %1136 : vector<1x1xf32> to vector<1x4xf32>
    %1138 = vector.broadcast %cst_322 : f32 to vector<1x4xf32>
    %1139 = arith.select %1135, %1137, %1138 : vector<1x4xi1>, vector<1x4xf32>
    %1140 = arith.addf %1133, %1139 : vector<1x4xf32>
    %1141 = vector.broadcast %1119 : vector<1x1xf32> to vector<1x4xf32>
    %1142 = arith.cmpf oeq, %21, %1141 : vector<1x4xf32>
    %cst_323 = arith.constant 0.000000e+00 : f32
    %1143 = vector.shape_cast %1127 : vector<1x1xf32> to vector<1x1xf32>
    %1144 = vector.broadcast %1143 : vector<1x1xf32> to vector<1x4xf32>
    %1145 = vector.broadcast %cst_323 : f32 to vector<1x4xf32>
    %1146 = arith.select %1142, %1144, %1145 : vector<1x4xi1>, vector<1x4xf32>
    %1147 = vector.broadcast %1121 : vector<1x1xf32> to vector<1x4xf32>
    %1148 = arith.cmpf oeq, %21, %1147 : vector<1x4xf32>
    %cst_324 = arith.constant 0.000000e+00 : f32
    %1149 = vector.shape_cast %1125 : vector<1x1xf32> to vector<1x1xf32>
    %1150 = vector.broadcast %1149 : vector<1x1xf32> to vector<1x4xf32>
    %1151 = vector.broadcast %cst_324 : f32 to vector<1x4xf32>
    %1152 = arith.select %1148, %1150, %1151 : vector<1x4xi1>, vector<1x4xf32>
    %1153 = arith.addf %1146, %1152 : vector<1x4xf32>
    %1154 = vector.extract_strided_slice %1153 {offsets = [0, 0], sizes = [1, 1], strides = [1, 1]} : vector<1x4xf32> to vector<1x1xf32>
    %1155 = vector.broadcast %1154 : vector<1x1xf32> to vector<1x4xf32>
    %1156 = arith.mulf %1155, %1140 : vector<1x4xf32>
    %1157 = vector.extract_strided_slice %1153 {offsets = [0, 1], sizes = [1, 1], strides = [1, 1]} : vector<1x4xf32> to vector<1x1xf32>
    %1158 = vector.broadcast %1157 : vector<1x1xf32> to vector<1x4xf32>
    %1159 = arith.mulf %1158, %1140 : vector<1x4xf32>
    %1160 = vector.extract_strided_slice %1153 {offsets = [0, 2], sizes = [1, 1], strides = [1, 1]} : vector<1x4xf32> to vector<1x1xf32>
    %1161 = vector.broadcast %1160 : vector<1x1xf32> to vector<1x4xf32>
    %1162 = arith.mulf %1161, %1140 : vector<1x4xf32>
    %1163 = vector.extract_strided_slice %1153 {offsets = [0, 3], sizes = [1, 1], strides = [1, 1]} : vector<1x4xf32> to vector<1x1xf32>
    %1164 = vector.broadcast %1163 : vector<1x1xf32> to vector<1x4xf32>
    %1165 = arith.mulf %1164, %1140 : vector<1x4xf32>
    %1166 = tpu.concatenate %1156, %1159, %1162, %1165 in 1 : vector<1x4xf32>, vector<1x4xf32>, vector<1x4xf32>, vector<1x4xf32> -> vector<1x16xf32>
    %1167 = vector.extract_strided_slice %1081 {offsets = [0, 2], sizes = [1, 1], strides = [1, 1]} : vector<8x8xf32> to vector<1x1xf32>
    %1168 = vector.extract_strided_slice %1081 {offsets = [0, 3], sizes = [1, 1], strides = [1, 1]} : vector<8x8xf32> to vector<1x1xf32>
    %cst_325 = arith.constant 4.000000e+00 : f32
    %1169 = vector.broadcast %cst_325 : f32 to vector<1x1xf32>
    %1170 = arith.divf %1167, %1169 : vector<1x1xf32>
    %1171 = arith.addf %1082, %1170 : vector<1x1xf32>
    %cst_326 = arith.constant 4.000000e+00 : f32
    %1172 = vector.broadcast %cst_326 : f32 to vector<1x1xf32>
    %1173 = arith.divf %1168, %1172 : vector<1x1xf32>
    %1174 = arith.addf %1083, %1173 : vector<1x1xf32>
    %cst_327 = arith.constant 2.000000e+00 : f32
    %1175 = vector.broadcast %cst_327 : f32 to vector<1x1xf32>
    %1176 = arith.mulf %1175, %1171 : vector<1x1xf32>
    %cst_328 = arith.constant 1.000000e+00 : f32
    %1177 = vector.broadcast %cst_328 : f32 to vector<1x1xf32>
    %1178 = arith.subf %1176, %1177 : vector<1x1xf32>
    %cst_329 = arith.constant 2.000000e+00 : f32
    %1179 = vector.broadcast %cst_329 : f32 to vector<1x1xf32>
    %1180 = arith.mulf %1179, %1174 : vector<1x1xf32>
    %cst_330 = arith.constant 1.000000e+00 : f32
    %1181 = vector.broadcast %cst_330 : f32 to vector<1x1xf32>
    %1182 = arith.subf %1180, %1181 : vector<1x1xf32>
    %cst_331 = arith.constant 1.000000e+00 : f32
    %1183 = vector.broadcast %cst_331 : f32 to vector<1x1xf32>
    %1184 = arith.addf %1178, %1183 : vector<1x1xf32>
    %cst_332 = arith.constant 4.000000e+00 : f32
    %1185 = vector.broadcast %cst_332 : f32 to vector<1x1xf32>
    %1186 = arith.mulf %1184, %1185 : vector<1x1xf32>
    %cst_333 = arith.constant 1.000000e+00 : f32
    %1187 = vector.broadcast %cst_333 : f32 to vector<1x1xf32>
    %1188 = arith.subf %1186, %1187 : vector<1x1xf32>
    %cst_334 = arith.constant 2.000000e+00 : f32
    %1189 = vector.broadcast %cst_334 : f32 to vector<1x1xf32>
    %1190 = arith.divf %1188, %1189 : vector<1x1xf32>
    %cst_335 = arith.constant 1.000000e+00 : f32
    %1191 = vector.broadcast %cst_335 : f32 to vector<1x1xf32>
    %1192 = arith.addf %1182, %1191 : vector<1x1xf32>
    %cst_336 = arith.constant 4.000000e+00 : f32
    %1193 = vector.broadcast %cst_336 : f32 to vector<1x1xf32>
    %1194 = arith.mulf %1192, %1193 : vector<1x1xf32>
    %cst_337 = arith.constant 1.000000e+00 : f32
    %1195 = vector.broadcast %cst_337 : f32 to vector<1x1xf32>
    %1196 = arith.subf %1194, %1195 : vector<1x1xf32>
    %cst_338 = arith.constant 2.000000e+00 : f32
    %1197 = vector.broadcast %cst_338 : f32 to vector<1x1xf32>
    %1198 = arith.divf %1196, %1197 : vector<1x1xf32>
    %1199 = math.floor %1190 : vector<1x1xf32>
    %cst_339 = arith.constant 1.000000e+00 : f32
    %1200 = vector.broadcast %cst_339 : f32 to vector<1x1xf32>
    %1201 = arith.addf %1199, %1200 : vector<1x1xf32>
    %1202 = math.floor %1198 : vector<1x1xf32>
    %cst_340 = arith.constant 1.000000e+00 : f32
    %1203 = vector.broadcast %cst_340 : f32 to vector<1x1xf32>
    %1204 = arith.addf %1202, %1203 : vector<1x1xf32>
    %1205 = arith.subf %1190, %1199 : vector<1x1xf32>
    %cst_341 = arith.constant 1.000000e+00 : f32
    %1206 = vector.broadcast %cst_341 : f32 to vector<1x1xf32>
    %1207 = arith.subf %1206, %1205 : vector<1x1xf32>
    %1208 = arith.subf %1198, %1202 : vector<1x1xf32>
    %cst_342 = arith.constant 1.000000e+00 : f32
    %1209 = vector.broadcast %cst_342 : f32 to vector<1x1xf32>
    %1210 = arith.subf %1209, %1208 : vector<1x1xf32>
    %1211 = vector.broadcast %1199 : vector<1x1xf32> to vector<1x4xf32>
    %1212 = arith.cmpf oeq, %23, %1211 : vector<1x4xf32>
    %cst_343 = arith.constant 0.000000e+00 : f32
    %1213 = vector.shape_cast %1207 : vector<1x1xf32> to vector<1x1xf32>
    %1214 = vector.broadcast %1213 : vector<1x1xf32> to vector<1x4xf32>
    %1215 = vector.broadcast %cst_343 : f32 to vector<1x4xf32>
    %1216 = arith.select %1212, %1214, %1215 : vector<1x4xi1>, vector<1x4xf32>
    %1217 = vector.broadcast %1201 : vector<1x1xf32> to vector<1x4xf32>
    %1218 = arith.cmpf oeq, %23, %1217 : vector<1x4xf32>
    %cst_344 = arith.constant 0.000000e+00 : f32
    %1219 = vector.shape_cast %1205 : vector<1x1xf32> to vector<1x1xf32>
    %1220 = vector.broadcast %1219 : vector<1x1xf32> to vector<1x4xf32>
    %1221 = vector.broadcast %cst_344 : f32 to vector<1x4xf32>
    %1222 = arith.select %1218, %1220, %1221 : vector<1x4xi1>, vector<1x4xf32>
    %1223 = arith.addf %1216, %1222 : vector<1x4xf32>
    %1224 = vector.broadcast %1202 : vector<1x1xf32> to vector<1x4xf32>
    %1225 = arith.cmpf oeq, %21, %1224 : vector<1x4xf32>
    %cst_345 = arith.constant 0.000000e+00 : f32
    %1226 = vector.shape_cast %1210 : vector<1x1xf32> to vector<1x1xf32>
    %1227 = vector.broadcast %1226 : vector<1x1xf32> to vector<1x4xf32>
    %1228 = vector.broadcast %cst_345 : f32 to vector<1x4xf32>
    %1229 = arith.select %1225, %1227, %1228 : vector<1x4xi1>, vector<1x4xf32>
    %1230 = vector.broadcast %1204 : vector<1x1xf32> to vector<1x4xf32>
    %1231 = arith.cmpf oeq, %21, %1230 : vector<1x4xf32>
    %cst_346 = arith.constant 0.000000e+00 : f32
    %1232 = vector.shape_cast %1208 : vector<1x1xf32> to vector<1x1xf32>
    %1233 = vector.broadcast %1232 : vector<1x1xf32> to vector<1x4xf32>
    %1234 = vector.broadcast %cst_346 : f32 to vector<1x4xf32>
    %1235 = arith.select %1231, %1233, %1234 : vector<1x4xi1>, vector<1x4xf32>
    %1236 = arith.addf %1229, %1235 : vector<1x4xf32>
    %1237 = vector.extract_strided_slice %1236 {offsets = [0, 0], sizes = [1, 1], strides = [1, 1]} : vector<1x4xf32> to vector<1x1xf32>
    %1238 = vector.broadcast %1237 : vector<1x1xf32> to vector<1x4xf32>
    %1239 = arith.mulf %1238, %1223 : vector<1x4xf32>
    %1240 = vector.extract_strided_slice %1236 {offsets = [0, 1], sizes = [1, 1], strides = [1, 1]} : vector<1x4xf32> to vector<1x1xf32>
    %1241 = vector.broadcast %1240 : vector<1x1xf32> to vector<1x4xf32>
    %1242 = arith.mulf %1241, %1223 : vector<1x4xf32>
    %1243 = vector.extract_strided_slice %1236 {offsets = [0, 2], sizes = [1, 1], strides = [1, 1]} : vector<1x4xf32> to vector<1x1xf32>
    %1244 = vector.broadcast %1243 : vector<1x1xf32> to vector<1x4xf32>
    %1245 = arith.mulf %1244, %1223 : vector<1x4xf32>
    %1246 = vector.extract_strided_slice %1236 {offsets = [0, 3], sizes = [1, 1], strides = [1, 1]} : vector<1x4xf32> to vector<1x1xf32>
    %1247 = vector.broadcast %1246 : vector<1x1xf32> to vector<1x4xf32>
    %1248 = arith.mulf %1247, %1223 : vector<1x4xf32>
    %1249 = tpu.concatenate %1239, %1242, %1245, %1248 in 1 : vector<1x4xf32>, vector<1x4xf32>, vector<1x4xf32>, vector<1x4xf32> -> vector<1x16xf32>
    %1250 = vector.extract_strided_slice %1081 {offsets = [0, 4], sizes = [1, 1], strides = [1, 1]} : vector<8x8xf32> to vector<1x1xf32>
    %1251 = vector.extract_strided_slice %1081 {offsets = [0, 5], sizes = [1, 1], strides = [1, 1]} : vector<8x8xf32> to vector<1x1xf32>
    %cst_347 = arith.constant 4.000000e+00 : f32
    %1252 = vector.broadcast %cst_347 : f32 to vector<1x1xf32>
    %1253 = arith.divf %1250, %1252 : vector<1x1xf32>
    %1254 = arith.addf %1082, %1253 : vector<1x1xf32>
    %cst_348 = arith.constant 4.000000e+00 : f32
    %1255 = vector.broadcast %cst_348 : f32 to vector<1x1xf32>
    %1256 = arith.divf %1251, %1255 : vector<1x1xf32>
    %1257 = arith.addf %1083, %1256 : vector<1x1xf32>
    %cst_349 = arith.constant 2.000000e+00 : f32
    %1258 = vector.broadcast %cst_349 : f32 to vector<1x1xf32>
    %1259 = arith.mulf %1258, %1254 : vector<1x1xf32>
    %cst_350 = arith.constant 1.000000e+00 : f32
    %1260 = vector.broadcast %cst_350 : f32 to vector<1x1xf32>
    %1261 = arith.subf %1259, %1260 : vector<1x1xf32>
    %cst_351 = arith.constant 2.000000e+00 : f32
    %1262 = vector.broadcast %cst_351 : f32 to vector<1x1xf32>
    %1263 = arith.mulf %1262, %1257 : vector<1x1xf32>
    %cst_352 = arith.constant 1.000000e+00 : f32
    %1264 = vector.broadcast %cst_352 : f32 to vector<1x1xf32>
    %1265 = arith.subf %1263, %1264 : vector<1x1xf32>
    %cst_353 = arith.constant 1.000000e+00 : f32
    %1266 = vector.broadcast %cst_353 : f32 to vector<1x1xf32>
    %1267 = arith.addf %1261, %1266 : vector<1x1xf32>
    %cst_354 = arith.constant 4.000000e+00 : f32
    %1268 = vector.broadcast %cst_354 : f32 to vector<1x1xf32>
    %1269 = arith.mulf %1267, %1268 : vector<1x1xf32>
    %cst_355 = arith.constant 1.000000e+00 : f32
    %1270 = vector.broadcast %cst_355 : f32 to vector<1x1xf32>
    %1271 = arith.subf %1269, %1270 : vector<1x1xf32>
    %cst_356 = arith.constant 2.000000e+00 : f32
    %1272 = vector.broadcast %cst_356 : f32 to vector<1x1xf32>
    %1273 = arith.divf %1271, %1272 : vector<1x1xf32>
    %cst_357 = arith.constant 1.000000e+00 : f32
    %1274 = vector.broadcast %cst_357 : f32 to vector<1x1xf32>
    %1275 = arith.addf %1265, %1274 : vector<1x1xf32>
    %cst_358 = arith.constant 4.000000e+00 : f32
    %1276 = vector.broadcast %cst_358 : f32 to vector<1x1xf32>
    %1277 = arith.mulf %1275, %1276 : vector<1x1xf32>
    %cst_359 = arith.constant 1.000000e+00 : f32
    %1278 = vector.broadcast %cst_359 : f32 to vector<1x1xf32>
    %1279 = arith.subf %1277, %1278 : vector<1x1xf32>
    %cst_360 = arith.constant 2.000000e+00 : f32
    %1280 = vector.broadcast %cst_360 : f32 to vector<1x1xf32>
    %1281 = arith.divf %1279, %1280 : vector<1x1xf32>
    %1282 = math.floor %1273 : vector<1x1xf32>
    %cst_361 = arith.constant 1.000000e+00 : f32
    %1283 = vector.broadcast %cst_361 : f32 to vector<1x1xf32>
    %1284 = arith.addf %1282, %1283 : vector<1x1xf32>
    %1285 = math.floor %1281 : vector<1x1xf32>
    %cst_362 = arith.constant 1.000000e+00 : f32
    %1286 = vector.broadcast %cst_362 : f32 to vector<1x1xf32>
    %1287 = arith.addf %1285, %1286 : vector<1x1xf32>
    %1288 = arith.subf %1273, %1282 : vector<1x1xf32>
    %cst_363 = arith.constant 1.000000e+00 : f32
    %1289 = vector.broadcast %cst_363 : f32 to vector<1x1xf32>
    %1290 = arith.subf %1289, %1288 : vector<1x1xf32>
    %1291 = arith.subf %1281, %1285 : vector<1x1xf32>
    %cst_364 = arith.constant 1.000000e+00 : f32
    %1292 = vector.broadcast %cst_364 : f32 to vector<1x1xf32>
    %1293 = arith.subf %1292, %1291 : vector<1x1xf32>
    %1294 = vector.broadcast %1282 : vector<1x1xf32> to vector<1x4xf32>
    %1295 = arith.cmpf oeq, %23, %1294 : vector<1x4xf32>
    %cst_365 = arith.constant 0.000000e+00 : f32
    %1296 = vector.shape_cast %1290 : vector<1x1xf32> to vector<1x1xf32>
    %1297 = vector.broadcast %1296 : vector<1x1xf32> to vector<1x4xf32>
    %1298 = vector.broadcast %cst_365 : f32 to vector<1x4xf32>
    %1299 = arith.select %1295, %1297, %1298 : vector<1x4xi1>, vector<1x4xf32>
    %1300 = vector.broadcast %1284 : vector<1x1xf32> to vector<1x4xf32>
    %1301 = arith.cmpf oeq, %23, %1300 : vector<1x4xf32>
    %cst_366 = arith.constant 0.000000e+00 : f32
    %1302 = vector.shape_cast %1288 : vector<1x1xf32> to vector<1x1xf32>
    %1303 = vector.broadcast %1302 : vector<1x1xf32> to vector<1x4xf32>
    %1304 = vector.broadcast %cst_366 : f32 to vector<1x4xf32>
    %1305 = arith.select %1301, %1303, %1304 : vector<1x4xi1>, vector<1x4xf32>
    %1306 = arith.addf %1299, %1305 : vector<1x4xf32>
    %1307 = vector.broadcast %1285 : vector<1x1xf32> to vector<1x4xf32>
    %1308 = arith.cmpf oeq, %21, %1307 : vector<1x4xf32>
    %cst_367 = arith.constant 0.000000e+00 : f32
    %1309 = vector.shape_cast %1293 : vector<1x1xf32> to vector<1x1xf32>
    %1310 = vector.broadcast %1309 : vector<1x1xf32> to vector<1x4xf32>
    %1311 = vector.broadcast %cst_367 : f32 to vector<1x4xf32>
    %1312 = arith.select %1308, %1310, %1311 : vector<1x4xi1>, vector<1x4xf32>
    %1313 = vector.broadcast %1287 : vector<1x1xf32> to vector<1x4xf32>
    %1314 = arith.cmpf oeq, %21, %1313 : vector<1x4xf32>
    %cst_368 = arith.constant 0.000000e+00 : f32
    %1315 = vector.shape_cast %1291 : vector<1x1xf32> to vector<1x1xf32>
    %1316 = vector.broadcast %1315 : vector<1x1xf32> to vector<1x4xf32>
    %1317 = vector.broadcast %cst_368 : f32 to vector<1x4xf32>
    %1318 = arith.select %1314, %1316, %1317 : vector<1x4xi1>, vector<1x4xf32>
    %1319 = arith.addf %1312, %1318 : vector<1x4xf32>
    %1320 = vector.extract_strided_slice %1319 {offsets = [0, 0], sizes = [1, 1], strides = [1, 1]} : vector<1x4xf32> to vector<1x1xf32>
    %1321 = vector.broadcast %1320 : vector<1x1xf32> to vector<1x4xf32>
    %1322 = arith.mulf %1321, %1306 : vector<1x4xf32>
    %1323 = vector.extract_strided_slice %1319 {offsets = [0, 1], sizes = [1, 1], strides = [1, 1]} : vector<1x4xf32> to vector<1x1xf32>
    %1324 = vector.broadcast %1323 : vector<1x1xf32> to vector<1x4xf32>
    %1325 = arith.mulf %1324, %1306 : vector<1x4xf32>
    %1326 = vector.extract_strided_slice %1319 {offsets = [0, 2], sizes = [1, 1], strides = [1, 1]} : vector<1x4xf32> to vector<1x1xf32>
    %1327 = vector.broadcast %1326 : vector<1x1xf32> to vector<1x4xf32>
    %1328 = arith.mulf %1327, %1306 : vector<1x4xf32>
    %1329 = vector.extract_strided_slice %1319 {offsets = [0, 3], sizes = [1, 1], strides = [1, 1]} : vector<1x4xf32> to vector<1x1xf32>
    %1330 = vector.broadcast %1329 : vector<1x1xf32> to vector<1x4xf32>
    %1331 = arith.mulf %1330, %1306 : vector<1x4xf32>
    %1332 = tpu.concatenate %1322, %1325, %1328, %1331 in 1 : vector<1x4xf32>, vector<1x4xf32>, vector<1x4xf32>, vector<1x4xf32> -> vector<1x16xf32>
    %1333 = vector.extract_strided_slice %1081 {offsets = [0, 6], sizes = [1, 1], strides = [1, 1]} : vector<8x8xf32> to vector<1x1xf32>
    %1334 = vector.extract_strided_slice %1081 {offsets = [0, 7], sizes = [1, 1], strides = [1, 1]} : vector<8x8xf32> to vector<1x1xf32>
    %cst_369 = arith.constant 4.000000e+00 : f32
    %1335 = vector.broadcast %cst_369 : f32 to vector<1x1xf32>
    %1336 = arith.divf %1333, %1335 : vector<1x1xf32>
    %1337 = arith.addf %1082, %1336 : vector<1x1xf32>
    %cst_370 = arith.constant 4.000000e+00 : f32
    %1338 = vector.broadcast %cst_370 : f32 to vector<1x1xf32>
    %1339 = arith.divf %1334, %1338 : vector<1x1xf32>
    %1340 = arith.addf %1083, %1339 : vector<1x1xf32>
    %cst_371 = arith.constant 2.000000e+00 : f32
    %1341 = vector.broadcast %cst_371 : f32 to vector<1x1xf32>
    %1342 = arith.mulf %1341, %1337 : vector<1x1xf32>
    %cst_372 = arith.constant 1.000000e+00 : f32
    %1343 = vector.broadcast %cst_372 : f32 to vector<1x1xf32>
    %1344 = arith.subf %1342, %1343 : vector<1x1xf32>
    %cst_373 = arith.constant 2.000000e+00 : f32
    %1345 = vector.broadcast %cst_373 : f32 to vector<1x1xf32>
    %1346 = arith.mulf %1345, %1340 : vector<1x1xf32>
    %cst_374 = arith.constant 1.000000e+00 : f32
    %1347 = vector.broadcast %cst_374 : f32 to vector<1x1xf32>
    %1348 = arith.subf %1346, %1347 : vector<1x1xf32>
    %cst_375 = arith.constant 1.000000e+00 : f32
    %1349 = vector.broadcast %cst_375 : f32 to vector<1x1xf32>
    %1350 = arith.addf %1344, %1349 : vector<1x1xf32>
    %cst_376 = arith.constant 4.000000e+00 : f32
    %1351 = vector.broadcast %cst_376 : f32 to vector<1x1xf32>
    %1352 = arith.mulf %1350, %1351 : vector<1x1xf32>
    %cst_377 = arith.constant 1.000000e+00 : f32
    %1353 = vector.broadcast %cst_377 : f32 to vector<1x1xf32>
    %1354 = arith.subf %1352, %1353 : vector<1x1xf32>
    %cst_378 = arith.constant 2.000000e+00 : f32
    %1355 = vector.broadcast %cst_378 : f32 to vector<1x1xf32>
    %1356 = arith.divf %1354, %1355 : vector<1x1xf32>
    %cst_379 = arith.constant 1.000000e+00 : f32
    %1357 = vector.broadcast %cst_379 : f32 to vector<1x1xf32>
    %1358 = arith.addf %1348, %1357 : vector<1x1xf32>
    %cst_380 = arith.constant 4.000000e+00 : f32
    %1359 = vector.broadcast %cst_380 : f32 to vector<1x1xf32>
    %1360 = arith.mulf %1358, %1359 : vector<1x1xf32>
    %cst_381 = arith.constant 1.000000e+00 : f32
    %1361 = vector.broadcast %cst_381 : f32 to vector<1x1xf32>
    %1362 = arith.subf %1360, %1361 : vector<1x1xf32>
    %cst_382 = arith.constant 2.000000e+00 : f32
    %1363 = vector.broadcast %cst_382 : f32 to vector<1x1xf32>
    %1364 = arith.divf %1362, %1363 : vector<1x1xf32>
    %1365 = math.floor %1356 : vector<1x1xf32>
    %cst_383 = arith.constant 1.000000e+00 : f32
    %1366 = vector.broadcast %cst_383 : f32 to vector<1x1xf32>
    %1367 = arith.addf %1365, %1366 : vector<1x1xf32>
    %1368 = math.floor %1364 : vector<1x1xf32>
    %cst_384 = arith.constant 1.000000e+00 : f32
    %1369 = vector.broadcast %cst_384 : f32 to vector<1x1xf32>
    %1370 = arith.addf %1368, %1369 : vector<1x1xf32>
    %1371 = arith.subf %1356, %1365 : vector<1x1xf32>
    %cst_385 = arith.constant 1.000000e+00 : f32
    %1372 = vector.broadcast %cst_385 : f32 to vector<1x1xf32>
    %1373 = arith.subf %1372, %1371 : vector<1x1xf32>
    %1374 = arith.subf %1364, %1368 : vector<1x1xf32>
    %cst_386 = arith.constant 1.000000e+00 : f32
    %1375 = vector.broadcast %cst_386 : f32 to vector<1x1xf32>
    %1376 = arith.subf %1375, %1374 : vector<1x1xf32>
    %1377 = vector.broadcast %1365 : vector<1x1xf32> to vector<1x4xf32>
    %1378 = arith.cmpf oeq, %23, %1377 : vector<1x4xf32>
    %cst_387 = arith.constant 0.000000e+00 : f32
    %1379 = vector.shape_cast %1373 : vector<1x1xf32> to vector<1x1xf32>
    %1380 = vector.broadcast %1379 : vector<1x1xf32> to vector<1x4xf32>
    %1381 = vector.broadcast %cst_387 : f32 to vector<1x4xf32>
    %1382 = arith.select %1378, %1380, %1381 : vector<1x4xi1>, vector<1x4xf32>
    %1383 = vector.broadcast %1367 : vector<1x1xf32> to vector<1x4xf32>
    %1384 = arith.cmpf oeq, %23, %1383 : vector<1x4xf32>
    %cst_388 = arith.constant 0.000000e+00 : f32
    %1385 = vector.shape_cast %1371 : vector<1x1xf32> to vector<1x1xf32>
    %1386 = vector.broadcast %1385 : vector<1x1xf32> to vector<1x4xf32>
    %1387 = vector.broadcast %cst_388 : f32 to vector<1x4xf32>
    %1388 = arith.select %1384, %1386, %1387 : vector<1x4xi1>, vector<1x4xf32>
    %1389 = arith.addf %1382, %1388 : vector<1x4xf32>
    %1390 = vector.broadcast %1368 : vector<1x1xf32> to vector<1x4xf32>
    %1391 = arith.cmpf oeq, %21, %1390 : vector<1x4xf32>
    %cst_389 = arith.constant 0.000000e+00 : f32
    %1392 = vector.shape_cast %1376 : vector<1x1xf32> to vector<1x1xf32>
    %1393 = vector.broadcast %1392 : vector<1x1xf32> to vector<1x4xf32>
    %1394 = vector.broadcast %cst_389 : f32 to vector<1x4xf32>
    %1395 = arith.select %1391, %1393, %1394 : vector<1x4xi1>, vector<1x4xf32>
    %1396 = vector.broadcast %1370 : vector<1x1xf32> to vector<1x4xf32>
    %1397 = arith.cmpf oeq, %21, %1396 : vector<1x4xf32>
    %cst_390 = arith.constant 0.000000e+00 : f32
    %1398 = vector.shape_cast %1374 : vector<1x1xf32> to vector<1x1xf32>
    %1399 = vector.broadcast %1398 : vector<1x1xf32> to vector<1x4xf32>
    %1400 = vector.broadcast %cst_390 : f32 to vector<1x4xf32>
    %1401 = arith.select %1397, %1399, %1400 : vector<1x4xi1>, vector<1x4xf32>
    %1402 = arith.addf %1395, %1401 : vector<1x4xf32>
    %1403 = vector.extract_strided_slice %1402 {offsets = [0, 0], sizes = [1, 1], strides = [1, 1]} : vector<1x4xf32> to vector<1x1xf32>
    %1404 = vector.broadcast %1403 : vector<1x1xf32> to vector<1x4xf32>
    %1405 = arith.mulf %1404, %1389 : vector<1x4xf32>
    %1406 = vector.extract_strided_slice %1402 {offsets = [0, 1], sizes = [1, 1], strides = [1, 1]} : vector<1x4xf32> to vector<1x1xf32>
    %1407 = vector.broadcast %1406 : vector<1x1xf32> to vector<1x4xf32>
    %1408 = arith.mulf %1407, %1389 : vector<1x4xf32>
    %1409 = vector.extract_strided_slice %1402 {offsets = [0, 2], sizes = [1, 1], strides = [1, 1]} : vector<1x4xf32> to vector<1x1xf32>
    %1410 = vector.broadcast %1409 : vector<1x1xf32> to vector<1x4xf32>
    %1411 = arith.mulf %1410, %1389 : vector<1x4xf32>
    %1412 = vector.extract_strided_slice %1402 {offsets = [0, 3], sizes = [1, 1], strides = [1, 1]} : vector<1x4xf32> to vector<1x1xf32>
    %1413 = vector.broadcast %1412 : vector<1x1xf32> to vector<1x4xf32>
    %1414 = arith.mulf %1413, %1389 : vector<1x4xf32>
    %1415 = tpu.concatenate %1405, %1408, %1411, %1414 in 1 : vector<1x4xf32>, vector<1x4xf32>, vector<1x4xf32>, vector<1x4xf32> -> vector<1x16xf32>
    %1416 = tpu.concatenate %1166, %1249, %1332, %1415 in 0 : vector<1x16xf32>, vector<1x16xf32>, vector<1x16xf32>, vector<1x16xf32> -> vector<4x16xf32>
    %1417 = vector.extract_strided_slice %3 {offsets = [0, 24], sizes = [16, 8], strides = [1, 1]} : vector<16x32xf32> to vector<16x8xf32>
    %cst_391 = arith.constant dense<0.000000e+00> : vector<4x8xf32>
    %1418 = tpu.matmul %1416, %1417, %cst_391 {dimension_numbers = #tpu.dot_dimension_numbers<[1], [0], [0], [1], [0, 0, 1, 1], [], []>} : vector<4x16xf32>, vector<16x8xf32>, vector<4x8xf32> -> vector<4x8xf32>
    %cst_392 = arith.constant dense<0.000000e+00> : vector<4x8xf32>
    %1419 = tpu.matmul %1418, %8, %cst_392 {dimension_numbers = #tpu.dot_dimension_numbers<[1], [0], [0], [1], [0, 0, 1, 1], [], []>} : vector<4x8xf32>, vector<8x8xf32>, vector<4x8xf32> -> vector<4x8xf32>
    %1420 = vector.broadcast %9 : vector<1x8xf32> to vector<4x8xf32>
    %1421 = arith.addf %1419, %1420 : vector<4x8xf32>
    %cst_393 = arith.constant dense<0.000000e+00> : vector<8x4xf32>
    %1422 = tpu.matmul %1080, %1421, %cst_393 {dimension_numbers = #tpu.dot_dimension_numbers<[1], [1], [0], [0], [0, 0, 1, 0], [], []>} : vector<8x8xf32>, vector<4x8xf32>, vector<8x4xf32> -> vector<8x4xf32>
    %cst_394 = arith.constant dense<0xFF800000> : vector<8xf32>
    %1423 = vector.multi_reduction <maximumf>, %1422, %cst_394 [1] : vector<8x4xf32> to vector<8xf32>
    %1424 = vector.shape_cast %1423 : vector<8xf32> to vector<8x1xf32>
    %1425 = vector.broadcast %1424 : vector<8x1xf32> to vector<8x4xf32>
    %1426 = arith.subf %1422, %1425 : vector<8x4xf32>
    %1427 = math.exp %1426 : vector<8x4xf32>
    %cst_395 = arith.constant dense<0.000000e+00> : vector<8xf32>
    %1428 = vector.multi_reduction <add>, %1427, %cst_395 [1] : vector<8x4xf32> to vector<8xf32>
    %1429 = vector.shape_cast %1428 : vector<8xf32> to vector<8x1xf32>
    %1430 = vector.broadcast %1429 : vector<8x1xf32> to vector<8x4xf32>
    %1431 = arith.divf %1427, %1430 : vector<8x4xf32>
    %1432 = vector.extract_strided_slice %7 {offsets = [0, 0], sizes = [8, 1], strides = [1, 1]} : vector<8x2xf32> to vector<8x1xf32>
    %1433 = vector.extract_strided_slice %7 {offsets = [0, 1], sizes = [8, 1], strides = [1, 1]} : vector<8x2xf32> to vector<8x1xf32>
    %1434 = vector.extract_strided_slice %19 {offsets = [0, 0], sizes = [8, 8], strides = [1, 1]} : vector<8x32xf32> to vector<8x8xf32>
    %1435 = vector.extract_strided_slice %1434 {offsets = [0, 0], sizes = [8, 1], strides = [1, 1]} : vector<8x8xf32> to vector<8x1xf32>
    %1436 = vector.extract_strided_slice %1434 {offsets = [0, 1], sizes = [8, 1], strides = [1, 1]} : vector<8x8xf32> to vector<8x1xf32>
    %1437 = vector.extract_strided_slice %375 {offsets = [0, 0], sizes = [8, 1], strides = [1, 1]} : vector<8x4xf32> to vector<8x1xf32>
    %cst_396 = arith.constant 4.000000e+00 : f32
    %1438 = vector.broadcast %cst_396 : f32 to vector<8x1xf32>
    %1439 = arith.divf %1435, %1438 : vector<8x1xf32>
    %1440 = arith.addf %1432, %1439 : vector<8x1xf32>
    %cst_397 = arith.constant 4.000000e+00 : f32
    %1441 = vector.broadcast %cst_397 : f32 to vector<8x1xf32>
    %1442 = arith.divf %1436, %1441 : vector<8x1xf32>
    %1443 = arith.addf %1433, %1442 : vector<8x1xf32>
    %cst_398 = arith.constant 2.000000e+00 : f32
    %1444 = vector.broadcast %cst_398 : f32 to vector<8x1xf32>
    %1445 = arith.mulf %1444, %1440 : vector<8x1xf32>
    %cst_399 = arith.constant 1.000000e+00 : f32
    %1446 = vector.broadcast %cst_399 : f32 to vector<8x1xf32>
    %1447 = arith.subf %1445, %1446 : vector<8x1xf32>
    %cst_400 = arith.constant 2.000000e+00 : f32
    %1448 = vector.broadcast %cst_400 : f32 to vector<8x1xf32>
    %1449 = arith.mulf %1448, %1443 : vector<8x1xf32>
    %cst_401 = arith.constant 1.000000e+00 : f32
    %1450 = vector.broadcast %cst_401 : f32 to vector<8x1xf32>
    %1451 = arith.subf %1449, %1450 : vector<8x1xf32>
    %cst_402 = arith.constant 1.000000e+00 : f32
    %1452 = vector.broadcast %cst_402 : f32 to vector<8x1xf32>
    %1453 = arith.addf %1447, %1452 : vector<8x1xf32>
    %cst_403 = arith.constant 4.000000e+00 : f32
    %1454 = vector.broadcast %cst_403 : f32 to vector<8x1xf32>
    %1455 = arith.mulf %1453, %1454 : vector<8x1xf32>
    %cst_404 = arith.constant 1.000000e+00 : f32
    %1456 = vector.broadcast %cst_404 : f32 to vector<8x1xf32>
    %1457 = arith.subf %1455, %1456 : vector<8x1xf32>
    %cst_405 = arith.constant 2.000000e+00 : f32
    %1458 = vector.broadcast %cst_405 : f32 to vector<8x1xf32>
    %1459 = arith.divf %1457, %1458 : vector<8x1xf32>
    %cst_406 = arith.constant 1.000000e+00 : f32
    %1460 = vector.broadcast %cst_406 : f32 to vector<8x1xf32>
    %1461 = arith.addf %1451, %1460 : vector<8x1xf32>
    %cst_407 = arith.constant 4.000000e+00 : f32
    %1462 = vector.broadcast %cst_407 : f32 to vector<8x1xf32>
    %1463 = arith.mulf %1461, %1462 : vector<8x1xf32>
    %cst_408 = arith.constant 1.000000e+00 : f32
    %1464 = vector.broadcast %cst_408 : f32 to vector<8x1xf32>
    %1465 = arith.subf %1463, %1464 : vector<8x1xf32>
    %cst_409 = arith.constant 2.000000e+00 : f32
    %1466 = vector.broadcast %cst_409 : f32 to vector<8x1xf32>
    %1467 = arith.divf %1465, %1466 : vector<8x1xf32>
    %1468 = math.floor %1459 : vector<8x1xf32>
    %cst_410 = arith.constant 1.000000e+00 : f32
    %1469 = vector.broadcast %cst_410 : f32 to vector<8x1xf32>
    %1470 = arith.addf %1468, %1469 : vector<8x1xf32>
    %1471 = math.floor %1467 : vector<8x1xf32>
    %cst_411 = arith.constant 1.000000e+00 : f32
    %1472 = vector.broadcast %cst_411 : f32 to vector<8x1xf32>
    %1473 = arith.addf %1471, %1472 : vector<8x1xf32>
    %1474 = arith.subf %1459, %1468 : vector<8x1xf32>
    %cst_412 = arith.constant 1.000000e+00 : f32
    %1475 = vector.broadcast %cst_412 : f32 to vector<8x1xf32>
    %1476 = arith.subf %1475, %1474 : vector<8x1xf32>
    %1477 = arith.subf %1467, %1471 : vector<8x1xf32>
    %cst_413 = arith.constant 1.000000e+00 : f32
    %1478 = vector.broadcast %cst_413 : f32 to vector<8x1xf32>
    %1479 = arith.subf %1478, %1477 : vector<8x1xf32>
    %1480 = arith.mulf %1479, %1437 : vector<8x1xf32>
    %1481 = arith.mulf %1477, %1437 : vector<8x1xf32>
    %1482 = vector.broadcast %23 : vector<1x4xf32> to vector<8x4xf32>
    %1483 = vector.broadcast %1468 : vector<8x1xf32> to vector<8x4xf32>
    %1484 = arith.cmpf oeq, %1482, %1483 : vector<8x4xf32>
    %cst_414 = arith.constant 0.000000e+00 : f32
    %1485 = vector.shape_cast %1476 : vector<8x1xf32> to vector<8x1xf32>
    %1486 = vector.broadcast %1485 : vector<8x1xf32> to vector<8x4xf32>
    %1487 = vector.broadcast %cst_414 : f32 to vector<8x4xf32>
    %1488 = arith.select %1484, %1486, %1487 : vector<8x4xi1>, vector<8x4xf32>
    %1489 = vector.broadcast %23 : vector<1x4xf32> to vector<8x4xf32>
    %1490 = vector.broadcast %1470 : vector<8x1xf32> to vector<8x4xf32>
    %1491 = arith.cmpf oeq, %1489, %1490 : vector<8x4xf32>
    %cst_415 = arith.constant 0.000000e+00 : f32
    %1492 = vector.shape_cast %1474 : vector<8x1xf32> to vector<8x1xf32>
    %1493 = vector.broadcast %1492 : vector<8x1xf32> to vector<8x4xf32>
    %1494 = vector.broadcast %cst_415 : f32 to vector<8x4xf32>
    %1495 = arith.select %1491, %1493, %1494 : vector<8x4xi1>, vector<8x4xf32>
    %1496 = arith.addf %1488, %1495 : vector<8x4xf32>
    %1497 = vector.broadcast %21 : vector<1x4xf32> to vector<8x4xf32>
    %1498 = vector.broadcast %1471 : vector<8x1xf32> to vector<8x4xf32>
    %1499 = arith.cmpf oeq, %1497, %1498 : vector<8x4xf32>
    %cst_416 = arith.constant 0.000000e+00 : f32
    %1500 = vector.shape_cast %1480 : vector<8x1xf32> to vector<8x1xf32>
    %1501 = vector.broadcast %1500 : vector<8x1xf32> to vector<8x4xf32>
    %1502 = vector.broadcast %cst_416 : f32 to vector<8x4xf32>
    %1503 = arith.select %1499, %1501, %1502 : vector<8x4xi1>, vector<8x4xf32>
    %1504 = vector.broadcast %21 : vector<1x4xf32> to vector<8x4xf32>
    %1505 = vector.broadcast %1473 : vector<8x1xf32> to vector<8x4xf32>
    %1506 = arith.cmpf oeq, %1504, %1505 : vector<8x4xf32>
    %cst_417 = arith.constant 0.000000e+00 : f32
    %1507 = vector.shape_cast %1481 : vector<8x1xf32> to vector<8x1xf32>
    %1508 = vector.broadcast %1507 : vector<8x1xf32> to vector<8x4xf32>
    %1509 = vector.broadcast %cst_417 : f32 to vector<8x4xf32>
    %1510 = arith.select %1506, %1508, %1509 : vector<8x4xi1>, vector<8x4xf32>
    %1511 = arith.addf %1503, %1510 : vector<8x4xf32>
    %1512 = vector.extract_strided_slice %1511 {offsets = [0, 0], sizes = [8, 1], strides = [1, 1]} : vector<8x4xf32> to vector<8x1xf32>
    %1513 = vector.broadcast %1512 : vector<8x1xf32> to vector<8x4xf32>
    %1514 = arith.mulf %1513, %1496 : vector<8x4xf32>
    %1515 = vector.extract_strided_slice %1511 {offsets = [0, 1], sizes = [8, 1], strides = [1, 1]} : vector<8x4xf32> to vector<8x1xf32>
    %1516 = vector.broadcast %1515 : vector<8x1xf32> to vector<8x4xf32>
    %1517 = arith.mulf %1516, %1496 : vector<8x4xf32>
    %1518 = vector.extract_strided_slice %1511 {offsets = [0, 2], sizes = [8, 1], strides = [1, 1]} : vector<8x4xf32> to vector<8x1xf32>
    %1519 = vector.broadcast %1518 : vector<8x1xf32> to vector<8x4xf32>
    %1520 = arith.mulf %1519, %1496 : vector<8x4xf32>
    %1521 = vector.extract_strided_slice %1511 {offsets = [0, 3], sizes = [8, 1], strides = [1, 1]} : vector<8x4xf32> to vector<8x1xf32>
    %1522 = vector.broadcast %1521 : vector<8x1xf32> to vector<8x4xf32>
    %1523 = arith.mulf %1522, %1496 : vector<8x4xf32>
    %1524 = tpu.concatenate %1514, %1517, %1520, %1523 in 1 : vector<8x4xf32>, vector<8x4xf32>, vector<8x4xf32>, vector<8x4xf32> -> vector<8x16xf32>
    %1525 = vector.extract_strided_slice %1434 {offsets = [0, 2], sizes = [8, 1], strides = [1, 1]} : vector<8x8xf32> to vector<8x1xf32>
    %1526 = vector.extract_strided_slice %1434 {offsets = [0, 3], sizes = [8, 1], strides = [1, 1]} : vector<8x8xf32> to vector<8x1xf32>
    %1527 = vector.extract_strided_slice %375 {offsets = [0, 1], sizes = [8, 1], strides = [1, 1]} : vector<8x4xf32> to vector<8x1xf32>
    %cst_418 = arith.constant 4.000000e+00 : f32
    %1528 = vector.broadcast %cst_418 : f32 to vector<8x1xf32>
    %1529 = arith.divf %1525, %1528 : vector<8x1xf32>
    %1530 = arith.addf %1432, %1529 : vector<8x1xf32>
    %cst_419 = arith.constant 4.000000e+00 : f32
    %1531 = vector.broadcast %cst_419 : f32 to vector<8x1xf32>
    %1532 = arith.divf %1526, %1531 : vector<8x1xf32>
    %1533 = arith.addf %1433, %1532 : vector<8x1xf32>
    %cst_420 = arith.constant 2.000000e+00 : f32
    %1534 = vector.broadcast %cst_420 : f32 to vector<8x1xf32>
    %1535 = arith.mulf %1534, %1530 : vector<8x1xf32>
    %cst_421 = arith.constant 1.000000e+00 : f32
    %1536 = vector.broadcast %cst_421 : f32 to vector<8x1xf32>
    %1537 = arith.subf %1535, %1536 : vector<8x1xf32>
    %cst_422 = arith.constant 2.000000e+00 : f32
    %1538 = vector.broadcast %cst_422 : f32 to vector<8x1xf32>
    %1539 = arith.mulf %1538, %1533 : vector<8x1xf32>
    %cst_423 = arith.constant 1.000000e+00 : f32
    %1540 = vector.broadcast %cst_423 : f32 to vector<8x1xf32>
    %1541 = arith.subf %1539, %1540 : vector<8x1xf32>
    %cst_424 = arith.constant 1.000000e+00 : f32
    %1542 = vector.broadcast %cst_424 : f32 to vector<8x1xf32>
    %1543 = arith.addf %1537, %1542 : vector<8x1xf32>
    %cst_425 = arith.constant 4.000000e+00 : f32
    %1544 = vector.broadcast %cst_425 : f32 to vector<8x1xf32>
    %1545 = arith.mulf %1543, %1544 : vector<8x1xf32>
    %cst_426 = arith.constant 1.000000e+00 : f32
    %1546 = vector.broadcast %cst_426 : f32 to vector<8x1xf32>
    %1547 = arith.subf %1545, %1546 : vector<8x1xf32>
    %cst_427 = arith.constant 2.000000e+00 : f32
    %1548 = vector.broadcast %cst_427 : f32 to vector<8x1xf32>
    %1549 = arith.divf %1547, %1548 : vector<8x1xf32>
    %cst_428 = arith.constant 1.000000e+00 : f32
    %1550 = vector.broadcast %cst_428 : f32 to vector<8x1xf32>
    %1551 = arith.addf %1541, %1550 : vector<8x1xf32>
    %cst_429 = arith.constant 4.000000e+00 : f32
    %1552 = vector.broadcast %cst_429 : f32 to vector<8x1xf32>
    %1553 = arith.mulf %1551, %1552 : vector<8x1xf32>
    %cst_430 = arith.constant 1.000000e+00 : f32
    %1554 = vector.broadcast %cst_430 : f32 to vector<8x1xf32>
    %1555 = arith.subf %1553, %1554 : vector<8x1xf32>
    %cst_431 = arith.constant 2.000000e+00 : f32
    %1556 = vector.broadcast %cst_431 : f32 to vector<8x1xf32>
    %1557 = arith.divf %1555, %1556 : vector<8x1xf32>
    %1558 = math.floor %1549 : vector<8x1xf32>
    %cst_432 = arith.constant 1.000000e+00 : f32
    %1559 = vector.broadcast %cst_432 : f32 to vector<8x1xf32>
    %1560 = arith.addf %1558, %1559 : vector<8x1xf32>
    %1561 = math.floor %1557 : vector<8x1xf32>
    %cst_433 = arith.constant 1.000000e+00 : f32
    %1562 = vector.broadcast %cst_433 : f32 to vector<8x1xf32>
    %1563 = arith.addf %1561, %1562 : vector<8x1xf32>
    %1564 = arith.subf %1549, %1558 : vector<8x1xf32>
    %cst_434 = arith.constant 1.000000e+00 : f32
    %1565 = vector.broadcast %cst_434 : f32 to vector<8x1xf32>
    %1566 = arith.subf %1565, %1564 : vector<8x1xf32>
    %1567 = arith.subf %1557, %1561 : vector<8x1xf32>
    %cst_435 = arith.constant 1.000000e+00 : f32
    %1568 = vector.broadcast %cst_435 : f32 to vector<8x1xf32>
    %1569 = arith.subf %1568, %1567 : vector<8x1xf32>
    %1570 = arith.mulf %1569, %1527 : vector<8x1xf32>
    %1571 = arith.mulf %1567, %1527 : vector<8x1xf32>
    %1572 = vector.broadcast %23 : vector<1x4xf32> to vector<8x4xf32>
    %1573 = vector.broadcast %1558 : vector<8x1xf32> to vector<8x4xf32>
    %1574 = arith.cmpf oeq, %1572, %1573 : vector<8x4xf32>
    %cst_436 = arith.constant 0.000000e+00 : f32
    %1575 = vector.shape_cast %1566 : vector<8x1xf32> to vector<8x1xf32>
    %1576 = vector.broadcast %1575 : vector<8x1xf32> to vector<8x4xf32>
    %1577 = vector.broadcast %cst_436 : f32 to vector<8x4xf32>
    %1578 = arith.select %1574, %1576, %1577 : vector<8x4xi1>, vector<8x4xf32>
    %1579 = vector.broadcast %23 : vector<1x4xf32> to vector<8x4xf32>
    %1580 = vector.broadcast %1560 : vector<8x1xf32> to vector<8x4xf32>
    %1581 = arith.cmpf oeq, %1579, %1580 : vector<8x4xf32>
    %cst_437 = arith.constant 0.000000e+00 : f32
    %1582 = vector.shape_cast %1564 : vector<8x1xf32> to vector<8x1xf32>
    %1583 = vector.broadcast %1582 : vector<8x1xf32> to vector<8x4xf32>
    %1584 = vector.broadcast %cst_437 : f32 to vector<8x4xf32>
    %1585 = arith.select %1581, %1583, %1584 : vector<8x4xi1>, vector<8x4xf32>
    %1586 = arith.addf %1578, %1585 : vector<8x4xf32>
    %1587 = vector.broadcast %21 : vector<1x4xf32> to vector<8x4xf32>
    %1588 = vector.broadcast %1561 : vector<8x1xf32> to vector<8x4xf32>
    %1589 = arith.cmpf oeq, %1587, %1588 : vector<8x4xf32>
    %cst_438 = arith.constant 0.000000e+00 : f32
    %1590 = vector.shape_cast %1570 : vector<8x1xf32> to vector<8x1xf32>
    %1591 = vector.broadcast %1590 : vector<8x1xf32> to vector<8x4xf32>
    %1592 = vector.broadcast %cst_438 : f32 to vector<8x4xf32>
    %1593 = arith.select %1589, %1591, %1592 : vector<8x4xi1>, vector<8x4xf32>
    %1594 = vector.broadcast %21 : vector<1x4xf32> to vector<8x4xf32>
    %1595 = vector.broadcast %1563 : vector<8x1xf32> to vector<8x4xf32>
    %1596 = arith.cmpf oeq, %1594, %1595 : vector<8x4xf32>
    %cst_439 = arith.constant 0.000000e+00 : f32
    %1597 = vector.shape_cast %1571 : vector<8x1xf32> to vector<8x1xf32>
    %1598 = vector.broadcast %1597 : vector<8x1xf32> to vector<8x4xf32>
    %1599 = vector.broadcast %cst_439 : f32 to vector<8x4xf32>
    %1600 = arith.select %1596, %1598, %1599 : vector<8x4xi1>, vector<8x4xf32>
    %1601 = arith.addf %1593, %1600 : vector<8x4xf32>
    %1602 = vector.extract_strided_slice %1601 {offsets = [0, 0], sizes = [8, 1], strides = [1, 1]} : vector<8x4xf32> to vector<8x1xf32>
    %1603 = vector.broadcast %1602 : vector<8x1xf32> to vector<8x4xf32>
    %1604 = arith.mulf %1603, %1586 : vector<8x4xf32>
    %1605 = vector.extract_strided_slice %1601 {offsets = [0, 1], sizes = [8, 1], strides = [1, 1]} : vector<8x4xf32> to vector<8x1xf32>
    %1606 = vector.broadcast %1605 : vector<8x1xf32> to vector<8x4xf32>
    %1607 = arith.mulf %1606, %1586 : vector<8x4xf32>
    %1608 = vector.extract_strided_slice %1601 {offsets = [0, 2], sizes = [8, 1], strides = [1, 1]} : vector<8x4xf32> to vector<8x1xf32>
    %1609 = vector.broadcast %1608 : vector<8x1xf32> to vector<8x4xf32>
    %1610 = arith.mulf %1609, %1586 : vector<8x4xf32>
    %1611 = vector.extract_strided_slice %1601 {offsets = [0, 3], sizes = [8, 1], strides = [1, 1]} : vector<8x4xf32> to vector<8x1xf32>
    %1612 = vector.broadcast %1611 : vector<8x1xf32> to vector<8x4xf32>
    %1613 = arith.mulf %1612, %1586 : vector<8x4xf32>
    %1614 = tpu.concatenate %1604, %1607, %1610, %1613 in 1 : vector<8x4xf32>, vector<8x4xf32>, vector<8x4xf32>, vector<8x4xf32> -> vector<8x16xf32>
    %1615 = arith.addf %1524, %1614 : vector<8x16xf32>
    %1616 = vector.extract_strided_slice %1434 {offsets = [0, 4], sizes = [8, 1], strides = [1, 1]} : vector<8x8xf32> to vector<8x1xf32>
    %1617 = vector.extract_strided_slice %1434 {offsets = [0, 5], sizes = [8, 1], strides = [1, 1]} : vector<8x8xf32> to vector<8x1xf32>
    %1618 = vector.extract_strided_slice %375 {offsets = [0, 2], sizes = [8, 1], strides = [1, 1]} : vector<8x4xf32> to vector<8x1xf32>
    %cst_440 = arith.constant 4.000000e+00 : f32
    %1619 = vector.broadcast %cst_440 : f32 to vector<8x1xf32>
    %1620 = arith.divf %1616, %1619 : vector<8x1xf32>
    %1621 = arith.addf %1432, %1620 : vector<8x1xf32>
    %cst_441 = arith.constant 4.000000e+00 : f32
    %1622 = vector.broadcast %cst_441 : f32 to vector<8x1xf32>
    %1623 = arith.divf %1617, %1622 : vector<8x1xf32>
    %1624 = arith.addf %1433, %1623 : vector<8x1xf32>
    %cst_442 = arith.constant 2.000000e+00 : f32
    %1625 = vector.broadcast %cst_442 : f32 to vector<8x1xf32>
    %1626 = arith.mulf %1625, %1621 : vector<8x1xf32>
    %cst_443 = arith.constant 1.000000e+00 : f32
    %1627 = vector.broadcast %cst_443 : f32 to vector<8x1xf32>
    %1628 = arith.subf %1626, %1627 : vector<8x1xf32>
    %cst_444 = arith.constant 2.000000e+00 : f32
    %1629 = vector.broadcast %cst_444 : f32 to vector<8x1xf32>
    %1630 = arith.mulf %1629, %1624 : vector<8x1xf32>
    %cst_445 = arith.constant 1.000000e+00 : f32
    %1631 = vector.broadcast %cst_445 : f32 to vector<8x1xf32>
    %1632 = arith.subf %1630, %1631 : vector<8x1xf32>
    %cst_446 = arith.constant 1.000000e+00 : f32
    %1633 = vector.broadcast %cst_446 : f32 to vector<8x1xf32>
    %1634 = arith.addf %1628, %1633 : vector<8x1xf32>
    %cst_447 = arith.constant 4.000000e+00 : f32
    %1635 = vector.broadcast %cst_447 : f32 to vector<8x1xf32>
    %1636 = arith.mulf %1634, %1635 : vector<8x1xf32>
    %cst_448 = arith.constant 1.000000e+00 : f32
    %1637 = vector.broadcast %cst_448 : f32 to vector<8x1xf32>
    %1638 = arith.subf %1636, %1637 : vector<8x1xf32>
    %cst_449 = arith.constant 2.000000e+00 : f32
    %1639 = vector.broadcast %cst_449 : f32 to vector<8x1xf32>
    %1640 = arith.divf %1638, %1639 : vector<8x1xf32>
    %cst_450 = arith.constant 1.000000e+00 : f32
    %1641 = vector.broadcast %cst_450 : f32 to vector<8x1xf32>
    %1642 = arith.addf %1632, %1641 : vector<8x1xf32>
    %cst_451 = arith.constant 4.000000e+00 : f32
    %1643 = vector.broadcast %cst_451 : f32 to vector<8x1xf32>
    %1644 = arith.mulf %1642, %1643 : vector<8x1xf32>
    %cst_452 = arith.constant 1.000000e+00 : f32
    %1645 = vector.broadcast %cst_452 : f32 to vector<8x1xf32>
    %1646 = arith.subf %1644, %1645 : vector<8x1xf32>
    %cst_453 = arith.constant 2.000000e+00 : f32
    %1647 = vector.broadcast %cst_453 : f32 to vector<8x1xf32>
    %1648 = arith.divf %1646, %1647 : vector<8x1xf32>
    %1649 = math.floor %1640 : vector<8x1xf32>
    %cst_454 = arith.constant 1.000000e+00 : f32
    %1650 = vector.broadcast %cst_454 : f32 to vector<8x1xf32>
    %1651 = arith.addf %1649, %1650 : vector<8x1xf32>
    %1652 = math.floor %1648 : vector<8x1xf32>
    %cst_455 = arith.constant 1.000000e+00 : f32
    %1653 = vector.broadcast %cst_455 : f32 to vector<8x1xf32>
    %1654 = arith.addf %1652, %1653 : vector<8x1xf32>
    %1655 = arith.subf %1640, %1649 : vector<8x1xf32>
    %cst_456 = arith.constant 1.000000e+00 : f32
    %1656 = vector.broadcast %cst_456 : f32 to vector<8x1xf32>
    %1657 = arith.subf %1656, %1655 : vector<8x1xf32>
    %1658 = arith.subf %1648, %1652 : vector<8x1xf32>
    %cst_457 = arith.constant 1.000000e+00 : f32
    %1659 = vector.broadcast %cst_457 : f32 to vector<8x1xf32>
    %1660 = arith.subf %1659, %1658 : vector<8x1xf32>
    %1661 = arith.mulf %1660, %1618 : vector<8x1xf32>
    %1662 = arith.mulf %1658, %1618 : vector<8x1xf32>
    %1663 = vector.broadcast %23 : vector<1x4xf32> to vector<8x4xf32>
    %1664 = vector.broadcast %1649 : vector<8x1xf32> to vector<8x4xf32>
    %1665 = arith.cmpf oeq, %1663, %1664 : vector<8x4xf32>
    %cst_458 = arith.constant 0.000000e+00 : f32
    %1666 = vector.shape_cast %1657 : vector<8x1xf32> to vector<8x1xf32>
    %1667 = vector.broadcast %1666 : vector<8x1xf32> to vector<8x4xf32>
    %1668 = vector.broadcast %cst_458 : f32 to vector<8x4xf32>
    %1669 = arith.select %1665, %1667, %1668 : vector<8x4xi1>, vector<8x4xf32>
    %1670 = vector.broadcast %23 : vector<1x4xf32> to vector<8x4xf32>
    %1671 = vector.broadcast %1651 : vector<8x1xf32> to vector<8x4xf32>
    %1672 = arith.cmpf oeq, %1670, %1671 : vector<8x4xf32>
    %cst_459 = arith.constant 0.000000e+00 : f32
    %1673 = vector.shape_cast %1655 : vector<8x1xf32> to vector<8x1xf32>
    %1674 = vector.broadcast %1673 : vector<8x1xf32> to vector<8x4xf32>
    %1675 = vector.broadcast %cst_459 : f32 to vector<8x4xf32>
    %1676 = arith.select %1672, %1674, %1675 : vector<8x4xi1>, vector<8x4xf32>
    %1677 = arith.addf %1669, %1676 : vector<8x4xf32>
    %1678 = vector.broadcast %21 : vector<1x4xf32> to vector<8x4xf32>
    %1679 = vector.broadcast %1652 : vector<8x1xf32> to vector<8x4xf32>
    %1680 = arith.cmpf oeq, %1678, %1679 : vector<8x4xf32>
    %cst_460 = arith.constant 0.000000e+00 : f32
    %1681 = vector.shape_cast %1661 : vector<8x1xf32> to vector<8x1xf32>
    %1682 = vector.broadcast %1681 : vector<8x1xf32> to vector<8x4xf32>
    %1683 = vector.broadcast %cst_460 : f32 to vector<8x4xf32>
    %1684 = arith.select %1680, %1682, %1683 : vector<8x4xi1>, vector<8x4xf32>
    %1685 = vector.broadcast %21 : vector<1x4xf32> to vector<8x4xf32>
    %1686 = vector.broadcast %1654 : vector<8x1xf32> to vector<8x4xf32>
    %1687 = arith.cmpf oeq, %1685, %1686 : vector<8x4xf32>
    %cst_461 = arith.constant 0.000000e+00 : f32
    %1688 = vector.shape_cast %1662 : vector<8x1xf32> to vector<8x1xf32>
    %1689 = vector.broadcast %1688 : vector<8x1xf32> to vector<8x4xf32>
    %1690 = vector.broadcast %cst_461 : f32 to vector<8x4xf32>
    %1691 = arith.select %1687, %1689, %1690 : vector<8x4xi1>, vector<8x4xf32>
    %1692 = arith.addf %1684, %1691 : vector<8x4xf32>
    %1693 = vector.extract_strided_slice %1692 {offsets = [0, 0], sizes = [8, 1], strides = [1, 1]} : vector<8x4xf32> to vector<8x1xf32>
    %1694 = vector.broadcast %1693 : vector<8x1xf32> to vector<8x4xf32>
    %1695 = arith.mulf %1694, %1677 : vector<8x4xf32>
    %1696 = vector.extract_strided_slice %1692 {offsets = [0, 1], sizes = [8, 1], strides = [1, 1]} : vector<8x4xf32> to vector<8x1xf32>
    %1697 = vector.broadcast %1696 : vector<8x1xf32> to vector<8x4xf32>
    %1698 = arith.mulf %1697, %1677 : vector<8x4xf32>
    %1699 = vector.extract_strided_slice %1692 {offsets = [0, 2], sizes = [8, 1], strides = [1, 1]} : vector<8x4xf32> to vector<8x1xf32>
    %1700 = vector.broadcast %1699 : vector<8x1xf32> to vector<8x4xf32>
    %1701 = arith.mulf %1700, %1677 : vector<8x4xf32>
    %1702 = vector.extract_strided_slice %1692 {offsets = [0, 3], sizes = [8, 1], strides = [1, 1]} : vector<8x4xf32> to vector<8x1xf32>
    %1703 = vector.broadcast %1702 : vector<8x1xf32> to vector<8x4xf32>
    %1704 = arith.mulf %1703, %1677 : vector<8x4xf32>
    %1705 = tpu.concatenate %1695, %1698, %1701, %1704 in 1 : vector<8x4xf32>, vector<8x4xf32>, vector<8x4xf32>, vector<8x4xf32> -> vector<8x16xf32>
    %1706 = arith.addf %1615, %1705 : vector<8x16xf32>
    %1707 = vector.extract_strided_slice %1434 {offsets = [0, 6], sizes = [8, 1], strides = [1, 1]} : vector<8x8xf32> to vector<8x1xf32>
    %1708 = vector.extract_strided_slice %1434 {offsets = [0, 7], sizes = [8, 1], strides = [1, 1]} : vector<8x8xf32> to vector<8x1xf32>
    %1709 = vector.extract_strided_slice %375 {offsets = [0, 3], sizes = [8, 1], strides = [1, 1]} : vector<8x4xf32> to vector<8x1xf32>
    %cst_462 = arith.constant 4.000000e+00 : f32
    %1710 = vector.broadcast %cst_462 : f32 to vector<8x1xf32>
    %1711 = arith.divf %1707, %1710 : vector<8x1xf32>
    %1712 = arith.addf %1432, %1711 : vector<8x1xf32>
    %cst_463 = arith.constant 4.000000e+00 : f32
    %1713 = vector.broadcast %cst_463 : f32 to vector<8x1xf32>
    %1714 = arith.divf %1708, %1713 : vector<8x1xf32>
    %1715 = arith.addf %1433, %1714 : vector<8x1xf32>
    %cst_464 = arith.constant 2.000000e+00 : f32
    %1716 = vector.broadcast %cst_464 : f32 to vector<8x1xf32>
    %1717 = arith.mulf %1716, %1712 : vector<8x1xf32>
    %cst_465 = arith.constant 1.000000e+00 : f32
    %1718 = vector.broadcast %cst_465 : f32 to vector<8x1xf32>
    %1719 = arith.subf %1717, %1718 : vector<8x1xf32>
    %cst_466 = arith.constant 2.000000e+00 : f32
    %1720 = vector.broadcast %cst_466 : f32 to vector<8x1xf32>
    %1721 = arith.mulf %1720, %1715 : vector<8x1xf32>
    %cst_467 = arith.constant 1.000000e+00 : f32
    %1722 = vector.broadcast %cst_467 : f32 to vector<8x1xf32>
    %1723 = arith.subf %1721, %1722 : vector<8x1xf32>
    %cst_468 = arith.constant 1.000000e+00 : f32
    %1724 = vector.broadcast %cst_468 : f32 to vector<8x1xf32>
    %1725 = arith.addf %1719, %1724 : vector<8x1xf32>
    %cst_469 = arith.constant 4.000000e+00 : f32
    %1726 = vector.broadcast %cst_469 : f32 to vector<8x1xf32>
    %1727 = arith.mulf %1725, %1726 : vector<8x1xf32>
    %cst_470 = arith.constant 1.000000e+00 : f32
    %1728 = vector.broadcast %cst_470 : f32 to vector<8x1xf32>
    %1729 = arith.subf %1727, %1728 : vector<8x1xf32>
    %cst_471 = arith.constant 2.000000e+00 : f32
    %1730 = vector.broadcast %cst_471 : f32 to vector<8x1xf32>
    %1731 = arith.divf %1729, %1730 : vector<8x1xf32>
    %cst_472 = arith.constant 1.000000e+00 : f32
    %1732 = vector.broadcast %cst_472 : f32 to vector<8x1xf32>
    %1733 = arith.addf %1723, %1732 : vector<8x1xf32>
    %cst_473 = arith.constant 4.000000e+00 : f32
    %1734 = vector.broadcast %cst_473 : f32 to vector<8x1xf32>
    %1735 = arith.mulf %1733, %1734 : vector<8x1xf32>
    %cst_474 = arith.constant 1.000000e+00 : f32
    %1736 = vector.broadcast %cst_474 : f32 to vector<8x1xf32>
    %1737 = arith.subf %1735, %1736 : vector<8x1xf32>
    %cst_475 = arith.constant 2.000000e+00 : f32
    %1738 = vector.broadcast %cst_475 : f32 to vector<8x1xf32>
    %1739 = arith.divf %1737, %1738 : vector<8x1xf32>
    %1740 = math.floor %1731 : vector<8x1xf32>
    %cst_476 = arith.constant 1.000000e+00 : f32
    %1741 = vector.broadcast %cst_476 : f32 to vector<8x1xf32>
    %1742 = arith.addf %1740, %1741 : vector<8x1xf32>
    %1743 = math.floor %1739 : vector<8x1xf32>
    %cst_477 = arith.constant 1.000000e+00 : f32
    %1744 = vector.broadcast %cst_477 : f32 to vector<8x1xf32>
    %1745 = arith.addf %1743, %1744 : vector<8x1xf32>
    %1746 = arith.subf %1731, %1740 : vector<8x1xf32>
    %cst_478 = arith.constant 1.000000e+00 : f32
    %1747 = vector.broadcast %cst_478 : f32 to vector<8x1xf32>
    %1748 = arith.subf %1747, %1746 : vector<8x1xf32>
    %1749 = arith.subf %1739, %1743 : vector<8x1xf32>
    %cst_479 = arith.constant 1.000000e+00 : f32
    %1750 = vector.broadcast %cst_479 : f32 to vector<8x1xf32>
    %1751 = arith.subf %1750, %1749 : vector<8x1xf32>
    %1752 = arith.mulf %1751, %1709 : vector<8x1xf32>
    %1753 = arith.mulf %1749, %1709 : vector<8x1xf32>
    %1754 = vector.broadcast %23 : vector<1x4xf32> to vector<8x4xf32>
    %1755 = vector.broadcast %1740 : vector<8x1xf32> to vector<8x4xf32>
    %1756 = arith.cmpf oeq, %1754, %1755 : vector<8x4xf32>
    %cst_480 = arith.constant 0.000000e+00 : f32
    %1757 = vector.shape_cast %1748 : vector<8x1xf32> to vector<8x1xf32>
    %1758 = vector.broadcast %1757 : vector<8x1xf32> to vector<8x4xf32>
    %1759 = vector.broadcast %cst_480 : f32 to vector<8x4xf32>
    %1760 = arith.select %1756, %1758, %1759 : vector<8x4xi1>, vector<8x4xf32>
    %1761 = vector.broadcast %23 : vector<1x4xf32> to vector<8x4xf32>
    %1762 = vector.broadcast %1742 : vector<8x1xf32> to vector<8x4xf32>
    %1763 = arith.cmpf oeq, %1761, %1762 : vector<8x4xf32>
    %cst_481 = arith.constant 0.000000e+00 : f32
    %1764 = vector.shape_cast %1746 : vector<8x1xf32> to vector<8x1xf32>
    %1765 = vector.broadcast %1764 : vector<8x1xf32> to vector<8x4xf32>
    %1766 = vector.broadcast %cst_481 : f32 to vector<8x4xf32>
    %1767 = arith.select %1763, %1765, %1766 : vector<8x4xi1>, vector<8x4xf32>
    %1768 = arith.addf %1760, %1767 : vector<8x4xf32>
    %1769 = vector.broadcast %21 : vector<1x4xf32> to vector<8x4xf32>
    %1770 = vector.broadcast %1743 : vector<8x1xf32> to vector<8x4xf32>
    %1771 = arith.cmpf oeq, %1769, %1770 : vector<8x4xf32>
    %cst_482 = arith.constant 0.000000e+00 : f32
    %1772 = vector.shape_cast %1752 : vector<8x1xf32> to vector<8x1xf32>
    %1773 = vector.broadcast %1772 : vector<8x1xf32> to vector<8x4xf32>
    %1774 = vector.broadcast %cst_482 : f32 to vector<8x4xf32>
    %1775 = arith.select %1771, %1773, %1774 : vector<8x4xi1>, vector<8x4xf32>
    %1776 = vector.broadcast %21 : vector<1x4xf32> to vector<8x4xf32>
    %1777 = vector.broadcast %1745 : vector<8x1xf32> to vector<8x4xf32>
    %1778 = arith.cmpf oeq, %1776, %1777 : vector<8x4xf32>
    %cst_483 = arith.constant 0.000000e+00 : f32
    %1779 = vector.shape_cast %1753 : vector<8x1xf32> to vector<8x1xf32>
    %1780 = vector.broadcast %1779 : vector<8x1xf32> to vector<8x4xf32>
    %1781 = vector.broadcast %cst_483 : f32 to vector<8x4xf32>
    %1782 = arith.select %1778, %1780, %1781 : vector<8x4xi1>, vector<8x4xf32>
    %1783 = arith.addf %1775, %1782 : vector<8x4xf32>
    %1784 = vector.extract_strided_slice %1783 {offsets = [0, 0], sizes = [8, 1], strides = [1, 1]} : vector<8x4xf32> to vector<8x1xf32>
    %1785 = vector.broadcast %1784 : vector<8x1xf32> to vector<8x4xf32>
    %1786 = arith.mulf %1785, %1768 : vector<8x4xf32>
    %1787 = vector.extract_strided_slice %1783 {offsets = [0, 1], sizes = [8, 1], strides = [1, 1]} : vector<8x4xf32> to vector<8x1xf32>
    %1788 = vector.broadcast %1787 : vector<8x1xf32> to vector<8x4xf32>
    %1789 = arith.mulf %1788, %1768 : vector<8x4xf32>
    %1790 = vector.extract_strided_slice %1783 {offsets = [0, 2], sizes = [8, 1], strides = [1, 1]} : vector<8x4xf32> to vector<8x1xf32>
    %1791 = vector.broadcast %1790 : vector<8x1xf32> to vector<8x4xf32>
    %1792 = arith.mulf %1791, %1768 : vector<8x4xf32>
    %1793 = vector.extract_strided_slice %1783 {offsets = [0, 3], sizes = [8, 1], strides = [1, 1]} : vector<8x4xf32> to vector<8x1xf32>
    %1794 = vector.broadcast %1793 : vector<8x1xf32> to vector<8x4xf32>
    %1795 = arith.mulf %1794, %1768 : vector<8x4xf32>
    %1796 = tpu.concatenate %1786, %1789, %1792, %1795 in 1 : vector<8x4xf32>, vector<8x4xf32>, vector<8x4xf32>, vector<8x4xf32> -> vector<8x16xf32>
    %1797 = arith.addf %1706, %1796 : vector<8x16xf32>
    %1798 = vector.extract_strided_slice %19 {offsets = [0, 8], sizes = [8, 8], strides = [1, 1]} : vector<8x32xf32> to vector<8x8xf32>
    %1799 = vector.extract_strided_slice %1798 {offsets = [0, 0], sizes = [8, 1], strides = [1, 1]} : vector<8x8xf32> to vector<8x1xf32>
    %1800 = vector.extract_strided_slice %1798 {offsets = [0, 1], sizes = [8, 1], strides = [1, 1]} : vector<8x8xf32> to vector<8x1xf32>
    %1801 = vector.extract_strided_slice %727 {offsets = [0, 0], sizes = [8, 1], strides = [1, 1]} : vector<8x4xf32> to vector<8x1xf32>
    %cst_484 = arith.constant 4.000000e+00 : f32
    %1802 = vector.broadcast %cst_484 : f32 to vector<8x1xf32>
    %1803 = arith.divf %1799, %1802 : vector<8x1xf32>
    %1804 = arith.addf %1432, %1803 : vector<8x1xf32>
    %cst_485 = arith.constant 4.000000e+00 : f32
    %1805 = vector.broadcast %cst_485 : f32 to vector<8x1xf32>
    %1806 = arith.divf %1800, %1805 : vector<8x1xf32>
    %1807 = arith.addf %1433, %1806 : vector<8x1xf32>
    %cst_486 = arith.constant 2.000000e+00 : f32
    %1808 = vector.broadcast %cst_486 : f32 to vector<8x1xf32>
    %1809 = arith.mulf %1808, %1804 : vector<8x1xf32>
    %cst_487 = arith.constant 1.000000e+00 : f32
    %1810 = vector.broadcast %cst_487 : f32 to vector<8x1xf32>
    %1811 = arith.subf %1809, %1810 : vector<8x1xf32>
    %cst_488 = arith.constant 2.000000e+00 : f32
    %1812 = vector.broadcast %cst_488 : f32 to vector<8x1xf32>
    %1813 = arith.mulf %1812, %1807 : vector<8x1xf32>
    %cst_489 = arith.constant 1.000000e+00 : f32
    %1814 = vector.broadcast %cst_489 : f32 to vector<8x1xf32>
    %1815 = arith.subf %1813, %1814 : vector<8x1xf32>
    %cst_490 = arith.constant 1.000000e+00 : f32
    %1816 = vector.broadcast %cst_490 : f32 to vector<8x1xf32>
    %1817 = arith.addf %1811, %1816 : vector<8x1xf32>
    %cst_491 = arith.constant 4.000000e+00 : f32
    %1818 = vector.broadcast %cst_491 : f32 to vector<8x1xf32>
    %1819 = arith.mulf %1817, %1818 : vector<8x1xf32>
    %cst_492 = arith.constant 1.000000e+00 : f32
    %1820 = vector.broadcast %cst_492 : f32 to vector<8x1xf32>
    %1821 = arith.subf %1819, %1820 : vector<8x1xf32>
    %cst_493 = arith.constant 2.000000e+00 : f32
    %1822 = vector.broadcast %cst_493 : f32 to vector<8x1xf32>
    %1823 = arith.divf %1821, %1822 : vector<8x1xf32>
    %cst_494 = arith.constant 1.000000e+00 : f32
    %1824 = vector.broadcast %cst_494 : f32 to vector<8x1xf32>
    %1825 = arith.addf %1815, %1824 : vector<8x1xf32>
    %cst_495 = arith.constant 4.000000e+00 : f32
    %1826 = vector.broadcast %cst_495 : f32 to vector<8x1xf32>
    %1827 = arith.mulf %1825, %1826 : vector<8x1xf32>
    %cst_496 = arith.constant 1.000000e+00 : f32
    %1828 = vector.broadcast %cst_496 : f32 to vector<8x1xf32>
    %1829 = arith.subf %1827, %1828 : vector<8x1xf32>
    %cst_497 = arith.constant 2.000000e+00 : f32
    %1830 = vector.broadcast %cst_497 : f32 to vector<8x1xf32>
    %1831 = arith.divf %1829, %1830 : vector<8x1xf32>
    %1832 = math.floor %1823 : vector<8x1xf32>
    %cst_498 = arith.constant 1.000000e+00 : f32
    %1833 = vector.broadcast %cst_498 : f32 to vector<8x1xf32>
    %1834 = arith.addf %1832, %1833 : vector<8x1xf32>
    %1835 = math.floor %1831 : vector<8x1xf32>
    %cst_499 = arith.constant 1.000000e+00 : f32
    %1836 = vector.broadcast %cst_499 : f32 to vector<8x1xf32>
    %1837 = arith.addf %1835, %1836 : vector<8x1xf32>
    %1838 = arith.subf %1823, %1832 : vector<8x1xf32>
    %cst_500 = arith.constant 1.000000e+00 : f32
    %1839 = vector.broadcast %cst_500 : f32 to vector<8x1xf32>
    %1840 = arith.subf %1839, %1838 : vector<8x1xf32>
    %1841 = arith.subf %1831, %1835 : vector<8x1xf32>
    %cst_501 = arith.constant 1.000000e+00 : f32
    %1842 = vector.broadcast %cst_501 : f32 to vector<8x1xf32>
    %1843 = arith.subf %1842, %1841 : vector<8x1xf32>
    %1844 = arith.mulf %1843, %1801 : vector<8x1xf32>
    %1845 = arith.mulf %1841, %1801 : vector<8x1xf32>
    %1846 = vector.broadcast %23 : vector<1x4xf32> to vector<8x4xf32>
    %1847 = vector.broadcast %1832 : vector<8x1xf32> to vector<8x4xf32>
    %1848 = arith.cmpf oeq, %1846, %1847 : vector<8x4xf32>
    %cst_502 = arith.constant 0.000000e+00 : f32
    %1849 = vector.shape_cast %1840 : vector<8x1xf32> to vector<8x1xf32>
    %1850 = vector.broadcast %1849 : vector<8x1xf32> to vector<8x4xf32>
    %1851 = vector.broadcast %cst_502 : f32 to vector<8x4xf32>
    %1852 = arith.select %1848, %1850, %1851 : vector<8x4xi1>, vector<8x4xf32>
    %1853 = vector.broadcast %23 : vector<1x4xf32> to vector<8x4xf32>
    %1854 = vector.broadcast %1834 : vector<8x1xf32> to vector<8x4xf32>
    %1855 = arith.cmpf oeq, %1853, %1854 : vector<8x4xf32>
    %cst_503 = arith.constant 0.000000e+00 : f32
    %1856 = vector.shape_cast %1838 : vector<8x1xf32> to vector<8x1xf32>
    %1857 = vector.broadcast %1856 : vector<8x1xf32> to vector<8x4xf32>
    %1858 = vector.broadcast %cst_503 : f32 to vector<8x4xf32>
    %1859 = arith.select %1855, %1857, %1858 : vector<8x4xi1>, vector<8x4xf32>
    %1860 = arith.addf %1852, %1859 : vector<8x4xf32>
    %1861 = vector.broadcast %21 : vector<1x4xf32> to vector<8x4xf32>
    %1862 = vector.broadcast %1835 : vector<8x1xf32> to vector<8x4xf32>
    %1863 = arith.cmpf oeq, %1861, %1862 : vector<8x4xf32>
    %cst_504 = arith.constant 0.000000e+00 : f32
    %1864 = vector.shape_cast %1844 : vector<8x1xf32> to vector<8x1xf32>
    %1865 = vector.broadcast %1864 : vector<8x1xf32> to vector<8x4xf32>
    %1866 = vector.broadcast %cst_504 : f32 to vector<8x4xf32>
    %1867 = arith.select %1863, %1865, %1866 : vector<8x4xi1>, vector<8x4xf32>
    %1868 = vector.broadcast %21 : vector<1x4xf32> to vector<8x4xf32>
    %1869 = vector.broadcast %1837 : vector<8x1xf32> to vector<8x4xf32>
    %1870 = arith.cmpf oeq, %1868, %1869 : vector<8x4xf32>
    %cst_505 = arith.constant 0.000000e+00 : f32
    %1871 = vector.shape_cast %1845 : vector<8x1xf32> to vector<8x1xf32>
    %1872 = vector.broadcast %1871 : vector<8x1xf32> to vector<8x4xf32>
    %1873 = vector.broadcast %cst_505 : f32 to vector<8x4xf32>
    %1874 = arith.select %1870, %1872, %1873 : vector<8x4xi1>, vector<8x4xf32>
    %1875 = arith.addf %1867, %1874 : vector<8x4xf32>
    %1876 = vector.extract_strided_slice %1875 {offsets = [0, 0], sizes = [8, 1], strides = [1, 1]} : vector<8x4xf32> to vector<8x1xf32>
    %1877 = vector.broadcast %1876 : vector<8x1xf32> to vector<8x4xf32>
    %1878 = arith.mulf %1877, %1860 : vector<8x4xf32>
    %1879 = vector.extract_strided_slice %1875 {offsets = [0, 1], sizes = [8, 1], strides = [1, 1]} : vector<8x4xf32> to vector<8x1xf32>
    %1880 = vector.broadcast %1879 : vector<8x1xf32> to vector<8x4xf32>
    %1881 = arith.mulf %1880, %1860 : vector<8x4xf32>
    %1882 = vector.extract_strided_slice %1875 {offsets = [0, 2], sizes = [8, 1], strides = [1, 1]} : vector<8x4xf32> to vector<8x1xf32>
    %1883 = vector.broadcast %1882 : vector<8x1xf32> to vector<8x4xf32>
    %1884 = arith.mulf %1883, %1860 : vector<8x4xf32>
    %1885 = vector.extract_strided_slice %1875 {offsets = [0, 3], sizes = [8, 1], strides = [1, 1]} : vector<8x4xf32> to vector<8x1xf32>
    %1886 = vector.broadcast %1885 : vector<8x1xf32> to vector<8x4xf32>
    %1887 = arith.mulf %1886, %1860 : vector<8x4xf32>
    %1888 = tpu.concatenate %1878, %1881, %1884, %1887 in 1 : vector<8x4xf32>, vector<8x4xf32>, vector<8x4xf32>, vector<8x4xf32> -> vector<8x16xf32>
    %1889 = vector.extract_strided_slice %1798 {offsets = [0, 2], sizes = [8, 1], strides = [1, 1]} : vector<8x8xf32> to vector<8x1xf32>
    %1890 = vector.extract_strided_slice %1798 {offsets = [0, 3], sizes = [8, 1], strides = [1, 1]} : vector<8x8xf32> to vector<8x1xf32>
    %1891 = vector.extract_strided_slice %727 {offsets = [0, 1], sizes = [8, 1], strides = [1, 1]} : vector<8x4xf32> to vector<8x1xf32>
    %cst_506 = arith.constant 4.000000e+00 : f32
    %1892 = vector.broadcast %cst_506 : f32 to vector<8x1xf32>
    %1893 = arith.divf %1889, %1892 : vector<8x1xf32>
    %1894 = arith.addf %1432, %1893 : vector<8x1xf32>
    %cst_507 = arith.constant 4.000000e+00 : f32
    %1895 = vector.broadcast %cst_507 : f32 to vector<8x1xf32>
    %1896 = arith.divf %1890, %1895 : vector<8x1xf32>
    %1897 = arith.addf %1433, %1896 : vector<8x1xf32>
    %cst_508 = arith.constant 2.000000e+00 : f32
    %1898 = vector.broadcast %cst_508 : f32 to vector<8x1xf32>
    %1899 = arith.mulf %1898, %1894 : vector<8x1xf32>
    %cst_509 = arith.constant 1.000000e+00 : f32
    %1900 = vector.broadcast %cst_509 : f32 to vector<8x1xf32>
    %1901 = arith.subf %1899, %1900 : vector<8x1xf32>
    %cst_510 = arith.constant 2.000000e+00 : f32
    %1902 = vector.broadcast %cst_510 : f32 to vector<8x1xf32>
    %1903 = arith.mulf %1902, %1897 : vector<8x1xf32>
    %cst_511 = arith.constant 1.000000e+00 : f32
    %1904 = vector.broadcast %cst_511 : f32 to vector<8x1xf32>
    %1905 = arith.subf %1903, %1904 : vector<8x1xf32>
    %cst_512 = arith.constant 1.000000e+00 : f32
    %1906 = vector.broadcast %cst_512 : f32 to vector<8x1xf32>
    %1907 = arith.addf %1901, %1906 : vector<8x1xf32>
    %cst_513 = arith.constant 4.000000e+00 : f32
    %1908 = vector.broadcast %cst_513 : f32 to vector<8x1xf32>
    %1909 = arith.mulf %1907, %1908 : vector<8x1xf32>
    %cst_514 = arith.constant 1.000000e+00 : f32
    %1910 = vector.broadcast %cst_514 : f32 to vector<8x1xf32>
    %1911 = arith.subf %1909, %1910 : vector<8x1xf32>
    %cst_515 = arith.constant 2.000000e+00 : f32
    %1912 = vector.broadcast %cst_515 : f32 to vector<8x1xf32>
    %1913 = arith.divf %1911, %1912 : vector<8x1xf32>
    %cst_516 = arith.constant 1.000000e+00 : f32
    %1914 = vector.broadcast %cst_516 : f32 to vector<8x1xf32>
    %1915 = arith.addf %1905, %1914 : vector<8x1xf32>
    %cst_517 = arith.constant 4.000000e+00 : f32
    %1916 = vector.broadcast %cst_517 : f32 to vector<8x1xf32>
    %1917 = arith.mulf %1915, %1916 : vector<8x1xf32>
    %cst_518 = arith.constant 1.000000e+00 : f32
    %1918 = vector.broadcast %cst_518 : f32 to vector<8x1xf32>
    %1919 = arith.subf %1917, %1918 : vector<8x1xf32>
    %cst_519 = arith.constant 2.000000e+00 : f32
    %1920 = vector.broadcast %cst_519 : f32 to vector<8x1xf32>
    %1921 = arith.divf %1919, %1920 : vector<8x1xf32>
    %1922 = math.floor %1913 : vector<8x1xf32>
    %cst_520 = arith.constant 1.000000e+00 : f32
    %1923 = vector.broadcast %cst_520 : f32 to vector<8x1xf32>
    %1924 = arith.addf %1922, %1923 : vector<8x1xf32>
    %1925 = math.floor %1921 : vector<8x1xf32>
    %cst_521 = arith.constant 1.000000e+00 : f32
    %1926 = vector.broadcast %cst_521 : f32 to vector<8x1xf32>
    %1927 = arith.addf %1925, %1926 : vector<8x1xf32>
    %1928 = arith.subf %1913, %1922 : vector<8x1xf32>
    %cst_522 = arith.constant 1.000000e+00 : f32
    %1929 = vector.broadcast %cst_522 : f32 to vector<8x1xf32>
    %1930 = arith.subf %1929, %1928 : vector<8x1xf32>
    %1931 = arith.subf %1921, %1925 : vector<8x1xf32>
    %cst_523 = arith.constant 1.000000e+00 : f32
    %1932 = vector.broadcast %cst_523 : f32 to vector<8x1xf32>
    %1933 = arith.subf %1932, %1931 : vector<8x1xf32>
    %1934 = arith.mulf %1933, %1891 : vector<8x1xf32>
    %1935 = arith.mulf %1931, %1891 : vector<8x1xf32>
    %1936 = vector.broadcast %23 : vector<1x4xf32> to vector<8x4xf32>
    %1937 = vector.broadcast %1922 : vector<8x1xf32> to vector<8x4xf32>
    %1938 = arith.cmpf oeq, %1936, %1937 : vector<8x4xf32>
    %cst_524 = arith.constant 0.000000e+00 : f32
    %1939 = vector.shape_cast %1930 : vector<8x1xf32> to vector<8x1xf32>
    %1940 = vector.broadcast %1939 : vector<8x1xf32> to vector<8x4xf32>
    %1941 = vector.broadcast %cst_524 : f32 to vector<8x4xf32>
    %1942 = arith.select %1938, %1940, %1941 : vector<8x4xi1>, vector<8x4xf32>
    %1943 = vector.broadcast %23 : vector<1x4xf32> to vector<8x4xf32>
    %1944 = vector.broadcast %1924 : vector<8x1xf32> to vector<8x4xf32>
    %1945 = arith.cmpf oeq, %1943, %1944 : vector<8x4xf32>
    %cst_525 = arith.constant 0.000000e+00 : f32
    %1946 = vector.shape_cast %1928 : vector<8x1xf32> to vector<8x1xf32>
    %1947 = vector.broadcast %1946 : vector<8x1xf32> to vector<8x4xf32>
    %1948 = vector.broadcast %cst_525 : f32 to vector<8x4xf32>
    %1949 = arith.select %1945, %1947, %1948 : vector<8x4xi1>, vector<8x4xf32>
    %1950 = arith.addf %1942, %1949 : vector<8x4xf32>
    %1951 = vector.broadcast %21 : vector<1x4xf32> to vector<8x4xf32>
    %1952 = vector.broadcast %1925 : vector<8x1xf32> to vector<8x4xf32>
    %1953 = arith.cmpf oeq, %1951, %1952 : vector<8x4xf32>
    %cst_526 = arith.constant 0.000000e+00 : f32
    %1954 = vector.shape_cast %1934 : vector<8x1xf32> to vector<8x1xf32>
    %1955 = vector.broadcast %1954 : vector<8x1xf32> to vector<8x4xf32>
    %1956 = vector.broadcast %cst_526 : f32 to vector<8x4xf32>
    %1957 = arith.select %1953, %1955, %1956 : vector<8x4xi1>, vector<8x4xf32>
    %1958 = vector.broadcast %21 : vector<1x4xf32> to vector<8x4xf32>
    %1959 = vector.broadcast %1927 : vector<8x1xf32> to vector<8x4xf32>
    %1960 = arith.cmpf oeq, %1958, %1959 : vector<8x4xf32>
    %cst_527 = arith.constant 0.000000e+00 : f32
    %1961 = vector.shape_cast %1935 : vector<8x1xf32> to vector<8x1xf32>
    %1962 = vector.broadcast %1961 : vector<8x1xf32> to vector<8x4xf32>
    %1963 = vector.broadcast %cst_527 : f32 to vector<8x4xf32>
    %1964 = arith.select %1960, %1962, %1963 : vector<8x4xi1>, vector<8x4xf32>
    %1965 = arith.addf %1957, %1964 : vector<8x4xf32>
    %1966 = vector.extract_strided_slice %1965 {offsets = [0, 0], sizes = [8, 1], strides = [1, 1]} : vector<8x4xf32> to vector<8x1xf32>
    %1967 = vector.broadcast %1966 : vector<8x1xf32> to vector<8x4xf32>
    %1968 = arith.mulf %1967, %1950 : vector<8x4xf32>
    %1969 = vector.extract_strided_slice %1965 {offsets = [0, 1], sizes = [8, 1], strides = [1, 1]} : vector<8x4xf32> to vector<8x1xf32>
    %1970 = vector.broadcast %1969 : vector<8x1xf32> to vector<8x4xf32>
    %1971 = arith.mulf %1970, %1950 : vector<8x4xf32>
    %1972 = vector.extract_strided_slice %1965 {offsets = [0, 2], sizes = [8, 1], strides = [1, 1]} : vector<8x4xf32> to vector<8x1xf32>
    %1973 = vector.broadcast %1972 : vector<8x1xf32> to vector<8x4xf32>
    %1974 = arith.mulf %1973, %1950 : vector<8x4xf32>
    %1975 = vector.extract_strided_slice %1965 {offsets = [0, 3], sizes = [8, 1], strides = [1, 1]} : vector<8x4xf32> to vector<8x1xf32>
    %1976 = vector.broadcast %1975 : vector<8x1xf32> to vector<8x4xf32>
    %1977 = arith.mulf %1976, %1950 : vector<8x4xf32>
    %1978 = tpu.concatenate %1968, %1971, %1974, %1977 in 1 : vector<8x4xf32>, vector<8x4xf32>, vector<8x4xf32>, vector<8x4xf32> -> vector<8x16xf32>
    %1979 = arith.addf %1888, %1978 : vector<8x16xf32>
    %1980 = vector.extract_strided_slice %1798 {offsets = [0, 4], sizes = [8, 1], strides = [1, 1]} : vector<8x8xf32> to vector<8x1xf32>
    %1981 = vector.extract_strided_slice %1798 {offsets = [0, 5], sizes = [8, 1], strides = [1, 1]} : vector<8x8xf32> to vector<8x1xf32>
    %1982 = vector.extract_strided_slice %727 {offsets = [0, 2], sizes = [8, 1], strides = [1, 1]} : vector<8x4xf32> to vector<8x1xf32>
    %cst_528 = arith.constant 4.000000e+00 : f32
    %1983 = vector.broadcast %cst_528 : f32 to vector<8x1xf32>
    %1984 = arith.divf %1980, %1983 : vector<8x1xf32>
    %1985 = arith.addf %1432, %1984 : vector<8x1xf32>
    %cst_529 = arith.constant 4.000000e+00 : f32
    %1986 = vector.broadcast %cst_529 : f32 to vector<8x1xf32>
    %1987 = arith.divf %1981, %1986 : vector<8x1xf32>
    %1988 = arith.addf %1433, %1987 : vector<8x1xf32>
    %cst_530 = arith.constant 2.000000e+00 : f32
    %1989 = vector.broadcast %cst_530 : f32 to vector<8x1xf32>
    %1990 = arith.mulf %1989, %1985 : vector<8x1xf32>
    %cst_531 = arith.constant 1.000000e+00 : f32
    %1991 = vector.broadcast %cst_531 : f32 to vector<8x1xf32>
    %1992 = arith.subf %1990, %1991 : vector<8x1xf32>
    %cst_532 = arith.constant 2.000000e+00 : f32
    %1993 = vector.broadcast %cst_532 : f32 to vector<8x1xf32>
    %1994 = arith.mulf %1993, %1988 : vector<8x1xf32>
    %cst_533 = arith.constant 1.000000e+00 : f32
    %1995 = vector.broadcast %cst_533 : f32 to vector<8x1xf32>
    %1996 = arith.subf %1994, %1995 : vector<8x1xf32>
    %cst_534 = arith.constant 1.000000e+00 : f32
    %1997 = vector.broadcast %cst_534 : f32 to vector<8x1xf32>
    %1998 = arith.addf %1992, %1997 : vector<8x1xf32>
    %cst_535 = arith.constant 4.000000e+00 : f32
    %1999 = vector.broadcast %cst_535 : f32 to vector<8x1xf32>
    %2000 = arith.mulf %1998, %1999 : vector<8x1xf32>
    %cst_536 = arith.constant 1.000000e+00 : f32
    %2001 = vector.broadcast %cst_536 : f32 to vector<8x1xf32>
    %2002 = arith.subf %2000, %2001 : vector<8x1xf32>
    %cst_537 = arith.constant 2.000000e+00 : f32
    %2003 = vector.broadcast %cst_537 : f32 to vector<8x1xf32>
    %2004 = arith.divf %2002, %2003 : vector<8x1xf32>
    %cst_538 = arith.constant 1.000000e+00 : f32
    %2005 = vector.broadcast %cst_538 : f32 to vector<8x1xf32>
    %2006 = arith.addf %1996, %2005 : vector<8x1xf32>
    %cst_539 = arith.constant 4.000000e+00 : f32
    %2007 = vector.broadcast %cst_539 : f32 to vector<8x1xf32>
    %2008 = arith.mulf %2006, %2007 : vector<8x1xf32>
    %cst_540 = arith.constant 1.000000e+00 : f32
    %2009 = vector.broadcast %cst_540 : f32 to vector<8x1xf32>
    %2010 = arith.subf %2008, %2009 : vector<8x1xf32>
    %cst_541 = arith.constant 2.000000e+00 : f32
    %2011 = vector.broadcast %cst_541 : f32 to vector<8x1xf32>
    %2012 = arith.divf %2010, %2011 : vector<8x1xf32>
    %2013 = math.floor %2004 : vector<8x1xf32>
    %cst_542 = arith.constant 1.000000e+00 : f32
    %2014 = vector.broadcast %cst_542 : f32 to vector<8x1xf32>
    %2015 = arith.addf %2013, %2014 : vector<8x1xf32>
    %2016 = math.floor %2012 : vector<8x1xf32>
    %cst_543 = arith.constant 1.000000e+00 : f32
    %2017 = vector.broadcast %cst_543 : f32 to vector<8x1xf32>
    %2018 = arith.addf %2016, %2017 : vector<8x1xf32>
    %2019 = arith.subf %2004, %2013 : vector<8x1xf32>
    %cst_544 = arith.constant 1.000000e+00 : f32
    %2020 = vector.broadcast %cst_544 : f32 to vector<8x1xf32>
    %2021 = arith.subf %2020, %2019 : vector<8x1xf32>
    %2022 = arith.subf %2012, %2016 : vector<8x1xf32>
    %cst_545 = arith.constant 1.000000e+00 : f32
    %2023 = vector.broadcast %cst_545 : f32 to vector<8x1xf32>
    %2024 = arith.subf %2023, %2022 : vector<8x1xf32>
    %2025 = arith.mulf %2024, %1982 : vector<8x1xf32>
    %2026 = arith.mulf %2022, %1982 : vector<8x1xf32>
    %2027 = vector.broadcast %23 : vector<1x4xf32> to vector<8x4xf32>
    %2028 = vector.broadcast %2013 : vector<8x1xf32> to vector<8x4xf32>
    %2029 = arith.cmpf oeq, %2027, %2028 : vector<8x4xf32>
    %cst_546 = arith.constant 0.000000e+00 : f32
    %2030 = vector.shape_cast %2021 : vector<8x1xf32> to vector<8x1xf32>
    %2031 = vector.broadcast %2030 : vector<8x1xf32> to vector<8x4xf32>
    %2032 = vector.broadcast %cst_546 : f32 to vector<8x4xf32>
    %2033 = arith.select %2029, %2031, %2032 : vector<8x4xi1>, vector<8x4xf32>
    %2034 = vector.broadcast %23 : vector<1x4xf32> to vector<8x4xf32>
    %2035 = vector.broadcast %2015 : vector<8x1xf32> to vector<8x4xf32>
    %2036 = arith.cmpf oeq, %2034, %2035 : vector<8x4xf32>
    %cst_547 = arith.constant 0.000000e+00 : f32
    %2037 = vector.shape_cast %2019 : vector<8x1xf32> to vector<8x1xf32>
    %2038 = vector.broadcast %2037 : vector<8x1xf32> to vector<8x4xf32>
    %2039 = vector.broadcast %cst_547 : f32 to vector<8x4xf32>
    %2040 = arith.select %2036, %2038, %2039 : vector<8x4xi1>, vector<8x4xf32>
    %2041 = arith.addf %2033, %2040 : vector<8x4xf32>
    %2042 = vector.broadcast %21 : vector<1x4xf32> to vector<8x4xf32>
    %2043 = vector.broadcast %2016 : vector<8x1xf32> to vector<8x4xf32>
    %2044 = arith.cmpf oeq, %2042, %2043 : vector<8x4xf32>
    %cst_548 = arith.constant 0.000000e+00 : f32
    %2045 = vector.shape_cast %2025 : vector<8x1xf32> to vector<8x1xf32>
    %2046 = vector.broadcast %2045 : vector<8x1xf32> to vector<8x4xf32>
    %2047 = vector.broadcast %cst_548 : f32 to vector<8x4xf32>
    %2048 = arith.select %2044, %2046, %2047 : vector<8x4xi1>, vector<8x4xf32>
    %2049 = vector.broadcast %21 : vector<1x4xf32> to vector<8x4xf32>
    %2050 = vector.broadcast %2018 : vector<8x1xf32> to vector<8x4xf32>
    %2051 = arith.cmpf oeq, %2049, %2050 : vector<8x4xf32>
    %cst_549 = arith.constant 0.000000e+00 : f32
    %2052 = vector.shape_cast %2026 : vector<8x1xf32> to vector<8x1xf32>
    %2053 = vector.broadcast %2052 : vector<8x1xf32> to vector<8x4xf32>
    %2054 = vector.broadcast %cst_549 : f32 to vector<8x4xf32>
    %2055 = arith.select %2051, %2053, %2054 : vector<8x4xi1>, vector<8x4xf32>
    %2056 = arith.addf %2048, %2055 : vector<8x4xf32>
    %2057 = vector.extract_strided_slice %2056 {offsets = [0, 0], sizes = [8, 1], strides = [1, 1]} : vector<8x4xf32> to vector<8x1xf32>
    %2058 = vector.broadcast %2057 : vector<8x1xf32> to vector<8x4xf32>
    %2059 = arith.mulf %2058, %2041 : vector<8x4xf32>
    %2060 = vector.extract_strided_slice %2056 {offsets = [0, 1], sizes = [8, 1], strides = [1, 1]} : vector<8x4xf32> to vector<8x1xf32>
    %2061 = vector.broadcast %2060 : vector<8x1xf32> to vector<8x4xf32>
    %2062 = arith.mulf %2061, %2041 : vector<8x4xf32>
    %2063 = vector.extract_strided_slice %2056 {offsets = [0, 2], sizes = [8, 1], strides = [1, 1]} : vector<8x4xf32> to vector<8x1xf32>
    %2064 = vector.broadcast %2063 : vector<8x1xf32> to vector<8x4xf32>
    %2065 = arith.mulf %2064, %2041 : vector<8x4xf32>
    %2066 = vector.extract_strided_slice %2056 {offsets = [0, 3], sizes = [8, 1], strides = [1, 1]} : vector<8x4xf32> to vector<8x1xf32>
    %2067 = vector.broadcast %2066 : vector<8x1xf32> to vector<8x4xf32>
    %2068 = arith.mulf %2067, %2041 : vector<8x4xf32>
    %2069 = tpu.concatenate %2059, %2062, %2065, %2068 in 1 : vector<8x4xf32>, vector<8x4xf32>, vector<8x4xf32>, vector<8x4xf32> -> vector<8x16xf32>
    %2070 = arith.addf %1979, %2069 : vector<8x16xf32>
    %2071 = vector.extract_strided_slice %1798 {offsets = [0, 6], sizes = [8, 1], strides = [1, 1]} : vector<8x8xf32> to vector<8x1xf32>
    %2072 = vector.extract_strided_slice %1798 {offsets = [0, 7], sizes = [8, 1], strides = [1, 1]} : vector<8x8xf32> to vector<8x1xf32>
    %2073 = vector.extract_strided_slice %727 {offsets = [0, 3], sizes = [8, 1], strides = [1, 1]} : vector<8x4xf32> to vector<8x1xf32>
    %cst_550 = arith.constant 4.000000e+00 : f32
    %2074 = vector.broadcast %cst_550 : f32 to vector<8x1xf32>
    %2075 = arith.divf %2071, %2074 : vector<8x1xf32>
    %2076 = arith.addf %1432, %2075 : vector<8x1xf32>
    %cst_551 = arith.constant 4.000000e+00 : f32
    %2077 = vector.broadcast %cst_551 : f32 to vector<8x1xf32>
    %2078 = arith.divf %2072, %2077 : vector<8x1xf32>
    %2079 = arith.addf %1433, %2078 : vector<8x1xf32>
    %cst_552 = arith.constant 2.000000e+00 : f32
    %2080 = vector.broadcast %cst_552 : f32 to vector<8x1xf32>
    %2081 = arith.mulf %2080, %2076 : vector<8x1xf32>
    %cst_553 = arith.constant 1.000000e+00 : f32
    %2082 = vector.broadcast %cst_553 : f32 to vector<8x1xf32>
    %2083 = arith.subf %2081, %2082 : vector<8x1xf32>
    %cst_554 = arith.constant 2.000000e+00 : f32
    %2084 = vector.broadcast %cst_554 : f32 to vector<8x1xf32>
    %2085 = arith.mulf %2084, %2079 : vector<8x1xf32>
    %cst_555 = arith.constant 1.000000e+00 : f32
    %2086 = vector.broadcast %cst_555 : f32 to vector<8x1xf32>
    %2087 = arith.subf %2085, %2086 : vector<8x1xf32>
    %cst_556 = arith.constant 1.000000e+00 : f32
    %2088 = vector.broadcast %cst_556 : f32 to vector<8x1xf32>
    %2089 = arith.addf %2083, %2088 : vector<8x1xf32>
    %cst_557 = arith.constant 4.000000e+00 : f32
    %2090 = vector.broadcast %cst_557 : f32 to vector<8x1xf32>
    %2091 = arith.mulf %2089, %2090 : vector<8x1xf32>
    %cst_558 = arith.constant 1.000000e+00 : f32
    %2092 = vector.broadcast %cst_558 : f32 to vector<8x1xf32>
    %2093 = arith.subf %2091, %2092 : vector<8x1xf32>
    %cst_559 = arith.constant 2.000000e+00 : f32
    %2094 = vector.broadcast %cst_559 : f32 to vector<8x1xf32>
    %2095 = arith.divf %2093, %2094 : vector<8x1xf32>
    %cst_560 = arith.constant 1.000000e+00 : f32
    %2096 = vector.broadcast %cst_560 : f32 to vector<8x1xf32>
    %2097 = arith.addf %2087, %2096 : vector<8x1xf32>
    %cst_561 = arith.constant 4.000000e+00 : f32
    %2098 = vector.broadcast %cst_561 : f32 to vector<8x1xf32>
    %2099 = arith.mulf %2097, %2098 : vector<8x1xf32>
    %cst_562 = arith.constant 1.000000e+00 : f32
    %2100 = vector.broadcast %cst_562 : f32 to vector<8x1xf32>
    %2101 = arith.subf %2099, %2100 : vector<8x1xf32>
    %cst_563 = arith.constant 2.000000e+00 : f32
    %2102 = vector.broadcast %cst_563 : f32 to vector<8x1xf32>
    %2103 = arith.divf %2101, %2102 : vector<8x1xf32>
    %2104 = math.floor %2095 : vector<8x1xf32>
    %cst_564 = arith.constant 1.000000e+00 : f32
    %2105 = vector.broadcast %cst_564 : f32 to vector<8x1xf32>
    %2106 = arith.addf %2104, %2105 : vector<8x1xf32>
    %2107 = math.floor %2103 : vector<8x1xf32>
    %cst_565 = arith.constant 1.000000e+00 : f32
    %2108 = vector.broadcast %cst_565 : f32 to vector<8x1xf32>
    %2109 = arith.addf %2107, %2108 : vector<8x1xf32>
    %2110 = arith.subf %2095, %2104 : vector<8x1xf32>
    %cst_566 = arith.constant 1.000000e+00 : f32
    %2111 = vector.broadcast %cst_566 : f32 to vector<8x1xf32>
    %2112 = arith.subf %2111, %2110 : vector<8x1xf32>
    %2113 = arith.subf %2103, %2107 : vector<8x1xf32>
    %cst_567 = arith.constant 1.000000e+00 : f32
    %2114 = vector.broadcast %cst_567 : f32 to vector<8x1xf32>
    %2115 = arith.subf %2114, %2113 : vector<8x1xf32>
    %2116 = arith.mulf %2115, %2073 : vector<8x1xf32>
    %2117 = arith.mulf %2113, %2073 : vector<8x1xf32>
    %2118 = vector.broadcast %23 : vector<1x4xf32> to vector<8x4xf32>
    %2119 = vector.broadcast %2104 : vector<8x1xf32> to vector<8x4xf32>
    %2120 = arith.cmpf oeq, %2118, %2119 : vector<8x4xf32>
    %cst_568 = arith.constant 0.000000e+00 : f32
    %2121 = vector.shape_cast %2112 : vector<8x1xf32> to vector<8x1xf32>
    %2122 = vector.broadcast %2121 : vector<8x1xf32> to vector<8x4xf32>
    %2123 = vector.broadcast %cst_568 : f32 to vector<8x4xf32>
    %2124 = arith.select %2120, %2122, %2123 : vector<8x4xi1>, vector<8x4xf32>
    %2125 = vector.broadcast %23 : vector<1x4xf32> to vector<8x4xf32>
    %2126 = vector.broadcast %2106 : vector<8x1xf32> to vector<8x4xf32>
    %2127 = arith.cmpf oeq, %2125, %2126 : vector<8x4xf32>
    %cst_569 = arith.constant 0.000000e+00 : f32
    %2128 = vector.shape_cast %2110 : vector<8x1xf32> to vector<8x1xf32>
    %2129 = vector.broadcast %2128 : vector<8x1xf32> to vector<8x4xf32>
    %2130 = vector.broadcast %cst_569 : f32 to vector<8x4xf32>
    %2131 = arith.select %2127, %2129, %2130 : vector<8x4xi1>, vector<8x4xf32>
    %2132 = arith.addf %2124, %2131 : vector<8x4xf32>
    %2133 = vector.broadcast %21 : vector<1x4xf32> to vector<8x4xf32>
    %2134 = vector.broadcast %2107 : vector<8x1xf32> to vector<8x4xf32>
    %2135 = arith.cmpf oeq, %2133, %2134 : vector<8x4xf32>
    %cst_570 = arith.constant 0.000000e+00 : f32
    %2136 = vector.shape_cast %2116 : vector<8x1xf32> to vector<8x1xf32>
    %2137 = vector.broadcast %2136 : vector<8x1xf32> to vector<8x4xf32>
    %2138 = vector.broadcast %cst_570 : f32 to vector<8x4xf32>
    %2139 = arith.select %2135, %2137, %2138 : vector<8x4xi1>, vector<8x4xf32>
    %2140 = vector.broadcast %21 : vector<1x4xf32> to vector<8x4xf32>
    %2141 = vector.broadcast %2109 : vector<8x1xf32> to vector<8x4xf32>
    %2142 = arith.cmpf oeq, %2140, %2141 : vector<8x4xf32>
    %cst_571 = arith.constant 0.000000e+00 : f32
    %2143 = vector.shape_cast %2117 : vector<8x1xf32> to vector<8x1xf32>
    %2144 = vector.broadcast %2143 : vector<8x1xf32> to vector<8x4xf32>
    %2145 = vector.broadcast %cst_571 : f32 to vector<8x4xf32>
    %2146 = arith.select %2142, %2144, %2145 : vector<8x4xi1>, vector<8x4xf32>
    %2147 = arith.addf %2139, %2146 : vector<8x4xf32>
    %2148 = vector.extract_strided_slice %2147 {offsets = [0, 0], sizes = [8, 1], strides = [1, 1]} : vector<8x4xf32> to vector<8x1xf32>
    %2149 = vector.broadcast %2148 : vector<8x1xf32> to vector<8x4xf32>
    %2150 = arith.mulf %2149, %2132 : vector<8x4xf32>
    %2151 = vector.extract_strided_slice %2147 {offsets = [0, 1], sizes = [8, 1], strides = [1, 1]} : vector<8x4xf32> to vector<8x1xf32>
    %2152 = vector.broadcast %2151 : vector<8x1xf32> to vector<8x4xf32>
    %2153 = arith.mulf %2152, %2132 : vector<8x4xf32>
    %2154 = vector.extract_strided_slice %2147 {offsets = [0, 2], sizes = [8, 1], strides = [1, 1]} : vector<8x4xf32> to vector<8x1xf32>
    %2155 = vector.broadcast %2154 : vector<8x1xf32> to vector<8x4xf32>
    %2156 = arith.mulf %2155, %2132 : vector<8x4xf32>
    %2157 = vector.extract_strided_slice %2147 {offsets = [0, 3], sizes = [8, 1], strides = [1, 1]} : vector<8x4xf32> to vector<8x1xf32>
    %2158 = vector.broadcast %2157 : vector<8x1xf32> to vector<8x4xf32>
    %2159 = arith.mulf %2158, %2132 : vector<8x4xf32>
    %2160 = tpu.concatenate %2150, %2153, %2156, %2159 in 1 : vector<8x4xf32>, vector<8x4xf32>, vector<8x4xf32>, vector<8x4xf32> -> vector<8x16xf32>
    %2161 = arith.addf %2070, %2160 : vector<8x16xf32>
    %2162 = vector.extract_strided_slice %19 {offsets = [0, 16], sizes = [8, 8], strides = [1, 1]} : vector<8x32xf32> to vector<8x8xf32>
    %2163 = vector.extract_strided_slice %2162 {offsets = [0, 0], sizes = [8, 1], strides = [1, 1]} : vector<8x8xf32> to vector<8x1xf32>
    %2164 = vector.extract_strided_slice %2162 {offsets = [0, 1], sizes = [8, 1], strides = [1, 1]} : vector<8x8xf32> to vector<8x1xf32>
    %2165 = vector.extract_strided_slice %1079 {offsets = [0, 0], sizes = [8, 1], strides = [1, 1]} : vector<8x4xf32> to vector<8x1xf32>
    %cst_572 = arith.constant 4.000000e+00 : f32
    %2166 = vector.broadcast %cst_572 : f32 to vector<8x1xf32>
    %2167 = arith.divf %2163, %2166 : vector<8x1xf32>
    %2168 = arith.addf %1432, %2167 : vector<8x1xf32>
    %cst_573 = arith.constant 4.000000e+00 : f32
    %2169 = vector.broadcast %cst_573 : f32 to vector<8x1xf32>
    %2170 = arith.divf %2164, %2169 : vector<8x1xf32>
    %2171 = arith.addf %1433, %2170 : vector<8x1xf32>
    %cst_574 = arith.constant 2.000000e+00 : f32
    %2172 = vector.broadcast %cst_574 : f32 to vector<8x1xf32>
    %2173 = arith.mulf %2172, %2168 : vector<8x1xf32>
    %cst_575 = arith.constant 1.000000e+00 : f32
    %2174 = vector.broadcast %cst_575 : f32 to vector<8x1xf32>
    %2175 = arith.subf %2173, %2174 : vector<8x1xf32>
    %cst_576 = arith.constant 2.000000e+00 : f32
    %2176 = vector.broadcast %cst_576 : f32 to vector<8x1xf32>
    %2177 = arith.mulf %2176, %2171 : vector<8x1xf32>
    %cst_577 = arith.constant 1.000000e+00 : f32
    %2178 = vector.broadcast %cst_577 : f32 to vector<8x1xf32>
    %2179 = arith.subf %2177, %2178 : vector<8x1xf32>
    %cst_578 = arith.constant 1.000000e+00 : f32
    %2180 = vector.broadcast %cst_578 : f32 to vector<8x1xf32>
    %2181 = arith.addf %2175, %2180 : vector<8x1xf32>
    %cst_579 = arith.constant 4.000000e+00 : f32
    %2182 = vector.broadcast %cst_579 : f32 to vector<8x1xf32>
    %2183 = arith.mulf %2181, %2182 : vector<8x1xf32>
    %cst_580 = arith.constant 1.000000e+00 : f32
    %2184 = vector.broadcast %cst_580 : f32 to vector<8x1xf32>
    %2185 = arith.subf %2183, %2184 : vector<8x1xf32>
    %cst_581 = arith.constant 2.000000e+00 : f32
    %2186 = vector.broadcast %cst_581 : f32 to vector<8x1xf32>
    %2187 = arith.divf %2185, %2186 : vector<8x1xf32>
    %cst_582 = arith.constant 1.000000e+00 : f32
    %2188 = vector.broadcast %cst_582 : f32 to vector<8x1xf32>
    %2189 = arith.addf %2179, %2188 : vector<8x1xf32>
    %cst_583 = arith.constant 4.000000e+00 : f32
    %2190 = vector.broadcast %cst_583 : f32 to vector<8x1xf32>
    %2191 = arith.mulf %2189, %2190 : vector<8x1xf32>
    %cst_584 = arith.constant 1.000000e+00 : f32
    %2192 = vector.broadcast %cst_584 : f32 to vector<8x1xf32>
    %2193 = arith.subf %2191, %2192 : vector<8x1xf32>
    %cst_585 = arith.constant 2.000000e+00 : f32
    %2194 = vector.broadcast %cst_585 : f32 to vector<8x1xf32>
    %2195 = arith.divf %2193, %2194 : vector<8x1xf32>
    %2196 = math.floor %2187 : vector<8x1xf32>
    %cst_586 = arith.constant 1.000000e+00 : f32
    %2197 = vector.broadcast %cst_586 : f32 to vector<8x1xf32>
    %2198 = arith.addf %2196, %2197 : vector<8x1xf32>
    %2199 = math.floor %2195 : vector<8x1xf32>
    %cst_587 = arith.constant 1.000000e+00 : f32
    %2200 = vector.broadcast %cst_587 : f32 to vector<8x1xf32>
    %2201 = arith.addf %2199, %2200 : vector<8x1xf32>
    %2202 = arith.subf %2187, %2196 : vector<8x1xf32>
    %cst_588 = arith.constant 1.000000e+00 : f32
    %2203 = vector.broadcast %cst_588 : f32 to vector<8x1xf32>
    %2204 = arith.subf %2203, %2202 : vector<8x1xf32>
    %2205 = arith.subf %2195, %2199 : vector<8x1xf32>
    %cst_589 = arith.constant 1.000000e+00 : f32
    %2206 = vector.broadcast %cst_589 : f32 to vector<8x1xf32>
    %2207 = arith.subf %2206, %2205 : vector<8x1xf32>
    %2208 = arith.mulf %2207, %2165 : vector<8x1xf32>
    %2209 = arith.mulf %2205, %2165 : vector<8x1xf32>
    %2210 = vector.broadcast %23 : vector<1x4xf32> to vector<8x4xf32>
    %2211 = vector.broadcast %2196 : vector<8x1xf32> to vector<8x4xf32>
    %2212 = arith.cmpf oeq, %2210, %2211 : vector<8x4xf32>
    %cst_590 = arith.constant 0.000000e+00 : f32
    %2213 = vector.shape_cast %2204 : vector<8x1xf32> to vector<8x1xf32>
    %2214 = vector.broadcast %2213 : vector<8x1xf32> to vector<8x4xf32>
    %2215 = vector.broadcast %cst_590 : f32 to vector<8x4xf32>
    %2216 = arith.select %2212, %2214, %2215 : vector<8x4xi1>, vector<8x4xf32>
    %2217 = vector.broadcast %23 : vector<1x4xf32> to vector<8x4xf32>
    %2218 = vector.broadcast %2198 : vector<8x1xf32> to vector<8x4xf32>
    %2219 = arith.cmpf oeq, %2217, %2218 : vector<8x4xf32>
    %cst_591 = arith.constant 0.000000e+00 : f32
    %2220 = vector.shape_cast %2202 : vector<8x1xf32> to vector<8x1xf32>
    %2221 = vector.broadcast %2220 : vector<8x1xf32> to vector<8x4xf32>
    %2222 = vector.broadcast %cst_591 : f32 to vector<8x4xf32>
    %2223 = arith.select %2219, %2221, %2222 : vector<8x4xi1>, vector<8x4xf32>
    %2224 = arith.addf %2216, %2223 : vector<8x4xf32>
    %2225 = vector.broadcast %21 : vector<1x4xf32> to vector<8x4xf32>
    %2226 = vector.broadcast %2199 : vector<8x1xf32> to vector<8x4xf32>
    %2227 = arith.cmpf oeq, %2225, %2226 : vector<8x4xf32>
    %cst_592 = arith.constant 0.000000e+00 : f32
    %2228 = vector.shape_cast %2208 : vector<8x1xf32> to vector<8x1xf32>
    %2229 = vector.broadcast %2228 : vector<8x1xf32> to vector<8x4xf32>
    %2230 = vector.broadcast %cst_592 : f32 to vector<8x4xf32>
    %2231 = arith.select %2227, %2229, %2230 : vector<8x4xi1>, vector<8x4xf32>
    %2232 = vector.broadcast %21 : vector<1x4xf32> to vector<8x4xf32>
    %2233 = vector.broadcast %2201 : vector<8x1xf32> to vector<8x4xf32>
    %2234 = arith.cmpf oeq, %2232, %2233 : vector<8x4xf32>
    %cst_593 = arith.constant 0.000000e+00 : f32
    %2235 = vector.shape_cast %2209 : vector<8x1xf32> to vector<8x1xf32>
    %2236 = vector.broadcast %2235 : vector<8x1xf32> to vector<8x4xf32>
    %2237 = vector.broadcast %cst_593 : f32 to vector<8x4xf32>
    %2238 = arith.select %2234, %2236, %2237 : vector<8x4xi1>, vector<8x4xf32>
    %2239 = arith.addf %2231, %2238 : vector<8x4xf32>
    %2240 = vector.extract_strided_slice %2239 {offsets = [0, 0], sizes = [8, 1], strides = [1, 1]} : vector<8x4xf32> to vector<8x1xf32>
    %2241 = vector.broadcast %2240 : vector<8x1xf32> to vector<8x4xf32>
    %2242 = arith.mulf %2241, %2224 : vector<8x4xf32>
    %2243 = vector.extract_strided_slice %2239 {offsets = [0, 1], sizes = [8, 1], strides = [1, 1]} : vector<8x4xf32> to vector<8x1xf32>
    %2244 = vector.broadcast %2243 : vector<8x1xf32> to vector<8x4xf32>
    %2245 = arith.mulf %2244, %2224 : vector<8x4xf32>
    %2246 = vector.extract_strided_slice %2239 {offsets = [0, 2], sizes = [8, 1], strides = [1, 1]} : vector<8x4xf32> to vector<8x1xf32>
    %2247 = vector.broadcast %2246 : vector<8x1xf32> to vector<8x4xf32>
    %2248 = arith.mulf %2247, %2224 : vector<8x4xf32>
    %2249 = vector.extract_strided_slice %2239 {offsets = [0, 3], sizes = [8, 1], strides = [1, 1]} : vector<8x4xf32> to vector<8x1xf32>
    %2250 = vector.broadcast %2249 : vector<8x1xf32> to vector<8x4xf32>
    %2251 = arith.mulf %2250, %2224 : vector<8x4xf32>
    %2252 = tpu.concatenate %2242, %2245, %2248, %2251 in 1 : vector<8x4xf32>, vector<8x4xf32>, vector<8x4xf32>, vector<8x4xf32> -> vector<8x16xf32>
    %2253 = vector.extract_strided_slice %2162 {offsets = [0, 2], sizes = [8, 1], strides = [1, 1]} : vector<8x8xf32> to vector<8x1xf32>
    %2254 = vector.extract_strided_slice %2162 {offsets = [0, 3], sizes = [8, 1], strides = [1, 1]} : vector<8x8xf32> to vector<8x1xf32>
    %2255 = vector.extract_strided_slice %1079 {offsets = [0, 1], sizes = [8, 1], strides = [1, 1]} : vector<8x4xf32> to vector<8x1xf32>
    %cst_594 = arith.constant 4.000000e+00 : f32
    %2256 = vector.broadcast %cst_594 : f32 to vector<8x1xf32>
    %2257 = arith.divf %2253, %2256 : vector<8x1xf32>
    %2258 = arith.addf %1432, %2257 : vector<8x1xf32>
    %cst_595 = arith.constant 4.000000e+00 : f32
    %2259 = vector.broadcast %cst_595 : f32 to vector<8x1xf32>
    %2260 = arith.divf %2254, %2259 : vector<8x1xf32>
    %2261 = arith.addf %1433, %2260 : vector<8x1xf32>
    %cst_596 = arith.constant 2.000000e+00 : f32
    %2262 = vector.broadcast %cst_596 : f32 to vector<8x1xf32>
    %2263 = arith.mulf %2262, %2258 : vector<8x1xf32>
    %cst_597 = arith.constant 1.000000e+00 : f32
    %2264 = vector.broadcast %cst_597 : f32 to vector<8x1xf32>
    %2265 = arith.subf %2263, %2264 : vector<8x1xf32>
    %cst_598 = arith.constant 2.000000e+00 : f32
    %2266 = vector.broadcast %cst_598 : f32 to vector<8x1xf32>
    %2267 = arith.mulf %2266, %2261 : vector<8x1xf32>
    %cst_599 = arith.constant 1.000000e+00 : f32
    %2268 = vector.broadcast %cst_599 : f32 to vector<8x1xf32>
    %2269 = arith.subf %2267, %2268 : vector<8x1xf32>
    %cst_600 = arith.constant 1.000000e+00 : f32
    %2270 = vector.broadcast %cst_600 : f32 to vector<8x1xf32>
    %2271 = arith.addf %2265, %2270 : vector<8x1xf32>
    %cst_601 = arith.constant 4.000000e+00 : f32
    %2272 = vector.broadcast %cst_601 : f32 to vector<8x1xf32>
    %2273 = arith.mulf %2271, %2272 : vector<8x1xf32>
    %cst_602 = arith.constant 1.000000e+00 : f32
    %2274 = vector.broadcast %cst_602 : f32 to vector<8x1xf32>
    %2275 = arith.subf %2273, %2274 : vector<8x1xf32>
    %cst_603 = arith.constant 2.000000e+00 : f32
    %2276 = vector.broadcast %cst_603 : f32 to vector<8x1xf32>
    %2277 = arith.divf %2275, %2276 : vector<8x1xf32>
    %cst_604 = arith.constant 1.000000e+00 : f32
    %2278 = vector.broadcast %cst_604 : f32 to vector<8x1xf32>
    %2279 = arith.addf %2269, %2278 : vector<8x1xf32>
    %cst_605 = arith.constant 4.000000e+00 : f32
    %2280 = vector.broadcast %cst_605 : f32 to vector<8x1xf32>
    %2281 = arith.mulf %2279, %2280 : vector<8x1xf32>
    %cst_606 = arith.constant 1.000000e+00 : f32
    %2282 = vector.broadcast %cst_606 : f32 to vector<8x1xf32>
    %2283 = arith.subf %2281, %2282 : vector<8x1xf32>
    %cst_607 = arith.constant 2.000000e+00 : f32
    %2284 = vector.broadcast %cst_607 : f32 to vector<8x1xf32>
    %2285 = arith.divf %2283, %2284 : vector<8x1xf32>
    %2286 = math.floor %2277 : vector<8x1xf32>
    %cst_608 = arith.constant 1.000000e+00 : f32
    %2287 = vector.broadcast %cst_608 : f32 to vector<8x1xf32>
    %2288 = arith.addf %2286, %2287 : vector<8x1xf32>
    %2289 = math.floor %2285 : vector<8x1xf32>
    %cst_609 = arith.constant 1.000000e+00 : f32
    %2290 = vector.broadcast %cst_609 : f32 to vector<8x1xf32>
    %2291 = arith.addf %2289, %2290 : vector<8x1xf32>
    %2292 = arith.subf %2277, %2286 : vector<8x1xf32>
    %cst_610 = arith.constant 1.000000e+00 : f32
    %2293 = vector.broadcast %cst_610 : f32 to vector<8x1xf32>
    %2294 = arith.subf %2293, %2292 : vector<8x1xf32>
    %2295 = arith.subf %2285, %2289 : vector<8x1xf32>
    %cst_611 = arith.constant 1.000000e+00 : f32
    %2296 = vector.broadcast %cst_611 : f32 to vector<8x1xf32>
    %2297 = arith.subf %2296, %2295 : vector<8x1xf32>
    %2298 = arith.mulf %2297, %2255 : vector<8x1xf32>
    %2299 = arith.mulf %2295, %2255 : vector<8x1xf32>
    %2300 = vector.broadcast %23 : vector<1x4xf32> to vector<8x4xf32>
    %2301 = vector.broadcast %2286 : vector<8x1xf32> to vector<8x4xf32>
    %2302 = arith.cmpf oeq, %2300, %2301 : vector<8x4xf32>
    %cst_612 = arith.constant 0.000000e+00 : f32
    %2303 = vector.shape_cast %2294 : vector<8x1xf32> to vector<8x1xf32>
    %2304 = vector.broadcast %2303 : vector<8x1xf32> to vector<8x4xf32>
    %2305 = vector.broadcast %cst_612 : f32 to vector<8x4xf32>
    %2306 = arith.select %2302, %2304, %2305 : vector<8x4xi1>, vector<8x4xf32>
    %2307 = vector.broadcast %23 : vector<1x4xf32> to vector<8x4xf32>
    %2308 = vector.broadcast %2288 : vector<8x1xf32> to vector<8x4xf32>
    %2309 = arith.cmpf oeq, %2307, %2308 : vector<8x4xf32>
    %cst_613 = arith.constant 0.000000e+00 : f32
    %2310 = vector.shape_cast %2292 : vector<8x1xf32> to vector<8x1xf32>
    %2311 = vector.broadcast %2310 : vector<8x1xf32> to vector<8x4xf32>
    %2312 = vector.broadcast %cst_613 : f32 to vector<8x4xf32>
    %2313 = arith.select %2309, %2311, %2312 : vector<8x4xi1>, vector<8x4xf32>
    %2314 = arith.addf %2306, %2313 : vector<8x4xf32>
    %2315 = vector.broadcast %21 : vector<1x4xf32> to vector<8x4xf32>
    %2316 = vector.broadcast %2289 : vector<8x1xf32> to vector<8x4xf32>
    %2317 = arith.cmpf oeq, %2315, %2316 : vector<8x4xf32>
    %cst_614 = arith.constant 0.000000e+00 : f32
    %2318 = vector.shape_cast %2298 : vector<8x1xf32> to vector<8x1xf32>
    %2319 = vector.broadcast %2318 : vector<8x1xf32> to vector<8x4xf32>
    %2320 = vector.broadcast %cst_614 : f32 to vector<8x4xf32>
    %2321 = arith.select %2317, %2319, %2320 : vector<8x4xi1>, vector<8x4xf32>
    %2322 = vector.broadcast %21 : vector<1x4xf32> to vector<8x4xf32>
    %2323 = vector.broadcast %2291 : vector<8x1xf32> to vector<8x4xf32>
    %2324 = arith.cmpf oeq, %2322, %2323 : vector<8x4xf32>
    %cst_615 = arith.constant 0.000000e+00 : f32
    %2325 = vector.shape_cast %2299 : vector<8x1xf32> to vector<8x1xf32>
    %2326 = vector.broadcast %2325 : vector<8x1xf32> to vector<8x4xf32>
    %2327 = vector.broadcast %cst_615 : f32 to vector<8x4xf32>
    %2328 = arith.select %2324, %2326, %2327 : vector<8x4xi1>, vector<8x4xf32>
    %2329 = arith.addf %2321, %2328 : vector<8x4xf32>
    %2330 = vector.extract_strided_slice %2329 {offsets = [0, 0], sizes = [8, 1], strides = [1, 1]} : vector<8x4xf32> to vector<8x1xf32>
    %2331 = vector.broadcast %2330 : vector<8x1xf32> to vector<8x4xf32>
    %2332 = arith.mulf %2331, %2314 : vector<8x4xf32>
    %2333 = vector.extract_strided_slice %2329 {offsets = [0, 1], sizes = [8, 1], strides = [1, 1]} : vector<8x4xf32> to vector<8x1xf32>
    %2334 = vector.broadcast %2333 : vector<8x1xf32> to vector<8x4xf32>
    %2335 = arith.mulf %2334, %2314 : vector<8x4xf32>
    %2336 = vector.extract_strided_slice %2329 {offsets = [0, 2], sizes = [8, 1], strides = [1, 1]} : vector<8x4xf32> to vector<8x1xf32>
    %2337 = vector.broadcast %2336 : vector<8x1xf32> to vector<8x4xf32>
    %2338 = arith.mulf %2337, %2314 : vector<8x4xf32>
    %2339 = vector.extract_strided_slice %2329 {offsets = [0, 3], sizes = [8, 1], strides = [1, 1]} : vector<8x4xf32> to vector<8x1xf32>
    %2340 = vector.broadcast %2339 : vector<8x1xf32> to vector<8x4xf32>
    %2341 = arith.mulf %2340, %2314 : vector<8x4xf32>
    %2342 = tpu.concatenate %2332, %2335, %2338, %2341 in 1 : vector<8x4xf32>, vector<8x4xf32>, vector<8x4xf32>, vector<8x4xf32> -> vector<8x16xf32>
    %2343 = arith.addf %2252, %2342 : vector<8x16xf32>
    %2344 = vector.extract_strided_slice %2162 {offsets = [0, 4], sizes = [8, 1], strides = [1, 1]} : vector<8x8xf32> to vector<8x1xf32>
    %2345 = vector.extract_strided_slice %2162 {offsets = [0, 5], sizes = [8, 1], strides = [1, 1]} : vector<8x8xf32> to vector<8x1xf32>
    %2346 = vector.extract_strided_slice %1079 {offsets = [0, 2], sizes = [8, 1], strides = [1, 1]} : vector<8x4xf32> to vector<8x1xf32>
    %cst_616 = arith.constant 4.000000e+00 : f32
    %2347 = vector.broadcast %cst_616 : f32 to vector<8x1xf32>
    %2348 = arith.divf %2344, %2347 : vector<8x1xf32>
    %2349 = arith.addf %1432, %2348 : vector<8x1xf32>
    %cst_617 = arith.constant 4.000000e+00 : f32
    %2350 = vector.broadcast %cst_617 : f32 to vector<8x1xf32>
    %2351 = arith.divf %2345, %2350 : vector<8x1xf32>
    %2352 = arith.addf %1433, %2351 : vector<8x1xf32>
    %cst_618 = arith.constant 2.000000e+00 : f32
    %2353 = vector.broadcast %cst_618 : f32 to vector<8x1xf32>
    %2354 = arith.mulf %2353, %2349 : vector<8x1xf32>
    %cst_619 = arith.constant 1.000000e+00 : f32
    %2355 = vector.broadcast %cst_619 : f32 to vector<8x1xf32>
    %2356 = arith.subf %2354, %2355 : vector<8x1xf32>
    %cst_620 = arith.constant 2.000000e+00 : f32
    %2357 = vector.broadcast %cst_620 : f32 to vector<8x1xf32>
    %2358 = arith.mulf %2357, %2352 : vector<8x1xf32>
    %cst_621 = arith.constant 1.000000e+00 : f32
    %2359 = vector.broadcast %cst_621 : f32 to vector<8x1xf32>
    %2360 = arith.subf %2358, %2359 : vector<8x1xf32>
    %cst_622 = arith.constant 1.000000e+00 : f32
    %2361 = vector.broadcast %cst_622 : f32 to vector<8x1xf32>
    %2362 = arith.addf %2356, %2361 : vector<8x1xf32>
    %cst_623 = arith.constant 4.000000e+00 : f32
    %2363 = vector.broadcast %cst_623 : f32 to vector<8x1xf32>
    %2364 = arith.mulf %2362, %2363 : vector<8x1xf32>
    %cst_624 = arith.constant 1.000000e+00 : f32
    %2365 = vector.broadcast %cst_624 : f32 to vector<8x1xf32>
    %2366 = arith.subf %2364, %2365 : vector<8x1xf32>
    %cst_625 = arith.constant 2.000000e+00 : f32
    %2367 = vector.broadcast %cst_625 : f32 to vector<8x1xf32>
    %2368 = arith.divf %2366, %2367 : vector<8x1xf32>
    %cst_626 = arith.constant 1.000000e+00 : f32
    %2369 = vector.broadcast %cst_626 : f32 to vector<8x1xf32>
    %2370 = arith.addf %2360, %2369 : vector<8x1xf32>
    %cst_627 = arith.constant 4.000000e+00 : f32
    %2371 = vector.broadcast %cst_627 : f32 to vector<8x1xf32>
    %2372 = arith.mulf %2370, %2371 : vector<8x1xf32>
    %cst_628 = arith.constant 1.000000e+00 : f32
    %2373 = vector.broadcast %cst_628 : f32 to vector<8x1xf32>
    %2374 = arith.subf %2372, %2373 : vector<8x1xf32>
    %cst_629 = arith.constant 2.000000e+00 : f32
    %2375 = vector.broadcast %cst_629 : f32 to vector<8x1xf32>
    %2376 = arith.divf %2374, %2375 : vector<8x1xf32>
    %2377 = math.floor %2368 : vector<8x1xf32>
    %cst_630 = arith.constant 1.000000e+00 : f32
    %2378 = vector.broadcast %cst_630 : f32 to vector<8x1xf32>
    %2379 = arith.addf %2377, %2378 : vector<8x1xf32>
    %2380 = math.floor %2376 : vector<8x1xf32>
    %cst_631 = arith.constant 1.000000e+00 : f32
    %2381 = vector.broadcast %cst_631 : f32 to vector<8x1xf32>
    %2382 = arith.addf %2380, %2381 : vector<8x1xf32>
    %2383 = arith.subf %2368, %2377 : vector<8x1xf32>
    %cst_632 = arith.constant 1.000000e+00 : f32
    %2384 = vector.broadcast %cst_632 : f32 to vector<8x1xf32>
    %2385 = arith.subf %2384, %2383 : vector<8x1xf32>
    %2386 = arith.subf %2376, %2380 : vector<8x1xf32>
    %cst_633 = arith.constant 1.000000e+00 : f32
    %2387 = vector.broadcast %cst_633 : f32 to vector<8x1xf32>
    %2388 = arith.subf %2387, %2386 : vector<8x1xf32>
    %2389 = arith.mulf %2388, %2346 : vector<8x1xf32>
    %2390 = arith.mulf %2386, %2346 : vector<8x1xf32>
    %2391 = vector.broadcast %23 : vector<1x4xf32> to vector<8x4xf32>
    %2392 = vector.broadcast %2377 : vector<8x1xf32> to vector<8x4xf32>
    %2393 = arith.cmpf oeq, %2391, %2392 : vector<8x4xf32>
    %cst_634 = arith.constant 0.000000e+00 : f32
    %2394 = vector.shape_cast %2385 : vector<8x1xf32> to vector<8x1xf32>
    %2395 = vector.broadcast %2394 : vector<8x1xf32> to vector<8x4xf32>
    %2396 = vector.broadcast %cst_634 : f32 to vector<8x4xf32>
    %2397 = arith.select %2393, %2395, %2396 : vector<8x4xi1>, vector<8x4xf32>
    %2398 = vector.broadcast %23 : vector<1x4xf32> to vector<8x4xf32>
    %2399 = vector.broadcast %2379 : vector<8x1xf32> to vector<8x4xf32>
    %2400 = arith.cmpf oeq, %2398, %2399 : vector<8x4xf32>
    %cst_635 = arith.constant 0.000000e+00 : f32
    %2401 = vector.shape_cast %2383 : vector<8x1xf32> to vector<8x1xf32>
    %2402 = vector.broadcast %2401 : vector<8x1xf32> to vector<8x4xf32>
    %2403 = vector.broadcast %cst_635 : f32 to vector<8x4xf32>
    %2404 = arith.select %2400, %2402, %2403 : vector<8x4xi1>, vector<8x4xf32>
    %2405 = arith.addf %2397, %2404 : vector<8x4xf32>
    %2406 = vector.broadcast %21 : vector<1x4xf32> to vector<8x4xf32>
    %2407 = vector.broadcast %2380 : vector<8x1xf32> to vector<8x4xf32>
    %2408 = arith.cmpf oeq, %2406, %2407 : vector<8x4xf32>
    %cst_636 = arith.constant 0.000000e+00 : f32
    %2409 = vector.shape_cast %2389 : vector<8x1xf32> to vector<8x1xf32>
    %2410 = vector.broadcast %2409 : vector<8x1xf32> to vector<8x4xf32>
    %2411 = vector.broadcast %cst_636 : f32 to vector<8x4xf32>
    %2412 = arith.select %2408, %2410, %2411 : vector<8x4xi1>, vector<8x4xf32>
    %2413 = vector.broadcast %21 : vector<1x4xf32> to vector<8x4xf32>
    %2414 = vector.broadcast %2382 : vector<8x1xf32> to vector<8x4xf32>
    %2415 = arith.cmpf oeq, %2413, %2414 : vector<8x4xf32>
    %cst_637 = arith.constant 0.000000e+00 : f32
    %2416 = vector.shape_cast %2390 : vector<8x1xf32> to vector<8x1xf32>
    %2417 = vector.broadcast %2416 : vector<8x1xf32> to vector<8x4xf32>
    %2418 = vector.broadcast %cst_637 : f32 to vector<8x4xf32>
    %2419 = arith.select %2415, %2417, %2418 : vector<8x4xi1>, vector<8x4xf32>
    %2420 = arith.addf %2412, %2419 : vector<8x4xf32>
    %2421 = vector.extract_strided_slice %2420 {offsets = [0, 0], sizes = [8, 1], strides = [1, 1]} : vector<8x4xf32> to vector<8x1xf32>
    %2422 = vector.broadcast %2421 : vector<8x1xf32> to vector<8x4xf32>
    %2423 = arith.mulf %2422, %2405 : vector<8x4xf32>
    %2424 = vector.extract_strided_slice %2420 {offsets = [0, 1], sizes = [8, 1], strides = [1, 1]} : vector<8x4xf32> to vector<8x1xf32>
    %2425 = vector.broadcast %2424 : vector<8x1xf32> to vector<8x4xf32>
    %2426 = arith.mulf %2425, %2405 : vector<8x4xf32>
    %2427 = vector.extract_strided_slice %2420 {offsets = [0, 2], sizes = [8, 1], strides = [1, 1]} : vector<8x4xf32> to vector<8x1xf32>
    %2428 = vector.broadcast %2427 : vector<8x1xf32> to vector<8x4xf32>
    %2429 = arith.mulf %2428, %2405 : vector<8x4xf32>
    %2430 = vector.extract_strided_slice %2420 {offsets = [0, 3], sizes = [8, 1], strides = [1, 1]} : vector<8x4xf32> to vector<8x1xf32>
    %2431 = vector.broadcast %2430 : vector<8x1xf32> to vector<8x4xf32>
    %2432 = arith.mulf %2431, %2405 : vector<8x4xf32>
    %2433 = tpu.concatenate %2423, %2426, %2429, %2432 in 1 : vector<8x4xf32>, vector<8x4xf32>, vector<8x4xf32>, vector<8x4xf32> -> vector<8x16xf32>
    %2434 = arith.addf %2343, %2433 : vector<8x16xf32>
    %2435 = vector.extract_strided_slice %2162 {offsets = [0, 6], sizes = [8, 1], strides = [1, 1]} : vector<8x8xf32> to vector<8x1xf32>
    %2436 = vector.extract_strided_slice %2162 {offsets = [0, 7], sizes = [8, 1], strides = [1, 1]} : vector<8x8xf32> to vector<8x1xf32>
    %2437 = vector.extract_strided_slice %1079 {offsets = [0, 3], sizes = [8, 1], strides = [1, 1]} : vector<8x4xf32> to vector<8x1xf32>
    %cst_638 = arith.constant 4.000000e+00 : f32
    %2438 = vector.broadcast %cst_638 : f32 to vector<8x1xf32>
    %2439 = arith.divf %2435, %2438 : vector<8x1xf32>
    %2440 = arith.addf %1432, %2439 : vector<8x1xf32>
    %cst_639 = arith.constant 4.000000e+00 : f32
    %2441 = vector.broadcast %cst_639 : f32 to vector<8x1xf32>
    %2442 = arith.divf %2436, %2441 : vector<8x1xf32>
    %2443 = arith.addf %1433, %2442 : vector<8x1xf32>
    %cst_640 = arith.constant 2.000000e+00 : f32
    %2444 = vector.broadcast %cst_640 : f32 to vector<8x1xf32>
    %2445 = arith.mulf %2444, %2440 : vector<8x1xf32>
    %cst_641 = arith.constant 1.000000e+00 : f32
    %2446 = vector.broadcast %cst_641 : f32 to vector<8x1xf32>
    %2447 = arith.subf %2445, %2446 : vector<8x1xf32>
    %cst_642 = arith.constant 2.000000e+00 : f32
    %2448 = vector.broadcast %cst_642 : f32 to vector<8x1xf32>
    %2449 = arith.mulf %2448, %2443 : vector<8x1xf32>
    %cst_643 = arith.constant 1.000000e+00 : f32
    %2450 = vector.broadcast %cst_643 : f32 to vector<8x1xf32>
    %2451 = arith.subf %2449, %2450 : vector<8x1xf32>
    %cst_644 = arith.constant 1.000000e+00 : f32
    %2452 = vector.broadcast %cst_644 : f32 to vector<8x1xf32>
    %2453 = arith.addf %2447, %2452 : vector<8x1xf32>
    %cst_645 = arith.constant 4.000000e+00 : f32
    %2454 = vector.broadcast %cst_645 : f32 to vector<8x1xf32>
    %2455 = arith.mulf %2453, %2454 : vector<8x1xf32>
    %cst_646 = arith.constant 1.000000e+00 : f32
    %2456 = vector.broadcast %cst_646 : f32 to vector<8x1xf32>
    %2457 = arith.subf %2455, %2456 : vector<8x1xf32>
    %cst_647 = arith.constant 2.000000e+00 : f32
    %2458 = vector.broadcast %cst_647 : f32 to vector<8x1xf32>
    %2459 = arith.divf %2457, %2458 : vector<8x1xf32>
    %cst_648 = arith.constant 1.000000e+00 : f32
    %2460 = vector.broadcast %cst_648 : f32 to vector<8x1xf32>
    %2461 = arith.addf %2451, %2460 : vector<8x1xf32>
    %cst_649 = arith.constant 4.000000e+00 : f32
    %2462 = vector.broadcast %cst_649 : f32 to vector<8x1xf32>
    %2463 = arith.mulf %2461, %2462 : vector<8x1xf32>
    %cst_650 = arith.constant 1.000000e+00 : f32
    %2464 = vector.broadcast %cst_650 : f32 to vector<8x1xf32>
    %2465 = arith.subf %2463, %2464 : vector<8x1xf32>
    %cst_651 = arith.constant 2.000000e+00 : f32
    %2466 = vector.broadcast %cst_651 : f32 to vector<8x1xf32>
    %2467 = arith.divf %2465, %2466 : vector<8x1xf32>
    %2468 = math.floor %2459 : vector<8x1xf32>
    %cst_652 = arith.constant 1.000000e+00 : f32
    %2469 = vector.broadcast %cst_652 : f32 to vector<8x1xf32>
    %2470 = arith.addf %2468, %2469 : vector<8x1xf32>
    %2471 = math.floor %2467 : vector<8x1xf32>
    %cst_653 = arith.constant 1.000000e+00 : f32
    %2472 = vector.broadcast %cst_653 : f32 to vector<8x1xf32>
    %2473 = arith.addf %2471, %2472 : vector<8x1xf32>
    %2474 = arith.subf %2459, %2468 : vector<8x1xf32>
    %cst_654 = arith.constant 1.000000e+00 : f32
    %2475 = vector.broadcast %cst_654 : f32 to vector<8x1xf32>
    %2476 = arith.subf %2475, %2474 : vector<8x1xf32>
    %2477 = arith.subf %2467, %2471 : vector<8x1xf32>
    %cst_655 = arith.constant 1.000000e+00 : f32
    %2478 = vector.broadcast %cst_655 : f32 to vector<8x1xf32>
    %2479 = arith.subf %2478, %2477 : vector<8x1xf32>
    %2480 = arith.mulf %2479, %2437 : vector<8x1xf32>
    %2481 = arith.mulf %2477, %2437 : vector<8x1xf32>
    %2482 = vector.broadcast %23 : vector<1x4xf32> to vector<8x4xf32>
    %2483 = vector.broadcast %2468 : vector<8x1xf32> to vector<8x4xf32>
    %2484 = arith.cmpf oeq, %2482, %2483 : vector<8x4xf32>
    %cst_656 = arith.constant 0.000000e+00 : f32
    %2485 = vector.shape_cast %2476 : vector<8x1xf32> to vector<8x1xf32>
    %2486 = vector.broadcast %2485 : vector<8x1xf32> to vector<8x4xf32>
    %2487 = vector.broadcast %cst_656 : f32 to vector<8x4xf32>
    %2488 = arith.select %2484, %2486, %2487 : vector<8x4xi1>, vector<8x4xf32>
    %2489 = vector.broadcast %23 : vector<1x4xf32> to vector<8x4xf32>
    %2490 = vector.broadcast %2470 : vector<8x1xf32> to vector<8x4xf32>
    %2491 = arith.cmpf oeq, %2489, %2490 : vector<8x4xf32>
    %cst_657 = arith.constant 0.000000e+00 : f32
    %2492 = vector.shape_cast %2474 : vector<8x1xf32> to vector<8x1xf32>
    %2493 = vector.broadcast %2492 : vector<8x1xf32> to vector<8x4xf32>
    %2494 = vector.broadcast %cst_657 : f32 to vector<8x4xf32>
    %2495 = arith.select %2491, %2493, %2494 : vector<8x4xi1>, vector<8x4xf32>
    %2496 = arith.addf %2488, %2495 : vector<8x4xf32>
    %2497 = vector.broadcast %21 : vector<1x4xf32> to vector<8x4xf32>
    %2498 = vector.broadcast %2471 : vector<8x1xf32> to vector<8x4xf32>
    %2499 = arith.cmpf oeq, %2497, %2498 : vector<8x4xf32>
    %cst_658 = arith.constant 0.000000e+00 : f32
    %2500 = vector.shape_cast %2480 : vector<8x1xf32> to vector<8x1xf32>
    %2501 = vector.broadcast %2500 : vector<8x1xf32> to vector<8x4xf32>
    %2502 = vector.broadcast %cst_658 : f32 to vector<8x4xf32>
    %2503 = arith.select %2499, %2501, %2502 : vector<8x4xi1>, vector<8x4xf32>
    %2504 = vector.broadcast %21 : vector<1x4xf32> to vector<8x4xf32>
    %2505 = vector.broadcast %2473 : vector<8x1xf32> to vector<8x4xf32>
    %2506 = arith.cmpf oeq, %2504, %2505 : vector<8x4xf32>
    %cst_659 = arith.constant 0.000000e+00 : f32
    %2507 = vector.shape_cast %2481 : vector<8x1xf32> to vector<8x1xf32>
    %2508 = vector.broadcast %2507 : vector<8x1xf32> to vector<8x4xf32>
    %2509 = vector.broadcast %cst_659 : f32 to vector<8x4xf32>
    %2510 = arith.select %2506, %2508, %2509 : vector<8x4xi1>, vector<8x4xf32>
    %2511 = arith.addf %2503, %2510 : vector<8x4xf32>
    %2512 = vector.extract_strided_slice %2511 {offsets = [0, 0], sizes = [8, 1], strides = [1, 1]} : vector<8x4xf32> to vector<8x1xf32>
    %2513 = vector.broadcast %2512 : vector<8x1xf32> to vector<8x4xf32>
    %2514 = arith.mulf %2513, %2496 : vector<8x4xf32>
    %2515 = vector.extract_strided_slice %2511 {offsets = [0, 1], sizes = [8, 1], strides = [1, 1]} : vector<8x4xf32> to vector<8x1xf32>
    %2516 = vector.broadcast %2515 : vector<8x1xf32> to vector<8x4xf32>
    %2517 = arith.mulf %2516, %2496 : vector<8x4xf32>
    %2518 = vector.extract_strided_slice %2511 {offsets = [0, 2], sizes = [8, 1], strides = [1, 1]} : vector<8x4xf32> to vector<8x1xf32>
    %2519 = vector.broadcast %2518 : vector<8x1xf32> to vector<8x4xf32>
    %2520 = arith.mulf %2519, %2496 : vector<8x4xf32>
    %2521 = vector.extract_strided_slice %2511 {offsets = [0, 3], sizes = [8, 1], strides = [1, 1]} : vector<8x4xf32> to vector<8x1xf32>
    %2522 = vector.broadcast %2521 : vector<8x1xf32> to vector<8x4xf32>
    %2523 = arith.mulf %2522, %2496 : vector<8x4xf32>
    %2524 = tpu.concatenate %2514, %2517, %2520, %2523 in 1 : vector<8x4xf32>, vector<8x4xf32>, vector<8x4xf32>, vector<8x4xf32> -> vector<8x16xf32>
    %2525 = arith.addf %2434, %2524 : vector<8x16xf32>
    %2526 = vector.extract_strided_slice %19 {offsets = [0, 24], sizes = [8, 8], strides = [1, 1]} : vector<8x32xf32> to vector<8x8xf32>
    %2527 = vector.extract_strided_slice %2526 {offsets = [0, 0], sizes = [8, 1], strides = [1, 1]} : vector<8x8xf32> to vector<8x1xf32>
    %2528 = vector.extract_strided_slice %2526 {offsets = [0, 1], sizes = [8, 1], strides = [1, 1]} : vector<8x8xf32> to vector<8x1xf32>
    %2529 = vector.extract_strided_slice %1431 {offsets = [0, 0], sizes = [8, 1], strides = [1, 1]} : vector<8x4xf32> to vector<8x1xf32>
    %cst_660 = arith.constant 4.000000e+00 : f32
    %2530 = vector.broadcast %cst_660 : f32 to vector<8x1xf32>
    %2531 = arith.divf %2527, %2530 : vector<8x1xf32>
    %2532 = arith.addf %1432, %2531 : vector<8x1xf32>
    %cst_661 = arith.constant 4.000000e+00 : f32
    %2533 = vector.broadcast %cst_661 : f32 to vector<8x1xf32>
    %2534 = arith.divf %2528, %2533 : vector<8x1xf32>
    %2535 = arith.addf %1433, %2534 : vector<8x1xf32>
    %cst_662 = arith.constant 2.000000e+00 : f32
    %2536 = vector.broadcast %cst_662 : f32 to vector<8x1xf32>
    %2537 = arith.mulf %2536, %2532 : vector<8x1xf32>
    %cst_663 = arith.constant 1.000000e+00 : f32
    %2538 = vector.broadcast %cst_663 : f32 to vector<8x1xf32>
    %2539 = arith.subf %2537, %2538 : vector<8x1xf32>
    %cst_664 = arith.constant 2.000000e+00 : f32
    %2540 = vector.broadcast %cst_664 : f32 to vector<8x1xf32>
    %2541 = arith.mulf %2540, %2535 : vector<8x1xf32>
    %cst_665 = arith.constant 1.000000e+00 : f32
    %2542 = vector.broadcast %cst_665 : f32 to vector<8x1xf32>
    %2543 = arith.subf %2541, %2542 : vector<8x1xf32>
    %cst_666 = arith.constant 1.000000e+00 : f32
    %2544 = vector.broadcast %cst_666 : f32 to vector<8x1xf32>
    %2545 = arith.addf %2539, %2544 : vector<8x1xf32>
    %cst_667 = arith.constant 4.000000e+00 : f32
    %2546 = vector.broadcast %cst_667 : f32 to vector<8x1xf32>
    %2547 = arith.mulf %2545, %2546 : vector<8x1xf32>
    %cst_668 = arith.constant 1.000000e+00 : f32
    %2548 = vector.broadcast %cst_668 : f32 to vector<8x1xf32>
    %2549 = arith.subf %2547, %2548 : vector<8x1xf32>
    %cst_669 = arith.constant 2.000000e+00 : f32
    %2550 = vector.broadcast %cst_669 : f32 to vector<8x1xf32>
    %2551 = arith.divf %2549, %2550 : vector<8x1xf32>
    %cst_670 = arith.constant 1.000000e+00 : f32
    %2552 = vector.broadcast %cst_670 : f32 to vector<8x1xf32>
    %2553 = arith.addf %2543, %2552 : vector<8x1xf32>
    %cst_671 = arith.constant 4.000000e+00 : f32
    %2554 = vector.broadcast %cst_671 : f32 to vector<8x1xf32>
    %2555 = arith.mulf %2553, %2554 : vector<8x1xf32>
    %cst_672 = arith.constant 1.000000e+00 : f32
    %2556 = vector.broadcast %cst_672 : f32 to vector<8x1xf32>
    %2557 = arith.subf %2555, %2556 : vector<8x1xf32>
    %cst_673 = arith.constant 2.000000e+00 : f32
    %2558 = vector.broadcast %cst_673 : f32 to vector<8x1xf32>
    %2559 = arith.divf %2557, %2558 : vector<8x1xf32>
    %2560 = math.floor %2551 : vector<8x1xf32>
    %cst_674 = arith.constant 1.000000e+00 : f32
    %2561 = vector.broadcast %cst_674 : f32 to vector<8x1xf32>
    %2562 = arith.addf %2560, %2561 : vector<8x1xf32>
    %2563 = math.floor %2559 : vector<8x1xf32>
    %cst_675 = arith.constant 1.000000e+00 : f32
    %2564 = vector.broadcast %cst_675 : f32 to vector<8x1xf32>
    %2565 = arith.addf %2563, %2564 : vector<8x1xf32>
    %2566 = arith.subf %2551, %2560 : vector<8x1xf32>
    %cst_676 = arith.constant 1.000000e+00 : f32
    %2567 = vector.broadcast %cst_676 : f32 to vector<8x1xf32>
    %2568 = arith.subf %2567, %2566 : vector<8x1xf32>
    %2569 = arith.subf %2559, %2563 : vector<8x1xf32>
    %cst_677 = arith.constant 1.000000e+00 : f32
    %2570 = vector.broadcast %cst_677 : f32 to vector<8x1xf32>
    %2571 = arith.subf %2570, %2569 : vector<8x1xf32>
    %2572 = arith.mulf %2571, %2529 : vector<8x1xf32>
    %2573 = arith.mulf %2569, %2529 : vector<8x1xf32>
    %2574 = vector.broadcast %23 : vector<1x4xf32> to vector<8x4xf32>
    %2575 = vector.broadcast %2560 : vector<8x1xf32> to vector<8x4xf32>
    %2576 = arith.cmpf oeq, %2574, %2575 : vector<8x4xf32>
    %cst_678 = arith.constant 0.000000e+00 : f32
    %2577 = vector.shape_cast %2568 : vector<8x1xf32> to vector<8x1xf32>
    %2578 = vector.broadcast %2577 : vector<8x1xf32> to vector<8x4xf32>
    %2579 = vector.broadcast %cst_678 : f32 to vector<8x4xf32>
    %2580 = arith.select %2576, %2578, %2579 : vector<8x4xi1>, vector<8x4xf32>
    %2581 = vector.broadcast %23 : vector<1x4xf32> to vector<8x4xf32>
    %2582 = vector.broadcast %2562 : vector<8x1xf32> to vector<8x4xf32>
    %2583 = arith.cmpf oeq, %2581, %2582 : vector<8x4xf32>
    %cst_679 = arith.constant 0.000000e+00 : f32
    %2584 = vector.shape_cast %2566 : vector<8x1xf32> to vector<8x1xf32>
    %2585 = vector.broadcast %2584 : vector<8x1xf32> to vector<8x4xf32>
    %2586 = vector.broadcast %cst_679 : f32 to vector<8x4xf32>
    %2587 = arith.select %2583, %2585, %2586 : vector<8x4xi1>, vector<8x4xf32>
    %2588 = arith.addf %2580, %2587 : vector<8x4xf32>
    %2589 = vector.broadcast %21 : vector<1x4xf32> to vector<8x4xf32>
    %2590 = vector.broadcast %2563 : vector<8x1xf32> to vector<8x4xf32>
    %2591 = arith.cmpf oeq, %2589, %2590 : vector<8x4xf32>
    %cst_680 = arith.constant 0.000000e+00 : f32
    %2592 = vector.shape_cast %2572 : vector<8x1xf32> to vector<8x1xf32>
    %2593 = vector.broadcast %2592 : vector<8x1xf32> to vector<8x4xf32>
    %2594 = vector.broadcast %cst_680 : f32 to vector<8x4xf32>
    %2595 = arith.select %2591, %2593, %2594 : vector<8x4xi1>, vector<8x4xf32>
    %2596 = vector.broadcast %21 : vector<1x4xf32> to vector<8x4xf32>
    %2597 = vector.broadcast %2565 : vector<8x1xf32> to vector<8x4xf32>
    %2598 = arith.cmpf oeq, %2596, %2597 : vector<8x4xf32>
    %cst_681 = arith.constant 0.000000e+00 : f32
    %2599 = vector.shape_cast %2573 : vector<8x1xf32> to vector<8x1xf32>
    %2600 = vector.broadcast %2599 : vector<8x1xf32> to vector<8x4xf32>
    %2601 = vector.broadcast %cst_681 : f32 to vector<8x4xf32>
    %2602 = arith.select %2598, %2600, %2601 : vector<8x4xi1>, vector<8x4xf32>
    %2603 = arith.addf %2595, %2602 : vector<8x4xf32>
    %2604 = vector.extract_strided_slice %2603 {offsets = [0, 0], sizes = [8, 1], strides = [1, 1]} : vector<8x4xf32> to vector<8x1xf32>
    %2605 = vector.broadcast %2604 : vector<8x1xf32> to vector<8x4xf32>
    %2606 = arith.mulf %2605, %2588 : vector<8x4xf32>
    %2607 = vector.extract_strided_slice %2603 {offsets = [0, 1], sizes = [8, 1], strides = [1, 1]} : vector<8x4xf32> to vector<8x1xf32>
    %2608 = vector.broadcast %2607 : vector<8x1xf32> to vector<8x4xf32>
    %2609 = arith.mulf %2608, %2588 : vector<8x4xf32>
    %2610 = vector.extract_strided_slice %2603 {offsets = [0, 2], sizes = [8, 1], strides = [1, 1]} : vector<8x4xf32> to vector<8x1xf32>
    %2611 = vector.broadcast %2610 : vector<8x1xf32> to vector<8x4xf32>
    %2612 = arith.mulf %2611, %2588 : vector<8x4xf32>
    %2613 = vector.extract_strided_slice %2603 {offsets = [0, 3], sizes = [8, 1], strides = [1, 1]} : vector<8x4xf32> to vector<8x1xf32>
    %2614 = vector.broadcast %2613 : vector<8x1xf32> to vector<8x4xf32>
    %2615 = arith.mulf %2614, %2588 : vector<8x4xf32>
    %2616 = tpu.concatenate %2606, %2609, %2612, %2615 in 1 : vector<8x4xf32>, vector<8x4xf32>, vector<8x4xf32>, vector<8x4xf32> -> vector<8x16xf32>
    %2617 = vector.extract_strided_slice %2526 {offsets = [0, 2], sizes = [8, 1], strides = [1, 1]} : vector<8x8xf32> to vector<8x1xf32>
    %2618 = vector.extract_strided_slice %2526 {offsets = [0, 3], sizes = [8, 1], strides = [1, 1]} : vector<8x8xf32> to vector<8x1xf32>
    %2619 = vector.extract_strided_slice %1431 {offsets = [0, 1], sizes = [8, 1], strides = [1, 1]} : vector<8x4xf32> to vector<8x1xf32>
    %cst_682 = arith.constant 4.000000e+00 : f32
    %2620 = vector.broadcast %cst_682 : f32 to vector<8x1xf32>
    %2621 = arith.divf %2617, %2620 : vector<8x1xf32>
    %2622 = arith.addf %1432, %2621 : vector<8x1xf32>
    %cst_683 = arith.constant 4.000000e+00 : f32
    %2623 = vector.broadcast %cst_683 : f32 to vector<8x1xf32>
    %2624 = arith.divf %2618, %2623 : vector<8x1xf32>
    %2625 = arith.addf %1433, %2624 : vector<8x1xf32>
    %cst_684 = arith.constant 2.000000e+00 : f32
    %2626 = vector.broadcast %cst_684 : f32 to vector<8x1xf32>
    %2627 = arith.mulf %2626, %2622 : vector<8x1xf32>
    %cst_685 = arith.constant 1.000000e+00 : f32
    %2628 = vector.broadcast %cst_685 : f32 to vector<8x1xf32>
    %2629 = arith.subf %2627, %2628 : vector<8x1xf32>
    %cst_686 = arith.constant 2.000000e+00 : f32
    %2630 = vector.broadcast %cst_686 : f32 to vector<8x1xf32>
    %2631 = arith.mulf %2630, %2625 : vector<8x1xf32>
    %cst_687 = arith.constant 1.000000e+00 : f32
    %2632 = vector.broadcast %cst_687 : f32 to vector<8x1xf32>
    %2633 = arith.subf %2631, %2632 : vector<8x1xf32>
    %cst_688 = arith.constant 1.000000e+00 : f32
    %2634 = vector.broadcast %cst_688 : f32 to vector<8x1xf32>
    %2635 = arith.addf %2629, %2634 : vector<8x1xf32>
    %cst_689 = arith.constant 4.000000e+00 : f32
    %2636 = vector.broadcast %cst_689 : f32 to vector<8x1xf32>
    %2637 = arith.mulf %2635, %2636 : vector<8x1xf32>
    %cst_690 = arith.constant 1.000000e+00 : f32
    %2638 = vector.broadcast %cst_690 : f32 to vector<8x1xf32>
    %2639 = arith.subf %2637, %2638 : vector<8x1xf32>
    %cst_691 = arith.constant 2.000000e+00 : f32
    %2640 = vector.broadcast %cst_691 : f32 to vector<8x1xf32>
    %2641 = arith.divf %2639, %2640 : vector<8x1xf32>
    %cst_692 = arith.constant 1.000000e+00 : f32
    %2642 = vector.broadcast %cst_692 : f32 to vector<8x1xf32>
    %2643 = arith.addf %2633, %2642 : vector<8x1xf32>
    %cst_693 = arith.constant 4.000000e+00 : f32
    %2644 = vector.broadcast %cst_693 : f32 to vector<8x1xf32>
    %2645 = arith.mulf %2643, %2644 : vector<8x1xf32>
    %cst_694 = arith.constant 1.000000e+00 : f32
    %2646 = vector.broadcast %cst_694 : f32 to vector<8x1xf32>
    %2647 = arith.subf %2645, %2646 : vector<8x1xf32>
    %cst_695 = arith.constant 2.000000e+00 : f32
    %2648 = vector.broadcast %cst_695 : f32 to vector<8x1xf32>
    %2649 = arith.divf %2647, %2648 : vector<8x1xf32>
    %2650 = math.floor %2641 : vector<8x1xf32>
    %cst_696 = arith.constant 1.000000e+00 : f32
    %2651 = vector.broadcast %cst_696 : f32 to vector<8x1xf32>
    %2652 = arith.addf %2650, %2651 : vector<8x1xf32>
    %2653 = math.floor %2649 : vector<8x1xf32>
    %cst_697 = arith.constant 1.000000e+00 : f32
    %2654 = vector.broadcast %cst_697 : f32 to vector<8x1xf32>
    %2655 = arith.addf %2653, %2654 : vector<8x1xf32>
    %2656 = arith.subf %2641, %2650 : vector<8x1xf32>
    %cst_698 = arith.constant 1.000000e+00 : f32
    %2657 = vector.broadcast %cst_698 : f32 to vector<8x1xf32>
    %2658 = arith.subf %2657, %2656 : vector<8x1xf32>
    %2659 = arith.subf %2649, %2653 : vector<8x1xf32>
    %cst_699 = arith.constant 1.000000e+00 : f32
    %2660 = vector.broadcast %cst_699 : f32 to vector<8x1xf32>
    %2661 = arith.subf %2660, %2659 : vector<8x1xf32>
    %2662 = arith.mulf %2661, %2619 : vector<8x1xf32>
    %2663 = arith.mulf %2659, %2619 : vector<8x1xf32>
    %2664 = vector.broadcast %23 : vector<1x4xf32> to vector<8x4xf32>
    %2665 = vector.broadcast %2650 : vector<8x1xf32> to vector<8x4xf32>
    %2666 = arith.cmpf oeq, %2664, %2665 : vector<8x4xf32>
    %cst_700 = arith.constant 0.000000e+00 : f32
    %2667 = vector.shape_cast %2658 : vector<8x1xf32> to vector<8x1xf32>
    %2668 = vector.broadcast %2667 : vector<8x1xf32> to vector<8x4xf32>
    %2669 = vector.broadcast %cst_700 : f32 to vector<8x4xf32>
    %2670 = arith.select %2666, %2668, %2669 : vector<8x4xi1>, vector<8x4xf32>
    %2671 = vector.broadcast %23 : vector<1x4xf32> to vector<8x4xf32>
    %2672 = vector.broadcast %2652 : vector<8x1xf32> to vector<8x4xf32>
    %2673 = arith.cmpf oeq, %2671, %2672 : vector<8x4xf32>
    %cst_701 = arith.constant 0.000000e+00 : f32
    %2674 = vector.shape_cast %2656 : vector<8x1xf32> to vector<8x1xf32>
    %2675 = vector.broadcast %2674 : vector<8x1xf32> to vector<8x4xf32>
    %2676 = vector.broadcast %cst_701 : f32 to vector<8x4xf32>
    %2677 = arith.select %2673, %2675, %2676 : vector<8x4xi1>, vector<8x4xf32>
    %2678 = arith.addf %2670, %2677 : vector<8x4xf32>
    %2679 = vector.broadcast %21 : vector<1x4xf32> to vector<8x4xf32>
    %2680 = vector.broadcast %2653 : vector<8x1xf32> to vector<8x4xf32>
    %2681 = arith.cmpf oeq, %2679, %2680 : vector<8x4xf32>
    %cst_702 = arith.constant 0.000000e+00 : f32
    %2682 = vector.shape_cast %2662 : vector<8x1xf32> to vector<8x1xf32>
    %2683 = vector.broadcast %2682 : vector<8x1xf32> to vector<8x4xf32>
    %2684 = vector.broadcast %cst_702 : f32 to vector<8x4xf32>
    %2685 = arith.select %2681, %2683, %2684 : vector<8x4xi1>, vector<8x4xf32>
    %2686 = vector.broadcast %21 : vector<1x4xf32> to vector<8x4xf32>
    %2687 = vector.broadcast %2655 : vector<8x1xf32> to vector<8x4xf32>
    %2688 = arith.cmpf oeq, %2686, %2687 : vector<8x4xf32>
    %cst_703 = arith.constant 0.000000e+00 : f32
    %2689 = vector.shape_cast %2663 : vector<8x1xf32> to vector<8x1xf32>
    %2690 = vector.broadcast %2689 : vector<8x1xf32> to vector<8x4xf32>
    %2691 = vector.broadcast %cst_703 : f32 to vector<8x4xf32>
    %2692 = arith.select %2688, %2690, %2691 : vector<8x4xi1>, vector<8x4xf32>
    %2693 = arith.addf %2685, %2692 : vector<8x4xf32>
    %2694 = vector.extract_strided_slice %2693 {offsets = [0, 0], sizes = [8, 1], strides = [1, 1]} : vector<8x4xf32> to vector<8x1xf32>
    %2695 = vector.broadcast %2694 : vector<8x1xf32> to vector<8x4xf32>
    %2696 = arith.mulf %2695, %2678 : vector<8x4xf32>
    %2697 = vector.extract_strided_slice %2693 {offsets = [0, 1], sizes = [8, 1], strides = [1, 1]} : vector<8x4xf32> to vector<8x1xf32>
    %2698 = vector.broadcast %2697 : vector<8x1xf32> to vector<8x4xf32>
    %2699 = arith.mulf %2698, %2678 : vector<8x4xf32>
    %2700 = vector.extract_strided_slice %2693 {offsets = [0, 2], sizes = [8, 1], strides = [1, 1]} : vector<8x4xf32> to vector<8x1xf32>
    %2701 = vector.broadcast %2700 : vector<8x1xf32> to vector<8x4xf32>
    %2702 = arith.mulf %2701, %2678 : vector<8x4xf32>
    %2703 = vector.extract_strided_slice %2693 {offsets = [0, 3], sizes = [8, 1], strides = [1, 1]} : vector<8x4xf32> to vector<8x1xf32>
    %2704 = vector.broadcast %2703 : vector<8x1xf32> to vector<8x4xf32>
    %2705 = arith.mulf %2704, %2678 : vector<8x4xf32>
    %2706 = tpu.concatenate %2696, %2699, %2702, %2705 in 1 : vector<8x4xf32>, vector<8x4xf32>, vector<8x4xf32>, vector<8x4xf32> -> vector<8x16xf32>
    %2707 = arith.addf %2616, %2706 : vector<8x16xf32>
    %2708 = vector.extract_strided_slice %2526 {offsets = [0, 4], sizes = [8, 1], strides = [1, 1]} : vector<8x8xf32> to vector<8x1xf32>
    %2709 = vector.extract_strided_slice %2526 {offsets = [0, 5], sizes = [8, 1], strides = [1, 1]} : vector<8x8xf32> to vector<8x1xf32>
    %2710 = vector.extract_strided_slice %1431 {offsets = [0, 2], sizes = [8, 1], strides = [1, 1]} : vector<8x4xf32> to vector<8x1xf32>
    %cst_704 = arith.constant 4.000000e+00 : f32
    %2711 = vector.broadcast %cst_704 : f32 to vector<8x1xf32>
    %2712 = arith.divf %2708, %2711 : vector<8x1xf32>
    %2713 = arith.addf %1432, %2712 : vector<8x1xf32>
    %cst_705 = arith.constant 4.000000e+00 : f32
    %2714 = vector.broadcast %cst_705 : f32 to vector<8x1xf32>
    %2715 = arith.divf %2709, %2714 : vector<8x1xf32>
    %2716 = arith.addf %1433, %2715 : vector<8x1xf32>
    %cst_706 = arith.constant 2.000000e+00 : f32
    %2717 = vector.broadcast %cst_706 : f32 to vector<8x1xf32>
    %2718 = arith.mulf %2717, %2713 : vector<8x1xf32>
    %cst_707 = arith.constant 1.000000e+00 : f32
    %2719 = vector.broadcast %cst_707 : f32 to vector<8x1xf32>
    %2720 = arith.subf %2718, %2719 : vector<8x1xf32>
    %cst_708 = arith.constant 2.000000e+00 : f32
    %2721 = vector.broadcast %cst_708 : f32 to vector<8x1xf32>
    %2722 = arith.mulf %2721, %2716 : vector<8x1xf32>
    %cst_709 = arith.constant 1.000000e+00 : f32
    %2723 = vector.broadcast %cst_709 : f32 to vector<8x1xf32>
    %2724 = arith.subf %2722, %2723 : vector<8x1xf32>
    %cst_710 = arith.constant 1.000000e+00 : f32
    %2725 = vector.broadcast %cst_710 : f32 to vector<8x1xf32>
    %2726 = arith.addf %2720, %2725 : vector<8x1xf32>
    %cst_711 = arith.constant 4.000000e+00 : f32
    %2727 = vector.broadcast %cst_711 : f32 to vector<8x1xf32>
    %2728 = arith.mulf %2726, %2727 : vector<8x1xf32>
    %cst_712 = arith.constant 1.000000e+00 : f32
    %2729 = vector.broadcast %cst_712 : f32 to vector<8x1xf32>
    %2730 = arith.subf %2728, %2729 : vector<8x1xf32>
    %cst_713 = arith.constant 2.000000e+00 : f32
    %2731 = vector.broadcast %cst_713 : f32 to vector<8x1xf32>
    %2732 = arith.divf %2730, %2731 : vector<8x1xf32>
    %cst_714 = arith.constant 1.000000e+00 : f32
    %2733 = vector.broadcast %cst_714 : f32 to vector<8x1xf32>
    %2734 = arith.addf %2724, %2733 : vector<8x1xf32>
    %cst_715 = arith.constant 4.000000e+00 : f32
    %2735 = vector.broadcast %cst_715 : f32 to vector<8x1xf32>
    %2736 = arith.mulf %2734, %2735 : vector<8x1xf32>
    %cst_716 = arith.constant 1.000000e+00 : f32
    %2737 = vector.broadcast %cst_716 : f32 to vector<8x1xf32>
    %2738 = arith.subf %2736, %2737 : vector<8x1xf32>
    %cst_717 = arith.constant 2.000000e+00 : f32
    %2739 = vector.broadcast %cst_717 : f32 to vector<8x1xf32>
    %2740 = arith.divf %2738, %2739 : vector<8x1xf32>
    %2741 = math.floor %2732 : vector<8x1xf32>
    %cst_718 = arith.constant 1.000000e+00 : f32
    %2742 = vector.broadcast %cst_718 : f32 to vector<8x1xf32>
    %2743 = arith.addf %2741, %2742 : vector<8x1xf32>
    %2744 = math.floor %2740 : vector<8x1xf32>
    %cst_719 = arith.constant 1.000000e+00 : f32
    %2745 = vector.broadcast %cst_719 : f32 to vector<8x1xf32>
    %2746 = arith.addf %2744, %2745 : vector<8x1xf32>
    %2747 = arith.subf %2732, %2741 : vector<8x1xf32>
    %cst_720 = arith.constant 1.000000e+00 : f32
    %2748 = vector.broadcast %cst_720 : f32 to vector<8x1xf32>
    %2749 = arith.subf %2748, %2747 : vector<8x1xf32>
    %2750 = arith.subf %2740, %2744 : vector<8x1xf32>
    %cst_721 = arith.constant 1.000000e+00 : f32
    %2751 = vector.broadcast %cst_721 : f32 to vector<8x1xf32>
    %2752 = arith.subf %2751, %2750 : vector<8x1xf32>
    %2753 = arith.mulf %2752, %2710 : vector<8x1xf32>
    %2754 = arith.mulf %2750, %2710 : vector<8x1xf32>
    %2755 = vector.broadcast %23 : vector<1x4xf32> to vector<8x4xf32>
    %2756 = vector.broadcast %2741 : vector<8x1xf32> to vector<8x4xf32>
    %2757 = arith.cmpf oeq, %2755, %2756 : vector<8x4xf32>
    %cst_722 = arith.constant 0.000000e+00 : f32
    %2758 = vector.shape_cast %2749 : vector<8x1xf32> to vector<8x1xf32>
    %2759 = vector.broadcast %2758 : vector<8x1xf32> to vector<8x4xf32>
    %2760 = vector.broadcast %cst_722 : f32 to vector<8x4xf32>
    %2761 = arith.select %2757, %2759, %2760 : vector<8x4xi1>, vector<8x4xf32>
    %2762 = vector.broadcast %23 : vector<1x4xf32> to vector<8x4xf32>
    %2763 = vector.broadcast %2743 : vector<8x1xf32> to vector<8x4xf32>
    %2764 = arith.cmpf oeq, %2762, %2763 : vector<8x4xf32>
    %cst_723 = arith.constant 0.000000e+00 : f32
    %2765 = vector.shape_cast %2747 : vector<8x1xf32> to vector<8x1xf32>
    %2766 = vector.broadcast %2765 : vector<8x1xf32> to vector<8x4xf32>
    %2767 = vector.broadcast %cst_723 : f32 to vector<8x4xf32>
    %2768 = arith.select %2764, %2766, %2767 : vector<8x4xi1>, vector<8x4xf32>
    %2769 = arith.addf %2761, %2768 : vector<8x4xf32>
    %2770 = vector.broadcast %21 : vector<1x4xf32> to vector<8x4xf32>
    %2771 = vector.broadcast %2744 : vector<8x1xf32> to vector<8x4xf32>
    %2772 = arith.cmpf oeq, %2770, %2771 : vector<8x4xf32>
    %cst_724 = arith.constant 0.000000e+00 : f32
    %2773 = vector.shape_cast %2753 : vector<8x1xf32> to vector<8x1xf32>
    %2774 = vector.broadcast %2773 : vector<8x1xf32> to vector<8x4xf32>
    %2775 = vector.broadcast %cst_724 : f32 to vector<8x4xf32>
    %2776 = arith.select %2772, %2774, %2775 : vector<8x4xi1>, vector<8x4xf32>
    %2777 = vector.broadcast %21 : vector<1x4xf32> to vector<8x4xf32>
    %2778 = vector.broadcast %2746 : vector<8x1xf32> to vector<8x4xf32>
    %2779 = arith.cmpf oeq, %2777, %2778 : vector<8x4xf32>
    %cst_725 = arith.constant 0.000000e+00 : f32
    %2780 = vector.shape_cast %2754 : vector<8x1xf32> to vector<8x1xf32>
    %2781 = vector.broadcast %2780 : vector<8x1xf32> to vector<8x4xf32>
    %2782 = vector.broadcast %cst_725 : f32 to vector<8x4xf32>
    %2783 = arith.select %2779, %2781, %2782 : vector<8x4xi1>, vector<8x4xf32>
    %2784 = arith.addf %2776, %2783 : vector<8x4xf32>
    %2785 = vector.extract_strided_slice %2784 {offsets = [0, 0], sizes = [8, 1], strides = [1, 1]} : vector<8x4xf32> to vector<8x1xf32>
    %2786 = vector.broadcast %2785 : vector<8x1xf32> to vector<8x4xf32>
    %2787 = arith.mulf %2786, %2769 : vector<8x4xf32>
    %2788 = vector.extract_strided_slice %2784 {offsets = [0, 1], sizes = [8, 1], strides = [1, 1]} : vector<8x4xf32> to vector<8x1xf32>
    %2789 = vector.broadcast %2788 : vector<8x1xf32> to vector<8x4xf32>
    %2790 = arith.mulf %2789, %2769 : vector<8x4xf32>
    %2791 = vector.extract_strided_slice %2784 {offsets = [0, 2], sizes = [8, 1], strides = [1, 1]} : vector<8x4xf32> to vector<8x1xf32>
    %2792 = vector.broadcast %2791 : vector<8x1xf32> to vector<8x4xf32>
    %2793 = arith.mulf %2792, %2769 : vector<8x4xf32>
    %2794 = vector.extract_strided_slice %2784 {offsets = [0, 3], sizes = [8, 1], strides = [1, 1]} : vector<8x4xf32> to vector<8x1xf32>
    %2795 = vector.broadcast %2794 : vector<8x1xf32> to vector<8x4xf32>
    %2796 = arith.mulf %2795, %2769 : vector<8x4xf32>
    %2797 = tpu.concatenate %2787, %2790, %2793, %2796 in 1 : vector<8x4xf32>, vector<8x4xf32>, vector<8x4xf32>, vector<8x4xf32> -> vector<8x16xf32>
    %2798 = arith.addf %2707, %2797 : vector<8x16xf32>
    %2799 = vector.extract_strided_slice %2526 {offsets = [0, 6], sizes = [8, 1], strides = [1, 1]} : vector<8x8xf32> to vector<8x1xf32>
    %2800 = vector.extract_strided_slice %2526 {offsets = [0, 7], sizes = [8, 1], strides = [1, 1]} : vector<8x8xf32> to vector<8x1xf32>
    %2801 = vector.extract_strided_slice %1431 {offsets = [0, 3], sizes = [8, 1], strides = [1, 1]} : vector<8x4xf32> to vector<8x1xf32>
    %cst_726 = arith.constant 4.000000e+00 : f32
    %2802 = vector.broadcast %cst_726 : f32 to vector<8x1xf32>
    %2803 = arith.divf %2799, %2802 : vector<8x1xf32>
    %2804 = arith.addf %1432, %2803 : vector<8x1xf32>
    %cst_727 = arith.constant 4.000000e+00 : f32
    %2805 = vector.broadcast %cst_727 : f32 to vector<8x1xf32>
    %2806 = arith.divf %2800, %2805 : vector<8x1xf32>
    %2807 = arith.addf %1433, %2806 : vector<8x1xf32>
    %cst_728 = arith.constant 2.000000e+00 : f32
    %2808 = vector.broadcast %cst_728 : f32 to vector<8x1xf32>
    %2809 = arith.mulf %2808, %2804 : vector<8x1xf32>
    %cst_729 = arith.constant 1.000000e+00 : f32
    %2810 = vector.broadcast %cst_729 : f32 to vector<8x1xf32>
    %2811 = arith.subf %2809, %2810 : vector<8x1xf32>
    %cst_730 = arith.constant 2.000000e+00 : f32
    %2812 = vector.broadcast %cst_730 : f32 to vector<8x1xf32>
    %2813 = arith.mulf %2812, %2807 : vector<8x1xf32>
    %cst_731 = arith.constant 1.000000e+00 : f32
    %2814 = vector.broadcast %cst_731 : f32 to vector<8x1xf32>
    %2815 = arith.subf %2813, %2814 : vector<8x1xf32>
    %cst_732 = arith.constant 1.000000e+00 : f32
    %2816 = vector.broadcast %cst_732 : f32 to vector<8x1xf32>
    %2817 = arith.addf %2811, %2816 : vector<8x1xf32>
    %cst_733 = arith.constant 4.000000e+00 : f32
    %2818 = vector.broadcast %cst_733 : f32 to vector<8x1xf32>
    %2819 = arith.mulf %2817, %2818 : vector<8x1xf32>
    %cst_734 = arith.constant 1.000000e+00 : f32
    %2820 = vector.broadcast %cst_734 : f32 to vector<8x1xf32>
    %2821 = arith.subf %2819, %2820 : vector<8x1xf32>
    %cst_735 = arith.constant 2.000000e+00 : f32
    %2822 = vector.broadcast %cst_735 : f32 to vector<8x1xf32>
    %2823 = arith.divf %2821, %2822 : vector<8x1xf32>
    %cst_736 = arith.constant 1.000000e+00 : f32
    %2824 = vector.broadcast %cst_736 : f32 to vector<8x1xf32>
    %2825 = arith.addf %2815, %2824 : vector<8x1xf32>
    %cst_737 = arith.constant 4.000000e+00 : f32
    %2826 = vector.broadcast %cst_737 : f32 to vector<8x1xf32>
    %2827 = arith.mulf %2825, %2826 : vector<8x1xf32>
    %cst_738 = arith.constant 1.000000e+00 : f32
    %2828 = vector.broadcast %cst_738 : f32 to vector<8x1xf32>
    %2829 = arith.subf %2827, %2828 : vector<8x1xf32>
    %cst_739 = arith.constant 2.000000e+00 : f32
    %2830 = vector.broadcast %cst_739 : f32 to vector<8x1xf32>
    %2831 = arith.divf %2829, %2830 : vector<8x1xf32>
    %2832 = math.floor %2823 : vector<8x1xf32>
    %cst_740 = arith.constant 1.000000e+00 : f32
    %2833 = vector.broadcast %cst_740 : f32 to vector<8x1xf32>
    %2834 = arith.addf %2832, %2833 : vector<8x1xf32>
    %2835 = math.floor %2831 : vector<8x1xf32>
    %cst_741 = arith.constant 1.000000e+00 : f32
    %2836 = vector.broadcast %cst_741 : f32 to vector<8x1xf32>
    %2837 = arith.addf %2835, %2836 : vector<8x1xf32>
    %2838 = arith.subf %2823, %2832 : vector<8x1xf32>
    %cst_742 = arith.constant 1.000000e+00 : f32
    %2839 = vector.broadcast %cst_742 : f32 to vector<8x1xf32>
    %2840 = arith.subf %2839, %2838 : vector<8x1xf32>
    %2841 = arith.subf %2831, %2835 : vector<8x1xf32>
    %cst_743 = arith.constant 1.000000e+00 : f32
    %2842 = vector.broadcast %cst_743 : f32 to vector<8x1xf32>
    %2843 = arith.subf %2842, %2841 : vector<8x1xf32>
    %2844 = arith.mulf %2843, %2801 : vector<8x1xf32>
    %2845 = arith.mulf %2841, %2801 : vector<8x1xf32>
    %2846 = vector.broadcast %23 : vector<1x4xf32> to vector<8x4xf32>
    %2847 = vector.broadcast %2832 : vector<8x1xf32> to vector<8x4xf32>
    %2848 = arith.cmpf oeq, %2846, %2847 : vector<8x4xf32>
    %cst_744 = arith.constant 0.000000e+00 : f32
    %2849 = vector.shape_cast %2840 : vector<8x1xf32> to vector<8x1xf32>
    %2850 = vector.broadcast %2849 : vector<8x1xf32> to vector<8x4xf32>
    %2851 = vector.broadcast %cst_744 : f32 to vector<8x4xf32>
    %2852 = arith.select %2848, %2850, %2851 : vector<8x4xi1>, vector<8x4xf32>
    %2853 = vector.broadcast %23 : vector<1x4xf32> to vector<8x4xf32>
    %2854 = vector.broadcast %2834 : vector<8x1xf32> to vector<8x4xf32>
    %2855 = arith.cmpf oeq, %2853, %2854 : vector<8x4xf32>
    %cst_745 = arith.constant 0.000000e+00 : f32
    %2856 = vector.shape_cast %2838 : vector<8x1xf32> to vector<8x1xf32>
    %2857 = vector.broadcast %2856 : vector<8x1xf32> to vector<8x4xf32>
    %2858 = vector.broadcast %cst_745 : f32 to vector<8x4xf32>
    %2859 = arith.select %2855, %2857, %2858 : vector<8x4xi1>, vector<8x4xf32>
    %2860 = arith.addf %2852, %2859 : vector<8x4xf32>
    %2861 = vector.broadcast %21 : vector<1x4xf32> to vector<8x4xf32>
    %2862 = vector.broadcast %2835 : vector<8x1xf32> to vector<8x4xf32>
    %2863 = arith.cmpf oeq, %2861, %2862 : vector<8x4xf32>
    %cst_746 = arith.constant 0.000000e+00 : f32
    %2864 = vector.shape_cast %2844 : vector<8x1xf32> to vector<8x1xf32>
    %2865 = vector.broadcast %2864 : vector<8x1xf32> to vector<8x4xf32>
    %2866 = vector.broadcast %cst_746 : f32 to vector<8x4xf32>
    %2867 = arith.select %2863, %2865, %2866 : vector<8x4xi1>, vector<8x4xf32>
    %2868 = vector.broadcast %21 : vector<1x4xf32> to vector<8x4xf32>
    %2869 = vector.broadcast %2837 : vector<8x1xf32> to vector<8x4xf32>
    %2870 = arith.cmpf oeq, %2868, %2869 : vector<8x4xf32>
    %cst_747 = arith.constant 0.000000e+00 : f32
    %2871 = vector.shape_cast %2845 : vector<8x1xf32> to vector<8x1xf32>
    %2872 = vector.broadcast %2871 : vector<8x1xf32> to vector<8x4xf32>
    %2873 = vector.broadcast %cst_747 : f32 to vector<8x4xf32>
    %2874 = arith.select %2870, %2872, %2873 : vector<8x4xi1>, vector<8x4xf32>
    %2875 = arith.addf %2867, %2874 : vector<8x4xf32>
    %2876 = vector.extract_strided_slice %2875 {offsets = [0, 0], sizes = [8, 1], strides = [1, 1]} : vector<8x4xf32> to vector<8x1xf32>
    %2877 = vector.broadcast %2876 : vector<8x1xf32> to vector<8x4xf32>
    %2878 = arith.mulf %2877, %2860 : vector<8x4xf32>
    %2879 = vector.extract_strided_slice %2875 {offsets = [0, 1], sizes = [8, 1], strides = [1, 1]} : vector<8x4xf32> to vector<8x1xf32>
    %2880 = vector.broadcast %2879 : vector<8x1xf32> to vector<8x4xf32>
    %2881 = arith.mulf %2880, %2860 : vector<8x4xf32>
    %2882 = vector.extract_strided_slice %2875 {offsets = [0, 2], sizes = [8, 1], strides = [1, 1]} : vector<8x4xf32> to vector<8x1xf32>
    %2883 = vector.broadcast %2882 : vector<8x1xf32> to vector<8x4xf32>
    %2884 = arith.mulf %2883, %2860 : vector<8x4xf32>
    %2885 = vector.extract_strided_slice %2875 {offsets = [0, 3], sizes = [8, 1], strides = [1, 1]} : vector<8x4xf32> to vector<8x1xf32>
    %2886 = vector.broadcast %2885 : vector<8x1xf32> to vector<8x4xf32>
    %2887 = arith.mulf %2886, %2860 : vector<8x4xf32>
    %2888 = tpu.concatenate %2878, %2881, %2884, %2887 in 1 : vector<8x4xf32>, vector<8x4xf32>, vector<8x4xf32>, vector<8x4xf32> -> vector<8x16xf32>
    %2889 = arith.addf %2798, %2888 : vector<8x16xf32>
    %2890 = tpu.concatenate %1797, %2161, %2525, %2889 in 0 : vector<8x16xf32>, vector<8x16xf32>, vector<8x16xf32>, vector<8x16xf32> -> vector<32x16xf32>
    %cst_748 = arith.constant dense<0.000000e+00> : vector<32x32xf32>
    %2891 = tpu.matmul %2890, %5, %cst_748 {dimension_numbers = #tpu.dot_dimension_numbers<[1], [0], [0], [1], [0, 0, 1, 1], [], []>} : vector<32x16xf32>, vector<16x32xf32>, vector<32x32xf32> -> vector<32x32xf32>
    %2892 = vector.extract_strided_slice %2891 {offsets = [0, 0], sizes = [8, 8], strides = [1, 1]} : vector<32x32xf32> to vector<8x8xf32>
    %2893 = vector.extract_strided_slice %2891 {offsets = [8, 8], sizes = [8, 8], strides = [1, 1]} : vector<32x32xf32> to vector<8x8xf32>
    %2894 = vector.extract_strided_slice %2891 {offsets = [16, 16], sizes = [8, 8], strides = [1, 1]} : vector<32x32xf32> to vector<8x8xf32>
    %2895 = vector.extract_strided_slice %2891 {offsets = [24, 24], sizes = [8, 8], strides = [1, 1]} : vector<32x32xf32> to vector<8x8xf32>
    %2896 = tpu.concatenate %2892, %2893, %2894, %2895 in 1 : vector<8x8xf32>, vector<8x8xf32>, vector<8x8xf32>, vector<8x8xf32> -> vector<8x32xf32>
    %c0_749 = arith.constant 0 : index
    %c0_750 = arith.constant 0 : index
    %2897 = vector.load %arg9[%c0_749, %c0_750] : memref<32x32xf32, #tpu.memory_space<vmem>>, vector<32x32xf32>
    %cst_751 = arith.constant dense<0.000000e+00> : vector<8x32xf32>
    %2898 = tpu.matmul %2896, %2897, %cst_751 {dimension_numbers = #tpu.dot_dimension_numbers<[1], [0], [0], [1], [0, 0, 1, 1], [], []>} : vector<8x32xf32>, vector<32x32xf32>, vector<8x32xf32> -> vector<8x32xf32>
    %c0_752 = arith.constant 0 : index
    %c0_753 = arith.constant 0 : index
    %2899 = vector.load %arg10[%c0_752, %c0_753] : memref<1x32xf32, #tpu.memory_space<vmem>>, vector<1x32xf32>
    %2900 = vector.broadcast %2899 : vector<1x32xf32> to vector<8x32xf32>
    %2901 = arith.addf %2898, %2900 : vector<8x32xf32>
    %c0_754 = arith.constant 0 : index
    %c0_755 = arith.constant 0 : index
    %2902 = vector.load %arg13[%c0_754, %c0_755] : memref<32x32xf32, #tpu.memory_space<vmem>>, vector<32x32xf32>
    %cst_756 = arith.constant dense<0.000000e+00> : vector<8x32xf32>
    %2903 = tpu.matmul %2901, %2902, %cst_756 {dimension_numbers = #tpu.dot_dimension_numbers<[1], [0], [0], [1], [0, 0, 1, 1], [], []>} : vector<8x32xf32>, vector<32x32xf32>, vector<8x32xf32> -> vector<8x32xf32>
    %c0_757 = arith.constant 0 : index
    %c0_758 = arith.constant 0 : index
    %2904 = vector.load %arg14[%c0_757, %c0_758] : memref<1x32xf32, #tpu.memory_space<vmem>>, vector<1x32xf32>
    %2905 = vector.broadcast %2904 : vector<1x32xf32> to vector<8x32xf32>
    %2906 = arith.addf %2903, %2905 : vector<8x32xf32>
    %2907 = arith.addf %2906, %1 : vector<8x32xf32>
    %c0_759 = arith.constant 0 : index
    %c0_760 = arith.constant 0 : index
    %c0_761 = arith.constant 0 : index
    %2908 = vector.load %arg15[%c0_759, %c0_760, %c0_761] : memref<1x8x32xf32, #tpu.memory_space<vmem>>, vector<1x8x32xf32>
    %2909 = vector.shape_cast %2908 : vector<1x8x32xf32> to vector<8x32xf32>
    %2910 = vector.shape_cast %2907 : vector<8x32xf32> to vector<1x8x32xf32>
    tpu.vector_store %arg15[%c0_759, %c0_760, %c0_761], %2910 {strides = array<i32>} : memref<1x8x32xf32, #tpu.memory_space<vmem>>, vector<1x8x32xf32>,
    return
  }
  func.func @transform_0(%arg0: i32) -> (i32, i32, i32) {
    %c0_i32 = arith.constant 0 : i32
    %c0_i32_0 = arith.constant 0 : i32
    %c0_i32_1 = arith.constant 0 : i32
    return %arg0, %c0_i32, %c0_i32_0 : i32, i32, i32
  }
  func.func @transform_1(%arg0: i32) -> (i32, i32, i32) {
    %c0_i32 = arith.constant 0 : i32
    %c0_i32_0 = arith.constant 0 : i32
    %c0_i32_1 = arith.constant 0 : i32
    return %arg0, %c0_i32, %c0_i32_0 : i32, i32, i32
  }
  func.func @transform_2(%arg0: i32) -> (i32, i32, i32) {
    %c0_i32 = arith.constant 0 : i32
    %c0_i32_0 = arith.constant 0 : i32
    %c0_i32_1 = arith.constant 0 : i32
    return %arg0, %c0_i32, %c0_i32_0 : i32, i32, i32
  }
  func.func @transform_3(%arg0: i32) -> (i32, i32, i32) {
    %c0_i32 = arith.constant 0 : i32
    %c0_i32_0 = arith.constant 0 : i32
    %c0_i32_1 = arith.constant 0 : i32
    return %arg0, %c0_i32, %c0_i32_0 : i32, i32, i32
  }
  func.func @transform_4(%arg0: i32) -> (i32, i32) {
    %c0_i32 = arith.constant 0 : i32
    %c0_i32_0 = arith.constant 0 : i32
    %c0_i32_1 = arith.constant 0 : i32
    return %c0_i32, %c0_i32_0 : i32, i32
  }
  func.func @transform_5(%arg0: i32) -> (i32, i32) {
    %c0_i32 = arith.constant 0 : i32
    %c0_i32_0 = arith.constant 0 : i32
    %c0_i32_1 = arith.constant 0 : i32
    return %c0_i32, %c0_i32_0 : i32, i32
  }
  func.func @transform_6(%arg0: i32) -> (i32, i32) {
    %c0_i32 = arith.constant 0 : i32
    %c0_i32_0 = arith.constant 0 : i32
    %c0_i32_1 = arith.constant 0 : i32
    return %c0_i32, %c0_i32_0 : i32, i32
  }
  func.func @transform_7(%arg0: i32) -> (i32, i32) {
    %c0_i32 = arith.constant 0 : i32
    %c0_i32_0 = arith.constant 0 : i32
    %c0_i32_1 = arith.constant 0 : i32
    return %c0_i32, %c0_i32_0 : i32, i32
  }
  func.func @transform_8(%arg0: i32) -> (i32, i32) {
    %c0_i32 = arith.constant 0 : i32
    %c0_i32_0 = arith.constant 0 : i32
    %c0_i32_1 = arith.constant 0 : i32
    return %c0_i32, %c0_i32_0 : i32, i32
  }
  func.func @transform_9(%arg0: i32) -> (i32, i32) {
    %c0_i32 = arith.constant 0 : i32
    %c0_i32_0 = arith.constant 0 : i32
    %c0_i32_1 = arith.constant 0 : i32
    return %c0_i32, %c0_i32_0 : i32, i32
  }
  func.func @transform_10(%arg0: i32) -> (i32, i32) {
    %c0_i32 = arith.constant 0 : i32
    %c0_i32_0 = arith.constant 0 : i32
    %c0_i32_1 = arith.constant 0 : i32
    return %c0_i32, %c0_i32_0 : i32, i32
  }
  func.func @transform_11(%arg0: i32) -> (i32, i32) {
    %c0_i32 = arith.constant 0 : i32
    %c0_i32_0 = arith.constant 0 : i32
    %c0_i32_1 = arith.constant 0 : i32
    return %c0_i32, %c0_i32_0 : i32, i32
  }
  func.func @transform_12(%arg0: i32) -> (i32, i32) {
    %c0_i32 = arith.constant 0 : i32
    %c0_i32_0 = arith.constant 0 : i32
    %c0_i32_1 = arith.constant 0 : i32
    return %c0_i32, %c0_i32_0 : i32, i32
  }
  func.func @transform_13(%arg0: i32) -> (i32, i32) {
    %c0_i32 = arith.constant 0 : i32
    %c0_i32_0 = arith.constant 0 : i32
    %c0_i32_1 = arith.constant 0 : i32
    return %c0_i32, %c0_i32_0 : i32, i32
  }
  func.func @transform_14(%arg0: i32) -> (i32, i32, i32) {
    %c0_i32 = arith.constant 0 : i32
    %c0_i32_0 = arith.constant 0 : i32
    %c0_i32_1 = arith.constant 0 : i32
    return %arg0, %c0_i32, %c0_i32_0 : i32, i32, i32
  }
}

</mosaic_0001>

<llo_original>
// kernel: tpu_custom_call.1
$region0: #{tpu_custom_call.1}
  #allocation0 [shape = 'u32[]', space=smem, size = 0x4, offset = 0x4, fixed_abs, tag = 'smem constant byte address 0x4 - core index']
  #allocation1 [shape = 'u32[144,128]{1,0:T(1,128)}', space=vmem, size = 0x12000, scoped, tag = 'internal scratch']
  %s0 = inlined_call_operand.hbm [shape: f32[2,8,32], index: 0, kind: input, shape index: {}]
  %s1 = inlined_call_operand.hbm [shape: f32[2,16,32], index: 1, kind: input, shape index: {}]
  %s2 = inlined_call_operand.hbm [shape: f32[2,16,32], index: 2, kind: input, shape index: {}]
  %s3 = inlined_call_operand.vmem [shape: f32[2,8,2], index: 3, kind: input, shape index: {}]
  %s4 = inlined_call_operand.vmem [shape: f32[32,32], index: 4, kind: input, shape index: {}]
  %s5 = inlined_call_operand.vmem [shape: f32[1,32], index: 5, kind: input, shape index: {}]
  %s6 = inlined_call_operand.hbm [shape: f32[8,8], index: 6, kind: input, shape index: {}]
  %s7 = inlined_call_operand.hbm [shape: f32[1,8], index: 7, kind: input, shape index: {}]
  %s8 = inlined_call_operand.hbm [shape: f32[32,32], index: 8, kind: input, shape index: {}]
  %s9 = inlined_call_operand.hbm [shape: f32[1,32], index: 9, kind: input, shape index: {}]
  %s10 = inlined_call_operand.hbm [shape: f32[32,32], index: 10, kind: input, shape index: {}]
  %s11 = inlined_call_operand.hbm [shape: f32[1,32], index: 11, kind: input, shape index: {}]
  %s12 = inlined_call_operand.vmem [shape: f32[32,32], index: 12, kind: input, shape index: {}]
  %s13 = inlined_call_operand.vmem [shape: f32[1,32], index: 13, kind: input, shape index: {}]
  %s14 = inlined_call_operand.hbm [shape: f32[2,8,32], index: 14, kind: output, shape index: {}]
  %s15 = sld [smem:[#allocation0]]
  $region125: #{tpu_custom_call.1} parent=0
    _
  %s17 = ssub.s32 1, %s15
  %s18 = scalar_select 0, %s17, %s15
  $region1: #{tpu_custom_call.1} parent=0
    #allocation2 [shape = 'u8[8192]{0}', space=vmem, size = 0x2000, scoped, tag = 'input window, operand 0']
    #allocation3 [shape = 's32[2]{0}', space=sflag, size = 0x8, scoped, tag = 'scoped memory for tpu_custom_call.1']
    #allocation4 [shape = 's32[2]{0}', space=sflag, size = 0x8, scoped, tag = 'scoped memory for tpu_custom_call.1']
    #allocation5 [shape = 'u8[16384]{0}', space=vmem, size = 0x4000, scoped, tag = 'input window, operand 1']
    #allocation6 [shape = 's32[2]{0}', space=sflag, size = 0x8, scoped, tag = 'scoped memory for tpu_custom_call.1']
    #allocation7 [shape = 'u8[16384]{0}', space=vmem, size = 0x4000, scoped, tag = 'input window, operand 2']
    #allocation8 [shape = 'u8[4096]{0}', space=vmem, size = 0x1000, scoped, tag = 'input window, operand 6, single buffered']
    #allocation9 [shape = 's32[1]{0}', space=sflag, size = 0x4, scoped, tag = 'scoped memory for tpu_custom_call.1']
    #allocation10 [shape = 'u8[512]{0}', space=vmem, size = 0x400, scoped, tag = 'input window, operand 7, single buffered']
    #allocation11 [shape = 'u8[16384]{0}', space=vmem, size = 0x4000, scoped, tag = 'input window, operand 8, single buffered']
    #allocation12 [shape = 's32[1]{0}', space=sflag, size = 0x4, scoped, tag = 'scoped memory for tpu_custom_call.1']
    #allocation13 [shape = 'u8[512]{0}', space=vmem, size = 0x400, scoped, tag = 'input window, operand 9, single buffered']
    #allocation14 [shape = 'u8[16384]{0}', space=vmem, size = 0x4000, scoped, tag = 'input window, operand 10, single buffered']
    #allocation15 [shape = 's32[1]{0}', space=sflag, size = 0x4, scoped, tag = 'scoped memory for tpu_custom_call.1']
    #allocation16 [shape = 'u8[512]{0}', space=vmem, size = 0x400, scoped, tag = 'input window, operand 11, single buffered']
    #allocation17 [shape = 'u8[8192]{0}', space=vmem, size = 0x2000, scoped, tag = 'output window, operand 0']
    %19 = vsyncpa [#allocation3], 0
    %s20 = scalar_lea.sflag [#allocation3], 1
    %21 = vsyncpa %s20, 0
    %22 = vsyncpa [#allocation6], 0
    %s23 = scalar_lea.sflag [#allocation6], 1
    %24 = vsyncpa %s23, 0
    %25 = vsyncpa [#allocation9], 0
    %26 = vsyncpa [#allocation12], 0
    %27 = vsyncpa [#allocation15], 0
    %28 = vsyncpa [#allocation4], 0
    %s29 = scalar_lea.sflag [#allocation4], 1
    %30 = vsyncpa %s29, 0
    loop: start=0, step=1, limit=4
    $region2: #{tpu_custom_call.1} parent=1 // loop_pre_header
      _
    $region3: #{tpu_custom_call.1} parent=1 // loop_header
      %s32 = sphi 0, %s36
      %p33 = scmp.ge.s32.totalorder %s32, 4
      %s42 = sphi 0, %s44
      %s45 = sphi 0, %s42
      %s46 = sphi 0, %s45
      %s62 = sphi 0, %s46
      %s68 = sphi 0, %s70
      %s71 = sphi 0, %s68
      %s72 = sphi 0, %s71
      %s88 = sphi 0, %s72
      %s94 = sphi 0, %s96
      %s97 = sphi 0, %s94
      %s98 = sphi 0, %s97
      %s114 = sphi 0, %s98
      %s120 = sphi 0, %s122
      %s123 = sphi 0, %s120
      %s124 = sphi 0, %s123
      %s140 = sphi 0, %s124
      %s144 = sphi 0, %s144
      %s146 = sphi 0, %s144
      %s147 = sphi 0, %s146
      %s161 = sphi 0, %s147
      %s165 = sphi 0, %s165
      %s167 = sphi 0, %s165
      %s168 = sphi 0, %s167
      %s182 = sphi 0, %s168
      %s186 = sphi 0, %s186
      %s188 = sphi 0, %s186
      %s189 = sphi 0, %s188
      %s203 = sphi 0, %s189
      %s207 = sphi 0, %s207
      %s209 = sphi 0, %s207
      %s210 = sphi 0, %s209
      %s224 = sphi 0, %s210
      %s228 = sphi 0, %s228
      %s230 = sphi 0, %s228
      %s231 = sphi 0, %s230
      %s245 = sphi 0, %s231
      %s249 = sphi 0, %s249
      %s251 = sphi 0, %s249
      %s252 = sphi 0, %s251
      %s266 = sphi 0, %s252
      %s270 = sphi 0, %s270
      %s272 = sphi 0, %s270
      %s273 = sphi 0, %s272
      %s287 = sphi 0, %s273
      %s291 = sphi 0, %s291
      %s293 = sphi 0, %s291
      %s294 = sphi 0, %s293
      %s308 = sphi 0, %s294
      %s312 = sphi 0, %s312
      %s314 = sphi 0, %s312
      %s315 = sphi 0, %s314
      %s329 = sphi 0, %s315
      %s333 = sphi 0, %s333
      %s335 = sphi 0, %s333
      %s336 = sphi 0, %s335
      %s350 = sphi 0, %s336
      %s356 = sphi 0, %s358
      %s359 = sphi 0, %s356
      %s360 = sphi 0, %s359
      %s376 = sphi 0, %s360
    $region4: #{tpu_custom_call.1} parent=1 // loop_header_branch
      %35 = sbr.rel (%p33) target = $region8
    $region5: #{tpu_custom_call.1} parent=1 // loop_body
      %s37 = ssub.s32 %s32, 1
      %s38 = ssub.s32 %s32, 2
      %s39 = sadd.s32 %s32, 1
      %s40 = ssub.s32 %s32, %s39
      %p41 = scmp.eq.s32.totalorder %s40, 0
      %s43 = sadd.s32 %s42, 1
      %s44 = scalar_select %p41, %s42, %s43
      %p47 = pneg %p41
      %p48 = scmp.eq.s32.totalorder %s32, 1
      %p49 = por %p47, %p48
      %p50 = scmp.ne.s32.totalorder %s42, %s45
      %p51 = scmp.eq.s32.totalorder %s32, 0
      %p52 = por %p50, %p51
      %p53 = scmp.ne.s32.totalorder %s42, %s45
      %p54 = scmp.eq.s32.totalorder %s37, 1
      %p55 = por %p53, %p54
      %p56 = scmp.ne.s32.totalorder %s45, %s46
      %p57 = scmp.eq.s32.totalorder %s37, 0
      %p58 = por %p56, %p57
      %p59 = scmp.ne.s32.totalorder %s45, %s46
      %p60 = scmp.eq.s32.totalorder %s38, 1
      %p61 = por %p59, %p60
      %p63 = scmp.ne.s32.totalorder %s46, %s62
      %p64 = scmp.eq.s32.totalorder %s38, 0
      %p65 = por %p63, %p64
      %s66 = ssub.s32 %s32, %s39
      %p67 = scmp.eq.s32.totalorder %s66, 0
      %s69 = sadd.s32 %s68, 1
      %s70 = scalar_select %p67, %s68, %s69
      %p73 = pneg %p67
      %p74 = scmp.eq.s32.totalorder %s32, 1
      %p75 = por %p73, %p74
      %p76 = scmp.ne.s32.totalorder %s68, %s71
      %p77 = scmp.eq.s32.totalorder %s32, 0
      %p78 = por %p76, %p77
      %p79 = scmp.ne.s32.totalorder %s68, %s71
      %p80 = scmp.eq.s32.totalorder %s37, 1
      %p81 = por %p79, %p80
      %p82 = scmp.ne.s32.totalorder %s71, %s72
      %p83 = scmp.eq.s32.totalorder %s37, 0
      %p84 = por %p82, %p83
      %p85 = scmp.ne.s32.totalorder %s71, %s72
      %p86 = scmp.eq.s32.totalorder %s38, 1
      %p87 = por %p85, %p86
      %p89 = scmp.ne.s32.totalorder %s72, %s88
      %p90 = scmp.eq.s32.totalorder %s38, 0
      %p91 = por %p89, %p90
      %s92 = ssub.s32 %s32, %s39
      %p93 = scmp.eq.s32.totalorder %s92, 0
      %s95 = sadd.s32 %s94, 1
      %s96 = scalar_select %p93, %s94, %s95
      %p99 = pneg %p93
      %p100 = scmp.eq.s32.totalorder %s32, 1
      %p101 = por %p99, %p100
      %p102 = scmp.ne.s32.totalorder %s94, %s97
      %p103 = scmp.eq.s32.totalorder %s32, 0
      %p104 = por %p102, %p103
      %p105 = scmp.ne.s32.totalorder %s94, %s97
      %p106 = scmp.eq.s32.totalorder %s37, 1
      %p107 = por %p105, %p106
      %p108 = scmp.ne.s32.totalorder %s97, %s98
      %p109 = scmp.eq.s32.totalorder %s37, 0
      %p110 = por %p108, %p109
      %p111 = scmp.ne.s32.totalorder %s97, %s98
      %p112 = scmp.eq.s32.totalorder %s38, 1
      %p113 = por %p111, %p112
      %p115 = scmp.ne.s32.totalorder %s98, %s114
      %p116 = scmp.eq.s32.totalorder %s38, 0
      %p117 = por %p115, %p116
      %s118 = ssub.s32 %s32, %s39
      %p119 = scmp.eq.s32.totalorder %s118, 0
      %s121 = sadd.s32 %s120, 1
      %s122 = scalar_select %p119, %s120, %s121
      %p125 = pneg %p119
      %p126 = scmp.eq.s32.totalorder %s32, 1
      %p127 = por %p125, %p126
      %p128 = scmp.ne.s32.totalorder %s120, %s123
      %p129 = scmp.eq.s32.totalorder %s32, 0
      %p130 = por %p128, %p129
      %p131 = scmp.ne.s32.totalorder %s120, %s123
      %p132 = scmp.eq.s32.totalorder %s37, 1
      %p133 = por %p131, %p132
      %p134 = scmp.ne.s32.totalorder %s123, %s124
      %p135 = scmp.eq.s32.totalorder %s37, 0
      %p136 = por %p134, %p135
      %p137 = scmp.ne.s32.totalorder %s123, %s124
      %p138 = scmp.eq.s32.totalorder %s38, 1
      %p139 = por %p137, %p138
      %p141 = scmp.ne.s32.totalorder %s124, %s140
      %p142 = scmp.eq.s32.totalorder %s38, 0
      %p143 = por %p141, %p142
      %s145 = sadd.s32 %s144, 1
      %p148 = scmp.eq.s32.totalorder %s32, 1
      %p149 = scmp.ne.s32.totalorder %s144, %s146
      %p150 = scmp.eq.s32.totalorder %s32, 0
      %p151 = por %p149, %p150
      %p152 = scmp.ne.s32.totalorder %s144, %s146
      %p153 = scmp.eq.s32.totalorder %s37, 1
      %p154 = por %p152, %p153
      %p155 = scmp.ne.s32.totalorder %s146, %s147
      %p156 = scmp.eq.s32.totalorder %s37, 0
      %p157 = por %p155, %p156
      %p158 = scmp.ne.s32.totalorder %s146, %s147
      %p159 = scmp.eq.s32.totalorder %s38, 1
      %p160 = por %p158, %p159
      %p162 = scmp.ne.s32.totalorder %s147, %s161
      %p163 = scmp.eq.s32.totalorder %s38, 0
      %p164 = por %p162, %p163
      %s166 = sadd.s32 %s165, 1
      %p169 = scmp.eq.s32.totalorder %s32, 1
      %p170 = scmp.ne.s32.totalorder %s165, %s167
      %p171 = scmp.eq.s32.totalorder %s32, 0
      %p172 = por %p170, %p171
      %p173 = scmp.ne.s32.totalorder %s165, %s167
      %p174 = scmp.eq.s32.totalorder %s37, 1
      %p175 = por %p173, %p174
      %p176 = scmp.ne.s32.totalorder %s167, %s168
      %p177 = scmp.eq.s32.totalorder %s37, 0
      %p178 = por %p176, %p177
      %p179 = scmp.ne.s32.totalorder %s167, %s168
      %p180 = scmp.eq.s32.totalorder %s38, 1
      %p181 = por %p179, %p180
      %p183 = scmp.ne.s32.totalorder %s168, %s182
      %p184 = scmp.eq.s32.totalorder %s38, 0
      %p185 = por %p183, %p184
      %s187 = sadd.s32 %s186, 1
      %p190 = scmp.eq.s32.totalorder %s32, 1
      %p191 = scmp.ne.s32.totalorder %s186, %s188
      %p192 = scmp.eq.s32.totalorder %s32, 0
      %p193 = por %p191, %p192
      %p194 = scmp.ne.s32.totalorder %s186, %s188
      %p195 = scmp.eq.s32.totalorder %s37, 1
      %p196 = por %p194, %p195
      %p197 = scmp.ne.s32.totalorder %s188, %s189
      %p198 = scmp.eq.s32.totalorder %s37, 0
      %p199 = por %p197, %p198
      %p200 = scmp.ne.s32.totalorder %s188, %s189
      %p201 = scmp.eq.s32.totalorder %s38, 1
      %p202 = por %p200, %p201
      %p204 = scmp.ne.s32.totalorder %s189, %s203
      %p205 = scmp.eq.s32.totalorder %s38, 0
      %p206 = por %p204, %p205
      %s208 = sadd.s32 %s207, 1
      %p211 = scmp.eq.s32.totalorder %s32, 1
      %p212 = scmp.ne.s32.totalorder %s207, %s209
      %p213 = scmp.eq.s32.totalorder %s32, 0
      %p214 = por %p212, %p213
      %p215 = scmp.ne.s32.totalorder %s207, %s209
      %p216 = scmp.eq.s32.totalorder %s37, 1
      %p217 = por %p215, %p216
      %p218 = scmp.ne.s32.totalorder %s209, %s210
      %p219 = scmp.eq.s32.totalorder %s37, 0
      %p220 = por %p218, %p219
      %p221 = scmp.ne.s32.totalorder %s209, %s210
      %p222 = scmp.eq.s32.totalorder %s38, 1
      %p223 = por %p221, %p222
      %p225 = scmp.ne.s32.totalorder %s210, %s224
      %p226 = scmp.eq.s32.totalorder %s38, 0
      %p227 = por %p225, %p226
      %s229 = sadd.s32 %s228, 1
      %p232 = scmp.eq.s32.totalorder %s32, 1
      %p233 = scmp.ne.s32.totalorder %s228, %s230
      %p234 = scmp.eq.s32.totalorder %s32, 0
      %p235 = por %p233, %p234
      %p236 = scmp.ne.s32.totalorder %s228, %s230
      %p237 = scmp.eq.s32.totalorder %s37, 1
      %p238 = por %p236, %p237
      %p239 = scmp.ne.s32.totalorder %s230, %s231
      %p240 = scmp.eq.s32.totalorder %s37, 0
      %p241 = por %p239, %p240
      %p242 = scmp.ne.s32.totalorder %s230, %s231
      %p243 = scmp.eq.s32.totalorder %s38, 1
      %p244 = por %p242, %p243
      %p246 = scmp.ne.s32.totalorder %s231, %s245
      %p247 = scmp.eq.s32.totalorder %s38, 0
      %p248 = por %p246, %p247
      %s250 = sadd.s32 %s249, 1
      %p253 = scmp.eq.s32.totalorder %s32, 1
      %p254 = scmp.ne.s32.totalorder %s249, %s251
      %p255 = scmp.eq.s32.totalorder %s32, 0
      %p256 = por %p254, %p255
      %p257 = scmp.ne.s32.totalorder %s249, %s251
      %p258 = scmp.eq.s32.totalorder %s37, 1
      %p259 = por %p257, %p258
      %p260 = scmp.ne.s32.totalorder %s251, %s252
      %p261 = scmp.eq.s32.totalorder %s37, 0
      %p262 = por %p260, %p261
      %p263 = scmp.ne.s32.totalorder %s251, %s252
      %p264 = scmp.eq.s32.totalorder %s38, 1
      %p265 = por %p263, %p264
      %p267 = scmp.ne.s32.totalorder %s252, %s266
      %p268 = scmp.eq.s32.totalorder %s38, 0
      %p269 = por %p267, %p268
      %s271 = sadd.s32 %s270, 1
      %p274 = scmp.eq.s32.totalorder %s32, 1
      %p275 = scmp.ne.s32.totalorder %s270, %s272
      %p276 = scmp.eq.s32.totalorder %s32, 0
      %p277 = por %p275, %p276
      %p278 = scmp.ne.s32.totalorder %s270, %s272
      %p279 = scmp.eq.s32.totalorder %s37, 1
      %p280 = por %p278, %p279
      %p281 = scmp.ne.s32.totalorder %s272, %s273
      %p282 = scmp.eq.s32.totalorder %s37, 0
      %p283 = por %p281, %p282
      %p284 = scmp.ne.s32.totalorder %s272, %s273
      %p285 = scmp.eq.s32.totalorder %s38, 1
      %p286 = por %p284, %p285
      %p288 = scmp.ne.s32.totalorder %s273, %s287
      %p289 = scmp.eq.s32.totalorder %s38, 0
      %p290 = por %p288, %p289
      %s292 = sadd.s32 %s291, 1
      %p295 = scmp.eq.s32.totalorder %s32, 1
      %p296 = scmp.ne.s32.totalorder %s291, %s293
      %p297 = scmp.eq.s32.totalorder %s32, 0
      %p298 = por %p296, %p297
      %p299 = scmp.ne.s32.totalorder %s291, %s293
      %p300 = scmp.eq.s32.totalorder %s37, 1
      %p301 = por %p299, %p300
      %p302 = scmp.ne.s32.totalorder %s293, %s294
      %p303 = scmp.eq.s32.totalorder %s37, 0
      %p304 = por %p302, %p303
      %p305 = scmp.ne.s32.totalorder %s293, %s294
      %p306 = scmp.eq.s32.totalorder %s38, 1
      %p307 = por %p305, %p306
      %p309 = scmp.ne.s32.totalorder %s294, %s308
      %p310 = scmp.eq.s32.totalorder %s38, 0
      %p311 = por %p309, %p310
      %s313 = sadd.s32 %s312, 1
      %p316 = scmp.eq.s32.totalorder %s32, 1
      %p317 = scmp.ne.s32.totalorder %s312, %s314
      %p318 = scmp.eq.s32.totalorder %s32, 0
      %p319 = por %p317, %p318
      %p320 = scmp.ne.s32.totalorder %s312, %s314
      %p321 = scmp.eq.s32.totalorder %s37, 1
      %p322 = por %p320, %p321
      %p323 = scmp.ne.s32.totalorder %s314, %s315
      %p324 = scmp.eq.s32.totalorder %s37, 0
      %p325 = por %p323, %p324
      %p326 = scmp.ne.s32.totalorder %s314, %s315
      %p327 = scmp.eq.s32.totalorder %s38, 1
      %p328 = por %p326, %p327
      %p330 = scmp.ne.s32.totalorder %s315, %s329
      %p331 = scmp.eq.s32.totalorder %s38, 0
      %p332 = por %p330, %p331
      %s334 = sadd.s32 %s333, 1
      %p337 = scmp.eq.s32.totalorder %s32, 1
      %p338 = scmp.ne.s32.totalorder %s333, %s335
      %p339 = scmp.eq.s32.totalorder %s32, 0
      %p340 = por %p338, %p339
      %p341 = scmp.ne.s32.totalorder %s333, %s335
      %p342 = scmp.eq.s32.totalorder %s37, 1
      %p343 = por %p341, %p342
      %p344 = scmp.ne.s32.totalorder %s335, %s336
      %p345 = scmp.eq.s32.totalorder %s37, 0
      %p346 = por %p344, %p345
      %p347 = scmp.ne.s32.totalorder %s335, %s336
      %p348 = scmp.eq.s32.totalorder %s38, 1
      %p349 = por %p347, %p348
      %p351 = scmp.ne.s32.totalorder %s336, %s350
      %p352 = scmp.eq.s32.totalorder %s38, 0
      %p353 = por %p351, %p352
      %s354 = ssub.s32 %s32, %s39
      %p355 = scmp.eq.s32.totalorder %s354, 0
      %s357 = sadd.s32 %s356, 1
      %s358 = scalar_select %p355, %s356, %s357
      %p361 = pneg %p355
      %p362 = scmp.eq.s32.totalorder %s32, 1
      %p363 = por %p361, %p362
      %p364 = scmp.ne.s32.totalorder %s356, %s359
      %p365 = scmp.eq.s32.totalorder %s32, 0
      %p366 = por %p364, %p365
      %p367 = scmp.ne.s32.totalorder %s356, %s359
      %p368 = scmp.eq.s32.totalorder %s37, 1
      %p369 = por %p367, %p368
      %p370 = scmp.ne.s32.totalorder %s359, %s360
      %p371 = scmp.eq.s32.totalorder %s37, 0
      %p372 = por %p370, %p371
      %p373 = scmp.ne.s32.totalorder %s359, %s360
      %p374 = scmp.eq.s32.totalorder %s38, 1
      %p375 = por %p373, %p374
      %p377 = scmp.ne.s32.totalorder %s360, %s376
      %p378 = scmp.eq.s32.totalorder %s38, 0
      %p379 = por %p377, %p378
      %p380 = scmp.le.s32.totalorder 1, %s32
      %p381 = scmp.lt.s32.totalorder %s32, 3
      %p382 = pnand %p380, %p381
      %p383 = pneg %p382
      // Predicated region
      $region9: #{tpu_custom_call.1} parent=5 // pred_check
        _
      $region10: #{tpu_custom_call.1} parent=5 // pred_check_branch
        %385 = sbr.rel (%p382) target = $region12
      $region11: #{tpu_custom_call.1} parent=5 // pred_region
        %s386 = ssub.s32 %s32, 1
        // Predicated region
        $region13: #{tpu_custom_call.1} parent=11 // pred_check
          %p387 = pneg %p157
        $region14: #{tpu_custom_call.1} parent=11 // pred_check_branch
          %389 = sbr.rel (%p387) target = $region16
        $region15: #{tpu_custom_call.1} parent=11 // pred_region
          _
        $region16: #{tpu_custom_call.1} parent=11 // pred_fallthru
          _
        // Predicated region
        $region17: #{tpu_custom_call.1} parent=11 // pred_check
          %p390 = pneg %p178
        $region18: #{tpu_custom_call.1} parent=11 // pred_check_branch
          %392 = sbr.rel (%p390) target = $region20
        $region19: #{tpu_custom_call.1} parent=11 // pred_region
          _
        $region20: #{tpu_custom_call.1} parent=11 // pred_fallthru
          _
        // Predicated region
        $region21: #{tpu_custom_call.1} parent=11 // pred_check
          %p393 = pneg %p199
        $region22: #{tpu_custom_call.1} parent=11 // pred_check_branch
          %395 = sbr.rel (%p393) target = $region24
        $region23: #{tpu_custom_call.1} parent=11 // pred_region
          %s397 = ssub.s32 128, 128
          %398 = vsyncadd [#allocation9], %s397
          %s400 = sshll.u32 [#allocation8], 4
          %s401 = int_to_ptr.vmem [resolvable:$true] %s400
          %403 = dma.hbm_to_vmem [thread:$0]  %s6, 128, %s401, [#allocation9]
        $region24: #{tpu_custom_call.1} parent=11 // pred_fallthru
          _
        // Predicated region
        $region25: #{tpu_custom_call.1} parent=11 // pred_check
          %p404 = pneg %p220
        $region26: #{tpu_custom_call.1} parent=11 // pred_check_branch
          %406 = sbr.rel (%p404) target = $region28
        $region27: #{tpu_custom_call.1} parent=11 // pred_region
          %s408 = ssub.s32 16, 16
          %409 = vsyncadd [#allocation9], %s408
          %s411 = sshll.u32 [#allocation10], 4
          %s412 = int_to_ptr.vmem [resolvable:$true] %s411
          %414 = dma.hbm_to_vmem [thread:$0]  %s7, 16, %s412, [#allocation9]
        $region28: #{tpu_custom_call.1} parent=11 // pred_fallthru
          _
        // Predicated region
        $region29: #{tpu_custom_call.1} parent=11 // pred_check
          %p415 = pneg %p241
        $region30: #{tpu_custom_call.1} parent=11 // pred_check_branch
          %417 = sbr.rel (%p415) target = $region32
        $region31: #{tpu_custom_call.1} parent=11 // pred_region
          %s419 = ssub.s32 512, 512
          %420 = vsyncadd [#allocation12], %s419
          %s421 = sshll.u32 [#allocation11], 4
          %s422 = int_to_ptr.vmem [resolvable:$true] %s421
          %427 = dma.hbm_to_vmem [thread:$0]  %s8, 512, %s422, [#allocation12], 128, 128, 8
        $region32: #{tpu_custom_call.1} parent=11 // pred_fallthru
          _
        // Predicated region
        $region33: #{tpu_custom_call.1} parent=11 // pred_check
          %p428 = pneg %p262
        $region34: #{tpu_custom_call.1} parent=11 // pred_check_branch
          %430 = sbr.rel (%p428) target = $region36
        $region35: #{tpu_custom_call.1} parent=11 // pred_region
          %s432 = ssub.s32 16, 16
          %433 = vsyncadd [#allocation12], %s432
          %s435 = sshll.u32 [#allocation13], 4
          %s436 = int_to_ptr.vmem [resolvable:$true] %s435
          %438 = dma.hbm_to_vmem [thread:$0]  %s9, 16, %s436, [#allocation12]
        $region36: #{tpu_custom_call.1} parent=11 // pred_fallthru
          _
        // Predicated region
        $region37: #{tpu_custom_call.1} parent=11 // pred_check
          %p439 = pneg %p283
        $region38: #{tpu_custom_call.1} parent=11 // pred_check_branch
          %441 = sbr.rel (%p439) target = $region40
        $region39: #{tpu_custom_call.1} parent=11 // pred_region
          %s443 = ssub.s32 512, 512
          %444 = vsyncadd [#allocation15], %s443
          %s445 = sshll.u32 [#allocation14], 4
          %s446 = int_to_ptr.vmem [resolvable:$true] %s445
          %451 = dma.hbm_to_vmem [thread:$0]  %s10, 512, %s446, [#allocation15], 128, 128, 8
        $region40: #{tpu_custom_call.1} parent=11 // pred_fallthru
          _
        // Predicated region
        $region41: #{tpu_custom_call.1} parent=11 // pred_check
          %p452 = pneg %p304
        $region42: #{tpu_custom_call.1} parent=11 // pred_check_branch
          %454 = sbr.rel (%p452) target = $region44
        $region43: #{tpu_custom_call.1} parent=11 // pred_region
          %s456 = ssub.s32 16, 16
          %457 = vsyncadd [#allocation15], %s456
          %s459 = sshll.u32 [#allocation16], 4
          %s460 = int_to_ptr.vmem [resolvable:$true] %s459
          %462 = dma.hbm_to_vmem [thread:$0]  %s11, 16, %s460, [#allocation15]
        $region44: #{tpu_custom_call.1} parent=11 // pred_fallthru
          _
        // Predicated region
        $region45: #{tpu_custom_call.1} parent=11 // pred_check
          %p463 = pneg %p325
        $region46: #{tpu_custom_call.1} parent=11 // pred_check_branch
          %465 = sbr.rel (%p463) target = $region48
        $region47: #{tpu_custom_call.1} parent=11 // pred_region
          _
        $region48: #{tpu_custom_call.1} parent=11 // pred_fallthru
          _
        // Predicated region
        $region49: #{tpu_custom_call.1} parent=11 // pred_check
          %p466 = pneg %p346
        $region50: #{tpu_custom_call.1} parent=11 // pred_check_branch
          %468 = sbr.rel (%p466) target = $region52
        $region51: #{tpu_custom_call.1} parent=11 // pred_region
          _
        $region52: #{tpu_custom_call.1} parent=11 // pred_fallthru
          _
      $region12: #{tpu_custom_call.1} parent=5 // pred_fallthru
        _
      %p469 = scmp.lt.s32.totalorder %s32, 2
      // Predicated region
      $region53: #{tpu_custom_call.1} parent=5 // pred_check
        %p470 = pneg %p469
      $region54: #{tpu_custom_call.1} parent=5 // pred_check_branch
        %472 = sbr.rel (%p470) target = $region56
      $region55: #{tpu_custom_call.1} parent=5 // pred_region
        // Predicated region
        $region57: #{tpu_custom_call.1} parent=55 // pred_check
          %p473 = pneg %p52
        $region58: #{tpu_custom_call.1} parent=55 // pred_check_branch
          %475 = sbr.rel (%p473) target = $region60
        $region59: #{tpu_custom_call.1} parent=55 // pred_region
          %s476 = sand.u32 %s42, 1
          %s477 = scalar_lea.sflag [#allocation3], %s476
          %s478 = sand.u32 %s42, 1
          %s479 = smul.addr %s478, 8
          %s480 = scalar_lea.vmem [#allocation2], %s479
          %s482 = ssub.s32 128, 128
          %483 = vsyncadd %s477, %s482
          %s484 = smul.addr %s32, 128
          %s485 = scalar_lea.hbm %s0, %s484
          %s487 = sshll.u32 %s480, 4
          %s488 = int_to_ptr.vmem [resolvable:$true] %s487
          %490 = dma.hbm_to_vmem [thread:$0]  %s485, 128, %s488, %s477
        $region60: #{tpu_custom_call.1} parent=55 // pred_fallthru
          _
        // Predicated region
        $region61: #{tpu_custom_call.1} parent=55 // pred_check
          %p491 = pneg %p78
        $region62: #{tpu_custom_call.1} parent=55 // pred_check_branch
          %493 = sbr.rel (%p491) target = $region64
        $region63: #{tpu_custom_call.1} parent=55 // pred_region
          %s494 = sand.u32 %s32, 1
          %s495 = scalar_lea.sflag [#allocation6], %s494
          %s496 = sand.u32 %s68, 1
          %s497 = smul.addr %s496, 16
          %s498 = scalar_lea.vmem [#allocation5], %s497
          %s500 = ssub.s32 256, 256
          %501 = vsyncadd %s495, %s500
          %s502 = smul.addr %s32, 2
          %s503 = smul.addr %s502, 128
          %s504 = scalar_lea.hbm %s1, %s503
          %s505 = sshll.u32 %s498, 4
          %s506 = int_to_ptr.vmem [resolvable:$true] %s505
          %511 = dma.hbm_to_vmem [thread:$0]  %s504, 256, %s506, %s495, 128, 128, 8
        $region64: #{tpu_custom_call.1} parent=55 // pred_fallthru
          _
        // Predicated region
        $region65: #{tpu_custom_call.1} parent=55 // pred_check
          %p512 = pneg %p104
        $region66: #{tpu_custom_call.1} parent=55 // pred_check_branch
          %514 = sbr.rel (%p512) target = $region68
        $region67: #{tpu_custom_call.1} parent=55 // pred_region
          %s515 = sand.u32 %s32, 1
          %s516 = scalar_lea.sflag [#allocation6], %s515
          %s517 = sand.u32 %s94, 1
          %s518 = smul.addr %s517, 16
          %s519 = scalar_lea.vmem [#allocation7], %s518
          %s521 = ssub.s32 256, 256
          %522 = vsyncadd %s516, %s521
          %s523 = smul.addr %s32, 2
          %s524 = smul.addr %s523, 128
          %s525 = scalar_lea.hbm %s2, %s524
          %s526 = sshll.u32 %s519, 4
          %s527 = int_to_ptr.vmem [resolvable:$true] %s526
          %532 = dma.hbm_to_vmem [thread:$0]  %s525, 256, %s527, %s516, 128, 128, 8
        $region68: #{tpu_custom_call.1} parent=55 // pred_fallthru
          _
        // Predicated region
        $region69: #{tpu_custom_call.1} parent=55 // pred_check
          %p533 = pneg %p130
        $region70: #{tpu_custom_call.1} parent=55 // pred_check_branch
          %535 = sbr.rel (%p533) target = $region72
        $region71: #{tpu_custom_call.1} parent=55 // pred_region
          %p536 = scmp.lt.s32.totalorder %s32, 1
          %s537 = scalar_select %p536, %s32, 1
          %s538 = smul.addr %s537, 8
          %s539 = scalar_lea.vmem %s3, %s538
        $region72: #{tpu_custom_call.1} parent=55 // pred_fallthru
          _
      $region56: #{tpu_custom_call.1} parent=5 // pred_fallthru
        _
      %p540 = scmp.le.s32.totalorder 1, %s32
      %p541 = scmp.lt.s32.totalorder %s32, 3
      %p542 = pnand %p540, %p541
      %p543 = pneg %p542
      // Predicated region
      $region73: #{tpu_custom_call.1} parent=5 // pred_check
        _
      $region74: #{tpu_custom_call.1} parent=5 // pred_check_branch
        %545 = sbr.rel (%p542) target = $region76
      $region75: #{tpu_custom_call.1} parent=5 // pred_region
        %s546 = ssub.s32 %s32, 1
        %s547 = sand.u32 %s45, 1
        %s548 = scalar_lea.sflag [#allocation3], %s547
        %s549 = sand.u32 %s45, 1
        %s550 = smul.addr %s549, 8
        %s551 = scalar_lea.vmem [#allocation2], %s550
        // Predicated region
        $region77: #{tpu_custom_call.1} parent=75 // pred_check
          %p552 = pneg %p58
        $region78: #{tpu_custom_call.1} parent=75 // pred_check_branch
          %554 = sbr.rel (%p552) target = $region80
        $region79: #{tpu_custom_call.1} parent=75 // pred_region
          %555 = dma.done %s548, 128
        $region80: #{tpu_custom_call.1} parent=75 // pred_fallthru
          _
        %s556 = sand.u32 %s37, 1
        %s557 = scalar_lea.sflag [#allocation6], %s556
        %s558 = sand.u32 %s71, 1
        %s559 = smul.addr %s558, 16
        %s560 = scalar_lea.vmem [#allocation5], %s559
        // Predicated region
        $region81: #{tpu_custom_call.1} parent=75 // pred_check
          %p561 = pneg %p84
        $region82: #{tpu_custom_call.1} parent=75 // pred_check_branch
          %563 = sbr.rel (%p561) target = $region84
        $region83: #{tpu_custom_call.1} parent=75 // pred_region
          %564 = dma.done %s557, 256
        $region84: #{tpu_custom_call.1} parent=75 // pred_fallthru
          _
        %s565 = sand.u32 %s37, 1
        %s566 = scalar_lea.sflag [#allocation6], %s565
        %s567 = sand.u32 %s97, 1
        %s568 = smul.addr %s567, 16
        %s569 = scalar_lea.vmem [#allocation7], %s568
        // Predicated region
        $region85: #{tpu_custom_call.1} parent=75 // pred_check
          %p570 = pneg %p110
        $region86: #{tpu_custom_call.1} parent=75 // pred_check_branch
          %572 = sbr.rel (%p570) target = $region88
        $region87: #{tpu_custom_call.1} parent=75 // pred_region
          %573 = dma.done %s566, 256
        $region88: #{tpu_custom_call.1} parent=75 // pred_fallthru
          _
        // Predicated region
        $region89: #{tpu_custom_call.1} parent=75 // pred_check
          %p574 = pneg %p199
        $region90: #{tpu_custom_call.1} parent=75 // pred_check_branch
          %576 = sbr.rel (%p574) target = $region92
        $region91: #{tpu_custom_call.1} parent=75 // pred_region
          %577 = dma.done [#allocation9], 128
        $region92: #{tpu_custom_call.1} parent=75 // pred_fallthru
          _
        // Predicated region
        $region93: #{tpu_custom_call.1} parent=75 // pred_check
          %p578 = pneg %p220
        $region94: #{tpu_custom_call.1} parent=75 // pred_check_branch
          %580 = sbr.rel (%p578) target = $region96
        $region95: #{tpu_custom_call.1} parent=75 // pred_region
          %581 = dma.done [#allocation9], 16
        $region96: #{tpu_custom_call.1} parent=75 // pred_fallthru
          _
        // Predicated region
        $region97: #{tpu_custom_call.1} parent=75 // pred_check
          %p582 = pneg %p241
        $region98: #{tpu_custom_call.1} parent=75 // pred_check_branch
          %584 = sbr.rel (%p582) target = $region100
        $region99: #{tpu_custom_call.1} parent=75 // pred_region
          %585 = dma.done [#allocation12], 512
        $region100: #{tpu_custom_call.1} parent=75 // pred_fallthru
          _
        // Predicated region
        $region101: #{tpu_custom_call.1} parent=75 // pred_check
          %p586 = pneg %p262
        $region102: #{tpu_custom_call.1} parent=75 // pred_check_branch
          %588 = sbr.rel (%p586) target = $region104
        $region103: #{tpu_custom_call.1} parent=75 // pred_region
          %589 = dma.done [#allocation12], 16
        $region104: #{tpu_custom_call.1} parent=75 // pred_fallthru
          _
        // Predicated region
        $region105: #{tpu_custom_call.1} parent=75 // pred_check
          %p590 = pneg %p283
        $region106: #{tpu_custom_call.1} parent=75 // pred_check_branch
          %592 = sbr.rel (%p590) target = $region108
        $region107: #{tpu_custom_call.1} parent=75 // pred_region
          %593 = dma.done [#allocation15], 512
        $region108: #{tpu_custom_call.1} parent=75 // pred_fallthru
          _
        // Predicated region
        $region109: #{tpu_custom_call.1} parent=75 // pred_check
          %p594 = pneg %p304
        $region110: #{tpu_custom_call.1} parent=75 // pred_check_branch
          %596 = sbr.rel (%p594) target = $region112
        $region111: #{tpu_custom_call.1} parent=75 // pred_region
          %597 = dma.done [#allocation15], 16
        $region112: #{tpu_custom_call.1} parent=75 // pred_fallthru
          _
        %s598 = sand.u32 %s45, 1
        %s599 = scalar_lea.sflag [#allocation3], %s598
        %s600 = sand.u32 %s45, 1
        %s601 = smul.addr %s600, 8
        %s602 = scalar_lea.vmem [#allocation2], %s601
        %p603 = pneg %p58
        %p604 = pneg %p55
        %s605 = sand.u32 %s37, 1
        %s606 = scalar_lea.sflag [#allocation6], %s605
        %s607 = sand.u32 %s71, 1
        %s608 = smul.addr %s607, 16
        %s609 = scalar_lea.vmem [#allocation5], %s608
        %p610 = pneg %p84
        %p611 = pneg %p81
        %s612 = sand.u32 %s37, 1
        %s613 = scalar_lea.sflag [#allocation6], %s612
        %s614 = sand.u32 %s97, 1
        %s615 = smul.addr %s614, 16
        %s616 = scalar_lea.vmem [#allocation7], %s615
        %p617 = pneg %p110
        %p618 = pneg %p107
        %p619 = scmp.lt.s32.totalorder %s37, 1
        %s620 = scalar_select %p619, %s37, 1
        %s621 = smul.addr %s620, 8
        %s622 = scalar_lea.vmem %s3, %s621
        %p623 = pneg %p136
        %p624 = pneg %p133
        %p625 = pneg %p157
        %p626 = pneg %p154
        %p627 = pneg %p178
        %p628 = pneg %p175
        %p629 = pneg %p199
        %p630 = pneg %p196
        %p631 = pneg %p220
        %p632 = pneg %p217
        %p633 = pneg %p241
        %p634 = pneg %p238
        %p635 = pneg %p262
        %p636 = pneg %p259
        %p637 = pneg %p283
        %p638 = pneg %p280
        %p639 = pneg %p304
        %p640 = pneg %p301
        %p641 = pneg %p325
        %p642 = pneg %p322
        %p643 = pneg %p346
        %p644 = pneg %p343
        %p645 = pneg %p372
        %p646 = pneg %p369
        %s647 = sand.u32 %s359, 1
        %s648 = scalar_lea.sflag [#allocation4], %s647
        %s649 = sand.u32 %s359, 1
        %s650 = smul.addr %s649, 8
        %s651 = scalar_lea.vmem [#allocation17], %s650
        %p652 = scmp.lt.s32.totalorder %s37, 1
        %s653 = scalar_select %p652, %s37, 1
        %s654 = smul.addr %s653, 8
        %s655 = scalar_lea.vmem %s3, %s654
        %v656 = vld [vmem:[%s551] sm:$0xff]
        %v657 = vld [vmem:[%s560] sm:$0xff]
        %v658 = vld [vmem:[%s560 + $0x8] sm:$0xff]
        %v659 = vld [vmem:[%s569] sm:$0xff]
        %v660 = vld [vmem:[%s569 + $0x8] sm:$0xff]
        %v661 = vld [vmem:[%s655] sm:$0xff]
        %v662 = vld [vmem:[#allocation8] sm:$0xff]
        %v663 = vld [vmem:[#allocation10] sm:$0x1]
        %v664 = vld [vmem:[%s4] sm:$0xff]
        %v665 = vld [vmem:[%s4 + $0x8] sm:$0xff]
        %v666 = vld [vmem:[%s4 + $0x10] sm:$0xff]
        %v667 = vld [vmem:[%s4 + $0x18] sm:$0xff]
        %v668 = vld [vmem:[%s5] sm:$0x1]
        %v670 = vlaneseq
        %v671 = vshrl.u32 %v670, 7
        %v672 = vsub.s32 0, %v671
        %v673 = vrot.slane %v668, %v672
        %vm675 = vcmask 261120
        %v677 = vsel %vm675, %v656, 0
        %679 = vmatprep.subr.mxu0 0.0
        %680 = vmatpush1.msra.mxu0 %v664
        %681 = vmatprep.subr.mxu0 0.0
        %682 = vmatpush1.msra.mxu0 %v665
        %683 = vmatprep.subr.mxu0 0.0
        %684 = vmatpush1.msra.mxu0 %v666
        %685 = vmatprep.subr.mxu0 0.0
        %686 = vmatpush1.msra.mxu0 %v667
        %687 = vmatprep.subr.mxu0 0.0
        %688 = vmatpush1.msra.mxu0 0.0
        %689 = vmatprep.subr.mxu0 0.0
        %690 = vmatpush1.msra.mxu0 0.0
        %691 = vmatprep.subr.mxu0 0.0
        %692 = vmatpush1.msra.mxu0 0.0
        %693 = vmatprep.subr.mxu0 0.0
        %694 = vmatpush1.msra.mxu0 0.0
        %695 = vmatprep.subr.mxu0 0.0
        %696 = vmatpush1.msra.mxu0 0.0
        %697 = vmatprep.subr.mxu0 0.0
        %698 = vmatpush1.msra.mxu0 0.0
        %699 = vmatprep.subr.mxu0 0.0
        %700 = vmatpush1.msra.mxu0 0.0
        %701 = vmatprep.subr.mxu0 0.0
        %702 = vmatpush1.msra.mxu0 0.0
        %703 = vmatprep.subr.mxu0 0.0
        %704 = vmatpush1.msra.mxu0 0.0
        %705 = vmatprep.subr.mxu0 0.0
        %706 = vmatpush1.msra.mxu0 0.0
        %707 = vmatprep.subr.mxu0 0.0
        %708 = vmatpush1.msra.mxu0 0.0
        %709 = vmatprep.subr.mxu0 0.0
        %710 = vmatpush1.msra.mxu0 0.0
        %711 = vmatprep.subr.mxu0 0.0
        %712 = vmatpush1.msra.mxu0 0.0
        %713 = vmatprep.subr.mxu0 0.0
        %714 = vmatpush1.msra.mxu0 0.0
        %715 = vmatprep.subr.mxu0 0.0
        %716 = vmatpush1.msra.mxu0 0.0
        %717 = vmatprep.subr.mxu0 0.0
        %718 = vmatpush1.msra.mxu0 0.0
        %719 = vmatprep.subr.mxu0 0.0
        %720 = vmatpush1.msra.mxu0 0.0
        %721 = vmatprep.subr.mxu0 0.0
        %722 = vmatpush1.msra.mxu0 0.0
        %723 = vmatprep.subr.mxu0 0.0
        %724 = vmatpush1.msra.mxu0 0.0
        %725 = vmatprep.subr.mxu0 0.0
        %726 = vmatpush1.msra.mxu0 0.0
        %727 = vmatprep.subr.mxu0 0.0
        %728 = vmatpush1.msra.mxu0 0.0
        %729 = vmatprep.subr.mxu0 0.0
        %730 = vmatpush1.msra.mxu0 0.0
        %731 = vmatprep.subr.mxu0 0.0
        %732 = vmatpush1.msra.mxu0 0.0
        %733 = vmatprep.subr.mxu0 0.0
        %734 = vmatpush1.msra.mxu0 0.0
        %735 = vmatprep.subr.mxu0 0.0
        %736 = vmatpush1.msra.mxu0 0.0
        %737 = vmatprep.subr.mxu0 0.0
        %738 = vmatpush1.msra.mxu0 0.0
        %739 = vmatprep.subr.mxu0 0.0
        %740 = vmatpush1.msra.mxu0 0.0
        %741 = vmatprep.subr.mxu0 0.0
        %742 = vmatpush1.msra.mxu0 0.0
        %743 = vmatprep.mubr.f32.mxu0 0.0
        %744 = vmatmul.mubr.f32.gmra.mrb[0].mxu0 %v677
        %v745 = vpop.f32.mrb[0].mxu0
        %v746 = vadd.f32 %v673, %v745
        %v747 = vpop.f32.mrb[0].mxu0
        %748 = vdwg.mxu0
        %v749 = vld [vmem:[#allocation14] sm:$0xff]
        %v750 = vld [vmem:[#allocation14 + $0x8] sm:$0xff]
        %v751 = vld [vmem:[#allocation14 + $0x10] sm:$0xff]
        %v752 = vld [vmem:[#allocation14 + $0x18] sm:$0xff]
        %v753 = vld [vmem:[#allocation16] sm:$0x1]
        %v755 = vlaneseq
        %v756 = vshrl.u32 %v755, 7
        %v757 = vsub.s32 0, %v756
        %v758 = vrot.slane %v753, %v757
        %760 = vmatprep.subr.mxu0 0.0
        %761 = vmatpush1.msra.mxu0 %v749
        %762 = vmatprep.subr.mxu0 0.0
        %763 = vmatpush1.msra.mxu0 %v750
        %764 = vmatprep.subr.mxu0 0.0
        %765 = vmatpush1.msra.mxu0 %v751
        %766 = vmatprep.subr.mxu0 0.0
        %767 = vmatpush1.msra.mxu0 %v752
        %768 = vmatprep.subr.mxu0 0.0
        %769 = vmatpush1.msra.mxu0 0.0
        %770 = vmatprep.subr.mxu0 0.0
        %771 = vmatpush1.msra.mxu0 0.0
        %772 = vmatprep.subr.mxu0 0.0
        %773 = vmatpush1.msra.mxu0 0.0
        %774 = vmatprep.subr.mxu0 0.0
        %775 = vmatpush1.msra.mxu0 0.0
        %776 = vmatprep.subr.mxu0 0.0
        %777 = vmatpush1.msra.mxu0 0.0
        %778 = vmatprep.subr.mxu0 0.0
        %779 = vmatpush1.msra.mxu0 0.0
        %780 = vmatprep.subr.mxu0 0.0
        %781 = vmatpush1.msra.mxu0 0.0
        %782 = vmatprep.subr.mxu0 0.0
        %783 = vmatpush1.msra.mxu0 0.0
        %784 = vmatprep.subr.mxu0 0.0
        %785 = vmatpush1.msra.mxu0 0.0
        %786 = vmatprep.subr.mxu0 0.0
        %787 = vmatpush1.msra.mxu0 0.0
        %788 = vmatprep.subr.mxu0 0.0
        %789 = vmatpush1.msra.mxu0 0.0
        %790 = vmatprep.subr.mxu0 0.0
        %791 = vmatpush1.msra.mxu0 0.0
        %792 = vmatprep.subr.mxu0 0.0
        %793 = vmatpush1.msra.mxu0 0.0
        %794 = vmatprep.subr.mxu0 0.0
        %795 = vmatpush1.msra.mxu0 0.0
        %796 = vmatprep.subr.mxu0 0.0
        %797 = vmatpush1.msra.mxu0 0.0
        %798 = vmatprep.subr.mxu0 0.0
        %799 = vmatpush1.msra.mxu0 0.0
        %800 = vmatprep.subr.mxu0 0.0
        %801 = vmatpush1.msra.mxu0 0.0
        %802 = vmatprep.subr.mxu0 0.0
        %803 = vmatpush1.msra.mxu0 0.0
        %804 = vmatprep.subr.mxu0 0.0
        %805 = vmatpush1.msra.mxu0 0.0
        %806 = vmatprep.subr.mxu0 0.0
        %807 = vmatpush1.msra.mxu0 0.0
        %808 = vmatprep.subr.mxu0 0.0
        %809 = vmatpush1.msra.mxu0 0.0
        %810 = vmatprep.subr.mxu0 0.0
        %811 = vmatpush1.msra.mxu0 0.0
        %812 = vmatprep.subr.mxu0 0.0
        %813 = vmatpush1.msra.mxu0 0.0
        %814 = vmatprep.subr.mxu0 0.0
        %815 = vmatpush1.msra.mxu0 0.0
        %816 = vmatprep.subr.mxu0 0.0
        %817 = vmatpush1.msra.mxu0 0.0
        %818 = vmatprep.subr.mxu0 0.0
        %819 = vmatpush1.msra.mxu0 0.0
        %820 = vmatprep.subr.mxu0 0.0
        %821 = vmatpush1.msra.mxu0 0.0
        %822 = vmatprep.subr.mxu0 0.0
        %823 = vmatpush1.msra.mxu0 0.0
        %824 = vmatprep.mubr.f32.mxu0 0.0
        %825 = vmatmul.mubr.f32.gmra.mrb[0].mxu0 %v677
        %v826 = vpop.f32.mrb[0].mxu0
        %v827 = vadd.f32 %v758, %v826
        %v828 = vpop.f32.mrb[0].mxu0
        %829 = vdwg.mxu0
        %v830 = vlaneseq
        %v831 = vand.u32 %v830, 127
        %v832 = vcvt.s32.f32 %v831
        %v833 = vrcp.pop 4.0
        %v834 = vmul.f32 %v827, %v833
        %v835 = vadd.f32 %v661, %v834
        %v836 = vmul.f32 %v835, 2.0
        %v837 = vsub.f32 %v836, 1.0
        %v838 = vadd.f32 %v837, 1.0
        %v839 = vmul.f32 %v838, 4.0
        %v840 = vsub.f32 %v839, 1.0
        %v841 = vrcp.pop 2.0
        %v842 = vmul.f32 %v840, %v841
        %v843 = vfloor.f32 %v842
        %v844 = vadd.f32 %v843, 1.0
        %v845 = vsub.f32 %v842, %v843
        %v846 = vsub.f32 1.0, %v845
        %848 = vset.pattern.permute.xlu0 0
        %849 = vperm.xlu0 %848, %v843
        %v850 = vpop.permute.xlu0 %849
        %vm852 = vcmp.eq.f32.partialorder %v832, %v850
        %854 = vset.pattern.permute.xlu0 0
        %855 = vperm.xlu0 %854, %v846
        %v856 = vpop.permute.xlu0 %855
        %v858 = vsel %vm852, %v856, 0.0
        %860 = vset.pattern.permute.xlu0 0
        %861 = vperm.xlu0 %860, %v844
        %v862 = vpop.permute.xlu0 %861
        %vm864 = vcmp.eq.f32.partialorder %v832, %v862
        %866 = vset.pattern.permute.xlu0 0
        %867 = vperm.xlu0 %866, %v845
        %v868 = vpop.permute.xlu0 %867
        %v870 = vsel %vm864, %v868, 0.0
        %v871 = vadd.f32 %v858, %v870
        %872 = vset.pattern.permute.xlu0 1
        %873 = vperm.xlu0 %872, %v843
        %v874 = vpop.permute.xlu0 %873
        %vm876 = vcmp.eq.f32.partialorder %v832, %v874
        %877 = vset.pattern.permute.xlu0 1
        %878 = vperm.xlu0 %877, %v846
        %v879 = vpop.permute.xlu0 %878
        %v881 = vsel %vm876, %v879, 0.0
        %882 = vset.pattern.permute.xlu0 1
        %883 = vperm.xlu0 %882, %v844
        %v884 = vpop.permute.xlu0 %883
        %vm886 = vcmp.eq.f32.partialorder %v832, %v884
        %887 = vset.pattern.permute.xlu0 1
        %888 = vperm.xlu0 %887, %v845
        %v889 = vpop.permute.xlu0 %888
        %v891 = vsel %vm886, %v889, 0.0
        %v892 = vadd.f32 %v881, %v891
        %894 = vset.pattern.permute.xlu0 0
        %895 = vperm.xlu0 %894, %v892
        %v896 = vpop.permute.xlu0 %895
        %v898 = vmul.f32 %v896, %v871
        %899 = vset.pattern.permute.xlu0 1
        %900 = vperm.xlu0 %899, %v892
        %v901 = vpop.permute.xlu0 %900
        %v903 = vmul.f32 %v901, %v871
        %904 = vset.pattern.permute.xlu0 2
        %905 = vperm.xlu0 %904, %v892
        %v906 = vpop.permute.xlu0 %905
        %v908 = vmul.f32 %v906, %v871
        %909 = vset.pattern.permute.xlu0 3
        %910 = vperm.xlu0 %909, %v892
        %v911 = vpop.permute.xlu0 %910
        %v913 = vmul.f32 %v911, %v871
        %915 = vrot.lane.b32.xlu0 %v903, 4
        %v916 = vpop.permute.xlu0 %915
        %919 = vrot.lane.b32.xlu0 %v908, 8
        %v920 = vpop.permute.xlu0 %919
        %923 = vrot.lane.b32.xlu0 %v913, 12
        %v924 = vpop.permute.xlu0 %923
        %vm926 = vcmask 31744
        %v927 = vsel %vm926, %v898, %v916
        %vm928 = vcmask 64512
        %v929 = vsel %vm928, %v927, %v920
        %vm930 = vcmask 97280
        %v931 = vsel %vm930, %v929, %v924
        %933 = vrot.lane.b32.xlu0 %v834, 126
        %v934 = vpop.permute.xlu0 %933
        %v936 = vadd.f32 %v661, %v934
        %v937 = vmul.f32 %v936, 2.0
        %v938 = vsub.f32 %v937, 1.0
        %v939 = vadd.f32 %v938, 1.0
        %v940 = vmul.f32 %v939, 4.0
        %v941 = vsub.f32 %v940, 1.0
        %v942 = vmul.f32 %v941, %v841
        %v943 = vfloor.f32 %v942
        %v944 = vadd.f32 %v943, 1.0
        %v945 = vsub.f32 %v942, %v943
        %v946 = vsub.f32 1.0, %v945
        %948 = vset.pattern.permute.xlu0 0
        %949 = vperm.xlu0 %948, %v943
        %v950 = vpop.permute.xlu0 %949
        %vm952 = vcmp.eq.f32.partialorder %v832, %v950
        %954 = vset.pattern.permute.xlu0 0
        %955 = vperm.xlu0 %954, %v946
        %v956 = vpop.permute.xlu0 %955
        %v958 = vsel %vm952, %v956, 0.0
        %960 = vset.pattern.permute.xlu0 0
        %961 = vperm.xlu0 %960, %v944
        %v962 = vpop.permute.xlu0 %961
        %vm964 = vcmp.eq.f32.partialorder %v832, %v962
        %966 = vset.pattern.permute.xlu0 0
        %967 = vperm.xlu0 %966, %v945
        %v968 = vpop.permute.xlu0 %967
        %v970 = vsel %vm964, %v968, 0.0
        %v971 = vadd.f32 %v958, %v970
        %972 = vset.pattern.permute.xlu0 1
        %973 = vperm.xlu0 %972, %v943
        %v974 = vpop.permute.xlu0 %973
        %vm976 = vcmp.eq.f32.partialorder %v832, %v974
        %977 = vset.pattern.permute.xlu0 1
        %978 = vperm.xlu0 %977, %v946
        %v979 = vpop.permute.xlu0 %978
        %v981 = vsel %vm976, %v979, 0.0
        %982 = vset.pattern.permute.xlu0 1
        %983 = vperm.xlu0 %982, %v944
        %v984 = vpop.permute.xlu0 %983
        %vm986 = vcmp.eq.f32.partialorder %v832, %v984
        %987 = vset.pattern.permute.xlu0 1
        %988 = vperm.xlu0 %987, %v945
        %v989 = vpop.permute.xlu0 %988
        %v991 = vsel %vm986, %v989, 0.0
        %v992 = vadd.f32 %v981, %v991
        %994 = vset.pattern.permute.xlu0 0
        %995 = vperm.xlu0 %994, %v992
        %v996 = vpop.permute.xlu0 %995
        %v998 = vmul.f32 %v996, %v971
        %999 = vset.pattern.permute.xlu0 1
        %1000 = vperm.xlu0 %999, %v992
        %v1001 = vpop.permute.xlu0 %1000
        %v1003 = vmul.f32 %v1001, %v971
        %1004 = vset.pattern.permute.xlu0 2
        %1005 = vperm.xlu0 %1004, %v992
        %v1006 = vpop.permute.xlu0 %1005
        %v1008 = vmul.f32 %v1006, %v971
        %1009 = vset.pattern.permute.xlu0 3
        %1010 = vperm.xlu0 %1009, %v992
        %v1011 = vpop.permute.xlu0 %1010
        %v1013 = vmul.f32 %v1011, %v971
        %1015 = vrot.lane.b32.xlu0 %v1003, 4
        %v1016 = vpop.permute.xlu0 %1015
        %1019 = vrot.lane.b32.xlu0 %v1008, 8
        %v1020 = vpop.permute.xlu0 %1019
        %1023 = vrot.lane.b32.xlu0 %v1013, 12
        %v1024 = vpop.permute.xlu0 %1023
        %v1026 = vsel %vm926, %v998, %v1016
        %v1027 = vsel %vm928, %v1026, %v1020
        %v1028 = vsel %vm930, %v1027, %v1024
        %1029 = vrot.lane.b32.xlu0 %v834, 124
        %v1030 = vpop.permute.xlu0 %1029
        %v1032 = vadd.f32 %v661, %v1030
        %v1033 = vmul.f32 %v1032, 2.0
        %v1034 = vsub.f32 %v1033, 1.0
        %v1035 = vadd.f32 %v1034, 1.0
        %v1036 = vmul.f32 %v1035, 4.0
        %v1037 = vsub.f32 %v1036, 1.0
        %v1038 = vmul.f32 %v1037, %v841
        %v1039 = vfloor.f32 %v1038
        %v1040 = vadd.f32 %v1039, 1.0
        %v1041 = vsub.f32 %v1038, %v1039
        %v1042 = vsub.f32 1.0, %v1041
        %1044 = vset.pattern.permute.xlu0 0
        %1045 = vperm.xlu0 %1044, %v1039
        %v1046 = vpop.permute.xlu0 %1045
        %vm1048 = vcmp.eq.f32.partialorder %v832, %v1046
        %1050 = vset.pattern.permute.xlu0 0
        %1051 = vperm.xlu0 %1050, %v1042
        %v1052 = vpop.permute.xlu0 %1051
        %v1054 = vsel %vm1048, %v1052, 0.0
        %1056 = vset.pattern.permute.xlu0 0
        %1057 = vperm.xlu0 %1056, %v1040
        %v1058 = vpop.permute.xlu0 %1057
        %vm1060 = vcmp.eq.f32.partialorder %v832, %v1058
        %1062 = vset.pattern.permute.xlu0 0
        %1063 = vperm.xlu0 %1062, %v1041
        %v1064 = vpop.permute.xlu0 %1063
        %v1066 = vsel %vm1060, %v1064, 0.0
        %v1067 = vadd.f32 %v1054, %v1066
        %1068 = vset.pattern.permute.xlu0 1
        %1069 = vperm.xlu0 %1068, %v1039
        %v1070 = vpop.permute.xlu0 %1069
        %vm1072 = vcmp.eq.f32.partialorder %v832, %v1070
        %1073 = vset.pattern.permute.xlu0 1
        %1074 = vperm.xlu0 %1073, %v1042
        %v1075 = vpop.permute.xlu0 %1074
        %v1077 = vsel %vm1072, %v1075, 0.0
        %1078 = vset.pattern.permute.xlu0 1
        %1079 = vperm.xlu0 %1078, %v1040
        %v1080 = vpop.permute.xlu0 %1079
        %vm1082 = vcmp.eq.f32.partialorder %v832, %v1080
        %1083 = vset.pattern.permute.xlu0 1
        %1084 = vperm.xlu0 %1083, %v1041
        %v1085 = vpop.permute.xlu0 %1084
        %v1087 = vsel %vm1082, %v1085, 0.0
        %v1088 = vadd.f32 %v1077, %v1087
        %1090 = vset.pattern.permute.xlu0 0
        %1091 = vperm.xlu0 %1090, %v1088
        %v1092 = vpop.permute.xlu0 %1091
        %v1094 = vmul.f32 %v1092, %v1067
        %1095 = vset.pattern.permute.xlu0 1
        %1096 = vperm.xlu0 %1095, %v1088
        %v1097 = vpop.permute.xlu0 %1096
        %v1099 = vmul.f32 %v1097, %v1067
        %1100 = vset.pattern.permute.xlu0 2
        %1101 = vperm.xlu0 %1100, %v1088
        %v1102 = vpop.permute.xlu0 %1101
        %v1104 = vmul.f32 %v1102, %v1067
        %1105 = vset.pattern.permute.xlu0 3
        %1106 = vperm.xlu0 %1105, %v1088
        %v1107 = vpop.permute.xlu0 %1106
        %v1109 = vmul.f32 %v1107, %v1067
        %1111 = vrot.lane.b32.xlu0 %v1099, 4
        %v1112 = vpop.permute.xlu0 %1111
        %1115 = vrot.lane.b32.xlu0 %v1104, 8
        %v1116 = vpop.permute.xlu0 %1115
        %1119 = vrot.lane.b32.xlu0 %v1109, 12
        %v1120 = vpop.permute.xlu0 %1119
        %v1122 = vsel %vm926, %v1094, %v1112
        %v1123 = vsel %vm928, %v1122, %v1116
        %v1124 = vsel %vm930, %v1123, %v1120
        %1125 = vrot.lane.b32.xlu0 %v834, 122
        %v1126 = vpop.permute.xlu0 %1125
        %v1128 = vadd.f32 %v661, %v1126
        %v1129 = vmul.f32 %v1128, 2.0
        %v1130 = vsub.f32 %v1129, 1.0
        %v1131 = vadd.f32 %v1130, 1.0
        %v1132 = vmul.f32 %v1131, 4.0
        %v1133 = vsub.f32 %v1132, 1.0
        %v1134 = vmul.f32 %v1133, %v841
        %v1135 = vfloor.f32 %v1134
        %v1136 = vadd.f32 %v1135, 1.0
        %v1137 = vsub.f32 %v1134, %v1135
        %v1138 = vsub.f32 1.0, %v1137
        %1140 = vset.pattern.permute.xlu0 0
        %1141 = vperm.xlu0 %1140, %v1135
        %v1142 = vpop.permute.xlu0 %1141
        %vm1144 = vcmp.eq.f32.partialorder %v832, %v1142
        %1146 = vset.pattern.permute.xlu0 0
        %1147 = vperm.xlu0 %1146, %v1138
        %v1148 = vpop.permute.xlu0 %1147
        %v1150 = vsel %vm1144, %v1148, 0.0
        %1152 = vset.pattern.permute.xlu0 0
        %1153 = vperm.xlu0 %1152, %v1136
        %v1154 = vpop.permute.xlu0 %1153
        %vm1156 = vcmp.eq.f32.partialorder %v832, %v1154
        %1158 = vset.pattern.permute.xlu0 0
        %1159 = vperm.xlu0 %1158, %v1137
        %v1160 = vpop.permute.xlu0 %1159
        %v1162 = vsel %vm1156, %v1160, 0.0
        %v1163 = vadd.f32 %v1150, %v1162
        %1164 = vset.pattern.permute.xlu0 1
        %1165 = vperm.xlu0 %1164, %v1135
        %v1166 = vpop.permute.xlu0 %1165
        %vm1168 = vcmp.eq.f32.partialorder %v832, %v1166
        %1169 = vset.pattern.permute.xlu0 1
        %1170 = vperm.xlu0 %1169, %v1138
        %v1171 = vpop.permute.xlu0 %1170
        %v1173 = vsel %vm1168, %v1171, 0.0
        %1174 = vset.pattern.permute.xlu0 1
        %1175 = vperm.xlu0 %1174, %v1136
        %v1176 = vpop.permute.xlu0 %1175
        %vm1178 = vcmp.eq.f32.partialorder %v832, %v1176
        %1179 = vset.pattern.permute.xlu0 1
        %1180 = vperm.xlu0 %1179, %v1137
        %v1181 = vpop.permute.xlu0 %1180
        %v1183 = vsel %vm1178, %v1181, 0.0
        %v1184 = vadd.f32 %v1173, %v1183
        %1186 = vset.pattern.permute.xlu0 0
        %1187 = vperm.xlu0 %1186, %v1184
        %v1188 = vpop.permute.xlu0 %1187
        %v1190 = vmul.f32 %v1188, %v1163
        %1191 = vset.pattern.permute.xlu0 1
        %1192 = vperm.xlu0 %1191, %v1184
        %v1193 = vpop.permute.xlu0 %1192
        %v1195 = vmul.f32 %v1193, %v1163
        %1196 = vset.pattern.permute.xlu0 2
        %1197 = vperm.xlu0 %1196, %v1184
        %v1198 = vpop.permute.xlu0 %1197
        %v1200 = vmul.f32 %v1198, %v1163
        %1201 = vset.pattern.permute.xlu0 3
        %1202 = vperm.xlu0 %1201, %v1184
        %v1203 = vpop.permute.xlu0 %1202
        %v1205 = vmul.f32 %v1203, %v1163
        %1207 = vrot.lane.b32.xlu0 %v1195, 4
        %v1208 = vpop.permute.xlu0 %1207
        %1211 = vrot.lane.b32.xlu0 %v1200, 8
        %v1212 = vpop.permute.xlu0 %1211
        %1215 = vrot.lane.b32.xlu0 %v1205, 12
        %v1216 = vpop.permute.xlu0 %1215
        %v1218 = vsel %vm926, %v1190, %v1208
        %v1219 = vsel %vm928, %v1218, %v1212
        %v1220 = vsel %vm930, %v1219, %v1216
        %v1222 = vrot.slane %v1028, 7
        %v1225 = vrot.slane %v1124, 6
        %v1228 = vrot.slane %v1220, 5
        %vm1230 = vcmask 1040384
        %v1231 = vsel %vm1230, %v931, %v1222
        %vm1232 = vcmask 1041408
        %v1233 = vsel %vm1232, %v1231, %v1225
        %vm1234 = vcmask 1042432
        %v1235 = vsel %vm1234, %v1233, %v1228
        %vm1236 = vcmask 130048
        %v1238 = vsel %vm1236, %v1235, 0
        %1240 = vmatprep.subr.mxu0 0.0
        %1241 = vmatpush1.msra.mxu0 %v657
        %1242 = vmatprep.subr.mxu0 0.0
        %1243 = vmatpush1.msra.mxu0 %v658
        %1244 = vmatprep.subr.mxu0 0.0
        %1245 = vmatpush1.msra.mxu0 0.0
        %1246 = vmatprep.subr.mxu0 0.0
        %1247 = vmatpush1.msra.mxu0 0.0
        %1248 = vmatprep.subr.mxu0 0.0
        %1249 = vmatpush1.msra.mxu0 0.0
        %1250 = vmatprep.subr.mxu0 0.0
        %1251 = vmatpush1.msra.mxu0 0.0
        %1252 = vmatprep.subr.mxu0 0.0
        %1253 = vmatpush1.msra.mxu0 0.0
        %1254 = vmatprep.subr.mxu0 0.0
        %1255 = vmatpush1.msra.mxu0 0.0
        %1256 = vmatprep.subr.mxu0 0.0
        %1257 = vmatpush1.msra.mxu0 0.0
        %1258 = vmatprep.subr.mxu0 0.0
        %1259 = vmatpush1.msra.mxu0 0.0
        %1260 = vmatprep.subr.mxu0 0.0
        %1261 = vmatpush1.msra.mxu0 0.0
        %1262 = vmatprep.subr.mxu0 0.0
        %1263 = vmatpush1.msra.mxu0 0.0
        %1264 = vmatprep.subr.mxu0 0.0
        %1265 = vmatpush1.msra.mxu0 0.0
        %1266 = vmatprep.subr.mxu0 0.0
        %1267 = vmatpush1.msra.mxu0 0.0
        %1268 = vmatprep.subr.mxu0 0.0
        %1269 = vmatpush1.msra.mxu0 0.0
        %1270 = vmatprep.subr.mxu0 0.0
        %1271 = vmatpush1.msra.mxu0 0.0
        %1272 = vmatprep.subr.mxu0 0.0
        %1273 = vmatpush1.msra.mxu0 0.0
        %1274 = vmatprep.subr.mxu0 0.0
        %1275 = vmatpush1.msra.mxu0 0.0
        %1276 = vmatprep.subr.mxu0 0.0
        %1277 = vmatpush1.msra.mxu0 0.0
        %1278 = vmatprep.subr.mxu0 0.0
        %1279 = vmatpush1.msra.mxu0 0.0
        %1280 = vmatprep.subr.mxu0 0.0
        %1281 = vmatpush1.msra.mxu0 0.0
        %1282 = vmatprep.subr.mxu0 0.0
        %1283 = vmatpush1.msra.mxu0 0.0
        %1284 = vmatprep.subr.mxu0 0.0
        %1285 = vmatpush1.msra.mxu0 0.0
        %1286 = vmatprep.subr.mxu0 0.0
        %1287 = vmatpush1.msra.mxu0 0.0
        %1288 = vmatprep.subr.mxu0 0.0
        %1289 = vmatpush1.msra.mxu0 0.0
        %1290 = vmatprep.subr.mxu0 0.0
        %1291 = vmatpush1.msra.mxu0 0.0
        %1292 = vmatprep.subr.mxu0 0.0
        %1293 = vmatpush1.msra.mxu0 0.0
        %1294 = vmatprep.subr.mxu0 0.0
        %1295 = vmatpush1.msra.mxu0 0.0
        %1296 = vmatprep.subr.mxu0 0.0
        %1297 = vmatpush1.msra.mxu0 0.0
        %1298 = vmatprep.subr.mxu0 0.0
        %1299 = vmatpush1.msra.mxu0 0.0
        %1300 = vmatprep.subr.mxu0 0.0
        %1301 = vmatpush1.msra.mxu0 0.0
        %1302 = vmatprep.subr.mxu0 0.0
        %1303 = vmatpush1.msra.mxu0 0.0
        %1304 = vmatprep.mubr.f32.mxu0 0.0
        %1305 = vmatmul.mubr.f32.gmra.mrb[0].mxu0 %v1238
        %v1306 = vpop.f32.mrb[0].mxu0
        %v1307 = vadd.f32 0.0, %v1306
        %v1308 = vpop.f32.mrb[0].mxu0
        %1309 = vdwg.mxu0
        %v1311 = vlaneseq
        %v1312 = vshrl.u32 %v1311, 7
        %v1313 = vsub.s32 0, %v1312
        %v1314 = vrot.slane %v663, %v1313
        %v1317 = vsel %vm928, %v1307, 0
        %1319 = vmatprep.subr.mxu0 0.0
        %1320 = vmatpush1.msra.mxu0 %v662
        %1321 = vmatprep.subr.mxu0 0.0
        %1322 = vmatpush1.msra.mxu0 0.0
        %1323 = vmatprep.subr.mxu0 0.0
        %1324 = vmatpush1.msra.mxu0 0.0
        %1325 = vmatprep.subr.mxu0 0.0
        %1326 = vmatpush1.msra.mxu0 0.0
        %1327 = vmatprep.subr.mxu0 0.0
        %1328 = vmatpush1.msra.mxu0 0.0
        %1329 = vmatprep.subr.mxu0 0.0
        %1330 = vmatpush1.msra.mxu0 0.0
        %1331 = vmatprep.subr.mxu0 0.0
        %1332 = vmatpush1.msra.mxu0 0.0
        %1333 = vmatprep.subr.mxu0 0.0
        %1334 = vmatpush1.msra.mxu0 0.0
        %1335 = vmatprep.subr.mxu0 0.0
        %1336 = vmatpush1.msra.mxu0 0.0
        %1337 = vmatprep.subr.mxu0 0.0
        %1338 = vmatpush1.msra.mxu0 0.0
        %1339 = vmatprep.subr.mxu0 0.0
        %1340 = vmatpush1.msra.mxu0 0.0
        %1341 = vmatprep.subr.mxu0 0.0
        %1342 = vmatpush1.msra.mxu0 0.0
        %1343 = vmatprep.subr.mxu0 0.0
        %1344 = vmatpush1.msra.mxu0 0.0
        %1345 = vmatprep.subr.mxu0 0.0
        %1346 = vmatpush1.msra.mxu0 0.0
        %1347 = vmatprep.subr.mxu0 0.0
        %1348 = vmatpush1.msra.mxu0 0.0
        %1349 = vmatprep.subr.mxu0 0.0
        %1350 = vmatpush1.msra.mxu0 0.0
        %1351 = vmatprep.subr.mxu0 0.0
        %1352 = vmatpush1.msra.mxu0 0.0
        %1353 = vmatprep.subr.mxu0 0.0
        %1354 = vmatpush1.msra.mxu0 0.0
        %1355 = vmatprep.subr.mxu0 0.0
        %1356 = vmatpush1.msra.mxu0 0.0
        %1357 = vmatprep.subr.mxu0 0.0
        %1358 = vmatpush1.msra.mxu0 0.0
        %1359 = vmatprep.subr.mxu0 0.0
        %1360 = vmatpush1.msra.mxu0 0.0
        %1361 = vmatprep.subr.mxu0 0.0
        %1362 = vmatpush1.msra.mxu0 0.0
        %1363 = vmatprep.subr.mxu0 0.0
        %1364 = vmatpush1.msra.mxu0 0.0
        %1365 = vmatprep.subr.mxu0 0.0
        %1366 = vmatpush1.msra.mxu0 0.0
        %1367 = vmatprep.subr.mxu0 0.0
        %1368 = vmatpush1.msra.mxu0 0.0
        %1369 = vmatprep.subr.mxu0 0.0
        %1370 = vmatpush1.msra.mxu0 0.0
        %1371 = vmatprep.subr.mxu0 0.0
        %1372 = vmatpush1.msra.mxu0 0.0
        %1373 = vmatprep.subr.mxu0 0.0
        %1374 = vmatpush1.msra.mxu0 0.0
        %1375 = vmatprep.subr.mxu0 0.0
        %1376 = vmatpush1.msra.mxu0 0.0
        %1377 = vmatprep.subr.mxu0 0.0
        %1378 = vmatpush1.msra.mxu0 0.0
        %1379 = vmatprep.subr.mxu0 0.0
        %1380 = vmatpush1.msra.mxu0 0.0
        %1381 = vmatprep.subr.mxu0 0.0
        %1382 = vmatpush1.msra.mxu0 0.0
        %1383 = vmatprep.mubr.f32.mxu0 0.0
        %1384 = vmatmul.mubr.f32.gmra.mrb[0].mxu0 %v1317
        %v1385 = vpop.f32.mrb[0].mxu0
        %v1386 = vadd.f32 %v1314, %v1385
        %v1387 = vpop.f32.mrb[0].mxu0
        %1388 = vdwg.mxu0
        %v1390 = vsel %vm928, %v746, 0
        %v1393 = vsel %vm928, %v1386, 0
        %1395 = vmatprep.subr.mxu0 0.0
        %1396 = vmatpush1.xpose.msra.mxu0 %v1393
        %1397 = vmatprep.subr.mxu0 0.0
        %1398 = vmatpush1.xpose.msra.mxu0 0.0
        %1399 = vmatprep.subr.mxu0 0.0
        %1400 = vmatpush1.xpose.msra.mxu0 0.0
        %1401 = vmatprep.subr.mxu0 0.0
        %1402 = vmatpush1.xpose.msra.mxu0 0.0
        %1403 = vmatprep.subr.mxu0 0.0
        %1404 = vmatpush1.xpose.msra.mxu0 0.0
        %1405 = vmatprep.subr.mxu0 0.0
        %1406 = vmatpush1.xpose.msra.mxu0 0.0
        %1407 = vmatprep.subr.mxu0 0.0
        %1408 = vmatpush1.xpose.msra.mxu0 0.0
        %1409 = vmatprep.subr.mxu0 0.0
        %1410 = vmatpush1.xpose.msra.mxu0 0.0
        %1411 = vmatprep.subr.mxu0 0.0
        %1412 = vmatpush1.xpose.msra.mxu0 0.0
        %1413 = vmatprep.subr.mxu0 0.0
        %1414 = vmatpush1.xpose.msra.mxu0 0.0
        %1415 = vmatprep.subr.mxu0 0.0
        %1416 = vmatpush1.xpose.msra.mxu0 0.0
        %1417 = vmatprep.subr.mxu0 0.0
        %1418 = vmatpush1.xpose.msra.mxu0 0.0
        %1419 = vmatprep.subr.mxu0 0.0
        %1420 = vmatpush1.xpose.msra.mxu0 0.0
        %1421 = vmatprep.subr.mxu0 0.0
        %1422 = vmatpush1.xpose.msra.mxu0 0.0
        %1423 = vmatprep.subr.mxu0 0.0
        %1424 = vmatpush1.xpose.msra.mxu0 0.0
        %1425 = vmatprep.subr.mxu0 0.0
        %1426 = vmatpush1.xpose.msra.mxu0 0.0
        %1427 = vmatprep.subr.mxu0 0.0
        %1428 = vmatpush1.xpose.msra.mxu0 0.0
        %1429 = vmatprep.subr.mxu0 0.0
        %1430 = vmatpush1.xpose.msra.mxu0 0.0
        %1431 = vmatprep.subr.mxu0 0.0
        %1432 = vmatpush1.xpose.msra.mxu0 0.0
        %1433 = vmatprep.subr.mxu0 0.0
        %1434 = vmatpush1.xpose.msra.mxu0 0.0
        %1435 = vmatprep.subr.mxu0 0.0
        %1436 = vmatpush1.xpose.msra.mxu0 0.0
        %1437 = vmatprep.subr.mxu0 0.0
        %1438 = vmatpush1.xpose.msra.mxu0 0.0
        %1439 = vmatprep.subr.mxu0 0.0
        %1440 = vmatpush1.xpose.msra.mxu0 0.0
        %1441 = vmatprep.subr.mxu0 0.0
        %1442 = vmatpush1.xpose.msra.mxu0 0.0
        %1443 = vmatprep.subr.mxu0 0.0
        %1444 = vmatpush1.xpose.msra.mxu0 0.0
        %1445 = vmatprep.subr.mxu0 0.0
        %1446 = vmatpush1.xpose.msra.mxu0 0.0
        %1447 = vmatprep.subr.mxu0 0.0
        %1448 = vmatpush1.xpose.msra.mxu0 0.0
        %1449 = vmatprep.subr.mxu0 0.0
        %1450 = vmatpush1.xpose.msra.mxu0 0.0
        %1451 = vmatprep.subr.mxu0 0.0
        %1452 = vmatpush1.xpose.msra.mxu0 0.0
        %1453 = vmatprep.subr.mxu0 0.0
        %1454 = vmatpush1.xpose.msra.mxu0 0.0
        %1455 = vmatprep.subr.mxu0 0.0
        %1456 = vmatpush1.xpose.msra.mxu0 0.0
        %1457 = vmatprep.subr.mxu0 0.0
        %1458 = vmatpush1.xpose.msra.mxu0 0.0
        %1459 = vmatprep.mubr.f32.mxu0 0.0
        %1460 = vmatmul.mubr.f32.gmra.mrb[0].mxu0 %v1390
        %v1461 = vpop.f32.mrb[0].mxu0
        %v1462 = vadd.f32 0.0, %v1461
        %v1463 = vpop.f32.mrb[0].mxu0
        %1464 = vdwg.mxu0
        %v1465 = vsel %vm926, %v1462, -inf
        %1466 = vmax.xlane.f32.xlu0 %v1465
        %v1467 = vpop.xlane.xlu0 %1466
        %v1468 = vsub.f32 %v1462, %v1467
        %v1469 = vmul.f32 %v1468, 1.442695
        %v1470 = vpow.pop %v1469
        %v1471 = vsel %vm926, %v1470, 0.0
        %1472 = vadd.xlane.f32.xlu0 %v1471
        %v1473 = vpop.xlane.xlu0 %1472
        %v1474 = vrcp.pop %v1473
        %v1475 = vmul.f32 %v1470, %v1474
        %1476 = vrot.lane.b32.xlu0 %v834, 120
        %v1477 = vpop.permute.xlu0 %1476
        %v1479 = vadd.f32 %v661, %v1477
        %v1480 = vmul.f32 %v1479, 2.0
        %v1481 = vsub.f32 %v1480, 1.0
        %v1482 = vadd.f32 %v1481, 1.0
        %v1483 = vmul.f32 %v1482, 4.0
        %v1484 = vsub.f32 %v1483, 1.0
        %v1485 = vmul.f32 %v1484, %v841
        %v1486 = vfloor.f32 %v1485
        %v1487 = vadd.f32 %v1486, 1.0
        %v1488 = vsub.f32 %v1485, %v1486
        %v1489 = vsub.f32 1.0, %v1488
        %1491 = vset.pattern.permute.xlu0 0
        %1492 = vperm.xlu0 %1491, %v1486
        %v1493 = vpop.permute.xlu0 %1492
        %vm1495 = vcmp.eq.f32.partialorder %v832, %v1493
        %1497 = vset.pattern.permute.xlu0 0
        %1498 = vperm.xlu0 %1497, %v1489
        %v1499 = vpop.permute.xlu0 %1498
        %v1501 = vsel %vm1495, %v1499, 0.0
        %1503 = vset.pattern.permute.xlu0 0
        %1504 = vperm.xlu0 %1503, %v1487
        %v1505 = vpop.permute.xlu0 %1504
        %vm1507 = vcmp.eq.f32.partialorder %v832, %v1505
        %1509 = vset.pattern.permute.xlu0 0
        %1510 = vperm.xlu0 %1509, %v1488
        %v1511 = vpop.permute.xlu0 %1510
        %v1513 = vsel %vm1507, %v1511, 0.0
        %v1514 = vadd.f32 %v1501, %v1513
        %1515 = vset.pattern.permute.xlu0 1
        %1516 = vperm.xlu0 %1515, %v1486
        %v1517 = vpop.permute.xlu0 %1516
        %vm1519 = vcmp.eq.f32.partialorder %v832, %v1517
        %1520 = vset.pattern.permute.xlu0 1
        %1521 = vperm.xlu0 %1520, %v1489
        %v1522 = vpop.permute.xlu0 %1521
        %v1524 = vsel %vm1519, %v1522, 0.0
        %1525 = vset.pattern.permute.xlu0 1
        %1526 = vperm.xlu0 %1525, %v1487
        %v1527 = vpop.permute.xlu0 %1526
        %vm1529 = vcmp.eq.f32.partialorder %v832, %v1527
        %1530 = vset.pattern.permute.xlu0 1
        %1531 = vperm.xlu0 %1530, %v1488
        %v1532 = vpop.permute.xlu0 %1531
        %v1534 = vsel %vm1529, %v1532, 0.0
        %v1535 = vadd.f32 %v1524, %v1534
        %1537 = vset.pattern.permute.xlu0 0
        %1538 = vperm.xlu0 %1537, %v1535
        %v1539 = vpop.permute.xlu0 %1538
        %v1541 = vmul.f32 %v1539, %v1514
        %1542 = vset.pattern.permute.xlu0 1
        %1543 = vperm.xlu0 %1542, %v1535
        %v1544 = vpop.permute.xlu0 %1543
        %v1546 = vmul.f32 %v1544, %v1514
        %1547 = vset.pattern.permute.xlu0 2
        %1548 = vperm.xlu0 %1547, %v1535
        %v1549 = vpop.permute.xlu0 %1548
        %v1551 = vmul.f32 %v1549, %v1514
        %1552 = vset.pattern.permute.xlu0 3
        %1553 = vperm.xlu0 %1552, %v1535
        %v1554 = vpop.permute.xlu0 %1553
        %v1556 = vmul.f32 %v1554, %v1514
        %1558 = vrot.lane.b32.xlu0 %v1546, 4
        %v1559 = vpop.permute.xlu0 %1558
        %1562 = vrot.lane.b32.xlu0 %v1551, 8
        %v1563 = vpop.permute.xlu0 %1562
        %1566 = vrot.lane.b32.xlu0 %v1556, 12
        %v1567 = vpop.permute.xlu0 %1566
        %v1569 = vsel %vm926, %v1541, %v1559
        %v1570 = vsel %vm928, %v1569, %v1563
        %v1571 = vsel %vm930, %v1570, %v1567
        %1572 = vrot.lane.b32.xlu0 %v834, 118
        %v1573 = vpop.permute.xlu0 %1572
        %v1575 = vadd.f32 %v661, %v1573
        %v1576 = vmul.f32 %v1575, 2.0
        %v1577 = vsub.f32 %v1576, 1.0
        %v1578 = vadd.f32 %v1577, 1.0
        %v1579 = vmul.f32 %v1578, 4.0
        %v1580 = vsub.f32 %v1579, 1.0
        %v1581 = vmul.f32 %v1580, %v841
        %v1582 = vfloor.f32 %v1581
        %v1583 = vadd.f32 %v1582, 1.0
        %v1584 = vsub.f32 %v1581, %v1582
        %v1585 = vsub.f32 1.0, %v1584
        %1587 = vset.pattern.permute.xlu0 0
        %1588 = vperm.xlu0 %1587, %v1582
        %v1589 = vpop.permute.xlu0 %1588
        %vm1591 = vcmp.eq.f32.partialorder %v832, %v1589
        %1593 = vset.pattern.permute.xlu0 0
        %1594 = vperm.xlu0 %1593, %v1585
        %v1595 = vpop.permute.xlu0 %1594
        %v1597 = vsel %vm1591, %v1595, 0.0
        %1599 = vset.pattern.permute.xlu0 0
        %1600 = vperm.xlu0 %1599, %v1583
        %v1601 = vpop.permute.xlu0 %1600
        %vm1603 = vcmp.eq.f32.partialorder %v832, %v1601
        %1605 = vset.pattern.permute.xlu0 0
        %1606 = vperm.xlu0 %1605, %v1584
        %v1607 = vpop.permute.xlu0 %1606
        %v1609 = vsel %vm1603, %v1607, 0.0
        %v1610 = vadd.f32 %v1597, %v1609
        %1611 = vset.pattern.permute.xlu0 1
        %1612 = vperm.xlu0 %1611, %v1582
        %v1613 = vpop.permute.xlu0 %1612
        %vm1615 = vcmp.eq.f32.partialorder %v832, %v1613
        %1616 = vset.pattern.permute.xlu0 1
        %1617 = vperm.xlu0 %1616, %v1585
        %v1618 = vpop.permute.xlu0 %1617
        %v1620 = vsel %vm1615, %v1618, 0.0
        %1621 = vset.pattern.permute.xlu0 1
        %1622 = vperm.xlu0 %1621, %v1583
        %v1623 = vpop.permute.xlu0 %1622
        %vm1625 = vcmp.eq.f32.partialorder %v832, %v1623
        %1626 = vset.pattern.permute.xlu0 1
        %1627 = vperm.xlu0 %1626, %v1584
        %v1628 = vpop.permute.xlu0 %1627
        %v1630 = vsel %vm1625, %v1628, 0.0
        %v1631 = vadd.f32 %v1620, %v1630
        %1633 = vset.pattern.permute.xlu0 0
        %1634 = vperm.xlu0 %1633, %v1631
        %v1635 = vpop.permute.xlu0 %1634
        %v1637 = vmul.f32 %v1635, %v1610
        %1638 = vset.pattern.permute.xlu0 1
        %1639 = vperm.xlu0 %1638, %v1631
        %v1640 = vpop.permute.xlu0 %1639
        %v1642 = vmul.f32 %v1640, %v1610
        %1643 = vset.pattern.permute.xlu0 2
        %1644 = vperm.xlu0 %1643, %v1631
        %v1645 = vpop.permute.xlu0 %1644
        %v1647 = vmul.f32 %v1645, %v1610
        %1648 = vset.pattern.permute.xlu0 3
        %1649 = vperm.xlu0 %1648, %v1631
        %v1650 = vpop.permute.xlu0 %1649
        %v1652 = vmul.f32 %v1650, %v1610
        %1654 = vrot.lane.b32.xlu0 %v1642, 4
        %v1655 = vpop.permute.xlu0 %1654
        %1658 = vrot.lane.b32.xlu0 %v1647, 8
        %v1659 = vpop.permute.xlu0 %1658
        %1662 = vrot.lane.b32.xlu0 %v1652, 12
        %v1663 = vpop.permute.xlu0 %1662
        %v1665 = vsel %vm926, %v1637, %v1655
        %v1666 = vsel %vm928, %v1665, %v1659
        %v1667 = vsel %vm930, %v1666, %v1663
        %1668 = vrot.lane.b32.xlu0 %v834, 116
        %v1669 = vpop.permute.xlu0 %1668
        %v1671 = vadd.f32 %v661, %v1669
        %v1672 = vmul.f32 %v1671, 2.0
        %v1673 = vsub.f32 %v1672, 1.0
        %v1674 = vadd.f32 %v1673, 1.0
        %v1675 = vmul.f32 %v1674, 4.0
        %v1676 = vsub.f32 %v1675, 1.0
        %v1677 = vmul.f32 %v1676, %v841
        %v1678 = vfloor.f32 %v1677
        %v1679 = vadd.f32 %v1678, 1.0
        %v1680 = vsub.f32 %v1677, %v1678
        %v1681 = vsub.f32 1.0, %v1680
        %1683 = vset.pattern.permute.xlu0 0
        %1684 = vperm.xlu0 %1683, %v1678
        %v1685 = vpop.permute.xlu0 %1684
        %vm1687 = vcmp.eq.f32.partialorder %v832, %v1685
        %1689 = vset.pattern.permute.xlu0 0
        %1690 = vperm.xlu0 %1689, %v1681
        %v1691 = vpop.permute.xlu0 %1690
        %v1693 = vsel %vm1687, %v1691, 0.0
        %1695 = vset.pattern.permute.xlu0 0
        %1696 = vperm.xlu0 %1695, %v1679
        %v1697 = vpop.permute.xlu0 %1696
        %vm1699 = vcmp.eq.f32.partialorder %v832, %v1697
        %1701 = vset.pattern.permute.xlu0 0
        %1702 = vperm.xlu0 %1701, %v1680
        %v1703 = vpop.permute.xlu0 %1702
        %v1705 = vsel %vm1699, %v1703, 0.0
        %v1706 = vadd.f32 %v1693, %v1705
        %1707 = vset.pattern.permute.xlu0 1
        %1708 = vperm.xlu0 %1707, %v1678
        %v1709 = vpop.permute.xlu0 %1708
        %vm1711 = vcmp.eq.f32.partialorder %v832, %v1709
        %1712 = vset.pattern.permute.xlu0 1
        %1713 = vperm.xlu0 %1712, %v1681
        %v1714 = vpop.permute.xlu0 %1713
        %v1716 = vsel %vm1711, %v1714, 0.0
        %1717 = vset.pattern.permute.xlu0 1
        %1718 = vperm.xlu0 %1717, %v1679
        %v1719 = vpop.permute.xlu0 %1718
        %vm1721 = vcmp.eq.f32.partialorder %v832, %v1719
        %1722 = vset.pattern.permute.xlu0 1
        %1723 = vperm.xlu0 %1722, %v1680
        %v1724 = vpop.permute.xlu0 %1723
        %v1726 = vsel %vm1721, %v1724, 0.0
        %v1727 = vadd.f32 %v1716, %v1726
        %1729 = vset.pattern.permute.xlu0 0
        %1730 = vperm.xlu0 %1729, %v1727
        %v1731 = vpop.permute.xlu0 %1730
        %v1733 = vmul.f32 %v1731, %v1706
        %1734 = vset.pattern.permute.xlu0 1
        %1735 = vperm.xlu0 %1734, %v1727
        %v1736 = vpop.permute.xlu0 %1735
        %v1738 = vmul.f32 %v1736, %v1706
        %1739 = vset.pattern.permute.xlu0 2
        %1740 = vperm.xlu0 %1739, %v1727
        %v1741 = vpop.permute.xlu0 %1740
        %v1743 = vmul.f32 %v1741, %v1706
        %1744 = vset.pattern.permute.xlu0 3
        %1745 = vperm.xlu0 %1744, %v1727
        %v1746 = vpop.permute.xlu0 %1745
        %v1748 = vmul.f32 %v1746, %v1706
        %1750 = vrot.lane.b32.xlu0 %v1738, 4
        %v1751 = vpop.permute.xlu0 %1750
        %1754 = vrot.lane.b32.xlu0 %v1743, 8
        %v1755 = vpop.permute.xlu0 %1754
        %1758 = vrot.lane.b32.xlu0 %v1748, 12
        %v1759 = vpop.permute.xlu0 %1758
        %v1761 = vsel %vm926, %v1733, %v1751
        %v1762 = vsel %vm928, %v1761, %v1755
        %v1763 = vsel %vm930, %v1762, %v1759
        %1764 = vrot.lane.b32.xlu0 %v834, 114
        %v1765 = vpop.permute.xlu0 %1764
        %v1767 = vadd.f32 %v661, %v1765
        %v1768 = vmul.f32 %v1767, 2.0
        %v1769 = vsub.f32 %v1768, 1.0
        %v1770 = vadd.f32 %v1769, 1.0
        %v1771 = vmul.f32 %v1770, 4.0
        %v1772 = vsub.f32 %v1771, 1.0
        %v1773 = vmul.f32 %v1772, %v841
        %v1774 = vfloor.f32 %v1773
        %v1775 = vadd.f32 %v1774, 1.0
        %v1776 = vsub.f32 %v1773, %v1774
        %v1777 = vsub.f32 1.0, %v1776
        %1779 = vset.pattern.permute.xlu0 0
        %1780 = vperm.xlu0 %1779, %v1774
        %v1781 = vpop.permute.xlu0 %1780
        %vm1783 = vcmp.eq.f32.partialorder %v832, %v1781
        %1785 = vset.pattern.permute.xlu0 0
        %1786 = vperm.xlu0 %1785, %v1777
        %v1787 = vpop.permute.xlu0 %1786
        %v1789 = vsel %vm1783, %v1787, 0.0
        %1791 = vset.pattern.permute.xlu0 0
        %1792 = vperm.xlu0 %1791, %v1775
        %v1793 = vpop.permute.xlu0 %1792
        %vm1795 = vcmp.eq.f32.partialorder %v832, %v1793
        %1797 = vset.pattern.permute.xlu0 0
        %1798 = vperm.xlu0 %1797, %v1776
        %v1799 = vpop.permute.xlu0 %1798
        %v1801 = vsel %vm1795, %v1799, 0.0
        %v1802 = vadd.f32 %v1789, %v1801
        %1803 = vset.pattern.permute.xlu0 1
        %1804 = vperm.xlu0 %1803, %v1774
        %v1805 = vpop.permute.xlu0 %1804
        %vm1807 = vcmp.eq.f32.partialorder %v832, %v1805
        %1808 = vset.pattern.permute.xlu0 1
        %1809 = vperm.xlu0 %1808, %v1777
        %v1810 = vpop.permute.xlu0 %1809
        %v1812 = vsel %vm1807, %v1810, 0.0
        %1813 = vset.pattern.permute.xlu0 1
        %1814 = vperm.xlu0 %1813, %v1775
        %v1815 = vpop.permute.xlu0 %1814
        %vm1817 = vcmp.eq.f32.partialorder %v832, %v1815
        %1818 = vset.pattern.permute.xlu0 1
        %1819 = vperm.xlu0 %1818, %v1776
        %v1820 = vpop.permute.xlu0 %1819
        %v1822 = vsel %vm1817, %v1820, 0.0
        %v1823 = vadd.f32 %v1812, %v1822
        %1825 = vset.pattern.permute.xlu0 0
        %1826 = vperm.xlu0 %1825, %v1823
        %v1827 = vpop.permute.xlu0 %1826
        %v1829 = vmul.f32 %v1827, %v1802
        %1830 = vset.pattern.permute.xlu0 1
        %1831 = vperm.xlu0 %1830, %v1823
        %v1832 = vpop.permute.xlu0 %1831
        %v1834 = vmul.f32 %v1832, %v1802
        %1835 = vset.pattern.permute.xlu0 2
        %1836 = vperm.xlu0 %1835, %v1823
        %v1837 = vpop.permute.xlu0 %1836
        %v1839 = vmul.f32 %v1837, %v1802
        %1840 = vset.pattern.permute.xlu0 3
        %1841 = vperm.xlu0 %1840, %v1823
        %v1842 = vpop.permute.xlu0 %1841
        %v1844 = vmul.f32 %v1842, %v1802
        %1846 = vrot.lane.b32.xlu0 %v1834, 4
        %v1847 = vpop.permute.xlu0 %1846
        %1850 = vrot.lane.b32.xlu0 %v1839, 8
        %v1851 = vpop.permute.xlu0 %1850
        %1854 = vrot.lane.b32.xlu0 %v1844, 12
        %v1855 = vpop.permute.xlu0 %1854
        %v1857 = vsel %vm926, %v1829, %v1847
        %v1858 = vsel %vm928, %v1857, %v1851
        %v1859 = vsel %vm930, %v1858, %v1855
        %v1861 = vrot.slane %v1667, 7
        %v1864 = vrot.slane %v1763, 6
        %v1867 = vrot.slane %v1859, 5
        %v1869 = vsel %vm1230, %v1571, %v1861
        %v1870 = vsel %vm1232, %v1869, %v1864
        %v1871 = vsel %vm1234, %v1870, %v1867
        %1874 = vrot.lane.b32.xlu0 %v657, 120
        %v1875 = vpop.permute.xlu0 %1874
        %1876 = vrot.lane.b32.xlu0 %v658, 120
        %v1877 = vpop.permute.xlu0 %1876
        %v1881 = vsel %vm1236, %v1871, 0
        %1883 = vmatprep.subr.mxu0 0.0
        %1884 = vmatpush1.msra.mxu0 %v1875
        %1885 = vmatprep.subr.mxu0 0.0
        %1886 = vmatpush1.msra.mxu0 %v1877
        %1887 = vmatprep.subr.mxu0 0.0
        %1888 = vmatpush1.msra.mxu0 0.0
        %1889 = vmatprep.subr.mxu0 0.0
        %1890 = vmatpush1.msra.mxu0 0.0
        %1891 = vmatprep.subr.mxu0 0.0
        %1892 = vmatpush1.msra.mxu0 0.0
        %1893 = vmatprep.subr.mxu0 0.0
        %1894 = vmatpush1.msra.mxu0 0.0
        %1895 = vmatprep.subr.mxu0 0.0
        %1896 = vmatpush1.msra.mxu0 0.0
        %1897 = vmatprep.subr.mxu0 0.0
        %1898 = vmatpush1.msra.mxu0 0.0
        %1899 = vmatprep.subr.mxu0 0.0
        %1900 = vmatpush1.msra.mxu0 0.0
        %1901 = vmatprep.subr.mxu0 0.0
        %1902 = vmatpush1.msra.mxu0 0.0
        %1903 = vmatprep.subr.mxu0 0.0
        %1904 = vmatpush1.msra.mxu0 0.0
        %1905 = vmatprep.subr.mxu0 0.0
        %1906 = vmatpush1.msra.mxu0 0.0
        %1907 = vmatprep.subr.mxu0 0.0
        %1908 = vmatpush1.msra.mxu0 0.0
        %1909 = vmatprep.subr.mxu0 0.0
        %1910 = vmatpush1.msra.mxu0 0.0
        %1911 = vmatprep.subr.mxu0 0.0
        %1912 = vmatpush1.msra.mxu0 0.0
        %1913 = vmatprep.subr.mxu0 0.0
        %1914 = vmatpush1.msra.mxu0 0.0
        %1915 = vmatprep.subr.mxu0 0.0
        %1916 = vmatpush1.msra.mxu0 0.0
        %1917 = vmatprep.subr.mxu0 0.0
        %1918 = vmatpush1.msra.mxu0 0.0
        %1919 = vmatprep.subr.mxu0 0.0
        %1920 = vmatpush1.msra.mxu0 0.0
        %1921 = vmatprep.subr.mxu0 0.0
        %1922 = vmatpush1.msra.mxu0 0.0
        %1923 = vmatprep.subr.mxu0 0.0
        %1924 = vmatpush1.msra.mxu0 0.0
        %1925 = vmatprep.subr.mxu0 0.0
        %1926 = vmatpush1.msra.mxu0 0.0
        %1927 = vmatprep.subr.mxu0 0.0
        %1928 = vmatpush1.msra.mxu0 0.0
        %1929 = vmatprep.subr.mxu0 0.0
        %1930 = vmatpush1.msra.mxu0 0.0
        %1931 = vmatprep.subr.mxu0 0.0
        %1932 = vmatpush1.msra.mxu0 0.0
        %1933 = vmatprep.subr.mxu0 0.0
        %1934 = vmatpush1.msra.mxu0 0.0
        %1935 = vmatprep.subr.mxu0 0.0
        %1936 = vmatpush1.msra.mxu0 0.0
        %1937 = vmatprep.subr.mxu0 0.0
        %1938 = vmatpush1.msra.mxu0 0.0
        %1939 = vmatprep.subr.mxu0 0.0
        %1940 = vmatpush1.msra.mxu0 0.0
        %1941 = vmatprep.subr.mxu0 0.0
        %1942 = vmatpush1.msra.mxu0 0.0
        %1943 = vmatprep.subr.mxu0 0.0
        %1944 = vmatpush1.msra.mxu0 0.0
        %1945 = vmatprep.subr.mxu0 0.0
        %1946 = vmatpush1.msra.mxu0 0.0
        %1947 = vmatprep.mubr.f32.mxu0 0.0
        %1948 = vmatmul.mubr.f32.gmra.mrb[0].mxu0 %v1881
        %v1949 = vpop.f32.mrb[0].mxu0
        %v1950 = vadd.f32 0.0, %v1949
        %v1951 = vpop.f32.mrb[0].mxu0
        %1952 = vdwg.mxu0
        %v1954 = vsel %vm928, %v1950, 0
        %1956 = vmatprep.subr.mxu0 0.0
        %1957 = vmatpush1.msra.mxu0 %v662
        %1958 = vmatprep.subr.mxu0 0.0
        %1959 = vmatpush1.msra.mxu0 0.0
        %1960 = vmatprep.subr.mxu0 0.0
        %1961 = vmatpush1.msra.mxu0 0.0
        %1962 = vmatprep.subr.mxu0 0.0
        %1963 = vmatpush1.msra.mxu0 0.0
        %1964 = vmatprep.subr.mxu0 0.0
        %1965 = vmatpush1.msra.mxu0 0.0
        %1966 = vmatprep.subr.mxu0 0.0
        %1967 = vmatpush1.msra.mxu0 0.0
        %1968 = vmatprep.subr.mxu0 0.0
        %1969 = vmatpush1.msra.mxu0 0.0
        %1970 = vmatprep.subr.mxu0 0.0
        %1971 = vmatpush1.msra.mxu0 0.0
        %1972 = vmatprep.subr.mxu0 0.0
        %1973 = vmatpush1.msra.mxu0 0.0
        %1974 = vmatprep.subr.mxu0 0.0
        %1975 = vmatpush1.msra.mxu0 0.0
        %1976 = vmatprep.subr.mxu0 0.0
        %1977 = vmatpush1.msra.mxu0 0.0
        %1978 = vmatprep.subr.mxu0 0.0
        %1979 = vmatpush1.msra.mxu0 0.0
        %1980 = vmatprep.subr.mxu0 0.0
        %1981 = vmatpush1.msra.mxu0 0.0
        %1982 = vmatprep.subr.mxu0 0.0
        %1983 = vmatpush1.msra.mxu0 0.0
        %1984 = vmatprep.subr.mxu0 0.0
        %1985 = vmatpush1.msra.mxu0 0.0
        %1986 = vmatprep.subr.mxu0 0.0
        %1987 = vmatpush1.msra.mxu0 0.0
        %1988 = vmatprep.subr.mxu0 0.0
        %1989 = vmatpush1.msra.mxu0 0.0
        %1990 = vmatprep.subr.mxu0 0.0
        %1991 = vmatpush1.msra.mxu0 0.0
        %1992 = vmatprep.subr.mxu0 0.0
        %1993 = vmatpush1.msra.mxu0 0.0
        %1994 = vmatprep.subr.mxu0 0.0
        %1995 = vmatpush1.msra.mxu0 0.0
        %1996 = vmatprep.subr.mxu0 0.0
        %1997 = vmatpush1.msra.mxu0 0.0
        %1998 = vmatprep.subr.mxu0 0.0
        %1999 = vmatpush1.msra.mxu0 0.0
        %2000 = vmatprep.subr.mxu0 0.0
        %2001 = vmatpush1.msra.mxu0 0.0
        %2002 = vmatprep.subr.mxu0 0.0
        %2003 = vmatpush1.msra.mxu0 0.0
        %2004 = vmatprep.subr.mxu0 0.0
        %2005 = vmatpush1.msra.mxu0 0.0
        %2006 = vmatprep.subr.mxu0 0.0
        %2007 = vmatpush1.msra.mxu0 0.0
        %2008 = vmatprep.subr.mxu0 0.0
        %2009 = vmatpush1.msra.mxu0 0.0
        %2010 = vmatprep.subr.mxu0 0.0
        %2011 = vmatpush1.msra.mxu0 0.0
        %2012 = vmatprep.subr.mxu0 0.0
        %2013 = vmatpush1.msra.mxu0 0.0
        %2014 = vmatprep.subr.mxu0 0.0
        %2015 = vmatpush1.msra.mxu0 0.0
        %2016 = vmatprep.subr.mxu0 0.0
        %2017 = vmatpush1.msra.mxu0 0.0
        %2018 = vmatprep.subr.mxu0 0.0
        %2019 = vmatpush1.msra.mxu0 0.0
        %2020 = vmatprep.mubr.f32.mxu0 0.0
        %2021 = vmatmul.mubr.f32.gmra.mrb[0].mxu0 %v1954
        %v2022 = vpop.f32.mrb[0].mxu0
        %v2023 = vadd.f32 %v1314, %v2022
        %v2024 = vpop.f32.mrb[0].mxu0
        %2025 = vdwg.mxu0
        %2026 = vrot.lane.b32.xlu0 %v746, 120
        %v2027 = vpop.permute.xlu0 %2026
        %v2028 = vsel %vm928, %v2027, 0
        %v2031 = vsel %vm928, %v2023, 0
        %2033 = vmatprep.subr.mxu0 0.0
        %2034 = vmatpush1.xpose.msra.mxu0 %v2031
        %2035 = vmatprep.subr.mxu0 0.0
        %2036 = vmatpush1.xpose.msra.mxu0 0.0
        %2037 = vmatprep.subr.mxu0 0.0
        %2038 = vmatpush1.xpose.msra.mxu0 0.0
        %2039 = vmatprep.subr.mxu0 0.0
        %2040 = vmatpush1.xpose.msra.mxu0 0.0
        %2041 = vmatprep.subr.mxu0 0.0
        %2042 = vmatpush1.xpose.msra.mxu0 0.0
        %2043 = vmatprep.subr.mxu0 0.0
        %2044 = vmatpush1.xpose.msra.mxu0 0.0
        %2045 = vmatprep.subr.mxu0 0.0
        %2046 = vmatpush1.xpose.msra.mxu0 0.0
        %2047 = vmatprep.subr.mxu0 0.0
        %2048 = vmatpush1.xpose.msra.mxu0 0.0
        %2049 = vmatprep.subr.mxu0 0.0
        %2050 = vmatpush1.xpose.msra.mxu0 0.0
        %2051 = vmatprep.subr.mxu0 0.0
        %2052 = vmatpush1.xpose.msra.mxu0 0.0
        %2053 = vmatprep.subr.mxu0 0.0
        %2054 = vmatpush1.xpose.msra.mxu0 0.0
        %2055 = vmatprep.subr.mxu0 0.0
        %2056 = vmatpush1.xpose.msra.mxu0 0.0
        %2057 = vmatprep.subr.mxu0 0.0
        %2058 = vmatpush1.xpose.msra.mxu0 0.0
        %2059 = vmatprep.subr.mxu0 0.0
        %2060 = vmatpush1.xpose.msra.mxu0 0.0
        %2061 = vmatprep.subr.mxu0 0.0
        %2062 = vmatpush1.xpose.msra.mxu0 0.0
        %2063 = vmatprep.subr.mxu0 0.0
        %2064 = vmatpush1.xpose.msra.mxu0 0.0
        %2065 = vmatprep.subr.mxu0 0.0
        %2066 = vmatpush1.xpose.msra.mxu0 0.0
        %2067 = vmatprep.subr.mxu0 0.0
        %2068 = vmatpush1.xpose.msra.mxu0 0.0
        %2069 = vmatprep.subr.mxu0 0.0
        %2070 = vmatpush1.xpose.msra.mxu0 0.0
        %2071 = vmatprep.subr.mxu0 0.0
        %2072 = vmatpush1.xpose.msra.mxu0 0.0
        %2073 = vmatprep.subr.mxu0 0.0
        %2074 = vmatpush1.xpose.msra.mxu0 0.0
        %2075 = vmatprep.subr.mxu0 0.0
        %2076 = vmatpush1.xpose.msra.mxu0 0.0
        %2077 = vmatprep.subr.mxu0 0.0
        %2078 = vmatpush1.xpose.msra.mxu0 0.0
        %2079 = vmatprep.subr.mxu0 0.0
        %2080 = vmatpush1.xpose.msra.mxu0 0.0
        %2081 = vmatprep.subr.mxu0 0.0
        %2082 = vmatpush1.xpose.msra.mxu0 0.0
        %2083 = vmatprep.subr.mxu0 0.0
        %2084 = vmatpush1.xpose.msra.mxu0 0.0
        %2085 = vmatprep.subr.mxu0 0.0
        %2086 = vmatpush1.xpose.msra.mxu0 0.0
        %2087 = vmatprep.subr.mxu0 0.0
        %2088 = vmatpush1.xpose.msra.mxu0 0.0
        %2089 = vmatprep.subr.mxu0 0.0
        %2090 = vmatpush1.xpose.msra.mxu0 0.0
        %2091 = vmatprep.subr.mxu0 0.0
        %2092 = vmatpush1.xpose.msra.mxu0 0.0
        %2093 = vmatprep.subr.mxu0 0.0
        %2094 = vmatpush1.xpose.msra.mxu0 0.0
        %2095 = vmatprep.subr.mxu0 0.0
        %2096 = vmatpush1.xpose.msra.mxu0 0.0
        %2097 = vmatprep.mubr.f32.mxu0 0.0
        %2098 = vmatmul.mubr.f32.gmra.mrb[0].mxu0 %v2028
        %v2099 = vpop.f32.mrb[0].mxu0
        %v2100 = vadd.f32 0.0, %v2099
        %v2101 = vpop.f32.mrb[0].mxu0
        %2102 = vdwg.mxu0
        %v2103 = vsel %vm926, %v2100, -inf
        %2104 = vmax.xlane.f32.xlu0 %v2103
        %v2105 = vpop.xlane.xlu0 %2104
        %v2106 = vsub.f32 %v2100, %v2105
        %v2107 = vmul.f32 %v2106, 1.442695
        %v2108 = vpow.pop %v2107
        %v2109 = vsel %vm926, %v2108, 0.0
        %2110 = vadd.xlane.f32.xlu0 %v2109
        %v2111 = vpop.xlane.xlu0 %2110
        %v2112 = vrcp.pop %v2111
        %v2113 = vmul.f32 %v2108, %v2112
        %2114 = vrot.lane.b32.xlu0 %v834, 112
        %v2115 = vpop.permute.xlu0 %2114
        %v2117 = vadd.f32 %v661, %v2115
        %v2118 = vmul.f32 %v2117, 2.0
        %v2119 = vsub.f32 %v2118, 1.0
        %v2120 = vadd.f32 %v2119, 1.0
        %v2121 = vmul.f32 %v2120, 4.0
        %v2122 = vsub.f32 %v2121, 1.0
        %v2123 = vmul.f32 %v2122, %v841
        %v2124 = vfloor.f32 %v2123
        %v2125 = vadd.f32 %v2124, 1.0
        %v2126 = vsub.f32 %v2123, %v2124
        %v2127 = vsub.f32 1.0, %v2126
        %2129 = vset.pattern.permute.xlu0 0
        %2130 = vperm.xlu0 %2129, %v2124
        %v2131 = vpop.permute.xlu0 %2130
        %vm2133 = vcmp.eq.f32.partialorder %v832, %v2131
        %2135 = vset.pattern.permute.xlu0 0
        %2136 = vperm.xlu0 %2135, %v2127
        %v2137 = vpop.permute.xlu0 %2136
        %v2139 = vsel %vm2133, %v2137, 0.0
        %2141 = vset.pattern.permute.xlu0 0
        %2142 = vperm.xlu0 %2141, %v2125
        %v2143 = vpop.permute.xlu0 %2142
        %vm2145 = vcmp.eq.f32.partialorder %v832, %v2143
        %2147 = vset.pattern.permute.xlu0 0
        %2148 = vperm.xlu0 %2147, %v2126
        %v2149 = vpop.permute.xlu0 %2148
        %v2151 = vsel %vm2145, %v2149, 0.0
        %v2152 = vadd.f32 %v2139, %v2151
        %2153 = vset.pattern.permute.xlu0 1
        %2154 = vperm.xlu0 %2153, %v2124
        %v2155 = vpop.permute.xlu0 %2154
        %vm2157 = vcmp.eq.f32.partialorder %v832, %v2155
        %2158 = vset.pattern.permute.xlu0 1
        %2159 = vperm.xlu0 %2158, %v2127
        %v2160 = vpop.permute.xlu0 %2159
        %v2162 = vsel %vm2157, %v2160, 0.0
        %2163 = vset.pattern.permute.xlu0 1
        %2164 = vperm.xlu0 %2163, %v2125
        %v2165 = vpop.permute.xlu0 %2164
        %vm2167 = vcmp.eq.f32.partialorder %v832, %v2165
        %2168 = vset.pattern.permute.xlu0 1
        %2169 = vperm.xlu0 %2168, %v2126
        %v2170 = vpop.permute.xlu0 %2169
        %v2172 = vsel %vm2167, %v2170, 0.0
        %v2173 = vadd.f32 %v2162, %v2172
        %2175 = vset.pattern.permute.xlu0 0
        %2176 = vperm.xlu0 %2175, %v2173
        %v2177 = vpop.permute.xlu0 %2176
        %v2179 = vmul.f32 %v2177, %v2152
        %2180 = vset.pattern.permute.xlu0 1
        %2181 = vperm.xlu0 %2180, %v2173
        %v2182 = vpop.permute.xlu0 %2181
        %v2184 = vmul.f32 %v2182, %v2152
        %2185 = vset.pattern.permute.xlu0 2
        %2186 = vperm.xlu0 %2185, %v2173
        %v2187 = vpop.permute.xlu0 %2186
        %v2189 = vmul.f32 %v2187, %v2152
        %2190 = vset.pattern.permute.xlu0 3
        %2191 = vperm.xlu0 %2190, %v2173
        %v2192 = vpop.permute.xlu0 %2191
        %v2194 = vmul.f32 %v2192, %v2152
        %2196 = vrot.lane.b32.xlu0 %v2184, 4
        %v2197 = vpop.permute.xlu0 %2196
        %2200 = vrot.lane.b32.xlu0 %v2189, 8
        %v2201 = vpop.permute.xlu0 %2200
        %2204 = vrot.lane.b32.xlu0 %v2194, 12
        %v2205 = vpop.permute.xlu0 %2204
        %v2207 = vsel %vm926, %v2179, %v2197
        %v2208 = vsel %vm928, %v2207, %v2201
        %v2209 = vsel %vm930, %v2208, %v2205
        %2210 = vrot.lane.b32.xlu0 %v834, 110
        %v2211 = vpop.permute.xlu0 %2210
        %v2213 = vadd.f32 %v661, %v2211
        %v2214 = vmul.f32 %v2213, 2.0
        %v2215 = vsub.f32 %v2214, 1.0
        %v2216 = vadd.f32 %v2215, 1.0
        %v2217 = vmul.f32 %v2216, 4.0
        %v2218 = vsub.f32 %v2217, 1.0
        %v2219 = vmul.f32 %v2218, %v841
        %v2220 = vfloor.f32 %v2219
        %v2221 = vadd.f32 %v2220, 1.0
        %v2222 = vsub.f32 %v2219, %v2220
        %v2223 = vsub.f32 1.0, %v2222
        %2225 = vset.pattern.permute.xlu0 0
        %2226 = vperm.xlu0 %2225, %v2220
        %v2227 = vpop.permute.xlu0 %2226
        %vm2229 = vcmp.eq.f32.partialorder %v832, %v2227
        %2231 = vset.pattern.permute.xlu0 0
        %2232 = vperm.xlu0 %2231, %v2223
        %v2233 = vpop.permute.xlu0 %2232
        %v2235 = vsel %vm2229, %v2233, 0.0
        %2237 = vset.pattern.permute.xlu0 0
        %2238 = vperm.xlu0 %2237, %v2221
        %v2239 = vpop.permute.xlu0 %2238
        %vm2241 = vcmp.eq.f32.partialorder %v832, %v2239
        %2243 = vset.pattern.permute.xlu0 0
        %2244 = vperm.xlu0 %2243, %v2222
        %v2245 = vpop.permute.xlu0 %2244
        %v2247 = vsel %vm2241, %v2245, 0.0
        %v2248 = vadd.f32 %v2235, %v2247
        %2249 = vset.pattern.permute.xlu0 1
        %2250 = vperm.xlu0 %2249, %v2220
        %v2251 = vpop.permute.xlu0 %2250
        %vm2253 = vcmp.eq.f32.partialorder %v832, %v2251
        %2254 = vset.pattern.permute.xlu0 1
        %2255 = vperm.xlu0 %2254, %v2223
        %v2256 = vpop.permute.xlu0 %2255
        %v2258 = vsel %vm2253, %v2256, 0.0
        %2259 = vset.pattern.permute.xlu0 1
        %2260 = vperm.xlu0 %2259, %v2221
        %v2261 = vpop.permute.xlu0 %2260
        %vm2263 = vcmp.eq.f32.partialorder %v832, %v2261
        %2264 = vset.pattern.permute.xlu0 1
        %2265 = vperm.xlu0 %2264, %v2222
        %v2266 = vpop.permute.xlu0 %2265
        %v2268 = vsel %vm2263, %v2266, 0.0
        %v2269 = vadd.f32 %v2258, %v2268
        %2271 = vset.pattern.permute.xlu0 0
        %2272 = vperm.xlu0 %2271, %v2269
        %v2273 = vpop.permute.xlu0 %2272
        %v2275 = vmul.f32 %v2273, %v2248
        %2276 = vset.pattern.permute.xlu0 1
        %2277 = vperm.xlu0 %2276, %v2269
        %v2278 = vpop.permute.xlu0 %2277
        %v2280 = vmul.f32 %v2278, %v2248
        %2281 = vset.pattern.permute.xlu0 2
        %2282 = vperm.xlu0 %2281, %v2269
        %v2283 = vpop.permute.xlu0 %2282
        %v2285 = vmul.f32 %v2283, %v2248
        %2286 = vset.pattern.permute.xlu0 3
        %2287 = vperm.xlu0 %2286, %v2269
        %v2288 = vpop.permute.xlu0 %2287
        %v2290 = vmul.f32 %v2288, %v2248
        %2292 = vrot.lane.b32.xlu0 %v2280, 4
        %v2293 = vpop.permute.xlu0 %2292
        %2296 = vrot.lane.b32.xlu0 %v2285, 8
        %v2297 = vpop.permute.xlu0 %2296
        %2300 = vrot.lane.b32.xlu0 %v2290, 12
        %v2301 = vpop.permute.xlu0 %2300
        %v2303 = vsel %vm926, %v2275, %v2293
        %v2304 = vsel %vm928, %v2303, %v2297
        %v2305 = vsel %vm930, %v2304, %v2301
        %2306 = vrot.lane.b32.xlu0 %v834, 108
        %v2307 = vpop.permute.xlu0 %2306
        %v2309 = vadd.f32 %v661, %v2307
        %v2310 = vmul.f32 %v2309, 2.0
        %v2311 = vsub.f32 %v2310, 1.0
        %v2312 = vadd.f32 %v2311, 1.0
        %v2313 = vmul.f32 %v2312, 4.0
        %v2314 = vsub.f32 %v2313, 1.0
        %v2315 = vmul.f32 %v2314, %v841
        %v2316 = vfloor.f32 %v2315
        %v2317 = vadd.f32 %v2316, 1.0
        %v2318 = vsub.f32 %v2315, %v2316
        %v2319 = vsub.f32 1.0, %v2318
        %2321 = vset.pattern.permute.xlu0 0
        %2322 = vperm.xlu0 %2321, %v2316
        %v2323 = vpop.permute.xlu0 %2322
        %vm2325 = vcmp.eq.f32.partialorder %v832, %v2323
        %2327 = vset.pattern.permute.xlu0 0
        %2328 = vperm.xlu0 %2327, %v2319
        %v2329 = vpop.permute.xlu0 %2328
        %v2331 = vsel %vm2325, %v2329, 0.0
        %2333 = vset.pattern.permute.xlu0 0
        %2334 = vperm.xlu0 %2333, %v2317
        %v2335 = vpop.permute.xlu0 %2334
        %vm2337 = vcmp.eq.f32.partialorder %v832, %v2335
        %2339 = vset.pattern.permute.xlu0 0
        %2340 = vperm.xlu0 %2339, %v2318
        %v2341 = vpop.permute.xlu0 %2340
        %v2343 = vsel %vm2337, %v2341, 0.0
        %v2344 = vadd.f32 %v2331, %v2343
        %2345 = vset.pattern.permute.xlu0 1
        %2346 = vperm.xlu0 %2345, %v2316
        %v2347 = vpop.permute.xlu0 %2346
        %vm2349 = vcmp.eq.f32.partialorder %v832, %v2347
        %2350 = vset.pattern.permute.xlu0 1
        %2351 = vperm.xlu0 %2350, %v2319
        %v2352 = vpop.permute.xlu0 %2351
        %v2354 = vsel %vm2349, %v2352, 0.0
        %2355 = vset.pattern.permute.xlu0 1
        %2356 = vperm.xlu0 %2355, %v2317
        %v2357 = vpop.permute.xlu0 %2356
        %vm2359 = vcmp.eq.f32.partialorder %v832, %v2357
        %2360 = vset.pattern.permute.xlu0 1
        %2361 = vperm.xlu0 %2360, %v2318
        %v2362 = vpop.permute.xlu0 %2361
        %v2364 = vsel %vm2359, %v2362, 0.0
        %v2365 = vadd.f32 %v2354, %v2364
        %2367 = vset.pattern.permute.xlu0 0
        %2368 = vperm.xlu0 %2367, %v2365
        %v2369 = vpop.permute.xlu0 %2368
        %v2371 = vmul.f32 %v2369, %v2344
        %2372 = vset.pattern.permute.xlu0 1
        %2373 = vperm.xlu0 %2372, %v2365
        %v2374 = vpop.permute.xlu0 %2373
        %v2376 = vmul.f32 %v2374, %v2344
        %2377 = vset.pattern.permute.xlu0 2
        %2378 = vperm.xlu0 %2377, %v2365
        %v2379 = vpop.permute.xlu0 %2378
        %v2381 = vmul.f32 %v2379, %v2344
        %2382 = vset.pattern.permute.xlu0 3
        %2383 = vperm.xlu0 %2382, %v2365
        %v2384 = vpop.permute.xlu0 %2383
        %v2386 = vmul.f32 %v2384, %v2344
        %2388 = vrot.lane.b32.xlu0 %v2376, 4
        %v2389 = vpop.permute.xlu0 %2388
        %2392 = vrot.lane.b32.xlu0 %v2381, 8
        %v2393 = vpop.permute.xlu0 %2392
        %2396 = vrot.lane.b32.xlu0 %v2386, 12
        %v2397 = vpop.permute.xlu0 %2396
        %v2399 = vsel %vm926, %v2371, %v2389
        %v2400 = vsel %vm928, %v2399, %v2393
        %v2401 = vsel %vm930, %v2400, %v2397
        %2402 = vrot.lane.b32.xlu0 %v834, 106
        %v2403 = vpop.permute.xlu0 %2402
        %v2405 = vadd.f32 %v661, %v2403
        %v2406 = vmul.f32 %v2405, 2.0
        %v2407 = vsub.f32 %v2406, 1.0
        %v2408 = vadd.f32 %v2407, 1.0
        %v2409 = vmul.f32 %v2408, 4.0
        %v2410 = vsub.f32 %v2409, 1.0
        %v2411 = vmul.f32 %v2410, %v841
        %v2412 = vfloor.f32 %v2411
        %v2413 = vadd.f32 %v2412, 1.0
        %v2414 = vsub.f32 %v2411, %v2412
        %v2415 = vsub.f32 1.0, %v2414
        %2417 = vset.pattern.permute.xlu0 0
        %2418 = vperm.xlu0 %2417, %v2412
        %v2419 = vpop.permute.xlu0 %2418
        %vm2421 = vcmp.eq.f32.partialorder %v832, %v2419
        %2423 = vset.pattern.permute.xlu0 0
        %2424 = vperm.xlu0 %2423, %v2415
        %v2425 = vpop.permute.xlu0 %2424
        %v2427 = vsel %vm2421, %v2425, 0.0
        %2429 = vset.pattern.permute.xlu0 0
        %2430 = vperm.xlu0 %2429, %v2413
        %v2431 = vpop.permute.xlu0 %2430
        %vm2433 = vcmp.eq.f32.partialorder %v832, %v2431
        %2435 = vset.pattern.permute.xlu0 0
        %2436 = vperm.xlu0 %2435, %v2414
        %v2437 = vpop.permute.xlu0 %2436
        %v2439 = vsel %vm2433, %v2437, 0.0
        %v2440 = vadd.f32 %v2427, %v2439
        %2441 = vset.pattern.permute.xlu0 1
        %2442 = vperm.xlu0 %2441, %v2412
        %v2443 = vpop.permute.xlu0 %2442
        %vm2445 = vcmp.eq.f32.partialorder %v832, %v2443
        %2446 = vset.pattern.permute.xlu0 1
        %2447 = vperm.xlu0 %2446, %v2415
        %v2448 = vpop.permute.xlu0 %2447
        %v2450 = vsel %vm2445, %v2448, 0.0
        %2451 = vset.pattern.permute.xlu0 1
        %2452 = vperm.xlu0 %2451, %v2413
        %v2453 = vpop.permute.xlu0 %2452
        %vm2455 = vcmp.eq.f32.partialorder %v832, %v2453
        %2456 = vset.pattern.permute.xlu0 1
        %2457 = vperm.xlu0 %2456, %v2414
        %v2458 = vpop.permute.xlu0 %2457
        %v2460 = vsel %vm2455, %v2458, 0.0
        %v2461 = vadd.f32 %v2450, %v2460
        %2463 = vset.pattern.permute.xlu0 0
        %2464 = vperm.xlu0 %2463, %v2461
        %v2465 = vpop.permute.xlu0 %2464
        %v2467 = vmul.f32 %v2465, %v2440
        %2468 = vset.pattern.permute.xlu0 1
        %2469 = vperm.xlu0 %2468, %v2461
        %v2470 = vpop.permute.xlu0 %2469
        %v2472 = vmul.f32 %v2470, %v2440
        %2473 = vset.pattern.permute.xlu0 2
        %2474 = vperm.xlu0 %2473, %v2461
        %v2475 = vpop.permute.xlu0 %2474
        %v2477 = vmul.f32 %v2475, %v2440
        %2478 = vset.pattern.permute.xlu0 3
        %2479 = vperm.xlu0 %2478, %v2461
        %v2480 = vpop.permute.xlu0 %2479
        %v2482 = vmul.f32 %v2480, %v2440
        %2484 = vrot.lane.b32.xlu0 %v2472, 4
        %v2485 = vpop.permute.xlu0 %2484
        %2488 = vrot.lane.b32.xlu0 %v2477, 8
        %v2489 = vpop.permute.xlu0 %2488
        %2492 = vrot.lane.b32.xlu0 %v2482, 12
        %v2493 = vpop.permute.xlu0 %2492
        %v2495 = vsel %vm926, %v2467, %v2485
        %v2496 = vsel %vm928, %v2495, %v2489
        %v2497 = vsel %vm930, %v2496, %v2493
        %v2499 = vrot.slane %v2305, 7
        %v2502 = vrot.slane %v2401, 6
        %v2505 = vrot.slane %v2497, 5
        %v2507 = vsel %vm1230, %v2209, %v2499
        %v2508 = vsel %vm1232, %v2507, %v2502
        %v2509 = vsel %vm1234, %v2508, %v2505
        %2510 = vrot.lane.b32.xlu0 %v657, 112
        %v2511 = vpop.permute.xlu0 %2510
        %2512 = vrot.lane.b32.xlu0 %v658, 112
        %v2513 = vpop.permute.xlu0 %2512
        %v2517 = vsel %vm1236, %v2509, 0
        %2519 = vmatprep.subr.mxu0 0.0
        %2520 = vmatpush1.msra.mxu0 %v2511
        %2521 = vmatprep.subr.mxu0 0.0
        %2522 = vmatpush1.msra.mxu0 %v2513
        %2523 = vmatprep.subr.mxu0 0.0
        %2524 = vmatpush1.msra.mxu0 0.0
        %2525 = vmatprep.subr.mxu0 0.0
        %2526 = vmatpush1.msra.mxu0 0.0
        %2527 = vmatprep.subr.mxu0 0.0
        %2528 = vmatpush1.msra.mxu0 0.0
        %2529 = vmatprep.subr.mxu0 0.0
        %2530 = vmatpush1.msra.mxu0 0.0
        %2531 = vmatprep.subr.mxu0 0.0
        %2532 = vmatpush1.msra.mxu0 0.0
        %2533 = vmatprep.subr.mxu0 0.0
        %2534 = vmatpush1.msra.mxu0 0.0
        %2535 = vmatprep.subr.mxu0 0.0
        %2536 = vmatpush1.msra.mxu0 0.0
        %2537 = vmatprep.subr.mxu0 0.0
        %2538 = vmatpush1.msra.mxu0 0.0
        %2539 = vmatprep.subr.mxu0 0.0
        %2540 = vmatpush1.msra.mxu0 0.0
        %2541 = vmatprep.subr.mxu0 0.0
        %2542 = vmatpush1.msra.mxu0 0.0
        %2543 = vmatprep.subr.mxu0 0.0
        %2544 = vmatpush1.msra.mxu0 0.0
        %2545 = vmatprep.subr.mxu0 0.0
        %2546 = vmatpush1.msra.mxu0 0.0
        %2547 = vmatprep.subr.mxu0 0.0
        %2548 = vmatpush1.msra.mxu0 0.0
        %2549 = vmatprep.subr.mxu0 0.0
        %2550 = vmatpush1.msra.mxu0 0.0
        %2551 = vmatprep.subr.mxu0 0.0
        %2552 = vmatpush1.msra.mxu0 0.0
        %2553 = vmatprep.subr.mxu0 0.0
        %2554 = vmatpush1.msra.mxu0 0.0
        %2555 = vmatprep.subr.mxu0 0.0
        %2556 = vmatpush1.msra.mxu0 0.0
        %2557 = vmatprep.subr.mxu0 0.0
        %2558 = vmatpush1.msra.mxu0 0.0
        %2559 = vmatprep.subr.mxu0 0.0
        %2560 = vmatpush1.msra.mxu0 0.0
        %2561 = vmatprep.subr.mxu0 0.0
        %2562 = vmatpush1.msra.mxu0 0.0
        %2563 = vmatprep.subr.mxu0 0.0
        %2564 = vmatpush1.msra.mxu0 0.0
        %2565 = vmatprep.subr.mxu0 0.0
        %2566 = vmatpush1.msra.mxu0 0.0
        %2567 = vmatprep.subr.mxu0 0.0
        %2568 = vmatpush1.msra.mxu0 0.0
        %2569 = vmatprep.subr.mxu0 0.0
        %2570 = vmatpush1.msra.mxu0 0.0
        %2571 = vmatprep.subr.mxu0 0.0
        %2572 = vmatpush1.msra.mxu0 0.0
        %2573 = vmatprep.subr.mxu0 0.0
        %2574 = vmatpush1.msra.mxu0 0.0
        %2575 = vmatprep.subr.mxu0 0.0
        %2576 = vmatpush1.msra.mxu0 0.0
        %2577 = vmatprep.subr.mxu0 0.0
        %2578 = vmatpush1.msra.mxu0 0.0
        %2579 = vmatprep.subr.mxu0 0.0
        %2580 = vmatpush1.msra.mxu0 0.0
        %2581 = vmatprep.subr.mxu0 0.0
        %2582 = vmatpush1.msra.mxu0 0.0
        %2583 = vmatprep.mubr.f32.mxu0 0.0
        %2584 = vmatmul.mubr.f32.gmra.mrb[0].mxu0 %v2517
        %v2585 = vpop.f32.mrb[0].mxu0
        %v2586 = vadd.f32 0.0, %v2585
        %v2587 = vpop.f32.mrb[0].mxu0
        %2588 = vdwg.mxu0
        %v2590 = vsel %vm928, %v2586, 0
        %2592 = vmatprep.subr.mxu0 0.0
        %2593 = vmatpush1.msra.mxu0 %v662
        %2594 = vmatprep.subr.mxu0 0.0
        %2595 = vmatpush1.msra.mxu0 0.0
        %2596 = vmatprep.subr.mxu0 0.0
        %2597 = vmatpush1.msra.mxu0 0.0
        %2598 = vmatprep.subr.mxu0 0.0
        %2599 = vmatpush1.msra.mxu0 0.0
        %2600 = vmatprep.subr.mxu0 0.0
        %2601 = vmatpush1.msra.mxu0 0.0
        %2602 = vmatprep.subr.mxu0 0.0
        %2603 = vmatpush1.msra.mxu0 0.0
        %2604 = vmatprep.subr.mxu0 0.0
        %2605 = vmatpush1.msra.mxu0 0.0
        %2606 = vmatprep.subr.mxu0 0.0
        %2607 = vmatpush1.msra.mxu0 0.0
        %2608 = vmatprep.subr.mxu0 0.0
        %2609 = vmatpush1.msra.mxu0 0.0
        %2610 = vmatprep.subr.mxu0 0.0
        %2611 = vmatpush1.msra.mxu0 0.0
        %2612 = vmatprep.subr.mxu0 0.0
        %2613 = vmatpush1.msra.mxu0 0.0
        %2614 = vmatprep.subr.mxu0 0.0
        %2615 = vmatpush1.msra.mxu0 0.0
        %2616 = vmatprep.subr.mxu0 0.0
        %2617 = vmatpush1.msra.mxu0 0.0
        %2618 = vmatprep.subr.mxu0 0.0
        %2619 = vmatpush1.msra.mxu0 0.0
        %2620 = vmatprep.subr.mxu0 0.0
        %2621 = vmatpush1.msra.mxu0 0.0
        %2622 = vmatprep.subr.mxu0 0.0
        %2623 = vmatpush1.msra.mxu0 0.0
        %2624 = vmatprep.subr.mxu0 0.0
        %2625 = vmatpush1.msra.mxu0 0.0
        %2626 = vmatprep.subr.mxu0 0.0
        %2627 = vmatpush1.msra.mxu0 0.0
        %2628 = vmatprep.subr.mxu0 0.0
        %2629 = vmatpush1.msra.mxu0 0.0
        %2630 = vmatprep.subr.mxu0 0.0
        %2631 = vmatpush1.msra.mxu0 0.0
        %2632 = vmatprep.subr.mxu0 0.0
        %2633 = vmatpush1.msra.mxu0 0.0
        %2634 = vmatprep.subr.mxu0 0.0
        %2635 = vmatpush1.msra.mxu0 0.0
        %2636 = vmatprep.subr.mxu0 0.0
        %2637 = vmatpush1.msra.mxu0 0.0
        %2638 = vmatprep.subr.mxu0 0.0
        %2639 = vmatpush1.msra.mxu0 0.0
        %2640 = vmatprep.subr.mxu0 0.0
        %2641 = vmatpush1.msra.mxu0 0.0
        %2642 = vmatprep.subr.mxu0 0.0
        %2643 = vmatpush1.msra.mxu0 0.0
        %2644 = vmatprep.subr.mxu0 0.0
        %2645 = vmatpush1.msra.mxu0 0.0
        %2646 = vmatprep.subr.mxu0 0.0
        %2647 = vmatpush1.msra.mxu0 0.0
        %2648 = vmatprep.subr.mxu0 0.0
        %2649 = vmatpush1.msra.mxu0 0.0
        %2650 = vmatprep.subr.mxu0 0.0
        %2651 = vmatpush1.msra.mxu0 0.0
        %2652 = vmatprep.subr.mxu0 0.0
        %2653 = vmatpush1.msra.mxu0 0.0
        %2654 = vmatprep.subr.mxu0 0.0
        %2655 = vmatpush1.msra.mxu0 0.0
        %2656 = vmatprep.mubr.f32.mxu0 0.0
        %2657 = vmatmul.mubr.f32.gmra.mrb[0].mxu0 %v2590
        %v2658 = vpop.f32.mrb[0].mxu0
        %v2659 = vadd.f32 %v1314, %v2658
        %v2660 = vpop.f32.mrb[0].mxu0
        %2661 = vdwg.mxu0
        %2662 = vrot.lane.b32.xlu0 %v746, 112
        %v2663 = vpop.permute.xlu0 %2662
        %v2664 = vsel %vm928, %v2663, 0
        %v2667 = vsel %vm928, %v2659, 0
        %2669 = vmatprep.subr.mxu0 0.0
        %2670 = vmatpush1.xpose.msra.mxu0 %v2667
        %2671 = vmatprep.subr.mxu0 0.0
        %2672 = vmatpush1.xpose.msra.mxu0 0.0
        %2673 = vmatprep.subr.mxu0 0.0
        %2674 = vmatpush1.xpose.msra.mxu0 0.0
        %2675 = vmatprep.subr.mxu0 0.0
        %2676 = vmatpush1.xpose.msra.mxu0 0.0
        %2677 = vmatprep.subr.mxu0 0.0
        %2678 = vmatpush1.xpose.msra.mxu0 0.0
        %2679 = vmatprep.subr.mxu0 0.0
        %2680 = vmatpush1.xpose.msra.mxu0 0.0
        %2681 = vmatprep.subr.mxu0 0.0
        %2682 = vmatpush1.xpose.msra.mxu0 0.0
        %2683 = vmatprep.subr.mxu0 0.0
        %2684 = vmatpush1.xpose.msra.mxu0 0.0
        %2685 = vmatprep.subr.mxu0 0.0
        %2686 = vmatpush1.xpose.msra.mxu0 0.0
        %2687 = vmatprep.subr.mxu0 0.0
        %2688 = vmatpush1.xpose.msra.mxu0 0.0
        %2689 = vmatprep.subr.mxu0 0.0
        %2690 = vmatpush1.xpose.msra.mxu0 0.0
        %2691 = vmatprep.subr.mxu0 0.0
        %2692 = vmatpush1.xpose.msra.mxu0 0.0
        %2693 = vmatprep.subr.mxu0 0.0
        %2694 = vmatpush1.xpose.msra.mxu0 0.0
        %2695 = vmatprep.subr.mxu0 0.0
        %2696 = vmatpush1.xpose.msra.mxu0 0.0
        %2697 = vmatprep.subr.mxu0 0.0
        %2698 = vmatpush1.xpose.msra.mxu0 0.0
        %2699 = vmatprep.subr.mxu0 0.0
        %2700 = vmatpush1.xpose.msra.mxu0 0.0
        %2701 = vmatprep.subr.mxu0 0.0
        %2702 = vmatpush1.xpose.msra.mxu0 0.0
        %2703 = vmatprep.subr.mxu0 0.0
        %2704 = vmatpush1.xpose.msra.mxu0 0.0
        %2705 = vmatprep.subr.mxu0 0.0
        %2706 = vmatpush1.xpose.msra.mxu0 0.0
        %2707 = vmatprep.subr.mxu0 0.0
        %2708 = vmatpush1.xpose.msra.mxu0 0.0
        %2709 = vmatprep.subr.mxu0 0.0
        %2710 = vmatpush1.xpose.msra.mxu0 0.0
        %2711 = vmatprep.subr.mxu0 0.0
        %2712 = vmatpush1.xpose.msra.mxu0 0.0
        %2713 = vmatprep.subr.mxu0 0.0
        %2714 = vmatpush1.xpose.msra.mxu0 0.0
        %2715 = vmatprep.subr.mxu0 0.0
        %2716 = vmatpush1.xpose.msra.mxu0 0.0
        %2717 = vmatprep.subr.mxu0 0.0
        %2718 = vmatpush1.xpose.msra.mxu0 0.0
        %2719 = vmatprep.subr.mxu0 0.0
        %2720 = vmatpush1.xpose.msra.mxu0 0.0
        %2721 = vmatprep.subr.mxu0 0.0
        %2722 = vmatpush1.xpose.msra.mxu0 0.0
        %2723 = vmatprep.subr.mxu0 0.0
        %2724 = vmatpush1.xpose.msra.mxu0 0.0
        %2725 = vmatprep.subr.mxu0 0.0
        %2726 = vmatpush1.xpose.msra.mxu0 0.0
        %2727 = vmatprep.subr.mxu0 0.0
        %2728 = vmatpush1.xpose.msra.mxu0 0.0
        %2729 = vmatprep.subr.mxu0 0.0
        %2730 = vmatpush1.xpose.msra.mxu0 0.0
        %2731 = vmatprep.subr.mxu0 0.0
        %2732 = vmatpush1.xpose.msra.mxu0 0.0
        %2733 = vmatprep.mubr.f32.mxu0 0.0
        %2734 = vmatmul.mubr.f32.gmra.mrb[0].mxu0 %v2664
        %v2735 = vpop.f32.mrb[0].mxu0
        %v2736 = vadd.f32 0.0, %v2735
        %v2737 = vpop.f32.mrb[0].mxu0
        %2738 = vdwg.mxu0
        %v2739 = vsel %vm926, %v2736, -inf
        %2740 = vmax.xlane.f32.xlu0 %v2739
        %v2741 = vpop.xlane.xlu0 %2740
        %v2742 = vsub.f32 %v2736, %v2741
        %v2743 = vmul.f32 %v2742, 1.442695
        %v2744 = vpow.pop %v2743
        %v2745 = vsel %vm926, %v2744, 0.0
        %2746 = vadd.xlane.f32.xlu0 %v2745
        %v2747 = vpop.xlane.xlu0 %2746
        %v2748 = vrcp.pop %v2747
        %v2749 = vmul.f32 %v2744, %v2748
        %2750 = vrot.lane.b32.xlu0 %v834, 104
        %v2751 = vpop.permute.xlu0 %2750
        %v2753 = vadd.f32 %v661, %v2751
        %v2754 = vmul.f32 %v2753, 2.0
        %v2755 = vsub.f32 %v2754, 1.0
        %v2756 = vadd.f32 %v2755, 1.0
        %v2757 = vmul.f32 %v2756, 4.0
        %v2758 = vsub.f32 %v2757, 1.0
        %v2759 = vmul.f32 %v2758, %v841
        %v2760 = vfloor.f32 %v2759
        %v2761 = vadd.f32 %v2760, 1.0
        %v2762 = vsub.f32 %v2759, %v2760
        %v2763 = vsub.f32 1.0, %v2762
        %2765 = vset.pattern.permute.xlu0 0
        %2766 = vperm.xlu0 %2765, %v2760
        %v2767 = vpop.permute.xlu0 %2766
        %vm2769 = vcmp.eq.f32.partialorder %v832, %v2767
        %2771 = vset.pattern.permute.xlu0 0
        %2772 = vperm.xlu0 %2771, %v2763
        %v2773 = vpop.permute.xlu0 %2772
        %v2775 = vsel %vm2769, %v2773, 0.0
        %2777 = vset.pattern.permute.xlu0 0
        %2778 = vperm.xlu0 %2777, %v2761
        %v2779 = vpop.permute.xlu0 %2778
        %vm2781 = vcmp.eq.f32.partialorder %v832, %v2779
        %2783 = vset.pattern.permute.xlu0 0
        %2784 = vperm.xlu0 %2783, %v2762
        %v2785 = vpop.permute.xlu0 %2784
        %v2787 = vsel %vm2781, %v2785, 0.0
        %v2788 = vadd.f32 %v2775, %v2787
        %2789 = vset.pattern.permute.xlu0 1
        %2790 = vperm.xlu0 %2789, %v2760
        %v2791 = vpop.permute.xlu0 %2790
        %vm2793 = vcmp.eq.f32.partialorder %v832, %v2791
        %2794 = vset.pattern.permute.xlu0 1
        %2795 = vperm.xlu0 %2794, %v2763
        %v2796 = vpop.permute.xlu0 %2795
        %v2798 = vsel %vm2793, %v2796, 0.0
        %2799 = vset.pattern.permute.xlu0 1
        %2800 = vperm.xlu0 %2799, %v2761
        %v2801 = vpop.permute.xlu0 %2800
        %vm2803 = vcmp.eq.f32.partialorder %v832, %v2801
        %2804 = vset.pattern.permute.xlu0 1
        %2805 = vperm.xlu0 %2804, %v2762
        %v2806 = vpop.permute.xlu0 %2805
        %v2808 = vsel %vm2803, %v2806, 0.0
        %v2809 = vadd.f32 %v2798, %v2808
        %2811 = vset.pattern.permute.xlu0 0
        %2812 = vperm.xlu0 %2811, %v2809
        %v2813 = vpop.permute.xlu0 %2812
        %v2815 = vmul.f32 %v2813, %v2788
        %2816 = vset.pattern.permute.xlu0 1
        %2817 = vperm.xlu0 %2816, %v2809
        %v2818 = vpop.permute.xlu0 %2817
        %v2820 = vmul.f32 %v2818, %v2788
        %2821 = vset.pattern.permute.xlu0 2
        %2822 = vperm.xlu0 %2821, %v2809
        %v2823 = vpop.permute.xlu0 %2822
        %v2825 = vmul.f32 %v2823, %v2788
        %2826 = vset.pattern.permute.xlu0 3
        %2827 = vperm.xlu0 %2826, %v2809
        %v2828 = vpop.permute.xlu0 %2827
        %v2830 = vmul.f32 %v2828, %v2788
        %2832 = vrot.lane.b32.xlu0 %v2820, 4
        %v2833 = vpop.permute.xlu0 %2832
        %2836 = vrot.lane.b32.xlu0 %v2825, 8
        %v2837 = vpop.permute.xlu0 %2836
        %2840 = vrot.lane.b32.xlu0 %v2830, 12
        %v2841 = vpop.permute.xlu0 %2840
        %v2843 = vsel %vm926, %v2815, %v2833
        %v2844 = vsel %vm928, %v2843, %v2837
        %v2845 = vsel %vm930, %v2844, %v2841
        %2846 = vrot.lane.b32.xlu0 %v834, 102
        %v2847 = vpop.permute.xlu0 %2846
        %v2849 = vadd.f32 %v661, %v2847
        %v2850 = vmul.f32 %v2849, 2.0
        %v2851 = vsub.f32 %v2850, 1.0
        %v2852 = vadd.f32 %v2851, 1.0
        %v2853 = vmul.f32 %v2852, 4.0
        %v2854 = vsub.f32 %v2853, 1.0
        %v2855 = vmul.f32 %v2854, %v841
        %v2856 = vfloor.f32 %v2855
        %v2857 = vadd.f32 %v2856, 1.0
        %v2858 = vsub.f32 %v2855, %v2856
        %v2859 = vsub.f32 1.0, %v2858
        %2861 = vset.pattern.permute.xlu0 0
        %2862 = vperm.xlu0 %2861, %v2856
        %v2863 = vpop.permute.xlu0 %2862
        %vm2865 = vcmp.eq.f32.partialorder %v832, %v2863
        %2867 = vset.pattern.permute.xlu0 0
        %2868 = vperm.xlu0 %2867, %v2859
        %v2869 = vpop.permute.xlu0 %2868
        %v2871 = vsel %vm2865, %v2869, 0.0
        %2873 = vset.pattern.permute.xlu0 0
        %2874 = vperm.xlu0 %2873, %v2857
        %v2875 = vpop.permute.xlu0 %2874
        %vm2877 = vcmp.eq.f32.partialorder %v832, %v2875
        %2879 = vset.pattern.permute.xlu0 0
        %2880 = vperm.xlu0 %2879, %v2858
        %v2881 = vpop.permute.xlu0 %2880
        %v2883 = vsel %vm2877, %v2881, 0.0
        %v2884 = vadd.f32 %v2871, %v2883
        %2885 = vset.pattern.permute.xlu0 1
        %2886 = vperm.xlu0 %2885, %v2856
        %v2887 = vpop.permute.xlu0 %2886
        %vm2889 = vcmp.eq.f32.partialorder %v832, %v2887
        %2890 = vset.pattern.permute.xlu0 1
        %2891 = vperm.xlu0 %2890, %v2859
        %v2892 = vpop.permute.xlu0 %2891
        %v2894 = vsel %vm2889, %v2892, 0.0
        %2895 = vset.pattern.permute.xlu0 1
        %2896 = vperm.xlu0 %2895, %v2857
        %v2897 = vpop.permute.xlu0 %2896
        %vm2899 = vcmp.eq.f32.partialorder %v832, %v2897
        %2900 = vset.pattern.permute.xlu0 1
        %2901 = vperm.xlu0 %2900, %v2858
        %v2902 = vpop.permute.xlu0 %2901
        %v2904 = vsel %vm2899, %v2902, 0.0
        %v2905 = vadd.f32 %v2894, %v2904
        %2907 = vset.pattern.permute.xlu0 0
        %2908 = vperm.xlu0 %2907, %v2905
        %v2909 = vpop.permute.xlu0 %2908
        %v2911 = vmul.f32 %v2909, %v2884
        %2912 = vset.pattern.permute.xlu0 1
        %2913 = vperm.xlu0 %2912, %v2905
        %v2914 = vpop.permute.xlu0 %2913
        %v2916 = vmul.f32 %v2914, %v2884
        %2917 = vset.pattern.permute.xlu0 2
        %2918 = vperm.xlu0 %2917, %v2905
        %v2919 = vpop.permute.xlu0 %2918
        %v2921 = vmul.f32 %v2919, %v2884
        %2922 = vset.pattern.permute.xlu0 3
        %2923 = vperm.xlu0 %2922, %v2905
        %v2924 = vpop.permute.xlu0 %2923
        %v2926 = vmul.f32 %v2924, %v2884
        %2928 = vrot.lane.b32.xlu0 %v2916, 4
        %v2929 = vpop.permute.xlu0 %2928
        %2932 = vrot.lane.b32.xlu0 %v2921, 8
        %v2933 = vpop.permute.xlu0 %2932
        %2936 = vrot.lane.b32.xlu0 %v2926, 12
        %v2937 = vpop.permute.xlu0 %2936
        %v2939 = vsel %vm926, %v2911, %v2929
        %v2940 = vsel %vm928, %v2939, %v2933
        %v2941 = vsel %vm930, %v2940, %v2937
        %2942 = vrot.lane.b32.xlu0 %v834, 100
        %v2943 = vpop.permute.xlu0 %2942
        %v2945 = vadd.f32 %v661, %v2943
        %v2946 = vmul.f32 %v2945, 2.0
        %v2947 = vsub.f32 %v2946, 1.0
        %v2948 = vadd.f32 %v2947, 1.0
        %v2949 = vmul.f32 %v2948, 4.0
        %v2950 = vsub.f32 %v2949, 1.0
        %v2951 = vmul.f32 %v2950, %v841
        %v2952 = vfloor.f32 %v2951
        %v2953 = vadd.f32 %v2952, 1.0
        %v2954 = vsub.f32 %v2951, %v2952
        %v2955 = vsub.f32 1.0, %v2954
        %2957 = vset.pattern.permute.xlu0 0
        %2958 = vperm.xlu0 %2957, %v2952
        %v2959 = vpop.permute.xlu0 %2958
        %vm2961 = vcmp.eq.f32.partialorder %v832, %v2959
        %2963 = vset.pattern.permute.xlu0 0
        %2964 = vperm.xlu0 %2963, %v2955
        %v2965 = vpop.permute.xlu0 %2964
        %v2967 = vsel %vm2961, %v2965, 0.0
        %2969 = vset.pattern.permute.xlu0 0
        %2970 = vperm.xlu0 %2969, %v2953
        %v2971 = vpop.permute.xlu0 %2970
        %vm2973 = vcmp.eq.f32.partialorder %v832, %v2971
        %2975 = vset.pattern.permute.xlu0 0
        %2976 = vperm.xlu0 %2975, %v2954
        %v2977 = vpop.permute.xlu0 %2976
        %v2979 = vsel %vm2973, %v2977, 0.0
        %v2980 = vadd.f32 %v2967, %v2979
        %2981 = vset.pattern.permute.xlu0 1
        %2982 = vperm.xlu0 %2981, %v2952
        %v2983 = vpop.permute.xlu0 %2982
        %vm2985 = vcmp.eq.f32.partialorder %v832, %v2983
        %2986 = vset.pattern.permute.xlu0 1
        %2987 = vperm.xlu0 %2986, %v2955
        %v2988 = vpop.permute.xlu0 %2987
        %v2990 = vsel %vm2985, %v2988, 0.0
        %2991 = vset.pattern.permute.xlu0 1
        %2992 = vperm.xlu0 %2991, %v2953
        %v2993 = vpop.permute.xlu0 %2992
        %vm2995 = vcmp.eq.f32.partialorder %v832, %v2993
        %2996 = vset.pattern.permute.xlu0 1
        %2997 = vperm.xlu0 %2996, %v2954
        %v2998 = vpop.permute.xlu0 %2997
        %v3000 = vsel %vm2995, %v2998, 0.0
        %v3001 = vadd.f32 %v2990, %v3000
        %3003 = vset.pattern.permute.xlu0 0
        %3004 = vperm.xlu0 %3003, %v3001
        %v3005 = vpop.permute.xlu0 %3004
        %v3007 = vmul.f32 %v3005, %v2980
        %3008 = vset.pattern.permute.xlu0 1
        %3009 = vperm.xlu0 %3008, %v3001
        %v3010 = vpop.permute.xlu0 %3009
        %v3012 = vmul.f32 %v3010, %v2980
        %3013 = vset.pattern.permute.xlu0 2
        %3014 = vperm.xlu0 %3013, %v3001
        %v3015 = vpop.permute.xlu0 %3014
        %v3017 = vmul.f32 %v3015, %v2980
        %3018 = vset.pattern.permute.xlu0 3
        %3019 = vperm.xlu0 %3018, %v3001
        %v3020 = vpop.permute.xlu0 %3019
        %v3022 = vmul.f32 %v3020, %v2980
        %3024 = vrot.lane.b32.xlu0 %v3012, 4
        %v3025 = vpop.permute.xlu0 %3024
        %3028 = vrot.lane.b32.xlu0 %v3017, 8
        %v3029 = vpop.permute.xlu0 %3028
        %3032 = vrot.lane.b32.xlu0 %v3022, 12
        %v3033 = vpop.permute.xlu0 %3032
        %v3035 = vsel %vm926, %v3007, %v3025
        %v3036 = vsel %vm928, %v3035, %v3029
        %v3037 = vsel %vm930, %v3036, %v3033
        %3038 = vrot.lane.b32.xlu0 %v834, 98
        %v3039 = vpop.permute.xlu0 %3038
        %v3041 = vadd.f32 %v661, %v3039
        %v3042 = vmul.f32 %v3041, 2.0
        %v3043 = vsub.f32 %v3042, 1.0
        %v3044 = vadd.f32 %v3043, 1.0
        %v3045 = vmul.f32 %v3044, 4.0
        %v3046 = vsub.f32 %v3045, 1.0
        %v3047 = vmul.f32 %v3046, %v841
        %v3048 = vfloor.f32 %v3047
        %v3049 = vadd.f32 %v3048, 1.0
        %v3050 = vsub.f32 %v3047, %v3048
        %v3051 = vsub.f32 1.0, %v3050
        %3053 = vset.pattern.permute.xlu0 0
        %3054 = vperm.xlu0 %3053, %v3048
        %v3055 = vpop.permute.xlu0 %3054
        %vm3057 = vcmp.eq.f32.partialorder %v832, %v3055
        %3059 = vset.pattern.permute.xlu0 0
        %3060 = vperm.xlu0 %3059, %v3051
        %v3061 = vpop.permute.xlu0 %3060
        %v3063 = vsel %vm3057, %v3061, 0.0
        %3065 = vset.pattern.permute.xlu0 0
        %3066 = vperm.xlu0 %3065, %v3049
        %v3067 = vpop.permute.xlu0 %3066
        %vm3069 = vcmp.eq.f32.partialorder %v832, %v3067
        %3071 = vset.pattern.permute.xlu0 0
        %3072 = vperm.xlu0 %3071, %v3050
        %v3073 = vpop.permute.xlu0 %3072
        %v3075 = vsel %vm3069, %v3073, 0.0
        %v3076 = vadd.f32 %v3063, %v3075
        %3077 = vset.pattern.permute.xlu0 1
        %3078 = vperm.xlu0 %3077, %v3048
        %v3079 = vpop.permute.xlu0 %3078
        %vm3081 = vcmp.eq.f32.partialorder %v832, %v3079
        %3082 = vset.pattern.permute.xlu0 1
        %3083 = vperm.xlu0 %3082, %v3051
        %v3084 = vpop.permute.xlu0 %3083
        %v3086 = vsel %vm3081, %v3084, 0.0
        %3087 = vset.pattern.permute.xlu0 1
        %3088 = vperm.xlu0 %3087, %v3049
        %v3089 = vpop.permute.xlu0 %3088
        %vm3091 = vcmp.eq.f32.partialorder %v832, %v3089
        %3092 = vset.pattern.permute.xlu0 1
        %3093 = vperm.xlu0 %3092, %v3050
        %v3094 = vpop.permute.xlu0 %3093
        %v3096 = vsel %vm3091, %v3094, 0.0
        %v3097 = vadd.f32 %v3086, %v3096
        %3099 = vset.pattern.permute.xlu0 0
        %3100 = vperm.xlu0 %3099, %v3097
        %v3101 = vpop.permute.xlu0 %3100
        %v3103 = vmul.f32 %v3101, %v3076
        %3104 = vset.pattern.permute.xlu0 1
        %3105 = vperm.xlu0 %3104, %v3097
        %v3106 = vpop.permute.xlu0 %3105
        %v3108 = vmul.f32 %v3106, %v3076
        %3109 = vset.pattern.permute.xlu0 2
        %3110 = vperm.xlu0 %3109, %v3097
        %v3111 = vpop.permute.xlu0 %3110
        %v3113 = vmul.f32 %v3111, %v3076
        %3114 = vset.pattern.permute.xlu0 3
        %3115 = vperm.xlu0 %3114, %v3097
        %v3116 = vpop.permute.xlu0 %3115
        %v3118 = vmul.f32 %v3116, %v3076
        %3120 = vrot.lane.b32.xlu0 %v3108, 4
        %v3121 = vpop.permute.xlu0 %3120
        %3124 = vrot.lane.b32.xlu0 %v3113, 8
        %v3125 = vpop.permute.xlu0 %3124
        %3128 = vrot.lane.b32.xlu0 %v3118, 12
        %v3129 = vpop.permute.xlu0 %3128
        %v3131 = vsel %vm926, %v3103, %v3121
        %v3132 = vsel %vm928, %v3131, %v3125
        %v3133 = vsel %vm930, %v3132, %v3129
        %v3135 = vrot.slane %v2941, 7
        %v3138 = vrot.slane %v3037, 6
        %v3141 = vrot.slane %v3133, 5
        %v3143 = vsel %vm1230, %v2845, %v3135
        %v3144 = vsel %vm1232, %v3143, %v3138
        %v3145 = vsel %vm1234, %v3144, %v3141
        %3146 = vrot.lane.b32.xlu0 %v657, 104
        %v3147 = vpop.permute.xlu0 %3146
        %3148 = vrot.lane.b32.xlu0 %v658, 104
        %v3149 = vpop.permute.xlu0 %3148
        %v3153 = vsel %vm1236, %v3145, 0
        %3155 = vmatprep.subr.mxu0 0.0
        %3156 = vmatpush1.msra.mxu0 %v3147
        %3157 = vmatprep.subr.mxu0 0.0
        %3158 = vmatpush1.msra.mxu0 %v3149
        %3159 = vmatprep.subr.mxu0 0.0
        %3160 = vmatpush1.msra.mxu0 0.0
        %3161 = vmatprep.subr.mxu0 0.0
        %3162 = vmatpush1.msra.mxu0 0.0
        %3163 = vmatprep.subr.mxu0 0.0
        %3164 = vmatpush1.msra.mxu0 0.0
        %3165 = vmatprep.subr.mxu0 0.0
        %3166 = vmatpush1.msra.mxu0 0.0
        %3167 = vmatprep.subr.mxu0 0.0
        %3168 = vmatpush1.msra.mxu0 0.0
        %3169 = vmatprep.subr.mxu0 0.0
        %3170 = vmatpush1.msra.mxu0 0.0
        %3171 = vmatprep.subr.mxu0 0.0
        %3172 = vmatpush1.msra.mxu0 0.0
        %3173 = vmatprep.subr.mxu0 0.0
        %3174 = vmatpush1.msra.mxu0 0.0
        %3175 = vmatprep.subr.mxu0 0.0
        %3176 = vmatpush1.msra.mxu0 0.0
        %3177 = vmatprep.subr.mxu0 0.0
        %3178 = vmatpush1.msra.mxu0 0.0
        %3179 = vmatprep.subr.mxu0 0.0
        %3180 = vmatpush1.msra.mxu0 0.0
        %3181 = vmatprep.subr.mxu0 0.0
        %3182 = vmatpush1.msra.mxu0 0.0
        %3183 = vmatprep.subr.mxu0 0.0
        %3184 = vmatpush1.msra.mxu0 0.0
        %3185 = vmatprep.subr.mxu0 0.0
        %3186 = vmatpush1.msra.mxu0 0.0
        %3187 = vmatprep.subr.mxu0 0.0
        %3188 = vmatpush1.msra.mxu0 0.0
        %3189 = vmatprep.subr.mxu0 0.0
        %3190 = vmatpush1.msra.mxu0 0.0
        %3191 = vmatprep.subr.mxu0 0.0
        %3192 = vmatpush1.msra.mxu0 0.0
        %3193 = vmatprep.subr.mxu0 0.0
        %3194 = vmatpush1.msra.mxu0 0.0
        %3195 = vmatprep.subr.mxu0 0.0
        %3196 = vmatpush1.msra.mxu0 0.0
        %3197 = vmatprep.subr.mxu0 0.0
        %3198 = vmatpush1.msra.mxu0 0.0
        %3199 = vmatprep.subr.mxu0 0.0
        %3200 = vmatpush1.msra.mxu0 0.0
        %3201 = vmatprep.subr.mxu0 0.0
        %3202 = vmatpush1.msra.mxu0 0.0
        %3203 = vmatprep.subr.mxu0 0.0
        %3204 = vmatpush1.msra.mxu0 0.0
        %3205 = vmatprep.subr.mxu0 0.0
        %3206 = vmatpush1.msra.mxu0 0.0
        %3207 = vmatprep.subr.mxu0 0.0
        %3208 = vmatpush1.msra.mxu0 0.0
        %3209 = vmatprep.subr.mxu0 0.0
        %3210 = vmatpush1.msra.mxu0 0.0
        %3211 = vmatprep.subr.mxu0 0.0
        %3212 = vmatpush1.msra.mxu0 0.0
        %3213 = vmatprep.subr.mxu0 0.0
        %3214 = vmatpush1.msra.mxu0 0.0
        %3215 = vmatprep.subr.mxu0 0.0
        %3216 = vmatpush1.msra.mxu0 0.0
        %3217 = vmatprep.subr.mxu0 0.0
        %3218 = vmatpush1.msra.mxu0 0.0
        %3219 = vmatprep.mubr.f32.mxu0 0.0
        %3220 = vmatmul.mubr.f32.gmra.mrb[0].mxu0 %v3153
        %v3221 = vpop.f32.mrb[0].mxu0
        %v3222 = vadd.f32 0.0, %v3221
        %v3223 = vpop.f32.mrb[0].mxu0
        %3224 = vdwg.mxu0
        %v3226 = vsel %vm928, %v3222, 0
        %3228 = vmatprep.subr.mxu0 0.0
        %3229 = vmatpush1.msra.mxu0 %v662
        %3230 = vmatprep.subr.mxu0 0.0
        %3231 = vmatpush1.msra.mxu0 0.0
        %3232 = vmatprep.subr.mxu0 0.0
        %3233 = vmatpush1.msra.mxu0 0.0
        %3234 = vmatprep.subr.mxu0 0.0
        %3235 = vmatpush1.msra.mxu0 0.0
        %3236 = vmatprep.subr.mxu0 0.0
        %3237 = vmatpush1.msra.mxu0 0.0
        %3238 = vmatprep.subr.mxu0 0.0
        %3239 = vmatpush1.msra.mxu0 0.0
        %3240 = vmatprep.subr.mxu0 0.0
        %3241 = vmatpush1.msra.mxu0 0.0
        %3242 = vmatprep.subr.mxu0 0.0
        %3243 = vmatpush1.msra.mxu0 0.0
        %3244 = vmatprep.subr.mxu0 0.0
        %3245 = vmatpush1.msra.mxu0 0.0
        %3246 = vmatprep.subr.mxu0 0.0
        %3247 = vmatpush1.msra.mxu0 0.0
        %3248 = vmatprep.subr.mxu0 0.0
        %3249 = vmatpush1.msra.mxu0 0.0
        %3250 = vmatprep.subr.mxu0 0.0
        %3251 = vmatpush1.msra.mxu0 0.0
        %3252 = vmatprep.subr.mxu0 0.0
        %3253 = vmatpush1.msra.mxu0 0.0
        %3254 = vmatprep.subr.mxu0 0.0
        %3255 = vmatpush1.msra.mxu0 0.0
        %3256 = vmatprep.subr.mxu0 0.0
        %3257 = vmatpush1.msra.mxu0 0.0
        %3258 = vmatprep.subr.mxu0 0.0
        %3259 = vmatpush1.msra.mxu0 0.0
        %3260 = vmatprep.subr.mxu0 0.0
        %3261 = vmatpush1.msra.mxu0 0.0
        %3262 = vmatprep.subr.mxu0 0.0
        %3263 = vmatpush1.msra.mxu0 0.0
        %3264 = vmatprep.subr.mxu0 0.0
        %3265 = vmatpush1.msra.mxu0 0.0
        %3266 = vmatprep.subr.mxu0 0.0
        %3267 = vmatpush1.msra.mxu0 0.0
        %3268 = vmatprep.subr.mxu0 0.0
        %3269 = vmatpush1.msra.mxu0 0.0
        %3270 = vmatprep.subr.mxu0 0.0
        %3271 = vmatpush1.msra.mxu0 0.0
        %3272 = vmatprep.subr.mxu0 0.0
        %3273 = vmatpush1.msra.mxu0 0.0
        %3274 = vmatprep.subr.mxu0 0.0
        %3275 = vmatpush1.msra.mxu0 0.0
        %3276 = vmatprep.subr.mxu0 0.0
        %3277 = vmatpush1.msra.mxu0 0.0
        %3278 = vmatprep.subr.mxu0 0.0
        %3279 = vmatpush1.msra.mxu0 0.0
        %3280 = vmatprep.subr.mxu0 0.0
        %3281 = vmatpush1.msra.mxu0 0.0
        %3282 = vmatprep.subr.mxu0 0.0
        %3283 = vmatpush1.msra.mxu0 0.0
        %3284 = vmatprep.subr.mxu0 0.0
        %3285 = vmatpush1.msra.mxu0 0.0
        %3286 = vmatprep.subr.mxu0 0.0
        %3287 = vmatpush1.msra.mxu0 0.0
        %3288 = vmatprep.subr.mxu0 0.0
        %3289 = vmatpush1.msra.mxu0 0.0
        %3290 = vmatprep.subr.mxu0 0.0
        %3291 = vmatpush1.msra.mxu0 0.0
        %3292 = vmatprep.mubr.f32.mxu0 0.0
        %3293 = vmatmul.mubr.f32.gmra.mrb[0].mxu0 %v3226
        %v3294 = vpop.f32.mrb[0].mxu0
        %v3295 = vadd.f32 %v1314, %v3294
        %v3296 = vpop.f32.mrb[0].mxu0
        %3297 = vdwg.mxu0
        %3298 = vrot.lane.b32.xlu0 %v746, 104
        %v3299 = vpop.permute.xlu0 %3298
        %v3300 = vsel %vm928, %v3299, 0
        %v3303 = vsel %vm928, %v3295, 0
        %3305 = vmatprep.subr.mxu0 0.0
        %3306 = vmatpush1.xpose.msra.mxu0 %v3303
        %3307 = vmatprep.subr.mxu0 0.0
        %3308 = vmatpush1.xpose.msra.mxu0 0.0
        %3309 = vmatprep.subr.mxu0 0.0
        %3310 = vmatpush1.xpose.msra.mxu0 0.0
        %3311 = vmatprep.subr.mxu0 0.0
        %3312 = vmatpush1.xpose.msra.mxu0 0.0
        %3313 = vmatprep.subr.mxu0 0.0
        %3314 = vmatpush1.xpose.msra.mxu0 0.0
        %3315 = vmatprep.subr.mxu0 0.0
        %3316 = vmatpush1.xpose.msra.mxu0 0.0
        %3317 = vmatprep.subr.mxu0 0.0
        %3318 = vmatpush1.xpose.msra.mxu0 0.0
        %3319 = vmatprep.subr.mxu0 0.0
        %3320 = vmatpush1.xpose.msra.mxu0 0.0
        %3321 = vmatprep.subr.mxu0 0.0
        %3322 = vmatpush1.xpose.msra.mxu0 0.0
        %3323 = vmatprep.subr.mxu0 0.0
        %3324 = vmatpush1.xpose.msra.mxu0 0.0
        %3325 = vmatprep.subr.mxu0 0.0
        %3326 = vmatpush1.xpose.msra.mxu0 0.0
        %3327 = vmatprep.subr.mxu0 0.0
        %3328 = vmatpush1.xpose.msra.mxu0 0.0
        %3329 = vmatprep.subr.mxu0 0.0
        %3330 = vmatpush1.xpose.msra.mxu0 0.0
        %3331 = vmatprep.subr.mxu0 0.0
        %3332 = vmatpush1.xpose.msra.mxu0 0.0
        %3333 = vmatprep.subr.mxu0 0.0
        %3334 = vmatpush1.xpose.msra.mxu0 0.0
        %3335 = vmatprep.subr.mxu0 0.0
        %3336 = vmatpush1.xpose.msra.mxu0 0.0
        %3337 = vmatprep.subr.mxu0 0.0
        %3338 = vmatpush1.xpose.msra.mxu0 0.0
        %3339 = vmatprep.subr.mxu0 0.0
        %3340 = vmatpush1.xpose.msra.mxu0 0.0
        %3341 = vmatprep.subr.mxu0 0.0
        %3342 = vmatpush1.xpose.msra.mxu0 0.0
        %3343 = vmatprep.subr.mxu0 0.0
        %3344 = vmatpush1.xpose.msra.mxu0 0.0
        %3345 = vmatprep.subr.mxu0 0.0
        %3346 = vmatpush1.xpose.msra.mxu0 0.0
        %3347 = vmatprep.subr.mxu0 0.0
        %3348 = vmatpush1.xpose.msra.mxu0 0.0
        %3349 = vmatprep.subr.mxu0 0.0
        %3350 = vmatpush1.xpose.msra.mxu0 0.0
        %3351 = vmatprep.subr.mxu0 0.0
        %3352 = vmatpush1.xpose.msra.mxu0 0.0
        %3353 = vmatprep.subr.mxu0 0.0
        %3354 = vmatpush1.xpose.msra.mxu0 0.0
        %3355 = vmatprep.subr.mxu0 0.0
        %3356 = vmatpush1.xpose.msra.mxu0 0.0
        %3357 = vmatprep.subr.mxu0 0.0
        %3358 = vmatpush1.xpose.msra.mxu0 0.0
        %3359 = vmatprep.subr.mxu0 0.0
        %3360 = vmatpush1.xpose.msra.mxu0 0.0
        %3361 = vmatprep.subr.mxu0 0.0
        %3362 = vmatpush1.xpose.msra.mxu0 0.0
        %3363 = vmatprep.subr.mxu0 0.0
        %3364 = vmatpush1.xpose.msra.mxu0 0.0
        %3365 = vmatprep.subr.mxu0 0.0
        %3366 = vmatpush1.xpose.msra.mxu0 0.0
        %3367 = vmatprep.subr.mxu0 0.0
        %3368 = vmatpush1.xpose.msra.mxu0 0.0
        %3369 = vmatprep.mubr.f32.mxu0 0.0
        %3370 = vmatmul.mubr.f32.gmra.mrb[0].mxu0 %v3300
        %v3371 = vpop.f32.mrb[0].mxu0
        %v3372 = vadd.f32 0.0, %v3371
        %v3373 = vpop.f32.mrb[0].mxu0
        %3374 = vdwg.mxu0
        %v3375 = vsel %vm926, %v3372, -inf
        %3376 = vmax.xlane.f32.xlu0 %v3375
        %v3377 = vpop.xlane.xlu0 %3376
        %v3378 = vsub.f32 %v3372, %v3377
        %v3379 = vmul.f32 %v3378, 1.442695
        %v3380 = vpow.pop %v3379
        %v3381 = vsel %vm926, %v3380, 0.0
        %3382 = vadd.xlane.f32.xlu0 %v3381
        %v3383 = vpop.xlane.xlu0 %3382
        %v3384 = vrcp.pop %v3383
        %v3385 = vmul.f32 %v3380, %v3384
        %3387 = vrot.lane.b32.xlu0 %v1475, 1
        %v3388 = vpop.permute.xlu0 %3387
        %v3390 = vmul.f32 %v846, %v3388
        %v3391 = vmul.f32 %v845, %v3388
        %3393 = vset.pattern.permute.xlu0 1
        %3394 = vperm.xlu0 %3393, %v3390
        %v3395 = vpop.permute.xlu0 %3394
        %v3397 = vsel %vm876, %v3395, 0.0
        %3399 = vset.pattern.permute.xlu0 1
        %3400 = vperm.xlu0 %3399, %v3391
        %v3401 = vpop.permute.xlu0 %3400
        %v3403 = vsel %vm886, %v3401, 0.0
        %v3404 = vadd.f32 %v3397, %v3403
        %3406 = vset.pattern.permute.xlu0 0
        %3407 = vperm.xlu0 %3406, %v3404
        %v3408 = vpop.permute.xlu0 %3407
        %v3410 = vmul.f32 %v3408, %v871
        %3411 = vset.pattern.permute.xlu0 1
        %3412 = vperm.xlu0 %3411, %v3404
        %v3413 = vpop.permute.xlu0 %3412
        %v3415 = vmul.f32 %v3413, %v871
        %3416 = vset.pattern.permute.xlu0 2
        %3417 = vperm.xlu0 %3416, %v3404
        %v3418 = vpop.permute.xlu0 %3417
        %v3420 = vmul.f32 %v3418, %v871
        %3421 = vset.pattern.permute.xlu0 3
        %3422 = vperm.xlu0 %3421, %v3404
        %v3423 = vpop.permute.xlu0 %3422
        %v3425 = vmul.f32 %v3423, %v871
        %3427 = vrot.lane.b32.xlu0 %v3415, 4
        %v3428 = vpop.permute.xlu0 %3427
        %3431 = vrot.lane.b32.xlu0 %v3420, 8
        %v3432 = vpop.permute.xlu0 %3431
        %3435 = vrot.lane.b32.xlu0 %v3425, 12
        %v3436 = vpop.permute.xlu0 %3435
        %v3438 = vsel %vm926, %v3410, %v3428
        %v3439 = vsel %vm928, %v3438, %v3432
        %v3440 = vsel %vm930, %v3439, %v3436
        %v3441 = vmul.f32 %v946, %v1475
        %v3442 = vmul.f32 %v945, %v1475
        %3444 = vset.pattern.permute.xlu0 1
        %3445 = vperm.xlu0 %3444, %v3441
        %v3446 = vpop.permute.xlu0 %3445
        %v3448 = vsel %vm976, %v3446, 0.0
        %3450 = vset.pattern.permute.xlu0 1
        %3451 = vperm.xlu0 %3450, %v3442
        %v3452 = vpop.permute.xlu0 %3451
        %v3454 = vsel %vm986, %v3452, 0.0
        %v3455 = vadd.f32 %v3448, %v3454
        %3457 = vset.pattern.permute.xlu0 0
        %3458 = vperm.xlu0 %3457, %v3455
        %v3459 = vpop.permute.xlu0 %3458
        %v3461 = vmul.f32 %v3459, %v971
        %3462 = vset.pattern.permute.xlu0 1
        %3463 = vperm.xlu0 %3462, %v3455
        %v3464 = vpop.permute.xlu0 %3463
        %v3466 = vmul.f32 %v3464, %v971
        %3467 = vset.pattern.permute.xlu0 2
        %3468 = vperm.xlu0 %3467, %v3455
        %v3469 = vpop.permute.xlu0 %3468
        %v3471 = vmul.f32 %v3469, %v971
        %3472 = vset.pattern.permute.xlu0 3
        %3473 = vperm.xlu0 %3472, %v3455
        %v3474 = vpop.permute.xlu0 %3473
        %v3476 = vmul.f32 %v3474, %v971
        %3478 = vrot.lane.b32.xlu0 %v3466, 4
        %v3479 = vpop.permute.xlu0 %3478
        %3482 = vrot.lane.b32.xlu0 %v3471, 8
        %v3483 = vpop.permute.xlu0 %3482
        %3486 = vrot.lane.b32.xlu0 %v3476, 12
        %v3487 = vpop.permute.xlu0 %3486
        %v3489 = vsel %vm926, %v3461, %v3479
        %v3490 = vsel %vm928, %v3489, %v3483
        %v3491 = vsel %vm930, %v3490, %v3487
        %v3492 = vadd.f32 %v3440, %v3491
        %3493 = vrot.lane.b32.xlu0 %v1475, 127
        %v3494 = vpop.permute.xlu0 %3493
        %v3496 = vmul.f32 %v1042, %v3494
        %v3497 = vmul.f32 %v1041, %v3494
        %3499 = vset.pattern.permute.xlu0 1
        %3500 = vperm.xlu0 %3499, %v3496
        %v3501 = vpop.permute.xlu0 %3500
        %v3503 = vsel %vm1072, %v3501, 0.0
        %3505 = vset.pattern.permute.xlu0 1
        %3506 = vperm.xlu0 %3505, %v3497
        %v3507 = vpop.permute.xlu0 %3506
        %v3509 = vsel %vm1082, %v3507, 0.0
        %v3510 = vadd.f32 %v3503, %v3509
        %3512 = vset.pattern.permute.xlu0 0
        %3513 = vperm.xlu0 %3512, %v3510
        %v3514 = vpop.permute.xlu0 %3513
        %v3516 = vmul.f32 %v3514, %v1067
        %3517 = vset.pattern.permute.xlu0 1
        %3518 = vperm.xlu0 %3517, %v3510
        %v3519 = vpop.permute.xlu0 %3518
        %v3521 = vmul.f32 %v3519, %v1067
        %3522 = vset.pattern.permute.xlu0 2
        %3523 = vperm.xlu0 %3522, %v3510
        %v3524 = vpop.permute.xlu0 %3523
        %v3526 = vmul.f32 %v3524, %v1067
        %3527 = vset.pattern.permute.xlu0 3
        %3528 = vperm.xlu0 %3527, %v3510
        %v3529 = vpop.permute.xlu0 %3528
        %v3531 = vmul.f32 %v3529, %v1067
        %3533 = vrot.lane.b32.xlu0 %v3521, 4
        %v3534 = vpop.permute.xlu0 %3533
        %3537 = vrot.lane.b32.xlu0 %v3526, 8
        %v3538 = vpop.permute.xlu0 %3537
        %3541 = vrot.lane.b32.xlu0 %v3531, 12
        %v3542 = vpop.permute.xlu0 %3541
        %v3544 = vsel %vm926, %v3516, %v3534
        %v3545 = vsel %vm928, %v3544, %v3538
        %v3546 = vsel %vm930, %v3545, %v3542
        %v3547 = vadd.f32 %v3492, %v3546
        %3548 = vrot.lane.b32.xlu0 %v1475, 126
        %v3549 = vpop.permute.xlu0 %3548
        %v3551 = vmul.f32 %v1138, %v3549
        %v3552 = vmul.f32 %v1137, %v3549
        %3554 = vset.pattern.permute.xlu0 1
        %3555 = vperm.xlu0 %3554, %v3551
        %v3556 = vpop.permute.xlu0 %3555
        %v3558 = vsel %vm1168, %v3556, 0.0
        %3560 = vset.pattern.permute.xlu0 1
        %3561 = vperm.xlu0 %3560, %v3552
        %v3562 = vpop.permute.xlu0 %3561
        %v3564 = vsel %vm1178, %v3562, 0.0
        %v3565 = vadd.f32 %v3558, %v3564
        %3567 = vset.pattern.permute.xlu0 0
        %3568 = vperm.xlu0 %3567, %v3565
        %v3569 = vpop.permute.xlu0 %3568
        %v3571 = vmul.f32 %v3569, %v1163
        %3572 = vset.pattern.permute.xlu0 1
        %3573 = vperm.xlu0 %3572, %v3565
        %v3574 = vpop.permute.xlu0 %3573
        %v3576 = vmul.f32 %v3574, %v1163
        %3577 = vset.pattern.permute.xlu0 2
        %3578 = vperm.xlu0 %3577, %v3565
        %v3579 = vpop.permute.xlu0 %3578
        %v3581 = vmul.f32 %v3579, %v1163
        %3582 = vset.pattern.permute.xlu0 3
        %3583 = vperm.xlu0 %3582, %v3565
        %v3584 = vpop.permute.xlu0 %3583
        %v3586 = vmul.f32 %v3584, %v1163
        %3588 = vrot.lane.b32.xlu0 %v3576, 4
        %v3589 = vpop.permute.xlu0 %3588
        %3592 = vrot.lane.b32.xlu0 %v3581, 8
        %v3593 = vpop.permute.xlu0 %3592
        %3596 = vrot.lane.b32.xlu0 %v3586, 12
        %v3597 = vpop.permute.xlu0 %3596
        %v3599 = vsel %vm926, %v3571, %v3589
        %v3600 = vsel %vm928, %v3599, %v3593
        %v3601 = vsel %vm930, %v3600, %v3597
        %v3602 = vadd.f32 %v3547, %v3601
        %3604 = vrot.lane.b32.xlu0 %v2113, 1
        %v3605 = vpop.permute.xlu0 %3604
        %v3607 = vmul.f32 %v1489, %v3605
        %v3608 = vmul.f32 %v1488, %v3605
        %3610 = vset.pattern.permute.xlu0 1
        %3611 = vperm.xlu0 %3610, %v3607
        %v3612 = vpop.permute.xlu0 %3611
        %v3614 = vsel %vm1519, %v3612, 0.0
        %3616 = vset.pattern.permute.xlu0 1
        %3617 = vperm.xlu0 %3616, %v3608
        %v3618 = vpop.permute.xlu0 %3617
        %v3620 = vsel %vm1529, %v3618, 0.0
        %v3621 = vadd.f32 %v3614, %v3620
        %3623 = vset.pattern.permute.xlu0 0
        %3624 = vperm.xlu0 %3623, %v3621
        %v3625 = vpop.permute.xlu0 %3624
        %v3627 = vmul.f32 %v3625, %v1514
        %3628 = vset.pattern.permute.xlu0 1
        %3629 = vperm.xlu0 %3628, %v3621
        %v3630 = vpop.permute.xlu0 %3629
        %v3632 = vmul.f32 %v3630, %v1514
        %3633 = vset.pattern.permute.xlu0 2
        %3634 = vperm.xlu0 %3633, %v3621
        %v3635 = vpop.permute.xlu0 %3634
        %v3637 = vmul.f32 %v3635, %v1514
        %3638 = vset.pattern.permute.xlu0 3
        %3639 = vperm.xlu0 %3638, %v3621
        %v3640 = vpop.permute.xlu0 %3639
        %v3642 = vmul.f32 %v3640, %v1514
        %3644 = vrot.lane.b32.xlu0 %v3632, 4
        %v3645 = vpop.permute.xlu0 %3644
        %3648 = vrot.lane.b32.xlu0 %v3637, 8
        %v3649 = vpop.permute.xlu0 %3648
        %3652 = vrot.lane.b32.xlu0 %v3642, 12
        %v3653 = vpop.permute.xlu0 %3652
        %v3655 = vsel %vm926, %v3627, %v3645
        %v3656 = vsel %vm928, %v3655, %v3649
        %v3657 = vsel %vm930, %v3656, %v3653
        %v3658 = vmul.f32 %v1585, %v2113
        %v3659 = vmul.f32 %v1584, %v2113
        %3661 = vset.pattern.permute.xlu0 1
        %3662 = vperm.xlu0 %3661, %v3658
        %v3663 = vpop.permute.xlu0 %3662
        %v3665 = vsel %vm1615, %v3663, 0.0
        %3667 = vset.pattern.permute.xlu0 1
        %3668 = vperm.xlu0 %3667, %v3659
        %v3669 = vpop.permute.xlu0 %3668
        %v3671 = vsel %vm1625, %v3669, 0.0
        %v3672 = vadd.f32 %v3665, %v3671
        %3674 = vset.pattern.permute.xlu0 0
        %3675 = vperm.xlu0 %3674, %v3672
        %v3676 = vpop.permute.xlu0 %3675
        %v3678 = vmul.f32 %v3676, %v1610
        %3679 = vset.pattern.permute.xlu0 1
        %3680 = vperm.xlu0 %3679, %v3672
        %v3681 = vpop.permute.xlu0 %3680
        %v3683 = vmul.f32 %v3681, %v1610
        %3684 = vset.pattern.permute.xlu0 2
        %3685 = vperm.xlu0 %3684, %v3672
        %v3686 = vpop.permute.xlu0 %3685
        %v3688 = vmul.f32 %v3686, %v1610
        %3689 = vset.pattern.permute.xlu0 3
        %3690 = vperm.xlu0 %3689, %v3672
        %v3691 = vpop.permute.xlu0 %3690
        %v3693 = vmul.f32 %v3691, %v1610
        %3695 = vrot.lane.b32.xlu0 %v3683, 4
        %v3696 = vpop.permute.xlu0 %3695
        %3699 = vrot.lane.b32.xlu0 %v3688, 8
        %v3700 = vpop.permute.xlu0 %3699
        %3703 = vrot.lane.b32.xlu0 %v3693, 12
        %v3704 = vpop.permute.xlu0 %3703
        %v3706 = vsel %vm926, %v3678, %v3696
        %v3707 = vsel %vm928, %v3706, %v3700
        %v3708 = vsel %vm930, %v3707, %v3704
        %v3709 = vadd.f32 %v3657, %v3708
        %3710 = vrot.lane.b32.xlu0 %v2113, 127
        %v3711 = vpop.permute.xlu0 %3710
        %v3713 = vmul.f32 %v1681, %v3711
        %v3714 = vmul.f32 %v1680, %v3711
        %3716 = vset.pattern.permute.xlu0 1
        %3717 = vperm.xlu0 %3716, %v3713
        %v3718 = vpop.permute.xlu0 %3717
        %v3720 = vsel %vm1711, %v3718, 0.0
        %3722 = vset.pattern.permute.xlu0 1
        %3723 = vperm.xlu0 %3722, %v3714
        %v3724 = vpop.permute.xlu0 %3723
        %v3726 = vsel %vm1721, %v3724, 0.0
        %v3727 = vadd.f32 %v3720, %v3726
        %3729 = vset.pattern.permute.xlu0 0
        %3730 = vperm.xlu0 %3729, %v3727
        %v3731 = vpop.permute.xlu0 %3730
        %v3733 = vmul.f32 %v3731, %v1706
        %3734 = vset.pattern.permute.xlu0 1
        %3735 = vperm.xlu0 %3734, %v3727
        %v3736 = vpop.permute.xlu0 %3735
        %v3738 = vmul.f32 %v3736, %v1706
        %3739 = vset.pattern.permute.xlu0 2
        %3740 = vperm.xlu0 %3739, %v3727
        %v3741 = vpop.permute.xlu0 %3740
        %v3743 = vmul.f32 %v3741, %v1706
        %3744 = vset.pattern.permute.xlu0 3
        %3745 = vperm.xlu0 %3744, %v3727
        %v3746 = vpop.permute.xlu0 %3745
        %v3748 = vmul.f32 %v3746, %v1706
        %3750 = vrot.lane.b32.xlu0 %v3738, 4
        %v3751 = vpop.permute.xlu0 %3750
        %3754 = vrot.lane.b32.xlu0 %v3743, 8
        %v3755 = vpop.permute.xlu0 %3754
        %3758 = vrot.lane.b32.xlu0 %v3748, 12
        %v3759 = vpop.permute.xlu0 %3758
        %v3761 = vsel %vm926, %v3733, %v3751
        %v3762 = vsel %vm928, %v3761, %v3755
        %v3763 = vsel %vm930, %v3762, %v3759
        %v3764 = vadd.f32 %v3709, %v3763
        %3765 = vrot.lane.b32.xlu0 %v2113, 126
        %v3766 = vpop.permute.xlu0 %3765
        %v3768 = vmul.f32 %v1777, %v3766
        %v3769 = vmul.f32 %v1776, %v3766
        %3771 = vset.pattern.permute.xlu0 1
        %3772 = vperm.xlu0 %3771, %v3768
        %v3773 = vpop.permute.xlu0 %3772
        %v3775 = vsel %vm1807, %v3773, 0.0
        %3777 = vset.pattern.permute.xlu0 1
        %3778 = vperm.xlu0 %3777, %v3769
        %v3779 = vpop.permute.xlu0 %3778
        %v3781 = vsel %vm1817, %v3779, 0.0
        %v3782 = vadd.f32 %v3775, %v3781
        %3784 = vset.pattern.permute.xlu0 0
        %3785 = vperm.xlu0 %3784, %v3782
        %v3786 = vpop.permute.xlu0 %3785
        %v3788 = vmul.f32 %v3786, %v1802
        %3789 = vset.pattern.permute.xlu0 1
        %3790 = vperm.xlu0 %3789, %v3782
        %v3791 = vpop.permute.xlu0 %3790
        %v3793 = vmul.f32 %v3791, %v1802
        %3794 = vset.pattern.permute.xlu0 2
        %3795 = vperm.xlu0 %3794, %v3782
        %v3796 = vpop.permute.xlu0 %3795
        %v3798 = vmul.f32 %v3796, %v1802
        %3799 = vset.pattern.permute.xlu0 3
        %3800 = vperm.xlu0 %3799, %v3782
        %v3801 = vpop.permute.xlu0 %3800
        %v3803 = vmul.f32 %v3801, %v1802
        %3805 = vrot.lane.b32.xlu0 %v3793, 4
        %v3806 = vpop.permute.xlu0 %3805
        %3809 = vrot.lane.b32.xlu0 %v3798, 8
        %v3810 = vpop.permute.xlu0 %3809
        %3813 = vrot.lane.b32.xlu0 %v3803, 12
        %v3814 = vpop.permute.xlu0 %3813
        %v3816 = vsel %vm926, %v3788, %v3806
        %v3817 = vsel %vm928, %v3816, %v3810
        %v3818 = vsel %vm930, %v3817, %v3814
        %v3819 = vadd.f32 %v3764, %v3818
        %3821 = vrot.lane.b32.xlu0 %v2749, 1
        %v3822 = vpop.permute.xlu0 %3821
        %v3824 = vmul.f32 %v2127, %v3822
        %v3825 = vmul.f32 %v2126, %v3822
        %3827 = vset.pattern.permute.xlu0 1
        %3828 = vperm.xlu0 %3827, %v3824
        %v3829 = vpop.permute.xlu0 %3828
        %v3831 = vsel %vm2157, %v3829, 0.0
        %3833 = vset.pattern.permute.xlu0 1
        %3834 = vperm.xlu0 %3833, %v3825
        %v3835 = vpop.permute.xlu0 %3834
        %v3837 = vsel %vm2167, %v3835, 0.0
        %v3838 = vadd.f32 %v3831, %v3837
        %3840 = vset.pattern.permute.xlu0 0
        %3841 = vperm.xlu0 %3840, %v3838
        %v3842 = vpop.permute.xlu0 %3841
        %v3844 = vmul.f32 %v3842, %v2152
        %3845 = vset.pattern.permute.xlu0 1
        %3846 = vperm.xlu0 %3845, %v3838
        %v3847 = vpop.permute.xlu0 %3846
        %v3849 = vmul.f32 %v3847, %v2152
        %3850 = vset.pattern.permute.xlu0 2
        %3851 = vperm.xlu0 %3850, %v3838
        %v3852 = vpop.permute.xlu0 %3851
        %v3854 = vmul.f32 %v3852, %v2152
        %3855 = vset.pattern.permute.xlu0 3
        %3856 = vperm.xlu0 %3855, %v3838
        %v3857 = vpop.permute.xlu0 %3856
        %v3859 = vmul.f32 %v3857, %v2152
        %3861 = vrot.lane.b32.xlu0 %v3849, 4
        %v3862 = vpop.permute.xlu0 %3861
        %3865 = vrot.lane.b32.xlu0 %v3854, 8
        %v3866 = vpop.permute.xlu0 %3865
        %3869 = vrot.lane.b32.xlu0 %v3859, 12
        %v3870 = vpop.permute.xlu0 %3869
        %v3872 = vsel %vm926, %v3844, %v3862
        %v3873 = vsel %vm928, %v3872, %v3866
        %v3874 = vsel %vm930, %v3873, %v3870
        %v3875 = vmul.f32 %v2223, %v2749
        %v3876 = vmul.f32 %v2222, %v2749
        %3878 = vset.pattern.permute.xlu0 1
        %3879 = vperm.xlu0 %3878, %v3875
        %v3880 = vpop.permute.xlu0 %3879
        %v3882 = vsel %vm2253, %v3880, 0.0
        %3884 = vset.pattern.permute.xlu0 1
        %3885 = vperm.xlu0 %3884, %v3876
        %v3886 = vpop.permute.xlu0 %3885
        %v3888 = vsel %vm2263, %v3886, 0.0
        %v3889 = vadd.f32 %v3882, %v3888
        %3891 = vset.pattern.permute.xlu0 0
        %3892 = vperm.xlu0 %3891, %v3889
        %v3893 = vpop.permute.xlu0 %3892
        %v3895 = vmul.f32 %v3893, %v2248
        %3896 = vset.pattern.permute.xlu0 1
        %3897 = vperm.xlu0 %3896, %v3889
        %v3898 = vpop.permute.xlu0 %3897
        %v3900 = vmul.f32 %v3898, %v2248
        %3901 = vset.pattern.permute.xlu0 2
        %3902 = vperm.xlu0 %3901, %v3889
        %v3903 = vpop.permute.xlu0 %3902
        %v3905 = vmul.f32 %v3903, %v2248
        %3906 = vset.pattern.permute.xlu0 3
        %3907 = vperm.xlu0 %3906, %v3889
        %v3908 = vpop.permute.xlu0 %3907
        %v3910 = vmul.f32 %v3908, %v2248
        %3912 = vrot.lane.b32.xlu0 %v3900, 4
        %v3913 = vpop.permute.xlu0 %3912
        %3916 = vrot.lane.b32.xlu0 %v3905, 8
        %v3917 = vpop.permute.xlu0 %3916
        %3920 = vrot.lane.b32.xlu0 %v3910, 12
        %v3921 = vpop.permute.xlu0 %3920
        %v3923 = vsel %vm926, %v3895, %v3913
        %v3924 = vsel %vm928, %v3923, %v3917
        %v3925 = vsel %vm930, %v3924, %v3921
        %v3926 = vadd.f32 %v3874, %v3925
        %3927 = vrot.lane.b32.xlu0 %v2749, 127
        %v3928 = vpop.permute.xlu0 %3927
        %v3930 = vmul.f32 %v2319, %v3928
        %v3931 = vmul.f32 %v2318, %v3928
        %3933 = vset.pattern.permute.xlu0 1
        %3934 = vperm.xlu0 %3933, %v3930
        %v3935 = vpop.permute.xlu0 %3934
        %v3937 = vsel %vm2349, %v3935, 0.0
        %3939 = vset.pattern.permute.xlu0 1
        %3940 = vperm.xlu0 %3939, %v3931
        %v3941 = vpop.permute.xlu0 %3940
        %v3943 = vsel %vm2359, %v3941, 0.0
        %v3944 = vadd.f32 %v3937, %v3943
        %3946 = vset.pattern.permute.xlu0 0
        %3947 = vperm.xlu0 %3946, %v3944
        %v3948 = vpop.permute.xlu0 %3947
        %v3950 = vmul.f32 %v3948, %v2344
        %3951 = vset.pattern.permute.xlu0 1
        %3952 = vperm.xlu0 %3951, %v3944
        %v3953 = vpop.permute.xlu0 %3952
        %v3955 = vmul.f32 %v3953, %v2344
        %3956 = vset.pattern.permute.xlu0 2
        %3957 = vperm.xlu0 %3956, %v3944
        %v3958 = vpop.permute.xlu0 %3957
        %v3960 = vmul.f32 %v3958, %v2344
        %3961 = vset.pattern.permute.xlu0 3
        %3962 = vperm.xlu0 %3961, %v3944
        %v3963 = vpop.permute.xlu0 %3962
        %v3965 = vmul.f32 %v3963, %v2344
        %3967 = vrot.lane.b32.xlu0 %v3955, 4
        %v3968 = vpop.permute.xlu0 %3967
        %3971 = vrot.lane.b32.xlu0 %v3960, 8
        %v3972 = vpop.permute.xlu0 %3971
        %3975 = vrot.lane.b32.xlu0 %v3965, 12
        %v3976 = vpop.permute.xlu0 %3975
        %v3978 = vsel %vm926, %v3950, %v3968
        %v3979 = vsel %vm928, %v3978, %v3972
        %v3980 = vsel %vm930, %v3979, %v3976
        %v3981 = vadd.f32 %v3926, %v3980
        %3982 = vrot.lane.b32.xlu0 %v2749, 126
        %v3983 = vpop.permute.xlu0 %3982
        %v3985 = vmul.f32 %v2415, %v3983
        %v3986 = vmul.f32 %v2414, %v3983
        %3988 = vset.pattern.permute.xlu0 1
        %3989 = vperm.xlu0 %3988, %v3985
        %v3990 = vpop.permute.xlu0 %3989
        %v3992 = vsel %vm2445, %v3990, 0.0
        %3994 = vset.pattern.permute.xlu0 1
        %3995 = vperm.xlu0 %3994, %v3986
        %v3996 = vpop.permute.xlu0 %3995
        %v3998 = vsel %vm2455, %v3996, 0.0
        %v3999 = vadd.f32 %v3992, %v3998
        %4001 = vset.pattern.permute.xlu0 0
        %4002 = vperm.xlu0 %4001, %v3999
        %v4003 = vpop.permute.xlu0 %4002
        %v4005 = vmul.f32 %v4003, %v2440
        %4006 = vset.pattern.permute.xlu0 1
        %4007 = vperm.xlu0 %4006, %v3999
        %v4008 = vpop.permute.xlu0 %4007
        %v4010 = vmul.f32 %v4008, %v2440
        %4011 = vset.pattern.permute.xlu0 2
        %4012 = vperm.xlu0 %4011, %v3999
        %v4013 = vpop.permute.xlu0 %4012
        %v4015 = vmul.f32 %v4013, %v2440
        %4016 = vset.pattern.permute.xlu0 3
        %4017 = vperm.xlu0 %4016, %v3999
        %v4018 = vpop.permute.xlu0 %4017
        %v4020 = vmul.f32 %v4018, %v2440
        %4022 = vrot.lane.b32.xlu0 %v4010, 4
        %v4023 = vpop.permute.xlu0 %4022
        %4026 = vrot.lane.b32.xlu0 %v4015, 8
        %v4027 = vpop.permute.xlu0 %4026
        %4030 = vrot.lane.b32.xlu0 %v4020, 12
        %v4031 = vpop.permute.xlu0 %4030
        %v4033 = vsel %vm926, %v4005, %v4023
        %v4034 = vsel %vm928, %v4033, %v4027
        %v4035 = vsel %vm930, %v4034, %v4031
        %v4036 = vadd.f32 %v3981, %v4035
        %4038 = vrot.lane.b32.xlu0 %v3385, 1
        %v4039 = vpop.permute.xlu0 %4038
        %v4041 = vmul.f32 %v2763, %v4039
        %v4042 = vmul.f32 %v2762, %v4039
        %4044 = vset.pattern.permute.xlu0 1
        %4045 = vperm.xlu0 %4044, %v4041
        %v4046 = vpop.permute.xlu0 %4045
        %v4048 = vsel %vm2793, %v4046, 0.0
        %4050 = vset.pattern.permute.xlu0 1
        %4051 = vperm.xlu0 %4050, %v4042
        %v4052 = vpop.permute.xlu0 %4051
        %v4054 = vsel %vm2803, %v4052, 0.0
        %v4055 = vadd.f32 %v4048, %v4054
        %4057 = vset.pattern.permute.xlu0 0
        %4058 = vperm.xlu0 %4057, %v4055
        %v4059 = vpop.permute.xlu0 %4058
        %v4061 = vmul.f32 %v4059, %v2788
        %4062 = vset.pattern.permute.xlu0 1
        %4063 = vperm.xlu0 %4062, %v4055
        %v4064 = vpop.permute.xlu0 %4063
        %v4066 = vmul.f32 %v4064, %v2788
        %4067 = vset.pattern.permute.xlu0 2
        %4068 = vperm.xlu0 %4067, %v4055
        %v4069 = vpop.permute.xlu0 %4068
        %v4071 = vmul.f32 %v4069, %v2788
        %4072 = vset.pattern.permute.xlu0 3
        %4073 = vperm.xlu0 %4072, %v4055
        %v4074 = vpop.permute.xlu0 %4073
        %v4076 = vmul.f32 %v4074, %v2788
        %4078 = vrot.lane.b32.xlu0 %v4066, 4
        %v4079 = vpop.permute.xlu0 %4078
        %4082 = vrot.lane.b32.xlu0 %v4071, 8
        %v4083 = vpop.permute.xlu0 %4082
        %4086 = vrot.lane.b32.xlu0 %v4076, 12
        %v4087 = vpop.permute.xlu0 %4086
        %v4089 = vsel %vm926, %v4061, %v4079
        %v4090 = vsel %vm928, %v4089, %v4083
        %v4091 = vsel %vm930, %v4090, %v4087
        %v4092 = vmul.f32 %v2859, %v3385
        %v4093 = vmul.f32 %v2858, %v3385
        %4095 = vset.pattern.permute.xlu0 1
        %4096 = vperm.xlu0 %4095, %v4092
        %v4097 = vpop.permute.xlu0 %4096
        %v4099 = vsel %vm2889, %v4097, 0.0
        %4101 = vset.pattern.permute.xlu0 1
        %4102 = vperm.xlu0 %4101, %v4093
        %v4103 = vpop.permute.xlu0 %4102
        %v4105 = vsel %vm2899, %v4103, 0.0
        %v4106 = vadd.f32 %v4099, %v4105
        %4108 = vset.pattern.permute.xlu0 0
        %4109 = vperm.xlu0 %4108, %v4106
        %v4110 = vpop.permute.xlu0 %4109
        %v4112 = vmul.f32 %v4110, %v2884
        %4113 = vset.pattern.permute.xlu0 1
        %4114 = vperm.xlu0 %4113, %v4106
        %v4115 = vpop.permute.xlu0 %4114
        %v4117 = vmul.f32 %v4115, %v2884
        %4118 = vset.pattern.permute.xlu0 2
        %4119 = vperm.xlu0 %4118, %v4106
        %v4120 = vpop.permute.xlu0 %4119
        %v4122 = vmul.f32 %v4120, %v2884
        %4123 = vset.pattern.permute.xlu0 3
        %4124 = vperm.xlu0 %4123, %v4106
        %v4125 = vpop.permute.xlu0 %4124
        %v4127 = vmul.f32 %v4125, %v2884
        %4129 = vrot.lane.b32.xlu0 %v4117, 4
        %v4130 = vpop.permute.xlu0 %4129
        %4133 = vrot.lane.b32.xlu0 %v4122, 8
        %v4134 = vpop.permute.xlu0 %4133
        %4137 = vrot.lane.b32.xlu0 %v4127, 12
        %v4138 = vpop.permute.xlu0 %4137
        %v4140 = vsel %vm926, %v4112, %v4130
        %v4141 = vsel %vm928, %v4140, %v4134
        %v4142 = vsel %vm930, %v4141, %v4138
        %v4143 = vadd.f32 %v4091, %v4142
        %4144 = vrot.lane.b32.xlu0 %v3385, 127
        %v4145 = vpop.permute.xlu0 %4144
        %v4147 = vmul.f32 %v2955, %v4145
        %v4148 = vmul.f32 %v2954, %v4145
        %4150 = vset.pattern.permute.xlu0 1
        %4151 = vperm.xlu0 %4150, %v4147
        %v4152 = vpop.permute.xlu0 %4151
        %v4154 = vsel %vm2985, %v4152, 0.0
        %4156 = vset.pattern.permute.xlu0 1
        %4157 = vperm.xlu0 %4156, %v4148
        %v4158 = vpop.permute.xlu0 %4157
        %v4160 = vsel %vm2995, %v4158, 0.0
        %v4161 = vadd.f32 %v4154, %v4160
        %4163 = vset.pattern.permute.xlu0 0
        %4164 = vperm.xlu0 %4163, %v4161
        %v4165 = vpop.permute.xlu0 %4164
        %v4167 = vmul.f32 %v4165, %v2980
        %4168 = vset.pattern.permute.xlu0 1
        %4169 = vperm.xlu0 %4168, %v4161
        %v4170 = vpop.permute.xlu0 %4169
        %v4172 = vmul.f32 %v4170, %v2980
        %4173 = vset.pattern.permute.xlu0 2
        %4174 = vperm.xlu0 %4173, %v4161
        %v4175 = vpop.permute.xlu0 %4174
        %v4177 = vmul.f32 %v4175, %v2980
        %4178 = vset.pattern.permute.xlu0 3
        %4179 = vperm.xlu0 %4178, %v4161
        %v4180 = vpop.permute.xlu0 %4179
        %v4182 = vmul.f32 %v4180, %v2980
        %4184 = vrot.lane.b32.xlu0 %v4172, 4
        %v4185 = vpop.permute.xlu0 %4184
        %4188 = vrot.lane.b32.xlu0 %v4177, 8
        %v4189 = vpop.permute.xlu0 %4188
        %4192 = vrot.lane.b32.xlu0 %v4182, 12
        %v4193 = vpop.permute.xlu0 %4192
        %v4195 = vsel %vm926, %v4167, %v4185
        %v4196 = vsel %vm928, %v4195, %v4189
        %v4197 = vsel %vm930, %v4196, %v4193
        %v4198 = vadd.f32 %v4143, %v4197
        %4199 = vrot.lane.b32.xlu0 %v3385, 126
        %v4200 = vpop.permute.xlu0 %4199
        %v4202 = vmul.f32 %v3051, %v4200
        %v4203 = vmul.f32 %v3050, %v4200
        %4205 = vset.pattern.permute.xlu0 1
        %4206 = vperm.xlu0 %4205, %v4202
        %v4207 = vpop.permute.xlu0 %4206
        %v4209 = vsel %vm3081, %v4207, 0.0
        %4211 = vset.pattern.permute.xlu0 1
        %4212 = vperm.xlu0 %4211, %v4203
        %v4213 = vpop.permute.xlu0 %4212
        %v4215 = vsel %vm3091, %v4213, 0.0
        %v4216 = vadd.f32 %v4209, %v4215
        %4218 = vset.pattern.permute.xlu0 0
        %4219 = vperm.xlu0 %4218, %v4216
        %v4220 = vpop.permute.xlu0 %4219
        %v4222 = vmul.f32 %v4220, %v3076
        %4223 = vset.pattern.permute.xlu0 1
        %4224 = vperm.xlu0 %4223, %v4216
        %v4225 = vpop.permute.xlu0 %4224
        %v4227 = vmul.f32 %v4225, %v3076
        %4228 = vset.pattern.permute.xlu0 2
        %4229 = vperm.xlu0 %4228, %v4216
        %v4230 = vpop.permute.xlu0 %4229
        %v4232 = vmul.f32 %v4230, %v3076
        %4233 = vset.pattern.permute.xlu0 3
        %4234 = vperm.xlu0 %4233, %v4216
        %v4235 = vpop.permute.xlu0 %4234
        %v4237 = vmul.f32 %v4235, %v3076
        %4239 = vrot.lane.b32.xlu0 %v4227, 4
        %v4240 = vpop.permute.xlu0 %4239
        %4243 = vrot.lane.b32.xlu0 %v4232, 8
        %v4244 = vpop.permute.xlu0 %4243
        %4247 = vrot.lane.b32.xlu0 %v4237, 12
        %v4248 = vpop.permute.xlu0 %4247
        %v4250 = vsel %vm926, %v4222, %v4240
        %v4251 = vsel %vm928, %v4250, %v4244
        %v4252 = vsel %vm930, %v4251, %v4248
        %v4253 = vadd.f32 %v4198, %v4252
        %v4255 = vsel %vm1236, %v3602, 0
        %v4258 = vsel %vm1236, %v3819, 0
        %v4261 = vsel %vm1236, %v4036, 0
        %v4264 = vsel %vm1236, %v4253, 0
        %4266 = vmatprep.subr.mxu0 0.0
        %4267 = vmatpush1.msra.mxu0 %v659
        %4268 = vmatprep.subr.mxu0 0.0
        %4269 = vmatpush1.msra.mxu0 %v660
        %4270 = vmatprep.subr.mxu0 0.0
        %4271 = vmatpush1.msra.mxu0 0.0
        %4272 = vmatprep.subr.mxu0 0.0
        %4273 = vmatpush1.msra.mxu0 0.0
        %4274 = vmatprep.subr.mxu0 0.0
        %4275 = vmatpush1.msra.mxu0 0.0
        %4276 = vmatprep.subr.mxu0 0.0
        %4277 = vmatpush1.msra.mxu0 0.0
        %4278 = vmatprep.subr.mxu0 0.0
        %4279 = vmatpush1.msra.mxu0 0.0
        %4280 = vmatprep.subr.mxu0 0.0
        %4281 = vmatpush1.msra.mxu0 0.0
        %4282 = vmatprep.subr.mxu0 0.0
        %4283 = vmatpush1.msra.mxu0 0.0
        %4284 = vmatprep.subr.mxu0 0.0
        %4285 = vmatpush1.msra.mxu0 0.0
        %4286 = vmatprep.subr.mxu0 0.0
        %4287 = vmatpush1.msra.mxu0 0.0
        %4288 = vmatprep.subr.mxu0 0.0
        %4289 = vmatpush1.msra.mxu0 0.0
        %4290 = vmatprep.subr.mxu0 0.0
        %4291 = vmatpush1.msra.mxu0 0.0
        %4292 = vmatprep.subr.mxu0 0.0
        %4293 = vmatpush1.msra.mxu0 0.0
        %4294 = vmatprep.subr.mxu0 0.0
        %4295 = vmatpush1.msra.mxu0 0.0
        %4296 = vmatprep.subr.mxu0 0.0
        %4297 = vmatpush1.msra.mxu0 0.0
        %4298 = vmatprep.subr.mxu0 0.0
        %4299 = vmatpush1.msra.mxu0 0.0
        %4300 = vmatprep.subr.mxu0 0.0
        %4301 = vmatpush1.msra.mxu0 0.0
        %4302 = vmatprep.subr.mxu0 0.0
        %4303 = vmatpush1.msra.mxu0 0.0
        %4304 = vmatprep.subr.mxu0 0.0
        %4305 = vmatpush1.msra.mxu0 0.0
        %4306 = vmatprep.subr.mxu0 0.0
        %4307 = vmatpush1.msra.mxu0 0.0
        %4308 = vmatprep.subr.mxu0 0.0
        %4309 = vmatpush1.msra.mxu0 0.0
        %4310 = vmatprep.subr.mxu0 0.0
        %4311 = vmatpush1.msra.mxu0 0.0
        %4312 = vmatprep.subr.mxu0 0.0
        %4313 = vmatpush1.msra.mxu0 0.0
        %4314 = vmatprep.subr.mxu0 0.0
        %4315 = vmatpush1.msra.mxu0 0.0
        %4316 = vmatprep.subr.mxu0 0.0
        %4317 = vmatpush1.msra.mxu0 0.0
        %4318 = vmatprep.subr.mxu0 0.0
        %4319 = vmatpush1.msra.mxu0 0.0
        %4320 = vmatprep.subr.mxu0 0.0
        %4321 = vmatpush1.msra.mxu0 0.0
        %4322 = vmatprep.subr.mxu0 0.0
        %4323 = vmatpush1.msra.mxu0 0.0
        %4324 = vmatprep.subr.mxu0 0.0
        %4325 = vmatpush1.msra.mxu0 0.0
        %4326 = vmatprep.subr.mxu0 0.0
        %4327 = vmatpush1.msra.mxu0 0.0
        %4328 = vmatprep.subr.mxu0 0.0
        %4329 = vmatpush1.msra.mxu0 0.0
        %4330 = vmatprep.mubr.f32.mxu0 0.0
        %4331 = vmatmul.mubr.f32.gmra.mrb[0].mxu0 %v4255
        %v4332 = vpop.f32.mrb[0].mxu0
        %v4333 = vadd.f32 0.0, %v4332
        %v4334 = vpop.f32.mrb[0].mxu0
        %4335 = vmatprep.mubr.f32.mxu0 0.0
        %4336 = vmatmul.mubr.f32.gmra.mrb[0].mxu0 %v4258
        %v4337 = vpop.f32.mrb[0].mxu0
        %v4338 = vadd.f32 0.0, %v4337
        %v4339 = vpop.f32.mrb[0].mxu0
        %4340 = vmatprep.mubr.f32.mxu0 0.0
        %4341 = vmatmul.mubr.f32.gmra.mrb[0].mxu0 %v4261
        %v4342 = vpop.f32.mrb[0].mxu0
        %v4343 = vadd.f32 0.0, %v4342
        %v4344 = vpop.f32.mrb[0].mxu0
        %4345 = vmatprep.mubr.f32.mxu0 0.0
        %4346 = vmatmul.mubr.f32.gmra.mrb[0].mxu0 %v4264
        %v4347 = vpop.f32.mrb[0].mxu0
        %v4348 = vadd.f32 0.0, %v4347
        %v4349 = vpop.f32.mrb[0].mxu0
        %4350 = vdwg.mxu0
        %v4351 = vsel %vm928, %v4333, %v4338
        %v4352 = vsel %vm1236, %v4351, %v4343
        %vm4353 = vcmask 195584
        %v4354 = vsel %vm4353, %v4352, %v4348
        %v4355 = vld [vmem:[#allocation11] sm:$0xff]
        %v4356 = vld [vmem:[#allocation11 + $0x8] sm:$0xff]
        %v4357 = vld [vmem:[#allocation11 + $0x10] sm:$0xff]
        %v4358 = vld [vmem:[#allocation11 + $0x18] sm:$0xff]
        %v4359 = vld [vmem:[#allocation13] sm:$0x1]
        %v4361 = vlaneseq
        %v4362 = vshrl.u32 %v4361, 7
        %v4363 = vsub.s32 0, %v4362
        %v4364 = vrot.slane %v4359, %v4363
        %v4367 = vsel %vm675, %v4354, 0
        %4369 = vmatprep.subr.mxu0 0.0
        %4370 = vmatpush1.msra.mxu0 %v4355
        %4371 = vmatprep.subr.mxu0 0.0
        %4372 = vmatpush1.msra.mxu0 %v4356
        %4373 = vmatprep.subr.mxu0 0.0
        %4374 = vmatpush1.msra.mxu0 %v4357
        %4375 = vmatprep.subr.mxu0 0.0
        %4376 = vmatpush1.msra.mxu0 %v4358
        %4377 = vmatprep.subr.mxu0 0.0
        %4378 = vmatpush1.msra.mxu0 0.0
        %4379 = vmatprep.subr.mxu0 0.0
        %4380 = vmatpush1.msra.mxu0 0.0
        %4381 = vmatprep.subr.mxu0 0.0
        %4382 = vmatpush1.msra.mxu0 0.0
        %4383 = vmatprep.subr.mxu0 0.0
        %4384 = vmatpush1.msra.mxu0 0.0
        %4385 = vmatprep.subr.mxu0 0.0
        %4386 = vmatpush1.msra.mxu0 0.0
        %4387 = vmatprep.subr.mxu0 0.0
        %4388 = vmatpush1.msra.mxu0 0.0
        %4389 = vmatprep.subr.mxu0 0.0
        %4390 = vmatpush1.msra.mxu0 0.0
        %4391 = vmatprep.subr.mxu0 0.0
        %4392 = vmatpush1.msra.mxu0 0.0
        %4393 = vmatprep.subr.mxu0 0.0
        %4394 = vmatpush1.msra.mxu0 0.0
        %4395 = vmatprep.subr.mxu0 0.0
        %4396 = vmatpush1.msra.mxu0 0.0
        %4397 = vmatprep.subr.mxu0 0.0
        %4398 = vmatpush1.msra.mxu0 0.0
        %4399 = vmatprep.subr.mxu0 0.0
        %4400 = vmatpush1.msra.mxu0 0.0
        %4401 = vmatprep.subr.mxu0 0.0
        %4402 = vmatpush1.msra.mxu0 0.0
        %4403 = vmatprep.subr.mxu0 0.0
        %4404 = vmatpush1.msra.mxu0 0.0
        %4405 = vmatprep.subr.mxu0 0.0
        %4406 = vmatpush1.msra.mxu0 0.0
        %4407 = vmatprep.subr.mxu0 0.0
        %4408 = vmatpush1.msra.mxu0 0.0
        %4409 = vmatprep.subr.mxu0 0.0
        %4410 = vmatpush1.msra.mxu0 0.0
        %4411 = vmatprep.subr.mxu0 0.0
        %4412 = vmatpush1.msra.mxu0 0.0
        %4413 = vmatprep.subr.mxu0 0.0
        %4414 = vmatpush1.msra.mxu0 0.0
        %4415 = vmatprep.subr.mxu0 0.0
        %4416 = vmatpush1.msra.mxu0 0.0
        %4417 = vmatprep.subr.mxu0 0.0
        %4418 = vmatpush1.msra.mxu0 0.0
        %4419 = vmatprep.subr.mxu0 0.0
        %4420 = vmatpush1.msra.mxu0 0.0
        %4421 = vmatprep.subr.mxu0 0.0
        %4422 = vmatpush1.msra.mxu0 0.0
        %4423 = vmatprep.subr.mxu0 0.0
        %4424 = vmatpush1.msra.mxu0 0.0
        %4425 = vmatprep.subr.mxu0 0.0
        %4426 = vmatpush1.msra.mxu0 0.0
        %4427 = vmatprep.subr.mxu0 0.0
        %4428 = vmatpush1.msra.mxu0 0.0
        %4429 = vmatprep.subr.mxu0 0.0
        %4430 = vmatpush1.msra.mxu0 0.0
        %4431 = vmatprep.subr.mxu0 0.0
        %4432 = vmatpush1.msra.mxu0 0.0
        %4433 = vmatprep.mubr.f32.mxu0 0.0
        %4434 = vmatmul.mubr.f32.gmra.mrb[0].mxu0 %v4367
        %v4435 = vpop.f32.mrb[0].mxu0
        %v4436 = vadd.f32 %v4364, %v4435
        %v4437 = vpop.f32.mrb[0].mxu0
        %4438 = vdwg.mxu0
        %v4439 = vld [vmem:[%s12] sm:$0xff]
        %v4440 = vld [vmem:[%s12 + $0x8] sm:$0xff]
        %v4441 = vld [vmem:[%s12 + $0x10] sm:$0xff]
        %v4442 = vld [vmem:[%s12 + $0x18] sm:$0xff]
        %v4443 = vld [vmem:[%s13] sm:$0x1]
        %v4445 = vlaneseq
        %v4446 = vshrl.u32 %v4445, 7
        %v4447 = vsub.s32 0, %v4446
        %v4448 = vrot.slane %v4443, %v4447
        %v4451 = vsel %vm675, %v4436, 0
        %4453 = vmatprep.subr.mxu0 0.0
        %4454 = vmatpush1.msra.mxu0 %v4439
        %4455 = vmatprep.subr.mxu0 0.0
        %4456 = vmatpush1.msra.mxu0 %v4440
        %4457 = vmatprep.subr.mxu0 0.0
        %4458 = vmatpush1.msra.mxu0 %v4441
        %4459 = vmatprep.subr.mxu0 0.0
        %4460 = vmatpush1.msra.mxu0 %v4442
        %4461 = vmatprep.subr.mxu0 0.0
        %4462 = vmatpush1.msra.mxu0 0.0
        %4463 = vmatprep.subr.mxu0 0.0
        %4464 = vmatpush1.msra.mxu0 0.0
        %4465 = vmatprep.subr.mxu0 0.0
        %4466 = vmatpush1.msra.mxu0 0.0
        %4467 = vmatprep.subr.mxu0 0.0
        %4468 = vmatpush1.msra.mxu0 0.0
        %4469 = vmatprep.subr.mxu0 0.0
        %4470 = vmatpush1.msra.mxu0 0.0
        %4471 = vmatprep.subr.mxu0 0.0
        %4472 = vmatpush1.msra.mxu0 0.0
        %4473 = vmatprep.subr.mxu0 0.0
        %4474 = vmatpush1.msra.mxu0 0.0
        %4475 = vmatprep.subr.mxu0 0.0
        %4476 = vmatpush1.msra.mxu0 0.0
        %4477 = vmatprep.subr.mxu0 0.0
        %4478 = vmatpush1.msra.mxu0 0.0
        %4479 = vmatprep.subr.mxu0 0.0
        %4480 = vmatpush1.msra.mxu0 0.0
        %4481 = vmatprep.subr.mxu0 0.0
        %4482 = vmatpush1.msra.mxu0 0.0
        %4483 = vmatprep.subr.mxu0 0.0
        %4484 = vmatpush1.msra.mxu0 0.0
        %4485 = vmatprep.subr.mxu0 0.0
        %4486 = vmatpush1.msra.mxu0 0.0
        %4487 = vmatprep.subr.mxu0 0.0
        %4488 = vmatpush1.msra.mxu0 0.0
        %4489 = vmatprep.subr.mxu0 0.0
        %4490 = vmatpush1.msra.mxu0 0.0
        %4491 = vmatprep.subr.mxu0 0.0
        %4492 = vmatpush1.msra.mxu0 0.0
        %4493 = vmatprep.subr.mxu0 0.0
        %4494 = vmatpush1.msra.mxu0 0.0
        %4495 = vmatprep.subr.mxu0 0.0
        %4496 = vmatpush1.msra.mxu0 0.0
        %4497 = vmatprep.subr.mxu0 0.0
        %4498 = vmatpush1.msra.mxu0 0.0
        %4499 = vmatprep.subr.mxu0 0.0
        %4500 = vmatpush1.msra.mxu0 0.0
        %4501 = vmatprep.subr.mxu0 0.0
        %4502 = vmatpush1.msra.mxu0 0.0
        %4503 = vmatprep.subr.mxu0 0.0
        %4504 = vmatpush1.msra.mxu0 0.0
        %4505 = vmatprep.subr.mxu0 0.0
        %4506 = vmatpush1.msra.mxu0 0.0
        %4507 = vmatprep.subr.mxu0 0.0
        %4508 = vmatpush1.msra.mxu0 0.0
        %4509 = vmatprep.subr.mxu0 0.0
        %4510 = vmatpush1.msra.mxu0 0.0
        %4511 = vmatprep.subr.mxu0 0.0
        %4512 = vmatpush1.msra.mxu0 0.0
        %4513 = vmatprep.subr.mxu0 0.0
        %4514 = vmatpush1.msra.mxu0 0.0
        %4515 = vmatprep.subr.mxu0 0.0
        %4516 = vmatpush1.msra.mxu0 0.0
        %4517 = vmatprep.mubr.f32.mxu0 0.0
        %4518 = vmatmul.mubr.f32.gmra.mrb[0].mxu0 %v4451
        %v4519 = vpop.f32.mrb[0].mxu0
        %v4520 = vadd.f32 %v4448, %v4519
        %v4521 = vpop.f32.mrb[0].mxu0
        %4522 = vdwg.mxu0
        %v4523 = vadd.f32 %v4520, %v656
        %4524 = vst.msk [vmem:[%s651] sm:$0xff] %vm675, %v4523
        %s4525 = sand.u32 %s359, 1
        %s4526 = scalar_lea.sflag [#allocation4], %s4525
        %s4527 = sand.u32 %s359, 1
        %s4528 = smul.addr %s4527, 8
        %s4529 = scalar_lea.vmem [#allocation17], %s4528
        // Predicated region
        $region113: #{tpu_custom_call.1} parent=75 // pred_check
          %p4530 = pneg %p369
        $region114: #{tpu_custom_call.1} parent=75 // pred_check_branch
          %4532 = sbr.rel (%p4530) target = $region116
        $region115: #{tpu_custom_call.1} parent=75 // pred_region
          %s4534 = ssub.s32 128, 128
          %4535 = vsyncadd %s4526, %s4534
          %s4536 = smul.addr %s37, 128
          %s4537 = scalar_lea.hbm %s14, %s4536
          %s4539 = sshll.u32 %s4529, 4
          %s4540 = int_to_ptr.vmem [resolvable:$true] %s4539
          %4542 = dma.vmem_to_hbm [thread:$0]  %s4540, 128, %s4537, %s4526
        $region116: #{tpu_custom_call.1} parent=75 // pred_fallthru
          _
      $region76: #{tpu_custom_call.1} parent=5 // pred_fallthru
        _
      %p4543 = scmp.le.s32.totalorder 2, %s32
      // Predicated region
      $region117: #{tpu_custom_call.1} parent=5 // pred_check
        %p4544 = pneg %p4543
      $region118: #{tpu_custom_call.1} parent=5 // pred_check_branch
        %4546 = sbr.rel (%p4544) target = $region120
      $region119: #{tpu_custom_call.1} parent=5 // pred_region
        %s4547 = ssub.s32 %s32, 2
        // Predicated region
        $region121: #{tpu_custom_call.1} parent=119 // pred_check
          %p4548 = pneg %p375
        $region122: #{tpu_custom_call.1} parent=119 // pred_check_branch
          %4550 = sbr.rel (%p4548) target = $region124
        $region123: #{tpu_custom_call.1} parent=119 // pred_region
          %s4551 = sand.u32 %s360, 1
          %s4552 = scalar_lea.sflag [#allocation4], %s4551
          %s4553 = sand.u32 %s360, 1
          %s4554 = smul.addr %s4553, 8
          %s4555 = scalar_lea.vmem [#allocation17], %s4554
          %4556 = dma.done %s4552, 128
        $region124: #{tpu_custom_call.1} parent=119 // pred_fallthru
          _
      $region120: #{tpu_custom_call.1} parent=5 // pred_fallthru
        _
    $region6: #{tpu_custom_call.1} parent=1 // loop_footer
      %s36 = sadd.s32 1, %s32
    $region7: #{tpu_custom_call.1} parent=1 // loop_footer_branch
      %31 = sbr.rel target = $region3
    $region8: #{tpu_custom_call.1} parent=1 // loop_exit
      _
    %4557 = vsyncpa [#allocation3], 1
    %s4558 = scalar_lea.sflag [#allocation3], 1
    %4559 = vsyncpa %s4558, 1
    %4560 = vsyncpa [#allocation6], 1
    %s4561 = scalar_lea.sflag [#allocation6], 1
    %4562 = vsyncpa %s4561, 1
    %4563 = vsyncpa [#allocation9], 1
    %4564 = vsyncpa [#allocation12], 1
    %4565 = vsyncpa [#allocation15], 1
    %4566 = vsyncpa [#allocation4], 1
    %s4567 = scalar_lea.sflag [#allocation4], 1
    %4568 = vsyncpa %s4567, 1

</llo_original>
